<compile_context>
chip_gen: v6e
topology: v6e:2x2x1
jax: 0.10.0
libtpu: 0.0.40
codegen_flags: <defaults>
</compile_context>

<pallas_src>
import functools

import jax
import jax.numpy as jnp
import numpy as np
from jax import lax
from jax.experimental import pallas as pl
from jax.experimental.pallas import tpu as pltpu


# ---------------------------------------------------------------------------
# Static layout of the packed parameter slabs
# ---------------------------------------------------------------------------
def _conv_plan(C):
    return (("coupling1", 1, C), ("block1a", C, C), ("block1b", C, C),
            ("coupling2", C, 2 * C), ("block2a", 2 * C, 2 * C), ("block2b", 2 * C, 2 * C),
            ("coupling3", 2 * C, 4 * C), ("block3a", 4 * C, 4 * C), ("block3b", 4 * C, 4 * C),
            ("coupling4", 4 * C, 4 * C))


def _slab_layout(C):
    """Row layout (all static) of the packed conv-weight / conv-bias slabs."""
    layout, row = {}, 0
    for name, cin, cout in _conv_plan(C):
        k = cin if name == "coupling4" else 9 * cin   # coupling4 keeps only the centre tap
        layout[name] = (row, cout, k)
        row += cout
    kmax = max(k for (_, _, k) in layout.values())
    return layout, row, kmax


def _head_layout(C, E):
    r8 = lambda n: -(-n // 8) * 8
    o1 = r8(4 * C)              # rows [0, 4C): w1 * bn1_scale
    o2 = o1 + 8                 # row  o1:      folded bn1 bias
    o3 = o2 + r8(E)             # rows [o2, o2+E): w2
    return o1, o2, o3, o3 + 8   # row  o3:      b2


# ---------------------------------------------------------------------------
# In-kernel helpers (operate on VMEM-resident values only)
# ---------------------------------------------------------------------------
def _shift(a, s):
    """out[:, q] = a[:, q + s].  Wrap-around roll or zero-filled fallback; callers mask
    every lane whose source crosses an image / row / buffer edge, so the contents of the
    invalid lanes never matter."""
    n = a.shape[1]
    if s == 0:
        return a
    if n % 128 == 0:
        return pltpu.roll(a, (-s) % n, axis=1)       # XLU rotate: no extra VMEM copy traffic
    if abs(s) >= n:                                   # tiny stage-3 buffers only
        return jnp.zeros_like(a)
    z = jnp.zeros((a.shape[0], abs(s)), a.dtype)
    if s > 0:
        return jnp.concatenate([a[:, s:], z], axis=1)
    return jnp.concatenate([z, a[:, :n + s]], axis=1)


def _tap_masks(h, w, b, dtype):
    """Per-tap edge masks for a 3x3 / pad-1 conv on position-major packed lanes
    (lane = (y*w + x)*b + img).  Built once per stage; h, w, b are powers of two."""
    n = h * w * b
    lane = lax.broadcasted_iota(jnp.int32, (1, n), 1)
    pos = lane >> int(np.log2(b))
    xc = pos & (w - 1)
    yc = pos >> int(np.log2(w))
    horiz = {-1: xc != 0, 0: None, 1: xc != (w - 1)}
    vert = {-1: yc != 0, 0: None, 1: yc != (h - 1)}
    masks = {}
    for dy in (-1, 0, 1):
        for dx in (-1, 0, 1):
            mv, mh = vert[dy], horiz[dx]
            if mv is None and mh is None:
                masks[(dy, dx)] = None
            elif mv is None:
                masks[(dy, dx)] = mh.astype(dtype)
            elif mh is None:
                masks[(dy, dx)] = mv.astype(dtype)
            else:
                masks[(dy, dx)] = (mv & mh).astype(dtype)
    return masks


def _conv3x3(a, w_cols, bias_col, w, b, masks):
    """3x3 conv (stride 1, pad 1) + folded-BN bias + ReLU on packed (Cin, H*W*B) lanes."""
    taps = []
    for dy in (-1, 0, 1):
        for dx in (-1, 0, 1):
            t = _shift(a, (dy * w + dx) * b)
            m = masks[(dy, dx)]
            taps.append(t if m is None else t * m)
    patches = jnp.concatenate(taps, axis=0)            # (9*Cin, N) im2col for the MXU
    out = jnp.dot(w_cols, patches, preferred_element_type=jnp.float32) + bias_col
    return jnp.maximum(out, 0.0)


def _maxpool_2_s4(a, h, w, b):
    """MaxPool2d(kernel_size=2, stride=4) on packed (C, H*W*B) lanes -> (C, OH*OW*B).

    Window origins (4*oy, 4*ox) never touch the last row/column, so the unmasked roll
    wrap-around inside the 4-way max can never be selected."""
    m = jnp.maximum(jnp.maximum(a, _shift(a, b)),
                    jnp.maximum(_shift(a, w * b), _shift(a, (w + 1) * b)))
    oh, ow = (h - 2) // 4 + 1, (w - 2) // 4 + 1
    cols = [m[:, (4 * oy * w + 4 * ox) * b:(4 * oy * w + 4 * ox + 1) * b]
            for oy in range(oh) for ox in range(ow)]
    return jnp.concatenate(cols, axis=1)


# ---------------------------------------------------------------------------
# Fused whole-network kernel (one grid step == B_TILE images)
# ---------------------------------------------------------------------------
def _vggres_kernel(x_ref, w_ref, b_ref, head_ref, o_ref, *, C, B, H, W, E, n_pad):
    layout, nrows, _ = _slab_layout(C)

    def wmat(name):
        r0, cout, k = layout[name]
        return w_ref[r0:r0 + cout, 0:k]

    def bcol(name):
        r0, cout, _ = layout[name]
        return b_ref[r0:r0 + cout, :]

    # input BatchNorm2d(1), eval affine
    s0 = b_ref[nrows:nrows + 1, :]
    b0 = b_ref[nrows + 1:nrows + 2, :]
    a = x_ref[0] * s0 + b0                                      # (1, H*W*B)

    # per-stage spatial sizes and hoisted edge masks (shared by every conv in a stage)
    H2, W2 = (H - 2) // 4 + 1, (W - 2) // 4 + 1
    H3, W3 = (H2 - 2) // 4 + 1, (W2 - 2) // 4 + 1
    m1 = _tap_masks(H, W, B, a.dtype)
    m2 = _tap_masks(H2, W2, B, a.dtype)
    m3 = _tap_masks(H3, W3, B, a.dtype)

    # ---- stage 1: 32x32 ----
    inb1 = _conv3x3(a, wmat("coupling1"), bcol("coupling1"), W, B, m1)
    t = _conv3x3(inb1, wmat("block1a"), bcol("block1a"), W, B, m1)
    z = _conv3x3(t, wmat("block1b"), bcol("block1b"), W, B, m1) + inb1
    z = _maxpool_2_s4(z, H, W, B)                               # (C, 8*8*B)

    # ---- stage 2: 8x8, block2 weights shared across three applications ----
    z = _conv3x3(z, wmat("coupling2"), bcol("coupling2"), W2, B, m2)
    for _ in range(3):
        t = _conv3x3(z, wmat("block2a"), bcol("block2a"), W2, B, m2)
        z = _conv3x3(t, wmat("block2b"), bcol("block2b"), W2, B, m2) + z
    z = _maxpool_2_s4(z, H2, W2, B)                             # (2C, 2*2*B)

    # ---- stage 3: 2x2, block3 weights shared across two applications ----
    # TODO(synk): could be folded into a single (4*Cout, 4*Cin) matmul per conv; kept on the
    # generic 9-tap path (tiny data) to avoid in-kernel transposes.
    z = _conv3x3(z, wmat("coupling3"), bcol("coupling3"), W3, B, m3)
    for _ in range(2):
        t = _conv3x3(z, wmat("block3a"), bcol("block3a"), W3, B, m3)
        z = _conv3x3(t, wmat("block3b"), bcol("block3b"), W3, B, m3) + z

    # MaxPool(2, stride 4) on a 2x2 map == max over the whole map -> (4C, B)
    feat = jnp.maximum(jnp.maximum(z[:, 0:B], z[:, B:2 * B]),
                       jnp.maximum(z[:, 2 * B:3 * B], z[:, 3 * B:4 * B]))

    # coupling4: 3x3 / stride-2 / pad-1 conv on a 1x1 map -> only the centre tap survives
    f4 = jnp.maximum(
        jnp.dot(wmat("coupling4"), feat, preferred_element_type=jnp.float32)
        + bcol("coupling4"), 0.0)                               # (4C, B)

    # head: Linear -> folded BN1d -> ReLU -> Dropout(eval = identity) -> Linear
    o1, o2, o3, _ = _head_layout(C, E)
    w1f = head_ref[0:4 * C, 0:E]
    b1r = head_ref[o1:o1 + 1, 0:E]
    w2m = head_ref[o2:o2 + E, 0:n_pad]
    b2r = head_ref[o3:o3 + 1, 0:n_pad]
    # contract the channel dim of f4 (dim 0) -> batch lands on sublanes, features on lanes
    hvec = lax.dot_general(f4, w1f, (((0,), (0,)), ((), ())),
                           preferred_element_type=jnp.float32)              # (B, E)
    hvec = jnp.maximum(hvec + b1r, 0.0)
    o_ref[0] = jnp.dot(hvec, w2m, preferred_element_type=jnp.float32) + b2r  # (B, n_pad)


# ---------------------------------------------------------------------------
# Parameter packing + wrapper
# ---------------------------------------------------------------------------
def _pack_slabs(p, C, E, n_pad):
    layout, _, kmax = _slab_layout(C)
    wparts, bparts = [], []
    for name, cin, cout in _conv_plan(C):
        prm = p[name]
        if name == "coupling4":
            wm = (prm["w"][1, 1, :, :] * prm["scale"]).T                 # centre tap (cout, cin)
        else:
            wm = (prm["w"].reshape(9 * cin, cout) * prm["scale"]).T      # (cout, 9*cin), tap-major
        wparts.append(jnp.pad(wm, ((0, 0), (0, kmax - wm.shape[1]))))
        bparts.append(prm["bias"].reshape(cout, 1))
    wslab = jnp.concatenate(wparts, axis=0)                              # (25C, 9*4C)
    bslab = jnp.concatenate(
        bparts + [jnp.reshape(p["bn0_scale"], (1, 1)), jnp.reshape(p["bn0_bias"], (1, 1))],
        axis=0)                                                          # (25C + 2, 1)

    o1, o2, o3, hrows = _head_layout(C, E)
    width = max(E, n_pad)
    n_class = p["w2"].shape[1]

    def block(m, rows):
        return jnp.pad(m, ((0, rows - m.shape[0]), (0, width - m.shape[1])))

    head = jnp.concatenate([
        block(p["w1"] * p["s1"], o1),
        block(p["bias1"].reshape(1, E), o2 - o1),
        block(p["w2"], o3 - o2),
        block(p["b2"].reshape(1, n_class), hrows - o3),
    ], axis=0)                                                           # (hrows, width)
    return wslab, bslab, head


@functools.partial(jax.jit, static_argnames=("b_tile",))
def forward(params, x, *, b_tile=2):
    """Fused VGGRes forward.  x: (B, 32, 32) float32 -> (B, n_class)."""
    B_total, H, W = x.shape
    C = params["coupling1"]["w"].shape[-1]
    E = params["w1"].shape[1]
    n_class = params["w2"].shape[1]
    n_pad = max(128, -(-n_class // 128) * 128)        # lane-dense output store

    assert (H & (H - 1)) == 0 and (W & (W - 1)) == 0, "spatial dims must be powers of two"
    assert b_tile >= 1 and (b_tile & (b_tile - 1)) == 0, "b_tile must be a power of two"
    assert B_total % b_tile == 0, "batch must be divisible by b_tile"
    H2, W2 = (H - 2) // 4 + 1, (W - 2) // 4 + 1
    H3, W3 = (H2 - 2) // 4 + 1, (W2 - 2) // 4 + 1
    assert (H3, W3) == (2, 2), "spatial plan requires a 32x32-style input"
    G = B_total // b_tile                             # keep >= 2 on v7x (two TensorCores)

    wslab, bslab, head = _pack_slabs(params, C, E, n_pad)

    # pack B_TILE images per grid step, position-major / image-minor along the lane axis
    xp = x.reshape(G, b_tile, H * W).transpose(0, 2, 1).reshape(G, 1, H * W * b_tile)

    # stage-1 im2col dominates the per-step VMEM footprint; raise the scoped limit only
    # when a large B_TILE actually needs it (cap comfortably below v7x's 64 MiB VMEM).
    est = 4 * H * W * b_tile * (2 * 9 * C + 6 * C) + 4 * (wslab.size + bslab.size + head.size)
    vmem_limit = None if est < 24 * 2**20 else int(min(56 * 2**20, 2 * est))

    out = pl.pallas_call(
        functools.partial(_vggres_kernel, C=C, B=b_tile, H=H, W=W, E=E, n_pad=n_pad),
        out_shape=jax.ShapeDtypeStruct((G, b_tile, n_pad), jnp.float32),
        grid=(G,),
        in_specs=[
            pl.BlockSpec((1, 1, H * W * b_tile), lambda g: (g, 0, 0)),
            pl.BlockSpec(wslab.shape, lambda g: (0, 0)),
            pl.BlockSpec(bslab.shape, lambda g: (0, 0)),
            pl.BlockSpec(head.shape, lambda g: (0, 0)),
        ],
        out_specs=pl.BlockSpec((1, b_tile, n_pad), lambda g: (g, 0, 0)),
        compiler_params=pltpu.CompilerParams(
            dimension_semantics=("parallel",),
            vmem_limit_bytes=vmem_limit),
    )(xp, wslab, bslab, head)
    return out.reshape(B_total, n_pad)[:, :n_class]


# ---------------------------------------------------------------------------
# Deterministic parameters (eval-mode BN folded to scale/bias) and pure-JAX reference
# ---------------------------------------------------------------------------
def make_params(key, C=8, n_class=16, E=128):
    keys = iter(jax.random.split(key, 128))
    eps = 1e-5

    def bn(cout):
        gamma = 1.0 + 0.1 * jax.random.normal(next(keys), (cout,), jnp.float32)
        beta = 0.05 * jax.random.normal(next(keys), (cout,), jnp.float32)
        mean = 0.05 * jax.random.normal(next(keys), (cout,), jnp.float32)
        var = 0.5 + jax.random.uniform(next(keys), (cout,), jnp.float32)
        s = gamma * lax.rsqrt(var + eps)
        return s, beta - mean * s

    def conv(cin, cout):
        w = jax.random.normal(next(keys), (3, 3, cin, cout), jnp.float32) / np.sqrt(9.0 * cin)
        cb = 0.05 * jax.random.normal(next(keys), (cout,), jnp.float32)
        s, b = bn(cout)
        return dict(w=w, scale=s, bias=cb * s + b)

    p = {}
    s0, b0 = bn(1)                                    # BatchNorm2d(1) on the raw input
    p["bn0_scale"], p["bn0_bias"] = s0[0], b0[0]
    for name, cin, cout in _conv_plan(C):
        p[name] = conv(cin, cout)

    w1 = jax.random.normal(next(keys), (4 * C, E), jnp.float32) / np.sqrt(4 * C)
    b1 = 0.05 * jax.random.normal(next(keys), (E,), jnp.float32)
    s1, bb1 = bn(E)
    p["w1"], p["s1"], p["bias1"] = w1, s1, b1 * s1 + bb1
    p["w2"] = jax.random.normal(next(keys), (E, n_class), jnp.float32) / np.sqrt(E)
    p["b2"] = 0.05 * jax.random.normal(next(keys), (n_class,), jnp.float32)
    return p


def forward_ref(p, x):
    """Pure-JAX reference (same folded eval parameters)."""
    z = x[..., None] * p["bn0_scale"] + p["bn0_bias"]            # NHWC, one channel

    def cbr(z, prm, stride=1, residual=None):
        y = lax.conv_general_dilated(
            z, prm["w"], (stride, stride), ((1, 1), (1, 1)),
            dimension_numbers=("NHWC", "HWIO", "NHWC"),
            precision=lax.Precision.HIGHEST)
        y = jnp.maximum(y * prm["scale"] + prm["bias"], 0.0)
        return y + residual if residual is not None else y

    def pool(z):
        return lax.reduce_window(z, -jnp.inf, lax.max, (1, 2, 2, 1), (1, 4, 4, 1), "VALID")

    inb1 = cbr(z, p["coupling1"])
    z = pool(cbr(cbr(inb1, p["block1a"]), p["block1b"], residual=inb1))
    z = cbr(z, p["coupling2"])
    for _ in range(3):
        z = cbr(cbr(z, p["block2a"]), p["block2b"], residual=z)
    z = pool(z)
    z = cbr(z, p["coupling3"])
    for _ in range(2):
        z = cbr(cbr(z, p["block3a"]), p["block3b"], residual=z)
    z = pool(z)
    z = cbr(z, p["coupling4"], stride=2)
    feat = z.reshape(z.shape[0], -1)
    h = jnp.maximum(feat @ p["w1"] * p["s1"] + p["bias1"], 0.0)
    return h @ p["w2"] + p["b2"]


if __name__ == "__main__":
    key = jax.random.PRNGKey(0)
    kp, kx = jax.random.split(key)
    C, n_class = 8, 16
    params = make_params(kp, C=C, n_class=n_class)
    x = jax.random.normal(kx, (4, 32, 32), jnp.float32)   # 32x32 -> 1x1 before the flatten

    out = jax.block_until_ready(forward(params, x, b_tile=2))   # grid = 2 steps (v7x-friendly)
    assert out.shape == (4, n_class), out.shape

    # Kernel matmuls run at default MXU precision while the reference uses HIGHEST; the
    # loose tolerance documents the expected drift.
    ref = jax.block_until_ready(forward_ref(params, x))
    np.testing.assert_allclose(np.asarray(out), np.asarray(ref), rtol=5e-2, atol=5e-2)

    print("KERNEL_OK")
</pallas_src>

<mosaic_0001>
module attributes {stable_mosaic.version = 11 : i64} {
  func.func @_vggres_kernel(%arg0: i32, %arg1: memref<1x1x2048xf32, #tpu.memory_space<vmem>>, %arg2: memref<200x288xf32, #tpu.memory_space<vmem>>, %arg3: memref<202x1xf32, #tpu.memory_space<vmem>>, %arg4: memref<176x128xf32, #tpu.memory_space<vmem>>, %arg5: memref<1x2x128xf32, #tpu.memory_space<vmem>>) attributes {dimension_semantics = [#tpu.dimension_semantics<parallel>], iteration_bounds = array<i64: 2>, scalar_prefetch = 0 : i64, scratch_operands = 0 : i64, tpu.core_type = #tpu.core_type<tc>, window_params = [{transform_indices = @transform_0, window_bounds = array<i64: 1, 1, 2048>}, {pipeline_mode = #tpu.pipeline_mode<synchronous>, transform_indices = @transform_1, window_bounds = array<i64: 200, 288>}, {pipeline_mode = #tpu.pipeline_mode<synchronous>, transform_indices = @transform_2, window_bounds = array<i64: 202, 1>}, {pipeline_mode = #tpu.pipeline_mode<synchronous>, transform_indices = @transform_3, window_bounds = array<i64: 176, 128>}, {transform_indices = @transform_4, window_bounds = array<i64: 1, 2, 128>}]} {
    %c200 = arith.constant 200 : index
    %c0 = arith.constant 0 : index
    %0 = vector.load %arg3[%c200, %c0] : memref<202x1xf32, #tpu.memory_space<vmem>>, vector<1x1xf32>
    %c201 = arith.constant 201 : index
    %c0_0 = arith.constant 0 : index
    %1 = vector.load %arg3[%c201, %c0_0] : memref<202x1xf32, #tpu.memory_space<vmem>>, vector<1x1xf32>
    %c0_1 = arith.constant 0 : index
    %c0_2 = arith.constant 0 : index
    %c0_3 = arith.constant 0 : index
    %2 = vector.load %arg1[%c0_1, %c0_2, %c0_3] : memref<1x1x2048xf32, #tpu.memory_space<vmem>>, vector<1x1x2048xf32>
    %3 = vector.shape_cast %2 : vector<1x1x2048xf32> to vector<1x2048xf32>
    %4 = vector.broadcast %0 : vector<1x1xf32> to vector<1x2048xf32>
    %5 = arith.mulf %3, %4 : vector<1x2048xf32>
    %6 = vector.broadcast %1 : vector<1x1xf32> to vector<1x2048xf32>
    %7 = arith.addf %5, %6 : vector<1x2048xf32>
    %8 = tpu.iota {dimensions = array<i32: 1>} : vector<1x2048xi32>
    %c1_i32 = arith.constant 1 : i32
    %9 = vector.broadcast %c1_i32 : i32 to vector<1x2048xi32>
    %10 = arith.shrsi %8, %9 : vector<1x2048xi32>
    %c31_i32 = arith.constant 31 : i32
    %11 = vector.broadcast %c31_i32 : i32 to vector<1x2048xi32>
    %12 = arith.andi %10, %11 : vector<1x2048xi32>
    %c5_i32 = arith.constant 5 : i32
    %13 = vector.broadcast %c5_i32 : i32 to vector<1x2048xi32>
    %14 = arith.shrsi %10, %13 : vector<1x2048xi32>
    %c0_i32 = arith.constant 0 : i32
    %15 = vector.broadcast %c0_i32 : i32 to vector<1x2048xi32>
    %16 = arith.cmpi ne, %12, %15 : vector<1x2048xi32>
    %c31_i32_4 = arith.constant 31 : i32
    %17 = vector.broadcast %c31_i32_4 : i32 to vector<1x2048xi32>
    %18 = arith.cmpi ne, %12, %17 : vector<1x2048xi32>
    %c0_i32_5 = arith.constant 0 : i32
    %19 = vector.broadcast %c0_i32_5 : i32 to vector<1x2048xi32>
    %20 = arith.cmpi ne, %14, %19 : vector<1x2048xi32>
    %c31_i32_6 = arith.constant 31 : i32
    %21 = vector.broadcast %c31_i32_6 : i32 to vector<1x2048xi32>
    %22 = arith.cmpi ne, %14, %21 : vector<1x2048xi32>
    %23 = arith.andi %20, %16 : vector<1x2048xi1>
    %24 = arith.extui %23 : vector<1x2048xi1> to vector<1x2048xi32>
    %25 = arith.sitofp %24 : vector<1x2048xi32> to vector<1x2048xf32>
    %26 = arith.extui %20 : vector<1x2048xi1> to vector<1x2048xi32>
    %27 = arith.sitofp %26 : vector<1x2048xi32> to vector<1x2048xf32>
    %28 = arith.andi %20, %18 : vector<1x2048xi1>
    %29 = arith.extui %28 : vector<1x2048xi1> to vector<1x2048xi32>
    %30 = arith.sitofp %29 : vector<1x2048xi32> to vector<1x2048xf32>
    %31 = arith.extui %16 : vector<1x2048xi1> to vector<1x2048xi32>
    %32 = arith.sitofp %31 : vector<1x2048xi32> to vector<1x2048xf32>
    %33 = arith.extui %18 : vector<1x2048xi1> to vector<1x2048xi32>
    %34 = arith.sitofp %33 : vector<1x2048xi32> to vector<1x2048xf32>
    %35 = arith.andi %22, %16 : vector<1x2048xi1>
    %36 = arith.extui %35 : vector<1x2048xi1> to vector<1x2048xi32>
    %37 = arith.sitofp %36 : vector<1x2048xi32> to vector<1x2048xf32>
    %38 = arith.extui %22 : vector<1x2048xi1> to vector<1x2048xi32>
    %39 = arith.sitofp %38 : vector<1x2048xi32> to vector<1x2048xf32>
    %40 = arith.andi %22, %18 : vector<1x2048xi1>
    %41 = arith.extui %40 : vector<1x2048xi1> to vector<1x2048xi32>
    %42 = arith.sitofp %41 : vector<1x2048xi32> to vector<1x2048xf32>
    %43 = tpu.iota {dimensions = array<i32: 1>} : vector<1x128xi32>
    %c1_i32_7 = arith.constant 1 : i32
    %44 = vector.broadcast %c1_i32_7 : i32 to vector<1x128xi32>
    %45 = arith.shrsi %43, %44 : vector<1x128xi32>
    %c7_i32 = arith.constant 7 : i32
    %46 = vector.broadcast %c7_i32 : i32 to vector<1x128xi32>
    %47 = arith.andi %45, %46 : vector<1x128xi32>
    %c3_i32 = arith.constant 3 : i32
    %48 = vector.broadcast %c3_i32 : i32 to vector<1x128xi32>
    %49 = arith.shrsi %45, %48 : vector<1x128xi32>
    %c0_i32_8 = arith.constant 0 : i32
    %50 = vector.broadcast %c0_i32_8 : i32 to vector<1x128xi32>
    %51 = arith.cmpi ne, %47, %50 : vector<1x128xi32>
    %c7_i32_9 = arith.constant 7 : i32
    %52 = vector.broadcast %c7_i32_9 : i32 to vector<1x128xi32>
    %53 = arith.cmpi ne, %47, %52 : vector<1x128xi32>
    %c0_i32_10 = arith.constant 0 : i32
    %54 = vector.broadcast %c0_i32_10 : i32 to vector<1x128xi32>
    %55 = arith.cmpi ne, %49, %54 : vector<1x128xi32>
    %c7_i32_11 = arith.constant 7 : i32
    %56 = vector.broadcast %c7_i32_11 : i32 to vector<1x128xi32>
    %57 = arith.cmpi ne, %49, %56 : vector<1x128xi32>
    %58 = arith.andi %55, %51 : vector<1x128xi1>
    %59 = arith.extui %58 : vector<1x128xi1> to vector<1x128xi32>
    %60 = arith.sitofp %59 : vector<1x128xi32> to vector<1x128xf32>
    %61 = arith.extui %55 : vector<1x128xi1> to vector<1x128xi32>
    %62 = arith.sitofp %61 : vector<1x128xi32> to vector<1x128xf32>
    %63 = arith.andi %55, %53 : vector<1x128xi1>
    %64 = arith.extui %63 : vector<1x128xi1> to vector<1x128xi32>
    %65 = arith.sitofp %64 : vector<1x128xi32> to vector<1x128xf32>
    %66 = arith.extui %51 : vector<1x128xi1> to vector<1x128xi32>
    %67 = arith.sitofp %66 : vector<1x128xi32> to vector<1x128xf32>
    %68 = arith.extui %53 : vector<1x128xi1> to vector<1x128xi32>
    %69 = arith.sitofp %68 : vector<1x128xi32> to vector<1x128xf32>
    %70 = arith.andi %57, %51 : vector<1x128xi1>
    %71 = arith.extui %70 : vector<1x128xi1> to vector<1x128xi32>
    %72 = arith.sitofp %71 : vector<1x128xi32> to vector<1x128xf32>
    %73 = arith.extui %57 : vector<1x128xi1> to vector<1x128xi32>
    %74 = arith.sitofp %73 : vector<1x128xi32> to vector<1x128xf32>
    %75 = arith.andi %57, %53 : vector<1x128xi1>
    %76 = arith.extui %75 : vector<1x128xi1> to vector<1x128xi32>
    %77 = arith.sitofp %76 : vector<1x128xi32> to vector<1x128xf32>
    %78 = tpu.iota {dimensions = array<i32: 1>} : vector<1x8xi32>
    %c1_i32_12 = arith.constant 1 : i32
    %79 = vector.broadcast %c1_i32_12 : i32 to vector<1x8xi32>
    %80 = arith.shrsi %78, %79 : vector<1x8xi32>
    %c1_i32_13 = arith.constant 1 : i32
    %81 = vector.broadcast %c1_i32_13 : i32 to vector<1x8xi32>
    %82 = arith.andi %80, %81 : vector<1x8xi32>
    %c1_i32_14 = arith.constant 1 : i32
    %83 = vector.broadcast %c1_i32_14 : i32 to vector<1x8xi32>
    %84 = arith.shrsi %80, %83 : vector<1x8xi32>
    %c0_i32_15 = arith.constant 0 : i32
    %85 = vector.broadcast %c0_i32_15 : i32 to vector<1x8xi32>
    %86 = arith.cmpi ne, %82, %85 : vector<1x8xi32>
    %c1_i32_16 = arith.constant 1 : i32
    %87 = vector.broadcast %c1_i32_16 : i32 to vector<1x8xi32>
    %88 = arith.cmpi ne, %82, %87 : vector<1x8xi32>
    %c0_i32_17 = arith.constant 0 : i32
    %89 = vector.broadcast %c0_i32_17 : i32 to vector<1x8xi32>
    %90 = arith.cmpi ne, %84, %89 : vector<1x8xi32>
    %c1_i32_18 = arith.constant 1 : i32
    %91 = vector.broadcast %c1_i32_18 : i32 to vector<1x8xi32>
    %92 = arith.cmpi ne, %84, %91 : vector<1x8xi32>
    %93 = arith.andi %90, %86 : vector<1x8xi1>
    %94 = arith.extui %93 : vector<1x8xi1> to vector<1x8xi32>
    %95 = arith.sitofp %94 : vector<1x8xi32> to vector<1x8xf32>
    %96 = arith.extui %90 : vector<1x8xi1> to vector<1x8xi32>
    %97 = arith.sitofp %96 : vector<1x8xi32> to vector<1x8xf32>
    %98 = arith.andi %90, %88 : vector<1x8xi1>
    %99 = arith.extui %98 : vector<1x8xi1> to vector<1x8xi32>
    %100 = arith.sitofp %99 : vector<1x8xi32> to vector<1x8xf32>
    %101 = arith.extui %86 : vector<1x8xi1> to vector<1x8xi32>
    %102 = arith.sitofp %101 : vector<1x8xi32> to vector<1x8xf32>
    %103 = arith.extui %88 : vector<1x8xi1> to vector<1x8xi32>
    %104 = arith.sitofp %103 : vector<1x8xi32> to vector<1x8xf32>
    %105 = arith.andi %92, %86 : vector<1x8xi1>
    %106 = arith.extui %105 : vector<1x8xi1> to vector<1x8xi32>
    %107 = arith.sitofp %106 : vector<1x8xi32> to vector<1x8xf32>
    %108 = arith.extui %92 : vector<1x8xi1> to vector<1x8xi32>
    %109 = arith.sitofp %108 : vector<1x8xi32> to vector<1x8xf32>
    %110 = arith.andi %92, %88 : vector<1x8xi1>
    %111 = arith.extui %110 : vector<1x8xi1> to vector<1x8xi32>
    %112 = arith.sitofp %111 : vector<1x8xi32> to vector<1x8xf32>
    %c0_19 = arith.constant 0 : index
    %c0_20 = arith.constant 0 : index
    %113 = vector.load %arg2[%c0_19, %c0_20] : memref<200x288xf32, #tpu.memory_space<vmem>>, vector<8x9xf32>
    %c0_21 = arith.constant 0 : index
    %c0_22 = arith.constant 0 : index
    %114 = vector.load %arg3[%c0_21, %c0_22] : memref<202x1xf32, #tpu.memory_space<vmem>>, vector<8x1xf32>
    %c66_i32 = arith.constant 66 : i32
    %115 = tpu.dynamic_rotate %7 by %c66_i32 dim 1 : vector<1x2048xf32>, i32 -> vector<1x2048xf32>
    %116 = arith.mulf %115, %25 : vector<1x2048xf32>
    %c64_i32 = arith.constant 64 : i32
    %117 = tpu.dynamic_rotate %7 by %c64_i32 dim 1 : vector<1x2048xf32>, i32 -> vector<1x2048xf32>
    %118 = arith.mulf %117, %27 : vector<1x2048xf32>
    %c62_i32 = arith.constant 62 : i32
    %119 = tpu.dynamic_rotate %7 by %c62_i32 dim 1 : vector<1x2048xf32>, i32 -> vector<1x2048xf32>
    %120 = arith.mulf %119, %30 : vector<1x2048xf32>
    %c2_i32 = arith.constant 2 : i32
    %121 = tpu.dynamic_rotate %7 by %c2_i32 dim 1 : vector<1x2048xf32>, i32 -> vector<1x2048xf32>
    %122 = arith.mulf %121, %32 : vector<1x2048xf32>
    %c2046_i32 = arith.constant 2046 : i32
    %123 = tpu.dynamic_rotate %7 by %c2046_i32 dim 1 : vector<1x2048xf32>, i32 -> vector<1x2048xf32>
    %124 = arith.mulf %123, %34 : vector<1x2048xf32>
    %c1986_i32 = arith.constant 1986 : i32
    %125 = tpu.dynamic_rotate %7 by %c1986_i32 dim 1 : vector<1x2048xf32>, i32 -> vector<1x2048xf32>
    %126 = arith.mulf %125, %37 : vector<1x2048xf32>
    %c1984_i32 = arith.constant 1984 : i32
    %127 = tpu.dynamic_rotate %7 by %c1984_i32 dim 1 : vector<1x2048xf32>, i32 -> vector<1x2048xf32>
    %128 = arith.mulf %127, %39 : vector<1x2048xf32>
    %c1982_i32 = arith.constant 1982 : i32
    %129 = tpu.dynamic_rotate %7 by %c1982_i32 dim 1 : vector<1x2048xf32>, i32 -> vector<1x2048xf32>
    %130 = arith.mulf %129, %42 : vector<1x2048xf32>
    %131 = tpu.concatenate %116, %118, %120, %122, %7, %124, %126, %128, %130 in 0 : vector<1x2048xf32>, vector<1x2048xf32>, vector<1x2048xf32>, vector<1x2048xf32>, vector<1x2048xf32>, vector<1x2048xf32>, vector<1x2048xf32>, vector<1x2048xf32>, vector<1x2048xf32> -> vector<9x2048xf32>
    %cst = arith.constant dense<0.000000e+00> : vector<8x2048xf32>
    %132 = tpu.matmul %113, %131, %cst {dimension_numbers = #tpu.dot_dimension_numbers<[1], [0], [0], [1], [0, 0, 1, 1], [], []>} : vector<8x9xf32>, vector<9x2048xf32>, vector<8x2048xf32> -> vector<8x2048xf32>
    %133 = vector.broadcast %114 : vector<8x1xf32> to vector<8x2048xf32>
    %134 = arith.addf %132, %133 : vector<8x2048xf32>
    %cst_23 = arith.constant 0.000000e+00 : f32
    %135 = vector.broadcast %cst_23 : f32 to vector<8x2048xf32>
    %136 = arith.maximumf %134, %135 : vector<8x2048xf32>
    %c8 = arith.constant 8 : index
    %c0_24 = arith.constant 0 : index
    %137 = vector.load %arg2[%c8, %c0_24] : memref<200x288xf32, #tpu.memory_space<vmem>>, vector<8x72xf32>
    %c8_25 = arith.constant 8 : index
    %c0_26 = arith.constant 0 : index
    %138 = vector.load %arg3[%c8_25, %c0_26] : memref<202x1xf32, #tpu.memory_space<vmem>>, vector<8x1xf32>
    %c66_i32_27 = arith.constant 66 : i32
    %139 = tpu.dynamic_rotate %136 by %c66_i32_27 dim 1 : vector<8x2048xf32>, i32 -> vector<8x2048xf32>
    %140 = vector.broadcast %25 : vector<1x2048xf32> to vector<8x2048xf32>
    %141 = arith.mulf %139, %140 : vector<8x2048xf32>
    %c64_i32_28 = arith.constant 64 : i32
    %142 = tpu.dynamic_rotate %136 by %c64_i32_28 dim 1 : vector<8x2048xf32>, i32 -> vector<8x2048xf32>
    %143 = vector.broadcast %27 : vector<1x2048xf32> to vector<8x2048xf32>
    %144 = arith.mulf %142, %143 : vector<8x2048xf32>
    %c62_i32_29 = arith.constant 62 : i32
    %145 = tpu.dynamic_rotate %136 by %c62_i32_29 dim 1 : vector<8x2048xf32>, i32 -> vector<8x2048xf32>
    %146 = vector.broadcast %30 : vector<1x2048xf32> to vector<8x2048xf32>
    %147 = arith.mulf %145, %146 : vector<8x2048xf32>
    %c2_i32_30 = arith.constant 2 : i32
    %148 = tpu.dynamic_rotate %136 by %c2_i32_30 dim 1 : vector<8x2048xf32>, i32 -> vector<8x2048xf32>
    %149 = vector.broadcast %32 : vector<1x2048xf32> to vector<8x2048xf32>
    %150 = arith.mulf %148, %149 : vector<8x2048xf32>
    %c2046_i32_31 = arith.constant 2046 : i32
    %151 = tpu.dynamic_rotate %136 by %c2046_i32_31 dim 1 : vector<8x2048xf32>, i32 -> vector<8x2048xf32>
    %152 = vector.broadcast %34 : vector<1x2048xf32> to vector<8x2048xf32>
    %153 = arith.mulf %151, %152 : vector<8x2048xf32>
    %c1986_i32_32 = arith.constant 1986 : i32
    %154 = tpu.dynamic_rotate %136 by %c1986_i32_32 dim 1 : vector<8x2048xf32>, i32 -> vector<8x2048xf32>
    %155 = vector.broadcast %37 : vector<1x2048xf32> to vector<8x2048xf32>
    %156 = arith.mulf %154, %155 : vector<8x2048xf32>
    %c1984_i32_33 = arith.constant 1984 : i32
    %157 = tpu.dynamic_rotate %136 by %c1984_i32_33 dim 1 : vector<8x2048xf32>, i32 -> vector<8x2048xf32>
    %158 = vector.broadcast %39 : vector<1x2048xf32> to vector<8x2048xf32>
    %159 = arith.mulf %157, %158 : vector<8x2048xf32>
    %c1982_i32_34 = arith.constant 1982 : i32
    %160 = tpu.dynamic_rotate %136 by %c1982_i32_34 dim 1 : vector<8x2048xf32>, i32 -> vector<8x2048xf32>
    %161 = vector.broadcast %42 : vector<1x2048xf32> to vector<8x2048xf32>
    %162 = arith.mulf %160, %161 : vector<8x2048xf32>
    %163 = tpu.concatenate %141, %144, %147, %150, %136, %153, %156, %159, %162 in 0 : vector<8x2048xf32>, vector<8x2048xf32>, vector<8x2048xf32>, vector<8x2048xf32>, vector<8x2048xf32>, vector<8x2048xf32>, vector<8x2048xf32>, vector<8x2048xf32>, vector<8x2048xf32> -> vector<72x2048xf32>
    %cst_35 = arith.constant dense<0.000000e+00> : vector<8x2048xf32>
    %164 = tpu.matmul %137, %163, %cst_35 {dimension_numbers = #tpu.dot_dimension_numbers<[1], [0], [0], [1], [0, 0, 1, 1], [], []>} : vector<8x72xf32>, vector<72x2048xf32>, vector<8x2048xf32> -> vector<8x2048xf32>
    %165 = vector.broadcast %138 : vector<8x1xf32> to vector<8x2048xf32>
    %166 = arith.addf %164, %165 : vector<8x2048xf32>
    %cst_36 = arith.constant 0.000000e+00 : f32
    %167 = vector.broadcast %cst_36 : f32 to vector<8x2048xf32>
    %168 = arith.maximumf %166, %167 : vector<8x2048xf32>
    %c16 = arith.constant 16 : index
    %c0_37 = arith.constant 0 : index
    %169 = vector.load %arg2[%c16, %c0_37] : memref<200x288xf32, #tpu.memory_space<vmem>>, vector<8x72xf32>
    %c16_38 = arith.constant 16 : index
    %c0_39 = arith.constant 0 : index
    %170 = vector.load %arg3[%c16_38, %c0_39] : memref<202x1xf32, #tpu.memory_space<vmem>>, vector<8x1xf32>
    %c66_i32_40 = arith.constant 66 : i32
    %171 = tpu.dynamic_rotate %168 by %c66_i32_40 dim 1 : vector<8x2048xf32>, i32 -> vector<8x2048xf32>
    %172 = vector.broadcast %25 : vector<1x2048xf32> to vector<8x2048xf32>
    %173 = arith.mulf %171, %172 : vector<8x2048xf32>
    %c64_i32_41 = arith.constant 64 : i32
    %174 = tpu.dynamic_rotate %168 by %c64_i32_41 dim 1 : vector<8x2048xf32>, i32 -> vector<8x2048xf32>
    %175 = vector.broadcast %27 : vector<1x2048xf32> to vector<8x2048xf32>
    %176 = arith.mulf %174, %175 : vector<8x2048xf32>
    %c62_i32_42 = arith.constant 62 : i32
    %177 = tpu.dynamic_rotate %168 by %c62_i32_42 dim 1 : vector<8x2048xf32>, i32 -> vector<8x2048xf32>
    %178 = vector.broadcast %30 : vector<1x2048xf32> to vector<8x2048xf32>
    %179 = arith.mulf %177, %178 : vector<8x2048xf32>
    %c2_i32_43 = arith.constant 2 : i32
    %180 = tpu.dynamic_rotate %168 by %c2_i32_43 dim 1 : vector<8x2048xf32>, i32 -> vector<8x2048xf32>
    %181 = vector.broadcast %32 : vector<1x2048xf32> to vector<8x2048xf32>
    %182 = arith.mulf %180, %181 : vector<8x2048xf32>
    %c2046_i32_44 = arith.constant 2046 : i32
    %183 = tpu.dynamic_rotate %168 by %c2046_i32_44 dim 1 : vector<8x2048xf32>, i32 -> vector<8x2048xf32>
    %184 = vector.broadcast %34 : vector<1x2048xf32> to vector<8x2048xf32>
    %185 = arith.mulf %183, %184 : vector<8x2048xf32>
    %c1986_i32_45 = arith.constant 1986 : i32
    %186 = tpu.dynamic_rotate %168 by %c1986_i32_45 dim 1 : vector<8x2048xf32>, i32 -> vector<8x2048xf32>
    %187 = vector.broadcast %37 : vector<1x2048xf32> to vector<8x2048xf32>
    %188 = arith.mulf %186, %187 : vector<8x2048xf32>
    %c1984_i32_46 = arith.constant 1984 : i32
    %189 = tpu.dynamic_rotate %168 by %c1984_i32_46 dim 1 : vector<8x2048xf32>, i32 -> vector<8x2048xf32>
    %190 = vector.broadcast %39 : vector<1x2048xf32> to vector<8x2048xf32>
    %191 = arith.mulf %189, %190 : vector<8x2048xf32>
    %c1982_i32_47 = arith.constant 1982 : i32
    %192 = tpu.dynamic_rotate %168 by %c1982_i32_47 dim 1 : vector<8x2048xf32>, i32 -> vector<8x2048xf32>
    %193 = vector.broadcast %42 : vector<1x2048xf32> to vector<8x2048xf32>
    %194 = arith.mulf %192, %193 : vector<8x2048xf32>
    %195 = tpu.concatenate %173, %176, %179, %182, %168, %185, %188, %191, %194 in 0 : vector<8x2048xf32>, vector<8x2048xf32>, vector<8x2048xf32>, vector<8x2048xf32>, vector<8x2048xf32>, vector<8x2048xf32>, vector<8x2048xf32>, vector<8x2048xf32>, vector<8x2048xf32> -> vector<72x2048xf32>
    %cst_48 = arith.constant dense<0.000000e+00> : vector<8x2048xf32>
    %196 = tpu.matmul %169, %195, %cst_48 {dimension_numbers = #tpu.dot_dimension_numbers<[1], [0], [0], [1], [0, 0, 1, 1], [], []>} : vector<8x72xf32>, vector<72x2048xf32>, vector<8x2048xf32> -> vector<8x2048xf32>
    %197 = vector.broadcast %170 : vector<8x1xf32> to vector<8x2048xf32>
    %198 = arith.addf %196, %197 : vector<8x2048xf32>
    %cst_49 = arith.constant 0.000000e+00 : f32
    %199 = vector.broadcast %cst_49 : f32 to vector<8x2048xf32>
    %200 = arith.maximumf %198, %199 : vector<8x2048xf32>
    %201 = arith.addf %200, %136 : vector<8x2048xf32>
    %c2046_i32_50 = arith.constant 2046 : i32
    %202 = tpu.dynamic_rotate %201 by %c2046_i32_50 dim 1 : vector<8x2048xf32>, i32 -> vector<8x2048xf32>
    %203 = arith.maximumf %201, %202 : vector<8x2048xf32>
    %c1984_i32_51 = arith.constant 1984 : i32
    %204 = tpu.dynamic_rotate %201 by %c1984_i32_51 dim 1 : vector<8x2048xf32>, i32 -> vector<8x2048xf32>
    %c1982_i32_52 = arith.constant 1982 : i32
    %205 = tpu.dynamic_rotate %201 by %c1982_i32_52 dim 1 : vector<8x2048xf32>, i32 -> vector<8x2048xf32>
    %206 = arith.maximumf %204, %205 : vector<8x2048xf32>
    %207 = arith.maximumf %203, %206 : vector<8x2048xf32>
    %208 = vector.extract_strided_slice %207 {offsets = [0, 0], sizes = [8, 2], strides = [1, 1]} : vector<8x2048xf32> to vector<8x2xf32>
    %209 = vector.extract_strided_slice %207 {offsets = [0, 8], sizes = [8, 2], strides = [1, 1]} : vector<8x2048xf32> to vector<8x2xf32>
    %210 = vector.extract_strided_slice %207 {offsets = [0, 16], sizes = [8, 2], strides = [1, 1]} : vector<8x2048xf32> to vector<8x2xf32>
    %211 = vector.extract_strided_slice %207 {offsets = [0, 24], sizes = [8, 2], strides = [1, 1]} : vector<8x2048xf32> to vector<8x2xf32>
    %212 = vector.extract_strided_slice %207 {offsets = [0, 32], sizes = [8, 2], strides = [1, 1]} : vector<8x2048xf32> to vector<8x2xf32>
    %213 = vector.extract_strided_slice %207 {offsets = [0, 40], sizes = [8, 2], strides = [1, 1]} : vector<8x2048xf32> to vector<8x2xf32>
    %214 = vector.extract_strided_slice %207 {offsets = [0, 48], sizes = [8, 2], strides = [1, 1]} : vector<8x2048xf32> to vector<8x2xf32>
    %215 = vector.extract_strided_slice %207 {offsets = [0, 56], sizes = [8, 2], strides = [1, 1]} : vector<8x2048xf32> to vector<8x2xf32>
    %216 = vector.extract_strided_slice %207 {offsets = [0, 256], sizes = [8, 2], strides = [1, 1]} : vector<8x2048xf32> to vector<8x2xf32>
    %217 = vector.extract_strided_slice %207 {offsets = [0, 264], sizes = [8, 2], strides = [1, 1]} : vector<8x2048xf32> to vector<8x2xf32>
    %218 = vector.extract_strided_slice %207 {offsets = [0, 272], sizes = [8, 2], strides = [1, 1]} : vector<8x2048xf32> to vector<8x2xf32>
    %219 = vector.extract_strided_slice %207 {offsets = [0, 280], sizes = [8, 2], strides = [1, 1]} : vector<8x2048xf32> to vector<8x2xf32>
    %220 = vector.extract_strided_slice %207 {offsets = [0, 288], sizes = [8, 2], strides = [1, 1]} : vector<8x2048xf32> to vector<8x2xf32>
    %221 = vector.extract_strided_slice %207 {offsets = [0, 296], sizes = [8, 2], strides = [1, 1]} : vector<8x2048xf32> to vector<8x2xf32>
    %222 = vector.extract_strided_slice %207 {offsets = [0, 304], sizes = [8, 2], strides = [1, 1]} : vector<8x2048xf32> to vector<8x2xf32>
    %223 = vector.extract_strided_slice %207 {offsets = [0, 312], sizes = [8, 2], strides = [1, 1]} : vector<8x2048xf32> to vector<8x2xf32>
    %224 = vector.extract_strided_slice %207 {offsets = [0, 512], sizes = [8, 2], strides = [1, 1]} : vector<8x2048xf32> to vector<8x2xf32>
    %225 = vector.extract_strided_slice %207 {offsets = [0, 520], sizes = [8, 2], strides = [1, 1]} : vector<8x2048xf32> to vector<8x2xf32>
    %226 = vector.extract_strided_slice %207 {offsets = [0, 528], sizes = [8, 2], strides = [1, 1]} : vector<8x2048xf32> to vector<8x2xf32>
    %227 = vector.extract_strided_slice %207 {offsets = [0, 536], sizes = [8, 2], strides = [1, 1]} : vector<8x2048xf32> to vector<8x2xf32>
    %228 = vector.extract_strided_slice %207 {offsets = [0, 544], sizes = [8, 2], strides = [1, 1]} : vector<8x2048xf32> to vector<8x2xf32>
    %229 = vector.extract_strided_slice %207 {offsets = [0, 552], sizes = [8, 2], strides = [1, 1]} : vector<8x2048xf32> to vector<8x2xf32>
    %230 = vector.extract_strided_slice %207 {offsets = [0, 560], sizes = [8, 2], strides = [1, 1]} : vector<8x2048xf32> to vector<8x2xf32>
    %231 = vector.extract_strided_slice %207 {offsets = [0, 568], sizes = [8, 2], strides = [1, 1]} : vector<8x2048xf32> to vector<8x2xf32>
    %232 = vector.extract_strided_slice %207 {offsets = [0, 768], sizes = [8, 2], strides = [1, 1]} : vector<8x2048xf32> to vector<8x2xf32>
    %233 = vector.extract_strided_slice %207 {offsets = [0, 776], sizes = [8, 2], strides = [1, 1]} : vector<8x2048xf32> to vector<8x2xf32>
    %234 = vector.extract_strided_slice %207 {offsets = [0, 784], sizes = [8, 2], strides = [1, 1]} : vector<8x2048xf32> to vector<8x2xf32>
    %235 = vector.extract_strided_slice %207 {offsets = [0, 792], sizes = [8, 2], strides = [1, 1]} : vector<8x2048xf32> to vector<8x2xf32>
    %236 = vector.extract_strided_slice %207 {offsets = [0, 800], sizes = [8, 2], strides = [1, 1]} : vector<8x2048xf32> to vector<8x2xf32>
    %237 = vector.extract_strided_slice %207 {offsets = [0, 808], sizes = [8, 2], strides = [1, 1]} : vector<8x2048xf32> to vector<8x2xf32>
    %238 = vector.extract_strided_slice %207 {offsets = [0, 816], sizes = [8, 2], strides = [1, 1]} : vector<8x2048xf32> to vector<8x2xf32>
    %239 = vector.extract_strided_slice %207 {offsets = [0, 824], sizes = [8, 2], strides = [1, 1]} : vector<8x2048xf32> to vector<8x2xf32>
    %240 = vector.extract_strided_slice %207 {offsets = [0, 1024], sizes = [8, 2], strides = [1, 1]} : vector<8x2048xf32> to vector<8x2xf32>
    %241 = vector.extract_strided_slice %207 {offsets = [0, 1032], sizes = [8, 2], strides = [1, 1]} : vector<8x2048xf32> to vector<8x2xf32>
    %242 = vector.extract_strided_slice %207 {offsets = [0, 1040], sizes = [8, 2], strides = [1, 1]} : vector<8x2048xf32> to vector<8x2xf32>
    %243 = vector.extract_strided_slice %207 {offsets = [0, 1048], sizes = [8, 2], strides = [1, 1]} : vector<8x2048xf32> to vector<8x2xf32>
    %244 = vector.extract_strided_slice %207 {offsets = [0, 1056], sizes = [8, 2], strides = [1, 1]} : vector<8x2048xf32> to vector<8x2xf32>
    %245 = vector.extract_strided_slice %207 {offsets = [0, 1064], sizes = [8, 2], strides = [1, 1]} : vector<8x2048xf32> to vector<8x2xf32>
    %246 = vector.extract_strided_slice %207 {offsets = [0, 1072], sizes = [8, 2], strides = [1, 1]} : vector<8x2048xf32> to vector<8x2xf32>
    %247 = vector.extract_strided_slice %207 {offsets = [0, 1080], sizes = [8, 2], strides = [1, 1]} : vector<8x2048xf32> to vector<8x2xf32>
    %248 = vector.extract_strided_slice %207 {offsets = [0, 1280], sizes = [8, 2], strides = [1, 1]} : vector<8x2048xf32> to vector<8x2xf32>
    %249 = vector.extract_strided_slice %207 {offsets = [0, 1288], sizes = [8, 2], strides = [1, 1]} : vector<8x2048xf32> to vector<8x2xf32>
    %250 = vector.extract_strided_slice %207 {offsets = [0, 1296], sizes = [8, 2], strides = [1, 1]} : vector<8x2048xf32> to vector<8x2xf32>
    %251 = vector.extract_strided_slice %207 {offsets = [0, 1304], sizes = [8, 2], strides = [1, 1]} : vector<8x2048xf32> to vector<8x2xf32>
    %252 = vector.extract_strided_slice %207 {offsets = [0, 1312], sizes = [8, 2], strides = [1, 1]} : vector<8x2048xf32> to vector<8x2xf32>
    %253 = vector.extract_strided_slice %207 {offsets = [0, 1320], sizes = [8, 2], strides = [1, 1]} : vector<8x2048xf32> to vector<8x2xf32>
    %254 = vector.extract_strided_slice %207 {offsets = [0, 1328], sizes = [8, 2], strides = [1, 1]} : vector<8x2048xf32> to vector<8x2xf32>
    %255 = vector.extract_strided_slice %207 {offsets = [0, 1336], sizes = [8, 2], strides = [1, 1]} : vector<8x2048xf32> to vector<8x2xf32>
    %256 = vector.extract_strided_slice %207 {offsets = [0, 1536], sizes = [8, 2], strides = [1, 1]} : vector<8x2048xf32> to vector<8x2xf32>
    %257 = vector.extract_strided_slice %207 {offsets = [0, 1544], sizes = [8, 2], strides = [1, 1]} : vector<8x2048xf32> to vector<8x2xf32>
    %258 = vector.extract_strided_slice %207 {offsets = [0, 1552], sizes = [8, 2], strides = [1, 1]} : vector<8x2048xf32> to vector<8x2xf32>
    %259 = vector.extract_strided_slice %207 {offsets = [0, 1560], sizes = [8, 2], strides = [1, 1]} : vector<8x2048xf32> to vector<8x2xf32>
    %260 = vector.extract_strided_slice %207 {offsets = [0, 1568], sizes = [8, 2], strides = [1, 1]} : vector<8x2048xf32> to vector<8x2xf32>
    %261 = vector.extract_strided_slice %207 {offsets = [0, 1576], sizes = [8, 2], strides = [1, 1]} : vector<8x2048xf32> to vector<8x2xf32>
    %262 = vector.extract_strided_slice %207 {offsets = [0, 1584], sizes = [8, 2], strides = [1, 1]} : vector<8x2048xf32> to vector<8x2xf32>
    %263 = vector.extract_strided_slice %207 {offsets = [0, 1592], sizes = [8, 2], strides = [1, 1]} : vector<8x2048xf32> to vector<8x2xf32>
    %264 = vector.extract_strided_slice %207 {offsets = [0, 1792], sizes = [8, 2], strides = [1, 1]} : vector<8x2048xf32> to vector<8x2xf32>
    %265 = vector.extract_strided_slice %207 {offsets = [0, 1800], sizes = [8, 2], strides = [1, 1]} : vector<8x2048xf32> to vector<8x2xf32>
    %266 = vector.extract_strided_slice %207 {offsets = [0, 1808], sizes = [8, 2], strides = [1, 1]} : vector<8x2048xf32> to vector<8x2xf32>
    %267 = vector.extract_strided_slice %207 {offsets = [0, 1816], sizes = [8, 2], strides = [1, 1]} : vector<8x2048xf32> to vector<8x2xf32>
    %268 = vector.extract_strided_slice %207 {offsets = [0, 1824], sizes = [8, 2], strides = [1, 1]} : vector<8x2048xf32> to vector<8x2xf32>
    %269 = vector.extract_strided_slice %207 {offsets = [0, 1832], sizes = [8, 2], strides = [1, 1]} : vector<8x2048xf32> to vector<8x2xf32>
    %270 = vector.extract_strided_slice %207 {offsets = [0, 1840], sizes = [8, 2], strides = [1, 1]} : vector<8x2048xf32> to vector<8x2xf32>
    %271 = vector.extract_strided_slice %207 {offsets = [0, 1848], sizes = [8, 2], strides = [1, 1]} : vector<8x2048xf32> to vector<8x2xf32>
    %272 = tpu.concatenate %208, %209, %210, %211, %212, %213, %214, %215, %216, %217, %218, %219, %220, %221, %222, %223 in 1 : vector<8x2xf32>, vector<8x2xf32>, vector<8x2xf32>, vector<8x2xf32>, vector<8x2xf32>, vector<8x2xf32>, vector<8x2xf32>, vector<8x2xf32>, vector<8x2xf32>, vector<8x2xf32>, vector<8x2xf32>, vector<8x2xf32>, vector<8x2xf32>, vector<8x2xf32>, vector<8x2xf32>, vector<8x2xf32> -> vector<8x32xf32>
    %273 = tpu.concatenate %224, %225, %226, %227, %228, %229, %230, %231, %232, %233, %234, %235, %236, %237, %238, %239 in 1 : vector<8x2xf32>, vector<8x2xf32>, vector<8x2xf32>, vector<8x2xf32>, vector<8x2xf32>, vector<8x2xf32>, vector<8x2xf32>, vector<8x2xf32>, vector<8x2xf32>, vector<8x2xf32>, vector<8x2xf32>, vector<8x2xf32>, vector<8x2xf32>, vector<8x2xf32>, vector<8x2xf32>, vector<8x2xf32> -> vector<8x32xf32>
    %274 = tpu.concatenate %240, %241, %242, %243, %244, %245, %246, %247, %248, %249, %250, %251, %252, %253, %254, %255 in 1 : vector<8x2xf32>, vector<8x2xf32>, vector<8x2xf32>, vector<8x2xf32>, vector<8x2xf32>, vector<8x2xf32>, vector<8x2xf32>, vector<8x2xf32>, vector<8x2xf32>, vector<8x2xf32>, vector<8x2xf32>, vector<8x2xf32>, vector<8x2xf32>, vector<8x2xf32>, vector<8x2xf32>, vector<8x2xf32> -> vector<8x32xf32>
    %275 = tpu.concatenate %256, %257, %258, %259, %260, %261, %262, %263, %264, %265, %266, %267, %268, %269, %270, %271 in 1 : vector<8x2xf32>, vector<8x2xf32>, vector<8x2xf32>, vector<8x2xf32>, vector<8x2xf32>, vector<8x2xf32>, vector<8x2xf32>, vector<8x2xf32>, vector<8x2xf32>, vector<8x2xf32>, vector<8x2xf32>, vector<8x2xf32>, vector<8x2xf32>, vector<8x2xf32>, vector<8x2xf32>, vector<8x2xf32> -> vector<8x32xf32>
    %276 = tpu.concatenate %272, %273, %274, %275 in 1 : vector<8x32xf32>, vector<8x32xf32>, vector<8x32xf32>, vector<8x32xf32> -> vector<8x128xf32>
    %c24 = arith.constant 24 : index
    %c0_53 = arith.constant 0 : index
    %277 = vector.load %arg2[%c24, %c0_53] : memref<200x288xf32, #tpu.memory_space<vmem>>, vector<16x72xf32>
    %c24_54 = arith.constant 24 : index
    %c0_55 = arith.constant 0 : index
    %278 = vector.load %arg3[%c24_54, %c0_55] : memref<202x1xf32, #tpu.memory_space<vmem>>, vector<16x1xf32>
    %c18_i32 = arith.constant 18 : i32
    %279 = tpu.dynamic_rotate %276 by %c18_i32 dim 1 : vector<8x128xf32>, i32 -> vector<8x128xf32>
    %280 = vector.broadcast %60 : vector<1x128xf32> to vector<8x128xf32>
    %281 = arith.mulf %279, %280 : vector<8x128xf32>
    %c16_i32 = arith.constant 16 : i32
    %282 = tpu.dynamic_rotate %276 by %c16_i32 dim 1 : vector<8x128xf32>, i32 -> vector<8x128xf32>
    %283 = vector.broadcast %62 : vector<1x128xf32> to vector<8x128xf32>
    %284 = arith.mulf %282, %283 : vector<8x128xf32>
    %c14_i32 = arith.constant 14 : i32
    %285 = tpu.dynamic_rotate %276 by %c14_i32 dim 1 : vector<8x128xf32>, i32 -> vector<8x128xf32>
    %286 = vector.broadcast %65 : vector<1x128xf32> to vector<8x128xf32>
    %287 = arith.mulf %285, %286 : vector<8x128xf32>
    %c2_i32_56 = arith.constant 2 : i32
    %288 = tpu.dynamic_rotate %276 by %c2_i32_56 dim 1 : vector<8x128xf32>, i32 -> vector<8x128xf32>
    %289 = vector.broadcast %67 : vector<1x128xf32> to vector<8x128xf32>
    %290 = arith.mulf %288, %289 : vector<8x128xf32>
    %c126_i32 = arith.constant 126 : i32
    %291 = tpu.dynamic_rotate %276 by %c126_i32 dim 1 : vector<8x128xf32>, i32 -> vector<8x128xf32>
    %292 = vector.broadcast %69 : vector<1x128xf32> to vector<8x128xf32>
    %293 = arith.mulf %291, %292 : vector<8x128xf32>
    %c114_i32 = arith.constant 114 : i32
    %294 = tpu.dynamic_rotate %276 by %c114_i32 dim 1 : vector<8x128xf32>, i32 -> vector<8x128xf32>
    %295 = vector.broadcast %72 : vector<1x128xf32> to vector<8x128xf32>
    %296 = arith.mulf %294, %295 : vector<8x128xf32>
    %c112_i32 = arith.constant 112 : i32
    %297 = tpu.dynamic_rotate %276 by %c112_i32 dim 1 : vector<8x128xf32>, i32 -> vector<8x128xf32>
    %298 = vector.broadcast %74 : vector<1x128xf32> to vector<8x128xf32>
    %299 = arith.mulf %297, %298 : vector<8x128xf32>
    %c110_i32 = arith.constant 110 : i32
    %300 = tpu.dynamic_rotate %276 by %c110_i32 dim 1 : vector<8x128xf32>, i32 -> vector<8x128xf32>
    %301 = vector.broadcast %77 : vector<1x128xf32> to vector<8x128xf32>
    %302 = arith.mulf %300, %301 : vector<8x128xf32>
    %303 = tpu.concatenate %281, %284, %287, %290, %276, %293, %296, %299, %302 in 0 : vector<8x128xf32>, vector<8x128xf32>, vector<8x128xf32>, vector<8x128xf32>, vector<8x128xf32>, vector<8x128xf32>, vector<8x128xf32>, vector<8x128xf32>, vector<8x128xf32> -> vector<72x128xf32>
    %cst_57 = arith.constant dense<0.000000e+00> : vector<16x128xf32>
    %304 = tpu.matmul %277, %303, %cst_57 {dimension_numbers = #tpu.dot_dimension_numbers<[1], [0], [0], [1], [0, 0, 1, 1], [], []>} : vector<16x72xf32>, vector<72x128xf32>, vector<16x128xf32> -> vector<16x128xf32>
    %305 = vector.broadcast %278 : vector<16x1xf32> to vector<16x128xf32>
    %306 = arith.addf %304, %305 : vector<16x128xf32>
    %cst_58 = arith.constant 0.000000e+00 : f32
    %307 = vector.broadcast %cst_58 : f32 to vector<16x128xf32>
    %308 = arith.maximumf %306, %307 : vector<16x128xf32>
    %c40 = arith.constant 40 : index
    %c0_59 = arith.constant 0 : index
    %309 = vector.load %arg2[%c40, %c0_59] : memref<200x288xf32, #tpu.memory_space<vmem>>, vector<16x144xf32>
    %c40_60 = arith.constant 40 : index
    %c0_61 = arith.constant 0 : index
    %310 = vector.load %arg3[%c40_60, %c0_61] : memref<202x1xf32, #tpu.memory_space<vmem>>, vector<16x1xf32>
    %c18_i32_62 = arith.constant 18 : i32
    %311 = tpu.dynamic_rotate %308 by %c18_i32_62 dim 1 : vector<16x128xf32>, i32 -> vector<16x128xf32>
    %312 = vector.broadcast %60 : vector<1x128xf32> to vector<16x128xf32>
    %313 = arith.mulf %311, %312 : vector<16x128xf32>
    %c16_i32_63 = arith.constant 16 : i32
    %314 = tpu.dynamic_rotate %308 by %c16_i32_63 dim 1 : vector<16x128xf32>, i32 -> vector<16x128xf32>
    %315 = vector.broadcast %62 : vector<1x128xf32> to vector<16x128xf32>
    %316 = arith.mulf %314, %315 : vector<16x128xf32>
    %c14_i32_64 = arith.constant 14 : i32
    %317 = tpu.dynamic_rotate %308 by %c14_i32_64 dim 1 : vector<16x128xf32>, i32 -> vector<16x128xf32>
    %318 = vector.broadcast %65 : vector<1x128xf32> to vector<16x128xf32>
    %319 = arith.mulf %317, %318 : vector<16x128xf32>
    %c2_i32_65 = arith.constant 2 : i32
    %320 = tpu.dynamic_rotate %308 by %c2_i32_65 dim 1 : vector<16x128xf32>, i32 -> vector<16x128xf32>
    %321 = vector.broadcast %67 : vector<1x128xf32> to vector<16x128xf32>
    %322 = arith.mulf %320, %321 : vector<16x128xf32>
    %c126_i32_66 = arith.constant 126 : i32
    %323 = tpu.dynamic_rotate %308 by %c126_i32_66 dim 1 : vector<16x128xf32>, i32 -> vector<16x128xf32>
    %324 = vector.broadcast %69 : vector<1x128xf32> to vector<16x128xf32>
    %325 = arith.mulf %323, %324 : vector<16x128xf32>
    %c114_i32_67 = arith.constant 114 : i32
    %326 = tpu.dynamic_rotate %308 by %c114_i32_67 dim 1 : vector<16x128xf32>, i32 -> vector<16x128xf32>
    %327 = vector.broadcast %72 : vector<1x128xf32> to vector<16x128xf32>
    %328 = arith.mulf %326, %327 : vector<16x128xf32>
    %c112_i32_68 = arith.constant 112 : i32
    %329 = tpu.dynamic_rotate %308 by %c112_i32_68 dim 1 : vector<16x128xf32>, i32 -> vector<16x128xf32>
    %330 = vector.broadcast %74 : vector<1x128xf32> to vector<16x128xf32>
    %331 = arith.mulf %329, %330 : vector<16x128xf32>
    %c110_i32_69 = arith.constant 110 : i32
    %332 = tpu.dynamic_rotate %308 by %c110_i32_69 dim 1 : vector<16x128xf32>, i32 -> vector<16x128xf32>
    %333 = vector.broadcast %77 : vector<1x128xf32> to vector<16x128xf32>
    %334 = arith.mulf %332, %333 : vector<16x128xf32>
    %335 = tpu.concatenate %313, %316, %319, %322, %308, %325, %328, %331, %334 in 0 : vector<16x128xf32>, vector<16x128xf32>, vector<16x128xf32>, vector<16x128xf32>, vector<16x128xf32>, vector<16x128xf32>, vector<16x128xf32>, vector<16x128xf32>, vector<16x128xf32> -> vector<144x128xf32>
    %cst_70 = arith.constant dense<0.000000e+00> : vector<16x128xf32>
    %336 = tpu.matmul %309, %335, %cst_70 {dimension_numbers = #tpu.dot_dimension_numbers<[1], [0], [0], [1], [0, 0, 1, 1], [], []>} : vector<16x144xf32>, vector<144x128xf32>, vector<16x128xf32> -> vector<16x128xf32>
    %337 = vector.broadcast %310 : vector<16x1xf32> to vector<16x128xf32>
    %338 = arith.addf %336, %337 : vector<16x128xf32>
    %cst_71 = arith.constant 0.000000e+00 : f32
    %339 = vector.broadcast %cst_71 : f32 to vector<16x128xf32>
    %340 = arith.maximumf %338, %339 : vector<16x128xf32>
    %c56 = arith.constant 56 : index
    %c0_72 = arith.constant 0 : index
    %341 = vector.load %arg2[%c56, %c0_72] : memref<200x288xf32, #tpu.memory_space<vmem>>, vector<16x144xf32>
    %c56_73 = arith.constant 56 : index
    %c0_74 = arith.constant 0 : index
    %342 = vector.load %arg3[%c56_73, %c0_74] : memref<202x1xf32, #tpu.memory_space<vmem>>, vector<16x1xf32>
    %c18_i32_75 = arith.constant 18 : i32
    %343 = tpu.dynamic_rotate %340 by %c18_i32_75 dim 1 : vector<16x128xf32>, i32 -> vector<16x128xf32>
    %344 = vector.broadcast %60 : vector<1x128xf32> to vector<16x128xf32>
    %345 = arith.mulf %343, %344 : vector<16x128xf32>
    %c16_i32_76 = arith.constant 16 : i32
    %346 = tpu.dynamic_rotate %340 by %c16_i32_76 dim 1 : vector<16x128xf32>, i32 -> vector<16x128xf32>
    %347 = vector.broadcast %62 : vector<1x128xf32> to vector<16x128xf32>
    %348 = arith.mulf %346, %347 : vector<16x128xf32>
    %c14_i32_77 = arith.constant 14 : i32
    %349 = tpu.dynamic_rotate %340 by %c14_i32_77 dim 1 : vector<16x128xf32>, i32 -> vector<16x128xf32>
    %350 = vector.broadcast %65 : vector<1x128xf32> to vector<16x128xf32>
    %351 = arith.mulf %349, %350 : vector<16x128xf32>
    %c2_i32_78 = arith.constant 2 : i32
    %352 = tpu.dynamic_rotate %340 by %c2_i32_78 dim 1 : vector<16x128xf32>, i32 -> vector<16x128xf32>
    %353 = vector.broadcast %67 : vector<1x128xf32> to vector<16x128xf32>
    %354 = arith.mulf %352, %353 : vector<16x128xf32>
    %c126_i32_79 = arith.constant 126 : i32
    %355 = tpu.dynamic_rotate %340 by %c126_i32_79 dim 1 : vector<16x128xf32>, i32 -> vector<16x128xf32>
    %356 = vector.broadcast %69 : vector<1x128xf32> to vector<16x128xf32>
    %357 = arith.mulf %355, %356 : vector<16x128xf32>
    %c114_i32_80 = arith.constant 114 : i32
    %358 = tpu.dynamic_rotate %340 by %c114_i32_80 dim 1 : vector<16x128xf32>, i32 -> vector<16x128xf32>
    %359 = vector.broadcast %72 : vector<1x128xf32> to vector<16x128xf32>
    %360 = arith.mulf %358, %359 : vector<16x128xf32>
    %c112_i32_81 = arith.constant 112 : i32
    %361 = tpu.dynamic_rotate %340 by %c112_i32_81 dim 1 : vector<16x128xf32>, i32 -> vector<16x128xf32>
    %362 = vector.broadcast %74 : vector<1x128xf32> to vector<16x128xf32>
    %363 = arith.mulf %361, %362 : vector<16x128xf32>
    %c110_i32_82 = arith.constant 110 : i32
    %364 = tpu.dynamic_rotate %340 by %c110_i32_82 dim 1 : vector<16x128xf32>, i32 -> vector<16x128xf32>
    %365 = vector.broadcast %77 : vector<1x128xf32> to vector<16x128xf32>
    %366 = arith.mulf %364, %365 : vector<16x128xf32>
    %367 = tpu.concatenate %345, %348, %351, %354, %340, %357, %360, %363, %366 in 0 : vector<16x128xf32>, vector<16x128xf32>, vector<16x128xf32>, vector<16x128xf32>, vector<16x128xf32>, vector<16x128xf32>, vector<16x128xf32>, vector<16x128xf32>, vector<16x128xf32> -> vector<144x128xf32>
    %cst_83 = arith.constant dense<0.000000e+00> : vector<16x128xf32>
    %368 = tpu.matmul %341, %367, %cst_83 {dimension_numbers = #tpu.dot_dimension_numbers<[1], [0], [0], [1], [0, 0, 1, 1], [], []>} : vector<16x144xf32>, vector<144x128xf32>, vector<16x128xf32> -> vector<16x128xf32>
    %369 = vector.broadcast %342 : vector<16x1xf32> to vector<16x128xf32>
    %370 = arith.addf %368, %369 : vector<16x128xf32>
    %cst_84 = arith.constant 0.000000e+00 : f32
    %371 = vector.broadcast %cst_84 : f32 to vector<16x128xf32>
    %372 = arith.maximumf %370, %371 : vector<16x128xf32>
    %373 = arith.addf %372, %308 : vector<16x128xf32>
    %c40_85 = arith.constant 40 : index
    %c0_86 = arith.constant 0 : index
    %374 = vector.load %arg2[%c40_85, %c0_86] : memref<200x288xf32, #tpu.memory_space<vmem>>, vector<16x144xf32>
    %c40_87 = arith.constant 40 : index
    %c0_88 = arith.constant 0 : index
    %375 = vector.load %arg3[%c40_87, %c0_88] : memref<202x1xf32, #tpu.memory_space<vmem>>, vector<16x1xf32>
    %c18_i32_89 = arith.constant 18 : i32
    %376 = tpu.dynamic_rotate %373 by %c18_i32_89 dim 1 : vector<16x128xf32>, i32 -> vector<16x128xf32>
    %377 = vector.broadcast %60 : vector<1x128xf32> to vector<16x128xf32>
    %378 = arith.mulf %376, %377 : vector<16x128xf32>
    %c16_i32_90 = arith.constant 16 : i32
    %379 = tpu.dynamic_rotate %373 by %c16_i32_90 dim 1 : vector<16x128xf32>, i32 -> vector<16x128xf32>
    %380 = vector.broadcast %62 : vector<1x128xf32> to vector<16x128xf32>
    %381 = arith.mulf %379, %380 : vector<16x128xf32>
    %c14_i32_91 = arith.constant 14 : i32
    %382 = tpu.dynamic_rotate %373 by %c14_i32_91 dim 1 : vector<16x128xf32>, i32 -> vector<16x128xf32>
    %383 = vector.broadcast %65 : vector<1x128xf32> to vector<16x128xf32>
    %384 = arith.mulf %382, %383 : vector<16x128xf32>
    %c2_i32_92 = arith.constant 2 : i32
    %385 = tpu.dynamic_rotate %373 by %c2_i32_92 dim 1 : vector<16x128xf32>, i32 -> vector<16x128xf32>
    %386 = vector.broadcast %67 : vector<1x128xf32> to vector<16x128xf32>
    %387 = arith.mulf %385, %386 : vector<16x128xf32>
    %c126_i32_93 = arith.constant 126 : i32
    %388 = tpu.dynamic_rotate %373 by %c126_i32_93 dim 1 : vector<16x128xf32>, i32 -> vector<16x128xf32>
    %389 = vector.broadcast %69 : vector<1x128xf32> to vector<16x128xf32>
    %390 = arith.mulf %388, %389 : vector<16x128xf32>
    %c114_i32_94 = arith.constant 114 : i32
    %391 = tpu.dynamic_rotate %373 by %c114_i32_94 dim 1 : vector<16x128xf32>, i32 -> vector<16x128xf32>
    %392 = vector.broadcast %72 : vector<1x128xf32> to vector<16x128xf32>
    %393 = arith.mulf %391, %392 : vector<16x128xf32>
    %c112_i32_95 = arith.constant 112 : i32
    %394 = tpu.dynamic_rotate %373 by %c112_i32_95 dim 1 : vector<16x128xf32>, i32 -> vector<16x128xf32>
    %395 = vector.broadcast %74 : vector<1x128xf32> to vector<16x128xf32>
    %396 = arith.mulf %394, %395 : vector<16x128xf32>
    %c110_i32_96 = arith.constant 110 : i32
    %397 = tpu.dynamic_rotate %373 by %c110_i32_96 dim 1 : vector<16x128xf32>, i32 -> vector<16x128xf32>
    %398 = vector.broadcast %77 : vector<1x128xf32> to vector<16x128xf32>
    %399 = arith.mulf %397, %398 : vector<16x128xf32>
    %400 = tpu.concatenate %378, %381, %384, %387, %373, %390, %393, %396, %399 in 0 : vector<16x128xf32>, vector<16x128xf32>, vector<16x128xf32>, vector<16x128xf32>, vector<16x128xf32>, vector<16x128xf32>, vector<16x128xf32>, vector<16x128xf32>, vector<16x128xf32> -> vector<144x128xf32>
    %cst_97 = arith.constant dense<0.000000e+00> : vector<16x128xf32>
    %401 = tpu.matmul %374, %400, %cst_97 {dimension_numbers = #tpu.dot_dimension_numbers<[1], [0], [0], [1], [0, 0, 1, 1], [], []>} : vector<16x144xf32>, vector<144x128xf32>, vector<16x128xf32> -> vector<16x128xf32>
    %402 = vector.broadcast %375 : vector<16x1xf32> to vector<16x128xf32>
    %403 = arith.addf %401, %402 : vector<16x128xf32>
    %cst_98 = arith.constant 0.000000e+00 : f32
    %404 = vector.broadcast %cst_98 : f32 to vector<16x128xf32>
    %405 = arith.maximumf %403, %404 : vector<16x128xf32>
    %c56_99 = arith.constant 56 : index
    %c0_100 = arith.constant 0 : index
    %406 = vector.load %arg2[%c56_99, %c0_100] : memref<200x288xf32, #tpu.memory_space<vmem>>, vector<16x144xf32>
    %c56_101 = arith.constant 56 : index
    %c0_102 = arith.constant 0 : index
    %407 = vector.load %arg3[%c56_101, %c0_102] : memref<202x1xf32, #tpu.memory_space<vmem>>, vector<16x1xf32>
    %c18_i32_103 = arith.constant 18 : i32
    %408 = tpu.dynamic_rotate %405 by %c18_i32_103 dim 1 : vector<16x128xf32>, i32 -> vector<16x128xf32>
    %409 = vector.broadcast %60 : vector<1x128xf32> to vector<16x128xf32>
    %410 = arith.mulf %408, %409 : vector<16x128xf32>
    %c16_i32_104 = arith.constant 16 : i32
    %411 = tpu.dynamic_rotate %405 by %c16_i32_104 dim 1 : vector<16x128xf32>, i32 -> vector<16x128xf32>
    %412 = vector.broadcast %62 : vector<1x128xf32> to vector<16x128xf32>
    %413 = arith.mulf %411, %412 : vector<16x128xf32>
    %c14_i32_105 = arith.constant 14 : i32
    %414 = tpu.dynamic_rotate %405 by %c14_i32_105 dim 1 : vector<16x128xf32>, i32 -> vector<16x128xf32>
    %415 = vector.broadcast %65 : vector<1x128xf32> to vector<16x128xf32>
    %416 = arith.mulf %414, %415 : vector<16x128xf32>
    %c2_i32_106 = arith.constant 2 : i32
    %417 = tpu.dynamic_rotate %405 by %c2_i32_106 dim 1 : vector<16x128xf32>, i32 -> vector<16x128xf32>
    %418 = vector.broadcast %67 : vector<1x128xf32> to vector<16x128xf32>
    %419 = arith.mulf %417, %418 : vector<16x128xf32>
    %c126_i32_107 = arith.constant 126 : i32
    %420 = tpu.dynamic_rotate %405 by %c126_i32_107 dim 1 : vector<16x128xf32>, i32 -> vector<16x128xf32>
    %421 = vector.broadcast %69 : vector<1x128xf32> to vector<16x128xf32>
    %422 = arith.mulf %420, %421 : vector<16x128xf32>
    %c114_i32_108 = arith.constant 114 : i32
    %423 = tpu.dynamic_rotate %405 by %c114_i32_108 dim 1 : vector<16x128xf32>, i32 -> vector<16x128xf32>
    %424 = vector.broadcast %72 : vector<1x128xf32> to vector<16x128xf32>
    %425 = arith.mulf %423, %424 : vector<16x128xf32>
    %c112_i32_109 = arith.constant 112 : i32
    %426 = tpu.dynamic_rotate %405 by %c112_i32_109 dim 1 : vector<16x128xf32>, i32 -> vector<16x128xf32>
    %427 = vector.broadcast %74 : vector<1x128xf32> to vector<16x128xf32>
    %428 = arith.mulf %426, %427 : vector<16x128xf32>
    %c110_i32_110 = arith.constant 110 : i32
    %429 = tpu.dynamic_rotate %405 by %c110_i32_110 dim 1 : vector<16x128xf32>, i32 -> vector<16x128xf32>
    %430 = vector.broadcast %77 : vector<1x128xf32> to vector<16x128xf32>
    %431 = arith.mulf %429, %430 : vector<16x128xf32>
    %432 = tpu.concatenate %410, %413, %416, %419, %405, %422, %425, %428, %431 in 0 : vector<16x128xf32>, vector<16x128xf32>, vector<16x128xf32>, vector<16x128xf32>, vector<16x128xf32>, vector<16x128xf32>, vector<16x128xf32>, vector<16x128xf32>, vector<16x128xf32> -> vector<144x128xf32>
    %cst_111 = arith.constant dense<0.000000e+00> : vector<16x128xf32>
    %433 = tpu.matmul %406, %432, %cst_111 {dimension_numbers = #tpu.dot_dimension_numbers<[1], [0], [0], [1], [0, 0, 1, 1], [], []>} : vector<16x144xf32>, vector<144x128xf32>, vector<16x128xf32> -> vector<16x128xf32>
    %434 = vector.broadcast %407 : vector<16x1xf32> to vector<16x128xf32>
    %435 = arith.addf %433, %434 : vector<16x128xf32>
    %cst_112 = arith.constant 0.000000e+00 : f32
    %436 = vector.broadcast %cst_112 : f32 to vector<16x128xf32>
    %437 = arith.maximumf %435, %436 : vector<16x128xf32>
    %438 = arith.addf %437, %373 : vector<16x128xf32>
    %c40_113 = arith.constant 40 : index
    %c0_114 = arith.constant 0 : index
    %439 = vector.load %arg2[%c40_113, %c0_114] : memref<200x288xf32, #tpu.memory_space<vmem>>, vector<16x144xf32>
    %c40_115 = arith.constant 40 : index
    %c0_116 = arith.constant 0 : index
    %440 = vector.load %arg3[%c40_115, %c0_116] : memref<202x1xf32, #tpu.memory_space<vmem>>, vector<16x1xf32>
    %c18_i32_117 = arith.constant 18 : i32
    %441 = tpu.dynamic_rotate %438 by %c18_i32_117 dim 1 : vector<16x128xf32>, i32 -> vector<16x128xf32>
    %442 = vector.broadcast %60 : vector<1x128xf32> to vector<16x128xf32>
    %443 = arith.mulf %441, %442 : vector<16x128xf32>
    %c16_i32_118 = arith.constant 16 : i32
    %444 = tpu.dynamic_rotate %438 by %c16_i32_118 dim 1 : vector<16x128xf32>, i32 -> vector<16x128xf32>
    %445 = vector.broadcast %62 : vector<1x128xf32> to vector<16x128xf32>
    %446 = arith.mulf %444, %445 : vector<16x128xf32>
    %c14_i32_119 = arith.constant 14 : i32
    %447 = tpu.dynamic_rotate %438 by %c14_i32_119 dim 1 : vector<16x128xf32>, i32 -> vector<16x128xf32>
    %448 = vector.broadcast %65 : vector<1x128xf32> to vector<16x128xf32>
    %449 = arith.mulf %447, %448 : vector<16x128xf32>
    %c2_i32_120 = arith.constant 2 : i32
    %450 = tpu.dynamic_rotate %438 by %c2_i32_120 dim 1 : vector<16x128xf32>, i32 -> vector<16x128xf32>
    %451 = vector.broadcast %67 : vector<1x128xf32> to vector<16x128xf32>
    %452 = arith.mulf %450, %451 : vector<16x128xf32>
    %c126_i32_121 = arith.constant 126 : i32
    %453 = tpu.dynamic_rotate %438 by %c126_i32_121 dim 1 : vector<16x128xf32>, i32 -> vector<16x128xf32>
    %454 = vector.broadcast %69 : vector<1x128xf32> to vector<16x128xf32>
    %455 = arith.mulf %453, %454 : vector<16x128xf32>
    %c114_i32_122 = arith.constant 114 : i32
    %456 = tpu.dynamic_rotate %438 by %c114_i32_122 dim 1 : vector<16x128xf32>, i32 -> vector<16x128xf32>
    %457 = vector.broadcast %72 : vector<1x128xf32> to vector<16x128xf32>
    %458 = arith.mulf %456, %457 : vector<16x128xf32>
    %c112_i32_123 = arith.constant 112 : i32
    %459 = tpu.dynamic_rotate %438 by %c112_i32_123 dim 1 : vector<16x128xf32>, i32 -> vector<16x128xf32>
    %460 = vector.broadcast %74 : vector<1x128xf32> to vector<16x128xf32>
    %461 = arith.mulf %459, %460 : vector<16x128xf32>
    %c110_i32_124 = arith.constant 110 : i32
    %462 = tpu.dynamic_rotate %438 by %c110_i32_124 dim 1 : vector<16x128xf32>, i32 -> vector<16x128xf32>
    %463 = vector.broadcast %77 : vector<1x128xf32> to vector<16x128xf32>
    %464 = arith.mulf %462, %463 : vector<16x128xf32>
    %465 = tpu.concatenate %443, %446, %449, %452, %438, %455, %458, %461, %464 in 0 : vector<16x128xf32>, vector<16x128xf32>, vector<16x128xf32>, vector<16x128xf32>, vector<16x128xf32>, vector<16x128xf32>, vector<16x128xf32>, vector<16x128xf32>, vector<16x128xf32> -> vector<144x128xf32>
    %cst_125 = arith.constant dense<0.000000e+00> : vector<16x128xf32>
    %466 = tpu.matmul %439, %465, %cst_125 {dimension_numbers = #tpu.dot_dimension_numbers<[1], [0], [0], [1], [0, 0, 1, 1], [], []>} : vector<16x144xf32>, vector<144x128xf32>, vector<16x128xf32> -> vector<16x128xf32>
    %467 = vector.broadcast %440 : vector<16x1xf32> to vector<16x128xf32>
    %468 = arith.addf %466, %467 : vector<16x128xf32>
    %cst_126 = arith.constant 0.000000e+00 : f32
    %469 = vector.broadcast %cst_126 : f32 to vector<16x128xf32>
    %470 = arith.maximumf %468, %469 : vector<16x128xf32>
    %c56_127 = arith.constant 56 : index
    %c0_128 = arith.constant 0 : index
    %471 = vector.load %arg2[%c56_127, %c0_128] : memref<200x288xf32, #tpu.memory_space<vmem>>, vector<16x144xf32>
    %c56_129 = arith.constant 56 : index
    %c0_130 = arith.constant 0 : index
    %472 = vector.load %arg3[%c56_129, %c0_130] : memref<202x1xf32, #tpu.memory_space<vmem>>, vector<16x1xf32>
    %c18_i32_131 = arith.constant 18 : i32
    %473 = tpu.dynamic_rotate %470 by %c18_i32_131 dim 1 : vector<16x128xf32>, i32 -> vector<16x128xf32>
    %474 = vector.broadcast %60 : vector<1x128xf32> to vector<16x128xf32>
    %475 = arith.mulf %473, %474 : vector<16x128xf32>
    %c16_i32_132 = arith.constant 16 : i32
    %476 = tpu.dynamic_rotate %470 by %c16_i32_132 dim 1 : vector<16x128xf32>, i32 -> vector<16x128xf32>
    %477 = vector.broadcast %62 : vector<1x128xf32> to vector<16x128xf32>
    %478 = arith.mulf %476, %477 : vector<16x128xf32>
    %c14_i32_133 = arith.constant 14 : i32
    %479 = tpu.dynamic_rotate %470 by %c14_i32_133 dim 1 : vector<16x128xf32>, i32 -> vector<16x128xf32>
    %480 = vector.broadcast %65 : vector<1x128xf32> to vector<16x128xf32>
    %481 = arith.mulf %479, %480 : vector<16x128xf32>
    %c2_i32_134 = arith.constant 2 : i32
    %482 = tpu.dynamic_rotate %470 by %c2_i32_134 dim 1 : vector<16x128xf32>, i32 -> vector<16x128xf32>
    %483 = vector.broadcast %67 : vector<1x128xf32> to vector<16x128xf32>
    %484 = arith.mulf %482, %483 : vector<16x128xf32>
    %c126_i32_135 = arith.constant 126 : i32
    %485 = tpu.dynamic_rotate %470 by %c126_i32_135 dim 1 : vector<16x128xf32>, i32 -> vector<16x128xf32>
    %486 = vector.broadcast %69 : vector<1x128xf32> to vector<16x128xf32>
    %487 = arith.mulf %485, %486 : vector<16x128xf32>
    %c114_i32_136 = arith.constant 114 : i32
    %488 = tpu.dynamic_rotate %470 by %c114_i32_136 dim 1 : vector<16x128xf32>, i32 -> vector<16x128xf32>
    %489 = vector.broadcast %72 : vector<1x128xf32> to vector<16x128xf32>
    %490 = arith.mulf %488, %489 : vector<16x128xf32>
    %c112_i32_137 = arith.constant 112 : i32
    %491 = tpu.dynamic_rotate %470 by %c112_i32_137 dim 1 : vector<16x128xf32>, i32 -> vector<16x128xf32>
    %492 = vector.broadcast %74 : vector<1x128xf32> to vector<16x128xf32>
    %493 = arith.mulf %491, %492 : vector<16x128xf32>
    %c110_i32_138 = arith.constant 110 : i32
    %494 = tpu.dynamic_rotate %470 by %c110_i32_138 dim 1 : vector<16x128xf32>, i32 -> vector<16x128xf32>
    %495 = vector.broadcast %77 : vector<1x128xf32> to vector<16x128xf32>
    %496 = arith.mulf %494, %495 : vector<16x128xf32>
    %497 = tpu.concatenate %475, %478, %481, %484, %470, %487, %490, %493, %496 in 0 : vector<16x128xf32>, vector<16x128xf32>, vector<16x128xf32>, vector<16x128xf32>, vector<16x128xf32>, vector<16x128xf32>, vector<16x128xf32>, vector<16x128xf32>, vector<16x128xf32> -> vector<144x128xf32>
    %cst_139 = arith.constant dense<0.000000e+00> : vector<16x128xf32>
    %498 = tpu.matmul %471, %497, %cst_139 {dimension_numbers = #tpu.dot_dimension_numbers<[1], [0], [0], [1], [0, 0, 1, 1], [], []>} : vector<16x144xf32>, vector<144x128xf32>, vector<16x128xf32> -> vector<16x128xf32>
    %499 = vector.broadcast %472 : vector<16x1xf32> to vector<16x128xf32>
    %500 = arith.addf %498, %499 : vector<16x128xf32>
    %cst_140 = arith.constant 0.000000e+00 : f32
    %501 = vector.broadcast %cst_140 : f32 to vector<16x128xf32>
    %502 = arith.maximumf %500, %501 : vector<16x128xf32>
    %503 = arith.addf %502, %438 : vector<16x128xf32>
    %c126_i32_141 = arith.constant 126 : i32
    %504 = tpu.dynamic_rotate %503 by %c126_i32_141 dim 1 : vector<16x128xf32>, i32 -> vector<16x128xf32>
    %505 = arith.maximumf %503, %504 : vector<16x128xf32>
    %c112_i32_142 = arith.constant 112 : i32
    %506 = tpu.dynamic_rotate %503 by %c112_i32_142 dim 1 : vector<16x128xf32>, i32 -> vector<16x128xf32>
    %c110_i32_143 = arith.constant 110 : i32
    %507 = tpu.dynamic_rotate %503 by %c110_i32_143 dim 1 : vector<16x128xf32>, i32 -> vector<16x128xf32>
    %508 = arith.maximumf %506, %507 : vector<16x128xf32>
    %509 = arith.maximumf %505, %508 : vector<16x128xf32>
    %510 = vector.extract_strided_slice %509 {offsets = [0, 0], sizes = [16, 2], strides = [1, 1]} : vector<16x128xf32> to vector<16x2xf32>
    %511 = vector.extract_strided_slice %509 {offsets = [0, 8], sizes = [16, 2], strides = [1, 1]} : vector<16x128xf32> to vector<16x2xf32>
    %512 = vector.extract_strided_slice %509 {offsets = [0, 64], sizes = [16, 2], strides = [1, 1]} : vector<16x128xf32> to vector<16x2xf32>
    %513 = vector.extract_strided_slice %509 {offsets = [0, 72], sizes = [16, 2], strides = [1, 1]} : vector<16x128xf32> to vector<16x2xf32>
    %514 = tpu.concatenate %510, %511, %512, %513 in 1 : vector<16x2xf32>, vector<16x2xf32>, vector<16x2xf32>, vector<16x2xf32> -> vector<16x8xf32>
    %c72 = arith.constant 72 : index
    %c0_144 = arith.constant 0 : index
    %515 = vector.load %arg2[%c72, %c0_144] : memref<200x288xf32, #tpu.memory_space<vmem>>, vector<32x144xf32>
    %c72_145 = arith.constant 72 : index
    %c0_146 = arith.constant 0 : index
    %516 = vector.load %arg3[%c72_145, %c0_146] : memref<202x1xf32, #tpu.memory_space<vmem>>, vector<32x1xf32>
    %cst_147 = arith.constant 0.000000e+00 : f32
    %517 = vector.broadcast %cst_147 : f32 to vector<16x6xf32>
    %518 = vector.extract_strided_slice %514 {offsets = [0, 0], sizes = [16, 2], strides = [1, 1]} : vector<16x8xf32> to vector<16x2xf32>
    %519 = tpu.concatenate %517, %518 in 1 : vector<16x6xf32>, vector<16x2xf32> -> vector<16x8xf32>
    %520 = vector.broadcast %95 : vector<1x8xf32> to vector<16x8xf32>
    %521 = arith.mulf %519, %520 : vector<16x8xf32>
    %cst_148 = arith.constant 0.000000e+00 : f32
    %522 = vector.broadcast %cst_148 : f32 to vector<16x4xf32>
    %523 = vector.extract_strided_slice %514 {offsets = [0, 0], sizes = [16, 4], strides = [1, 1]} : vector<16x8xf32> to vector<16x4xf32>
    %524 = tpu.concatenate %522, %523 in 1 : vector<16x4xf32>, vector<16x4xf32> -> vector<16x8xf32>
    %525 = vector.broadcast %97 : vector<1x8xf32> to vector<16x8xf32>
    %526 = arith.mulf %524, %525 : vector<16x8xf32>
    %cst_149 = arith.constant 0.000000e+00 : f32
    %527 = vector.broadcast %cst_149 : f32 to vector<16x2xf32>
    %528 = vector.extract_strided_slice %514 {offsets = [0, 0], sizes = [16, 6], strides = [1, 1]} : vector<16x8xf32> to vector<16x6xf32>
    %529 = tpu.concatenate %527, %528 in 1 : vector<16x2xf32>, vector<16x6xf32> -> vector<16x8xf32>
    %530 = vector.broadcast %100 : vector<1x8xf32> to vector<16x8xf32>
    %531 = arith.mulf %529, %530 : vector<16x8xf32>
    %cst_150 = arith.constant 0.000000e+00 : f32
    %532 = vector.broadcast %cst_150 : f32 to vector<16x2xf32>
    %533 = vector.extract_strided_slice %514 {offsets = [0, 0], sizes = [16, 6], strides = [1, 1]} : vector<16x8xf32> to vector<16x6xf32>
    %534 = tpu.concatenate %532, %533 in 1 : vector<16x2xf32>, vector<16x6xf32> -> vector<16x8xf32>
    %535 = vector.broadcast %102 : vector<1x8xf32> to vector<16x8xf32>
    %536 = arith.mulf %534, %535 : vector<16x8xf32>
    %cst_151 = arith.constant 0.000000e+00 : f32
    %537 = vector.broadcast %cst_151 : f32 to vector<16x2xf32>
    %538 = vector.extract_strided_slice %514 {offsets = [0, 2], sizes = [16, 6], strides = [1, 1]} : vector<16x8xf32> to vector<16x6xf32>
    %539 = tpu.concatenate %538, %537 in 1 : vector<16x6xf32>, vector<16x2xf32> -> vector<16x8xf32>
    %540 = vector.broadcast %104 : vector<1x8xf32> to vector<16x8xf32>
    %541 = arith.mulf %539, %540 : vector<16x8xf32>
    %cst_152 = arith.constant 0.000000e+00 : f32
    %542 = vector.broadcast %cst_152 : f32 to vector<16x2xf32>
    %543 = vector.extract_strided_slice %514 {offsets = [0, 2], sizes = [16, 6], strides = [1, 1]} : vector<16x8xf32> to vector<16x6xf32>
    %544 = tpu.concatenate %543, %542 in 1 : vector<16x6xf32>, vector<16x2xf32> -> vector<16x8xf32>
    %545 = vector.broadcast %107 : vector<1x8xf32> to vector<16x8xf32>
    %546 = arith.mulf %544, %545 : vector<16x8xf32>
    %cst_153 = arith.constant 0.000000e+00 : f32
    %547 = vector.broadcast %cst_153 : f32 to vector<16x4xf32>
    %548 = vector.extract_strided_slice %514 {offsets = [0, 4], sizes = [16, 4], strides = [1, 1]} : vector<16x8xf32> to vector<16x4xf32>
    %549 = tpu.concatenate %548, %547 in 1 : vector<16x4xf32>, vector<16x4xf32> -> vector<16x8xf32>
    %550 = vector.broadcast %109 : vector<1x8xf32> to vector<16x8xf32>
    %551 = arith.mulf %549, %550 : vector<16x8xf32>
    %cst_154 = arith.constant 0.000000e+00 : f32
    %552 = vector.broadcast %cst_154 : f32 to vector<16x6xf32>
    %553 = vector.extract_strided_slice %514 {offsets = [0, 6], sizes = [16, 2], strides = [1, 1]} : vector<16x8xf32> to vector<16x2xf32>
    %554 = tpu.concatenate %553, %552 in 1 : vector<16x2xf32>, vector<16x6xf32> -> vector<16x8xf32>
    %555 = vector.broadcast %112 : vector<1x8xf32> to vector<16x8xf32>
    %556 = arith.mulf %554, %555 : vector<16x8xf32>
    %557 = tpu.concatenate %521, %526, %531, %536, %514, %541, %546, %551, %556 in 0 : vector<16x8xf32>, vector<16x8xf32>, vector<16x8xf32>, vector<16x8xf32>, vector<16x8xf32>, vector<16x8xf32>, vector<16x8xf32>, vector<16x8xf32>, vector<16x8xf32> -> vector<144x8xf32>
    %cst_155 = arith.constant dense<0.000000e+00> : vector<32x8xf32>
    %558 = tpu.matmul %515, %557, %cst_155 {dimension_numbers = #tpu.dot_dimension_numbers<[1], [0], [0], [1], [0, 0, 1, 1], [], []>} : vector<32x144xf32>, vector<144x8xf32>, vector<32x8xf32> -> vector<32x8xf32>
    %559 = vector.broadcast %516 : vector<32x1xf32> to vector<32x8xf32>
    %560 = arith.addf %558, %559 : vector<32x8xf32>
    %cst_156 = arith.constant 0.000000e+00 : f32
    %561 = vector.broadcast %cst_156 : f32 to vector<32x8xf32>
    %562 = arith.maximumf %560, %561 : vector<32x8xf32>
    %c104 = arith.constant 104 : index
    %c0_157 = arith.constant 0 : index
    %563 = vector.load %arg2[%c104, %c0_157] : memref<200x288xf32, #tpu.memory_space<vmem>>, vector<32x288xf32>
    %c104_158 = arith.constant 104 : index
    %c0_159 = arith.constant 0 : index
    %564 = vector.load %arg3[%c104_158, %c0_159] : memref<202x1xf32, #tpu.memory_space<vmem>>, vector<32x1xf32>
    %cst_160 = arith.constant 0.000000e+00 : f32
    %565 = vector.broadcast %cst_160 : f32 to vector<32x6xf32>
    %566 = vector.extract_strided_slice %562 {offsets = [0, 0], sizes = [32, 2], strides = [1, 1]} : vector<32x8xf32> to vector<32x2xf32>
    %567 = tpu.concatenate %565, %566 in 1 : vector<32x6xf32>, vector<32x2xf32> -> vector<32x8xf32>
    %568 = vector.broadcast %95 : vector<1x8xf32> to vector<32x8xf32>
    %569 = arith.mulf %567, %568 : vector<32x8xf32>
    %cst_161 = arith.constant 0.000000e+00 : f32
    %570 = vector.broadcast %cst_161 : f32 to vector<32x4xf32>
    %571 = vector.extract_strided_slice %562 {offsets = [0, 0], sizes = [32, 4], strides = [1, 1]} : vector<32x8xf32> to vector<32x4xf32>
    %572 = tpu.concatenate %570, %571 in 1 : vector<32x4xf32>, vector<32x4xf32> -> vector<32x8xf32>
    %573 = vector.broadcast %97 : vector<1x8xf32> to vector<32x8xf32>
    %574 = arith.mulf %572, %573 : vector<32x8xf32>
    %cst_162 = arith.constant 0.000000e+00 : f32
    %575 = vector.broadcast %cst_162 : f32 to vector<32x2xf32>
    %576 = vector.extract_strided_slice %562 {offsets = [0, 0], sizes = [32, 6], strides = [1, 1]} : vector<32x8xf32> to vector<32x6xf32>
    %577 = tpu.concatenate %575, %576 in 1 : vector<32x2xf32>, vector<32x6xf32> -> vector<32x8xf32>
    %578 = vector.broadcast %100 : vector<1x8xf32> to vector<32x8xf32>
    %579 = arith.mulf %577, %578 : vector<32x8xf32>
    %cst_163 = arith.constant 0.000000e+00 : f32
    %580 = vector.broadcast %cst_163 : f32 to vector<32x2xf32>
    %581 = vector.extract_strided_slice %562 {offsets = [0, 0], sizes = [32, 6], strides = [1, 1]} : vector<32x8xf32> to vector<32x6xf32>
    %582 = tpu.concatenate %580, %581 in 1 : vector<32x2xf32>, vector<32x6xf32> -> vector<32x8xf32>
    %583 = vector.broadcast %102 : vector<1x8xf32> to vector<32x8xf32>
    %584 = arith.mulf %582, %583 : vector<32x8xf32>
    %cst_164 = arith.constant 0.000000e+00 : f32
    %585 = vector.broadcast %cst_164 : f32 to vector<32x2xf32>
    %586 = vector.extract_strided_slice %562 {offsets = [0, 2], sizes = [32, 6], strides = [1, 1]} : vector<32x8xf32> to vector<32x6xf32>
    %587 = tpu.concatenate %586, %585 in 1 : vector<32x6xf32>, vector<32x2xf32> -> vector<32x8xf32>
    %588 = vector.broadcast %104 : vector<1x8xf32> to vector<32x8xf32>
    %589 = arith.mulf %587, %588 : vector<32x8xf32>
    %cst_165 = arith.constant 0.000000e+00 : f32
    %590 = vector.broadcast %cst_165 : f32 to vector<32x2xf32>
    %591 = vector.extract_strided_slice %562 {offsets = [0, 2], sizes = [32, 6], strides = [1, 1]} : vector<32x8xf32> to vector<32x6xf32>
    %592 = tpu.concatenate %591, %590 in 1 : vector<32x6xf32>, vector<32x2xf32> -> vector<32x8xf32>
    %593 = vector.broadcast %107 : vector<1x8xf32> to vector<32x8xf32>
    %594 = arith.mulf %592, %593 : vector<32x8xf32>
    %cst_166 = arith.constant 0.000000e+00 : f32
    %595 = vector.broadcast %cst_166 : f32 to vector<32x4xf32>
    %596 = vector.extract_strided_slice %562 {offsets = [0, 4], sizes = [32, 4], strides = [1, 1]} : vector<32x8xf32> to vector<32x4xf32>
    %597 = tpu.concatenate %596, %595 in 1 : vector<32x4xf32>, vector<32x4xf32> -> vector<32x8xf32>
    %598 = vector.broadcast %109 : vector<1x8xf32> to vector<32x8xf32>
    %599 = arith.mulf %597, %598 : vector<32x8xf32>
    %cst_167 = arith.constant 0.000000e+00 : f32
    %600 = vector.broadcast %cst_167 : f32 to vector<32x6xf32>
    %601 = vector.extract_strided_slice %562 {offsets = [0, 6], sizes = [32, 2], strides = [1, 1]} : vector<32x8xf32> to vector<32x2xf32>
    %602 = tpu.concatenate %601, %600 in 1 : vector<32x2xf32>, vector<32x6xf32> -> vector<32x8xf32>
    %603 = vector.broadcast %112 : vector<1x8xf32> to vector<32x8xf32>
    %604 = arith.mulf %602, %603 : vector<32x8xf32>
    %605 = tpu.concatenate %569, %574, %579, %584, %562, %589, %594, %599, %604 in 0 : vector<32x8xf32>, vector<32x8xf32>, vector<32x8xf32>, vector<32x8xf32>, vector<32x8xf32>, vector<32x8xf32>, vector<32x8xf32>, vector<32x8xf32>, vector<32x8xf32> -> vector<288x8xf32>
    %cst_168 = arith.constant dense<0.000000e+00> : vector<32x8xf32>
    %606 = tpu.matmul %563, %605, %cst_168 {dimension_numbers = #tpu.dot_dimension_numbers<[1], [0], [0], [1], [0, 0, 1, 1], [], []>} : vector<32x288xf32>, vector<288x8xf32>, vector<32x8xf32> -> vector<32x8xf32>
    %607 = vector.broadcast %564 : vector<32x1xf32> to vector<32x8xf32>
    %608 = arith.addf %606, %607 : vector<32x8xf32>
    %cst_169 = arith.constant 0.000000e+00 : f32
    %609 = vector.broadcast %cst_169 : f32 to vector<32x8xf32>
    %610 = arith.maximumf %608, %609 : vector<32x8xf32>
    %c136 = arith.constant 136 : index
    %c0_170 = arith.constant 0 : index
    %611 = vector.load %arg2[%c136, %c0_170] : memref<200x288xf32, #tpu.memory_space<vmem>>, vector<32x288xf32>
    %c136_171 = arith.constant 136 : index
    %c0_172 = arith.constant 0 : index
    %612 = vector.load %arg3[%c136_171, %c0_172] : memref<202x1xf32, #tpu.memory_space<vmem>>, vector<32x1xf32>
    %cst_173 = arith.constant 0.000000e+00 : f32
    %613 = vector.broadcast %cst_173 : f32 to vector<32x6xf32>
    %614 = vector.extract_strided_slice %610 {offsets = [0, 0], sizes = [32, 2], strides = [1, 1]} : vector<32x8xf32> to vector<32x2xf32>
    %615 = tpu.concatenate %613, %614 in 1 : vector<32x6xf32>, vector<32x2xf32> -> vector<32x8xf32>
    %616 = vector.broadcast %95 : vector<1x8xf32> to vector<32x8xf32>
    %617 = arith.mulf %615, %616 : vector<32x8xf32>
    %cst_174 = arith.constant 0.000000e+00 : f32
    %618 = vector.broadcast %cst_174 : f32 to vector<32x4xf32>
    %619 = vector.extract_strided_slice %610 {offsets = [0, 0], sizes = [32, 4], strides = [1, 1]} : vector<32x8xf32> to vector<32x4xf32>
    %620 = tpu.concatenate %618, %619 in 1 : vector<32x4xf32>, vector<32x4xf32> -> vector<32x8xf32>
    %621 = vector.broadcast %97 : vector<1x8xf32> to vector<32x8xf32>
    %622 = arith.mulf %620, %621 : vector<32x8xf32>
    %cst_175 = arith.constant 0.000000e+00 : f32
    %623 = vector.broadcast %cst_175 : f32 to vector<32x2xf32>
    %624 = vector.extract_strided_slice %610 {offsets = [0, 0], sizes = [32, 6], strides = [1, 1]} : vector<32x8xf32> to vector<32x6xf32>
    %625 = tpu.concatenate %623, %624 in 1 : vector<32x2xf32>, vector<32x6xf32> -> vector<32x8xf32>
    %626 = vector.broadcast %100 : vector<1x8xf32> to vector<32x8xf32>
    %627 = arith.mulf %625, %626 : vector<32x8xf32>
    %cst_176 = arith.constant 0.000000e+00 : f32
    %628 = vector.broadcast %cst_176 : f32 to vector<32x2xf32>
    %629 = vector.extract_strided_slice %610 {offsets = [0, 0], sizes = [32, 6], strides = [1, 1]} : vector<32x8xf32> to vector<32x6xf32>
    %630 = tpu.concatenate %628, %629 in 1 : vector<32x2xf32>, vector<32x6xf32> -> vector<32x8xf32>
    %631 = vector.broadcast %102 : vector<1x8xf32> to vector<32x8xf32>
    %632 = arith.mulf %630, %631 : vector<32x8xf32>
    %cst_177 = arith.constant 0.000000e+00 : f32
    %633 = vector.broadcast %cst_177 : f32 to vector<32x2xf32>
    %634 = vector.extract_strided_slice %610 {offsets = [0, 2], sizes = [32, 6], strides = [1, 1]} : vector<32x8xf32> to vector<32x6xf32>
    %635 = tpu.concatenate %634, %633 in 1 : vector<32x6xf32>, vector<32x2xf32> -> vector<32x8xf32>
    %636 = vector.broadcast %104 : vector<1x8xf32> to vector<32x8xf32>
    %637 = arith.mulf %635, %636 : vector<32x8xf32>
    %cst_178 = arith.constant 0.000000e+00 : f32
    %638 = vector.broadcast %cst_178 : f32 to vector<32x2xf32>
    %639 = vector.extract_strided_slice %610 {offsets = [0, 2], sizes = [32, 6], strides = [1, 1]} : vector<32x8xf32> to vector<32x6xf32>
    %640 = tpu.concatenate %639, %638 in 1 : vector<32x6xf32>, vector<32x2xf32> -> vector<32x8xf32>
    %641 = vector.broadcast %107 : vector<1x8xf32> to vector<32x8xf32>
    %642 = arith.mulf %640, %641 : vector<32x8xf32>
    %cst_179 = arith.constant 0.000000e+00 : f32
    %643 = vector.broadcast %cst_179 : f32 to vector<32x4xf32>
    %644 = vector.extract_strided_slice %610 {offsets = [0, 4], sizes = [32, 4], strides = [1, 1]} : vector<32x8xf32> to vector<32x4xf32>
    %645 = tpu.concatenate %644, %643 in 1 : vector<32x4xf32>, vector<32x4xf32> -> vector<32x8xf32>
    %646 = vector.broadcast %109 : vector<1x8xf32> to vector<32x8xf32>
    %647 = arith.mulf %645, %646 : vector<32x8xf32>
    %cst_180 = arith.constant 0.000000e+00 : f32
    %648 = vector.broadcast %cst_180 : f32 to vector<32x6xf32>
    %649 = vector.extract_strided_slice %610 {offsets = [0, 6], sizes = [32, 2], strides = [1, 1]} : vector<32x8xf32> to vector<32x2xf32>
    %650 = tpu.concatenate %649, %648 in 1 : vector<32x2xf32>, vector<32x6xf32> -> vector<32x8xf32>
    %651 = vector.broadcast %112 : vector<1x8xf32> to vector<32x8xf32>
    %652 = arith.mulf %650, %651 : vector<32x8xf32>
    %653 = tpu.concatenate %617, %622, %627, %632, %610, %637, %642, %647, %652 in 0 : vector<32x8xf32>, vector<32x8xf32>, vector<32x8xf32>, vector<32x8xf32>, vector<32x8xf32>, vector<32x8xf32>, vector<32x8xf32>, vector<32x8xf32>, vector<32x8xf32> -> vector<288x8xf32>
    %cst_181 = arith.constant dense<0.000000e+00> : vector<32x8xf32>
    %654 = tpu.matmul %611, %653, %cst_181 {dimension_numbers = #tpu.dot_dimension_numbers<[1], [0], [0], [1], [0, 0, 1, 1], [], []>} : vector<32x288xf32>, vector<288x8xf32>, vector<32x8xf32> -> vector<32x8xf32>
    %655 = vector.broadcast %612 : vector<32x1xf32> to vector<32x8xf32>
    %656 = arith.addf %654, %655 : vector<32x8xf32>
    %cst_182 = arith.constant 0.000000e+00 : f32
    %657 = vector.broadcast %cst_182 : f32 to vector<32x8xf32>
    %658 = arith.maximumf %656, %657 : vector<32x8xf32>
    %659 = arith.addf %658, %562 : vector<32x8xf32>
    %c104_183 = arith.constant 104 : index
    %c0_184 = arith.constant 0 : index
    %660 = vector.load %arg2[%c104_183, %c0_184] : memref<200x288xf32, #tpu.memory_space<vmem>>, vector<32x288xf32>
    %c104_185 = arith.constant 104 : index
    %c0_186 = arith.constant 0 : index
    %661 = vector.load %arg3[%c104_185, %c0_186] : memref<202x1xf32, #tpu.memory_space<vmem>>, vector<32x1xf32>
    %cst_187 = arith.constant 0.000000e+00 : f32
    %662 = vector.broadcast %cst_187 : f32 to vector<32x6xf32>
    %663 = vector.extract_strided_slice %659 {offsets = [0, 0], sizes = [32, 2], strides = [1, 1]} : vector<32x8xf32> to vector<32x2xf32>
    %664 = tpu.concatenate %662, %663 in 1 : vector<32x6xf32>, vector<32x2xf32> -> vector<32x8xf32>
    %665 = vector.broadcast %95 : vector<1x8xf32> to vector<32x8xf32>
    %666 = arith.mulf %664, %665 : vector<32x8xf32>
    %cst_188 = arith.constant 0.000000e+00 : f32
    %667 = vector.broadcast %cst_188 : f32 to vector<32x4xf32>
    %668 = vector.extract_strided_slice %659 {offsets = [0, 0], sizes = [32, 4], strides = [1, 1]} : vector<32x8xf32> to vector<32x4xf32>
    %669 = tpu.concatenate %667, %668 in 1 : vector<32x4xf32>, vector<32x4xf32> -> vector<32x8xf32>
    %670 = vector.broadcast %97 : vector<1x8xf32> to vector<32x8xf32>
    %671 = arith.mulf %669, %670 : vector<32x8xf32>
    %cst_189 = arith.constant 0.000000e+00 : f32
    %672 = vector.broadcast %cst_189 : f32 to vector<32x2xf32>
    %673 = vector.extract_strided_slice %659 {offsets = [0, 0], sizes = [32, 6], strides = [1, 1]} : vector<32x8xf32> to vector<32x6xf32>
    %674 = tpu.concatenate %672, %673 in 1 : vector<32x2xf32>, vector<32x6xf32> -> vector<32x8xf32>
    %675 = vector.broadcast %100 : vector<1x8xf32> to vector<32x8xf32>
    %676 = arith.mulf %674, %675 : vector<32x8xf32>
    %cst_190 = arith.constant 0.000000e+00 : f32
    %677 = vector.broadcast %cst_190 : f32 to vector<32x2xf32>
    %678 = vector.extract_strided_slice %659 {offsets = [0, 0], sizes = [32, 6], strides = [1, 1]} : vector<32x8xf32> to vector<32x6xf32>
    %679 = tpu.concatenate %677, %678 in 1 : vector<32x2xf32>, vector<32x6xf32> -> vector<32x8xf32>
    %680 = vector.broadcast %102 : vector<1x8xf32> to vector<32x8xf32>
    %681 = arith.mulf %679, %680 : vector<32x8xf32>
    %cst_191 = arith.constant 0.000000e+00 : f32
    %682 = vector.broadcast %cst_191 : f32 to vector<32x2xf32>
    %683 = vector.extract_strided_slice %659 {offsets = [0, 2], sizes = [32, 6], strides = [1, 1]} : vector<32x8xf32> to vector<32x6xf32>
    %684 = tpu.concatenate %683, %682 in 1 : vector<32x6xf32>, vector<32x2xf32> -> vector<32x8xf32>
    %685 = vector.broadcast %104 : vector<1x8xf32> to vector<32x8xf32>
    %686 = arith.mulf %684, %685 : vector<32x8xf32>
    %cst_192 = arith.constant 0.000000e+00 : f32
    %687 = vector.broadcast %cst_192 : f32 to vector<32x2xf32>
    %688 = vector.extract_strided_slice %659 {offsets = [0, 2], sizes = [32, 6], strides = [1, 1]} : vector<32x8xf32> to vector<32x6xf32>
    %689 = tpu.concatenate %688, %687 in 1 : vector<32x6xf32>, vector<32x2xf32> -> vector<32x8xf32>
    %690 = vector.broadcast %107 : vector<1x8xf32> to vector<32x8xf32>
    %691 = arith.mulf %689, %690 : vector<32x8xf32>
    %cst_193 = arith.constant 0.000000e+00 : f32
    %692 = vector.broadcast %cst_193 : f32 to vector<32x4xf32>
    %693 = vector.extract_strided_slice %659 {offsets = [0, 4], sizes = [32, 4], strides = [1, 1]} : vector<32x8xf32> to vector<32x4xf32>
    %694 = tpu.concatenate %693, %692 in 1 : vector<32x4xf32>, vector<32x4xf32> -> vector<32x8xf32>
    %695 = vector.broadcast %109 : vector<1x8xf32> to vector<32x8xf32>
    %696 = arith.mulf %694, %695 : vector<32x8xf32>
    %cst_194 = arith.constant 0.000000e+00 : f32
    %697 = vector.broadcast %cst_194 : f32 to vector<32x6xf32>
    %698 = vector.extract_strided_slice %659 {offsets = [0, 6], sizes = [32, 2], strides = [1, 1]} : vector<32x8xf32> to vector<32x2xf32>
    %699 = tpu.concatenate %698, %697 in 1 : vector<32x2xf32>, vector<32x6xf32> -> vector<32x8xf32>
    %700 = vector.broadcast %112 : vector<1x8xf32> to vector<32x8xf32>
    %701 = arith.mulf %699, %700 : vector<32x8xf32>
    %702 = tpu.concatenate %666, %671, %676, %681, %659, %686, %691, %696, %701 in 0 : vector<32x8xf32>, vector<32x8xf32>, vector<32x8xf32>, vector<32x8xf32>, vector<32x8xf32>, vector<32x8xf32>, vector<32x8xf32>, vector<32x8xf32>, vector<32x8xf32> -> vector<288x8xf32>
    %cst_195 = arith.constant dense<0.000000e+00> : vector<32x8xf32>
    %703 = tpu.matmul %660, %702, %cst_195 {dimension_numbers = #tpu.dot_dimension_numbers<[1], [0], [0], [1], [0, 0, 1, 1], [], []>} : vector<32x288xf32>, vector<288x8xf32>, vector<32x8xf32> -> vector<32x8xf32>
    %704 = vector.broadcast %661 : vector<32x1xf32> to vector<32x8xf32>
    %705 = arith.addf %703, %704 : vector<32x8xf32>
    %cst_196 = arith.constant 0.000000e+00 : f32
    %706 = vector.broadcast %cst_196 : f32 to vector<32x8xf32>
    %707 = arith.maximumf %705, %706 : vector<32x8xf32>
    %c136_197 = arith.constant 136 : index
    %c0_198 = arith.constant 0 : index
    %708 = vector.load %arg2[%c136_197, %c0_198] : memref<200x288xf32, #tpu.memory_space<vmem>>, vector<32x288xf32>
    %c136_199 = arith.constant 136 : index
    %c0_200 = arith.constant 0 : index
    %709 = vector.load %arg3[%c136_199, %c0_200] : memref<202x1xf32, #tpu.memory_space<vmem>>, vector<32x1xf32>
    %cst_201 = arith.constant 0.000000e+00 : f32
    %710 = vector.broadcast %cst_201 : f32 to vector<32x6xf32>
    %711 = vector.extract_strided_slice %707 {offsets = [0, 0], sizes = [32, 2], strides = [1, 1]} : vector<32x8xf32> to vector<32x2xf32>
    %712 = tpu.concatenate %710, %711 in 1 : vector<32x6xf32>, vector<32x2xf32> -> vector<32x8xf32>
    %713 = vector.broadcast %95 : vector<1x8xf32> to vector<32x8xf32>
    %714 = arith.mulf %712, %713 : vector<32x8xf32>
    %cst_202 = arith.constant 0.000000e+00 : f32
    %715 = vector.broadcast %cst_202 : f32 to vector<32x4xf32>
    %716 = vector.extract_strided_slice %707 {offsets = [0, 0], sizes = [32, 4], strides = [1, 1]} : vector<32x8xf32> to vector<32x4xf32>
    %717 = tpu.concatenate %715, %716 in 1 : vector<32x4xf32>, vector<32x4xf32> -> vector<32x8xf32>
    %718 = vector.broadcast %97 : vector<1x8xf32> to vector<32x8xf32>
    %719 = arith.mulf %717, %718 : vector<32x8xf32>
    %cst_203 = arith.constant 0.000000e+00 : f32
    %720 = vector.broadcast %cst_203 : f32 to vector<32x2xf32>
    %721 = vector.extract_strided_slice %707 {offsets = [0, 0], sizes = [32, 6], strides = [1, 1]} : vector<32x8xf32> to vector<32x6xf32>
    %722 = tpu.concatenate %720, %721 in 1 : vector<32x2xf32>, vector<32x6xf32> -> vector<32x8xf32>
    %723 = vector.broadcast %100 : vector<1x8xf32> to vector<32x8xf32>
    %724 = arith.mulf %722, %723 : vector<32x8xf32>
    %cst_204 = arith.constant 0.000000e+00 : f32
    %725 = vector.broadcast %cst_204 : f32 to vector<32x2xf32>
    %726 = vector.extract_strided_slice %707 {offsets = [0, 0], sizes = [32, 6], strides = [1, 1]} : vector<32x8xf32> to vector<32x6xf32>
    %727 = tpu.concatenate %725, %726 in 1 : vector<32x2xf32>, vector<32x6xf32> -> vector<32x8xf32>
    %728 = vector.broadcast %102 : vector<1x8xf32> to vector<32x8xf32>
    %729 = arith.mulf %727, %728 : vector<32x8xf32>
    %cst_205 = arith.constant 0.000000e+00 : f32
    %730 = vector.broadcast %cst_205 : f32 to vector<32x2xf32>
    %731 = vector.extract_strided_slice %707 {offsets = [0, 2], sizes = [32, 6], strides = [1, 1]} : vector<32x8xf32> to vector<32x6xf32>
    %732 = tpu.concatenate %731, %730 in 1 : vector<32x6xf32>, vector<32x2xf32> -> vector<32x8xf32>
    %733 = vector.broadcast %104 : vector<1x8xf32> to vector<32x8xf32>
    %734 = arith.mulf %732, %733 : vector<32x8xf32>
    %cst_206 = arith.constant 0.000000e+00 : f32
    %735 = vector.broadcast %cst_206 : f32 to vector<32x2xf32>
    %736 = vector.extract_strided_slice %707 {offsets = [0, 2], sizes = [32, 6], strides = [1, 1]} : vector<32x8xf32> to vector<32x6xf32>
    %737 = tpu.concatenate %736, %735 in 1 : vector<32x6xf32>, vector<32x2xf32> -> vector<32x8xf32>
    %738 = vector.broadcast %107 : vector<1x8xf32> to vector<32x8xf32>
    %739 = arith.mulf %737, %738 : vector<32x8xf32>
    %cst_207 = arith.constant 0.000000e+00 : f32
    %740 = vector.broadcast %cst_207 : f32 to vector<32x4xf32>
    %741 = vector.extract_strided_slice %707 {offsets = [0, 4], sizes = [32, 4], strides = [1, 1]} : vector<32x8xf32> to vector<32x4xf32>
    %742 = tpu.concatenate %741, %740 in 1 : vector<32x4xf32>, vector<32x4xf32> -> vector<32x8xf32>
    %743 = vector.broadcast %109 : vector<1x8xf32> to vector<32x8xf32>
    %744 = arith.mulf %742, %743 : vector<32x8xf32>
    %cst_208 = arith.constant 0.000000e+00 : f32
    %745 = vector.broadcast %cst_208 : f32 to vector<32x6xf32>
    %746 = vector.extract_strided_slice %707 {offsets = [0, 6], sizes = [32, 2], strides = [1, 1]} : vector<32x8xf32> to vector<32x2xf32>
    %747 = tpu.concatenate %746, %745 in 1 : vector<32x2xf32>, vector<32x6xf32> -> vector<32x8xf32>
    %748 = vector.broadcast %112 : vector<1x8xf32> to vector<32x8xf32>
    %749 = arith.mulf %747, %748 : vector<32x8xf32>
    %750 = tpu.concatenate %714, %719, %724, %729, %707, %734, %739, %744, %749 in 0 : vector<32x8xf32>, vector<32x8xf32>, vector<32x8xf32>, vector<32x8xf32>, vector<32x8xf32>, vector<32x8xf32>, vector<32x8xf32>, vector<32x8xf32>, vector<32x8xf32> -> vector<288x8xf32>
    %cst_209 = arith.constant dense<0.000000e+00> : vector<32x8xf32>
    %751 = tpu.matmul %708, %750, %cst_209 {dimension_numbers = #tpu.dot_dimension_numbers<[1], [0], [0], [1], [0, 0, 1, 1], [], []>} : vector<32x288xf32>, vector<288x8xf32>, vector<32x8xf32> -> vector<32x8xf32>
    %752 = vector.broadcast %709 : vector<32x1xf32> to vector<32x8xf32>
    %753 = arith.addf %751, %752 : vector<32x8xf32>
    %cst_210 = arith.constant 0.000000e+00 : f32
    %754 = vector.broadcast %cst_210 : f32 to vector<32x8xf32>
    %755 = arith.maximumf %753, %754 : vector<32x8xf32>
    %756 = arith.addf %755, %659 : vector<32x8xf32>
    %757 = vector.extract_strided_slice %756 {offsets = [0, 0], sizes = [32, 2], strides = [1, 1]} : vector<32x8xf32> to vector<32x2xf32>
    %758 = vector.extract_strided_slice %756 {offsets = [0, 2], sizes = [32, 2], strides = [1, 1]} : vector<32x8xf32> to vector<32x2xf32>
    %759 = arith.maximumf %757, %758 : vector<32x2xf32>
    %760 = vector.extract_strided_slice %756 {offsets = [0, 4], sizes = [32, 2], strides = [1, 1]} : vector<32x8xf32> to vector<32x2xf32>
    %761 = vector.extract_strided_slice %756 {offsets = [0, 6], sizes = [32, 2], strides = [1, 1]} : vector<32x8xf32> to vector<32x2xf32>
    %762 = arith.maximumf %760, %761 : vector<32x2xf32>
    %763 = arith.maximumf %759, %762 : vector<32x2xf32>
    %c168 = arith.constant 168 : index
    %c0_211 = arith.constant 0 : index
    %764 = vector.load %arg2[%c168, %c0_211] : memref<200x288xf32, #tpu.memory_space<vmem>>, vector<32x32xf32>
    %cst_212 = arith.constant dense<0.000000e+00> : vector<32x2xf32>
    %765 = tpu.matmul %764, %763, %cst_212 {dimension_numbers = #tpu.dot_dimension_numbers<[1], [0], [0], [1], [0, 0, 1, 1], [], []>} : vector<32x32xf32>, vector<32x2xf32>, vector<32x2xf32> -> vector<32x2xf32>
    %c168_213 = arith.constant 168 : index
    %c0_214 = arith.constant 0 : index
    %766 = vector.load %arg3[%c168_213, %c0_214] : memref<202x1xf32, #tpu.memory_space<vmem>>, vector<32x1xf32>
    %767 = vector.broadcast %766 : vector<32x1xf32> to vector<32x2xf32>
    %768 = arith.addf %765, %767 : vector<32x2xf32>
    %cst_215 = arith.constant 0.000000e+00 : f32
    %769 = vector.broadcast %cst_215 : f32 to vector<32x2xf32>
    %770 = arith.maximumf %768, %769 : vector<32x2xf32>
    %c0_216 = arith.constant 0 : index
    %c0_217 = arith.constant 0 : index
    %771 = vector.load %arg4[%c0_216, %c0_217] : memref<176x128xf32, #tpu.memory_space<vmem>>, vector<32x128xf32>
    %c32 = arith.constant 32 : index
    %c0_218 = arith.constant 0 : index
    %772 = vector.load %arg4[%c32, %c0_218] : memref<176x128xf32, #tpu.memory_space<vmem>>, vector<1x128xf32>
    %c40_219 = arith.constant 40 : index
    %c0_220 = arith.constant 0 : index
    %773 = vector.load %arg4[%c40_219, %c0_220] : memref<176x128xf32, #tpu.memory_space<vmem>>, vector<128x128xf32>
    %c168_221 = arith.constant 168 : index
    %c0_222 = arith.constant 0 : index
    %774 = vector.load %arg4[%c168_221, %c0_222] : memref<176x128xf32, #tpu.memory_space<vmem>>, vector<1x128xf32>
    %cst_223 = arith.constant dense<0.000000e+00> : vector<2x128xf32>
    %775 = tpu.matmul %770, %771, %cst_223 {dimension_numbers = #tpu.dot_dimension_numbers<[0], [0], [1], [1], [0, 1, 1, 1], [], []>} : vector<32x2xf32>, vector<32x128xf32>, vector<2x128xf32> -> vector<2x128xf32>
    %776 = vector.broadcast %772 : vector<1x128xf32> to vector<2x128xf32>
    %777 = arith.addf %775, %776 : vector<2x128xf32>
    %cst_224 = arith.constant 0.000000e+00 : f32
    %778 = vector.broadcast %cst_224 : f32 to vector<2x128xf32>
    %779 = arith.maximumf %777, %778 : vector<2x128xf32>
    %cst_225 = arith.constant dense<0.000000e+00> : vector<2x128xf32>
    %780 = tpu.matmul %779, %773, %cst_225 {dimension_numbers = #tpu.dot_dimension_numbers<[1], [0], [0], [1], [0, 0, 1, 1], [], []>} : vector<2x128xf32>, vector<128x128xf32>, vector<2x128xf32> -> vector<2x128xf32>
    %781 = vector.broadcast %774 : vector<1x128xf32> to vector<2x128xf32>
    %782 = arith.addf %780, %781 : vector<2x128xf32>
    %c0_226 = arith.constant 0 : index
    %c0_227 = arith.constant 0 : index
    %c0_228 = arith.constant 0 : index
    %783 = vector.load %arg5[%c0_226, %c0_227, %c0_228] : memref<1x2x128xf32, #tpu.memory_space<vmem>>, vector<1x2x128xf32>
    %784 = vector.shape_cast %783 : vector<1x2x128xf32> to vector<2x128xf32>
    %785 = vector.shape_cast %782 : vector<2x128xf32> to vector<1x2x128xf32>
    tpu.vector_store %arg5[%c0_226, %c0_227, %c0_228], %785 {strides = array<i32>} : memref<1x2x128xf32, #tpu.memory_space<vmem>>, vector<1x2x128xf32>,
    return
  }
  func.func @transform_0(%arg0: i32) -> (i32, i32, i32) {
    %c0_i32 = arith.constant 0 : i32
    %c0_i32_0 = arith.constant 0 : i32
    %c0_i32_1 = arith.constant 0 : i32
    return %arg0, %c0_i32, %c0_i32_0 : i32, i32, i32
  }
  func.func @transform_1(%arg0: i32) -> (i32, i32) {
    %c0_i32 = arith.constant 0 : i32
    %c0_i32_0 = arith.constant 0 : i32
    %c0_i32_1 = arith.constant 0 : i32
    return %c0_i32, %c0_i32_0 : i32, i32
  }
  func.func @transform_2(%arg0: i32) -> (i32, i32) {
    %c0_i32 = arith.constant 0 : i32
    %c0_i32_0 = arith.constant 0 : i32
    %c0_i32_1 = arith.constant 0 : i32
    return %c0_i32, %c0_i32_0 : i32, i32
  }
  func.func @transform_3(%arg0: i32) -> (i32, i32) {
    %c0_i32 = arith.constant 0 : i32
    %c0_i32_0 = arith.constant 0 : i32
    %c0_i32_1 = arith.constant 0 : i32
    return %c0_i32, %c0_i32_0 : i32, i32
  }
  func.func @transform_4(%arg0: i32) -> (i32, i32, i32) {
    %c0_i32 = arith.constant 0 : i32
    %c0_i32_0 = arith.constant 0 : i32
    %c0_i32_1 = arith.constant 0 : i32
    return %arg0, %c0_i32, %c0_i32_0 : i32, i32, i32
  }
}

</mosaic_0001>

<llo_original>
// kernel: forward.1
$region0: #{forward.1}
  #allocation0 [shape = 'u32[]', space=smem, size = 0x4, offset = 0x4, fixed_abs, tag = 'smem constant byte address 0x4 - core index']
  #allocation1 [shape = 'u32[144,128]{1,0:T(1,128)}', space=vmem, size = 0x12000, scoped, tag = 'internal scratch']
  %s0 = inlined_call_operand.vmem [shape: f32[2,1,2048], index: 0, kind: input, shape index: {}]
  %s1 = inlined_call_operand.vmem [shape: f32[200,288], index: 1, kind: input, shape index: {}]
  %s2 = inlined_call_operand.vmem [shape: f32[202,1], index: 2, kind: input, shape index: {}]
  %s3 = inlined_call_operand.vmem [shape: f32[176,128], index: 3, kind: input, shape index: {}]
  %s4 = inlined_call_operand.hbm [shape: f32[2,2,128], index: 4, kind: output, shape index: {}]
  %s5 = sld [smem:[#allocation0]]
  $region49: #{forward.1} parent=0
    _
  %s7 = ssub.s32 1, %s5
  %s8 = scalar_select 0, %s7, %s5
  $region1: #{forward.1} parent=0
    #allocation2 [shape = 'u8[2048]{0}', space=vmem, size = 0x800, scoped, tag = 'output window, operand 0']
    #allocation3 [shape = 's32[2]{0}', space=sflag, size = 0x8, scoped, tag = 'scoped memory for forward.1']
    %9 = vsyncpa [#allocation3], 0
    %s10 = scalar_lea.sflag [#allocation3], 1
    %11 = vsyncpa %s10, 0
    loop: start=0, step=1, limit=4
    $region2: #{forward.1} parent=1 // loop_pre_header
      _
    $region3: #{forward.1} parent=1 // loop_header
      %s13 = sphi 0, %s17
      %p14 = scmp.ge.s32.totalorder %s13, 4
      %s23 = sphi 0, %s25
      %s26 = sphi 0, %s23
      %s27 = sphi 0, %s26
      %s43 = sphi 0, %s27
      %s47 = sphi 0, %s47
      %s49 = sphi 0, %s47
      %s50 = sphi 0, %s49
      %s64 = sphi 0, %s50
      %s68 = sphi 0, %s68
      %s70 = sphi 0, %s68
      %s71 = sphi 0, %s70
      %s85 = sphi 0, %s71
      %s89 = sphi 0, %s89
      %s91 = sphi 0, %s89
      %s92 = sphi 0, %s91
      %s106 = sphi 0, %s92
      %s112 = sphi 0, %s114
      %s115 = sphi 0, %s112
      %s116 = sphi 0, %s115
      %s132 = sphi 0, %s116
    $region4: #{forward.1} parent=1 // loop_header_branch
      %16 = sbr.rel (%p14) target = $region8
    $region5: #{forward.1} parent=1 // loop_body
      %s18 = ssub.s32 %s13, 1
      %s19 = ssub.s32 %s13, 2
      %s20 = sadd.s32 %s13, 1
      %s21 = ssub.s32 %s13, %s20
      %p22 = scmp.eq.s32.totalorder %s21, 0
      %s24 = sadd.s32 %s23, 1
      %s25 = scalar_select %p22, %s23, %s24
      %p28 = pneg %p22
      %p29 = scmp.eq.s32.totalorder %s13, 1
      %p30 = por %p28, %p29
      %p31 = scmp.ne.s32.totalorder %s23, %s26
      %p32 = scmp.eq.s32.totalorder %s13, 0
      %p33 = por %p31, %p32
      %p34 = scmp.ne.s32.totalorder %s23, %s26
      %p35 = scmp.eq.s32.totalorder %s18, 1
      %p36 = por %p34, %p35
      %p37 = scmp.ne.s32.totalorder %s26, %s27
      %p38 = scmp.eq.s32.totalorder %s18, 0
      %p39 = por %p37, %p38
      %p40 = scmp.ne.s32.totalorder %s26, %s27
      %p41 = scmp.eq.s32.totalorder %s19, 1
      %p42 = por %p40, %p41
      %p44 = scmp.ne.s32.totalorder %s27, %s43
      %p45 = scmp.eq.s32.totalorder %s19, 0
      %p46 = por %p44, %p45
      %s48 = sadd.s32 %s47, 1
      %p51 = scmp.eq.s32.totalorder %s13, 1
      %p52 = scmp.ne.s32.totalorder %s47, %s49
      %p53 = scmp.eq.s32.totalorder %s13, 0
      %p54 = por %p52, %p53
      %p55 = scmp.ne.s32.totalorder %s47, %s49
      %p56 = scmp.eq.s32.totalorder %s18, 1
      %p57 = por %p55, %p56
      %p58 = scmp.ne.s32.totalorder %s49, %s50
      %p59 = scmp.eq.s32.totalorder %s18, 0
      %p60 = por %p58, %p59
      %p61 = scmp.ne.s32.totalorder %s49, %s50
      %p62 = scmp.eq.s32.totalorder %s19, 1
      %p63 = por %p61, %p62
      %p65 = scmp.ne.s32.totalorder %s50, %s64
      %p66 = scmp.eq.s32.totalorder %s19, 0
      %p67 = por %p65, %p66
      %s69 = sadd.s32 %s68, 1
      %p72 = scmp.eq.s32.totalorder %s13, 1
      %p73 = scmp.ne.s32.totalorder %s68, %s70
      %p74 = scmp.eq.s32.totalorder %s13, 0
      %p75 = por %p73, %p74
      %p76 = scmp.ne.s32.totalorder %s68, %s70
      %p77 = scmp.eq.s32.totalorder %s18, 1
      %p78 = por %p76, %p77
      %p79 = scmp.ne.s32.totalorder %s70, %s71
      %p80 = scmp.eq.s32.totalorder %s18, 0
      %p81 = por %p79, %p80
      %p82 = scmp.ne.s32.totalorder %s70, %s71
      %p83 = scmp.eq.s32.totalorder %s19, 1
      %p84 = por %p82, %p83
      %p86 = scmp.ne.s32.totalorder %s71, %s85
      %p87 = scmp.eq.s32.totalorder %s19, 0
      %p88 = por %p86, %p87
      %s90 = sadd.s32 %s89, 1
      %p93 = scmp.eq.s32.totalorder %s13, 1
      %p94 = scmp.ne.s32.totalorder %s89, %s91
      %p95 = scmp.eq.s32.totalorder %s13, 0
      %p96 = por %p94, %p95
      %p97 = scmp.ne.s32.totalorder %s89, %s91
      %p98 = scmp.eq.s32.totalorder %s18, 1
      %p99 = por %p97, %p98
      %p100 = scmp.ne.s32.totalorder %s91, %s92
      %p101 = scmp.eq.s32.totalorder %s18, 0
      %p102 = por %p100, %p101
      %p103 = scmp.ne.s32.totalorder %s91, %s92
      %p104 = scmp.eq.s32.totalorder %s19, 1
      %p105 = por %p103, %p104
      %p107 = scmp.ne.s32.totalorder %s92, %s106
      %p108 = scmp.eq.s32.totalorder %s19, 0
      %p109 = por %p107, %p108
      %s110 = ssub.s32 %s13, %s20
      %p111 = scmp.eq.s32.totalorder %s110, 0
      %s113 = sadd.s32 %s112, 1
      %s114 = scalar_select %p111, %s112, %s113
      %p117 = pneg %p111
      %p118 = scmp.eq.s32.totalorder %s13, 1
      %p119 = por %p117, %p118
      %p120 = scmp.ne.s32.totalorder %s112, %s115
      %p121 = scmp.eq.s32.totalorder %s13, 0
      %p122 = por %p120, %p121
      %p123 = scmp.ne.s32.totalorder %s112, %s115
      %p124 = scmp.eq.s32.totalorder %s18, 1
      %p125 = por %p123, %p124
      %p126 = scmp.ne.s32.totalorder %s115, %s116
      %p127 = scmp.eq.s32.totalorder %s18, 0
      %p128 = por %p126, %p127
      %p129 = scmp.ne.s32.totalorder %s115, %s116
      %p130 = scmp.eq.s32.totalorder %s19, 1
      %p131 = por %p129, %p130
      %p133 = scmp.ne.s32.totalorder %s116, %s132
      %p134 = scmp.eq.s32.totalorder %s19, 0
      %p135 = por %p133, %p134
      %p136 = scmp.le.s32.totalorder 1, %s13
      %p137 = scmp.lt.s32.totalorder %s13, 3
      %p138 = pnand %p136, %p137
      %p139 = pneg %p138
      // Predicated region
      $region9: #{forward.1} parent=5 // pred_check
        _
      $region10: #{forward.1} parent=5 // pred_check_branch
        %141 = sbr.rel (%p138) target = $region12
      $region11: #{forward.1} parent=5 // pred_region
        %s142 = ssub.s32 %s13, 1
        // Predicated region
        $region13: #{forward.1} parent=11 // pred_check
          %p143 = pneg %p60
        $region14: #{forward.1} parent=11 // pred_check_branch
          %145 = sbr.rel (%p143) target = $region16
        $region15: #{forward.1} parent=11 // pred_region
          _
        $region16: #{forward.1} parent=11 // pred_fallthru
          _
        // Predicated region
        $region17: #{forward.1} parent=11 // pred_check
          %p146 = pneg %p81
        $region18: #{forward.1} parent=11 // pred_check_branch
          %148 = sbr.rel (%p146) target = $region20
        $region19: #{forward.1} parent=11 // pred_region
          _
        $region20: #{forward.1} parent=11 // pred_fallthru
          _
        // Predicated region
        $region21: #{forward.1} parent=11 // pred_check
          %p149 = pneg %p102
        $region22: #{forward.1} parent=11 // pred_check_branch
          %151 = sbr.rel (%p149) target = $region24
        $region23: #{forward.1} parent=11 // pred_region
          _
        $region24: #{forward.1} parent=11 // pred_fallthru
          _
      $region12: #{forward.1} parent=5 // pred_fallthru
        _
      %p152 = scmp.lt.s32.totalorder %s13, 2
      // Predicated region
      $region25: #{forward.1} parent=5 // pred_check
        %p153 = pneg %p152
      $region26: #{forward.1} parent=5 // pred_check_branch
        %155 = sbr.rel (%p153) target = $region28
      $region27: #{forward.1} parent=5 // pred_region
        // Predicated region
        $region29: #{forward.1} parent=27 // pred_check
          %p156 = pneg %p33
        $region30: #{forward.1} parent=27 // pred_check_branch
          %158 = sbr.rel (%p156) target = $region32
        $region31: #{forward.1} parent=27 // pred_region
          %p159 = scmp.lt.s32.totalorder %s13, 1
          %s160 = scalar_select %p159, %s13, 1
          %s161 = smul.addr %s160, 16
          %s162 = scalar_lea.vmem %s0, %s161
        $region32: #{forward.1} parent=27 // pred_fallthru
          _
      $region28: #{forward.1} parent=5 // pred_fallthru
        _
      %p163 = scmp.le.s32.totalorder 1, %s13
      %p164 = scmp.lt.s32.totalorder %s13, 3
      %p165 = pnand %p163, %p164
      %p166 = pneg %p165
      // Predicated region
      $region33: #{forward.1} parent=5 // pred_check
        _
      $region34: #{forward.1} parent=5 // pred_check_branch
        %168 = sbr.rel (%p165) target = $region36
      $region35: #{forward.1} parent=5 // pred_region
        %s169 = ssub.s32 %s13, 1
        %p170 = scmp.lt.s32.totalorder %s18, 1
        %s171 = scalar_select %p170, %s18, 1
        %s172 = smul.addr %s171, 16
        %s173 = scalar_lea.vmem %s0, %s172
        %p174 = pneg %p39
        %p175 = pneg %p36
        %p176 = pneg %p60
        %p177 = pneg %p57
        %p178 = pneg %p81
        %p179 = pneg %p78
        %p180 = pneg %p102
        %p181 = pneg %p99
        %p182 = pneg %p128
        %p183 = pneg %p125
        %s184 = sand.u32 %s115, 1
        %s185 = scalar_lea.sflag [#allocation3], %s184
        %s186 = sand.u32 %s115, 1
        %s187 = smul.addr %s186, 2
        %s188 = scalar_lea.vmem [#allocation2], %s187
        %p189 = scmp.lt.s32.totalorder %s18, 1
        %s190 = scalar_select %p189, %s18, 1
        %s191 = smul.addr %s190, 16
        %s192 = scalar_lea.vmem %s0, %s191
        %v193 = vld [vmem:[%s2 + $0xc8] sm:$0x1]
        %v194 = vld [vmem:[%s2 + $0xc9] sm:$0x1]
        %v195 = vld [vmem:[%s192] sm:$0xff]
        %v196 = vld [vmem:[%s192 + $0x8] sm:$0xff]
        %198 = vset.pattern.permute.xlu0 0
        %199 = vperm.xlu0 %198, %v193
        %v200 = vpop.permute.xlu0 %199
        %v201 = vlaneseq
        %v202 = vshrl.u32 %v201, 7
        %v203 = vsub.s32 0, %v202
        %v204 = vrot.slane %v200, %v203
        %v206 = vmul.f32 %v195, %v204
        %v207 = vmul.f32 %v196, %v204
        %209 = vset.pattern.permute.xlu0 0
        %210 = vperm.xlu0 %209, %v194
        %v211 = vpop.permute.xlu0 %210
        %v212 = vlaneseq
        %v213 = vshrl.u32 %v212, 7
        %v214 = vsub.s32 0, %v213
        %v215 = vrot.slane %v211, %v214
        %v217 = vadd.f32 %v206, %v215
        %v218 = vadd.f32 %v207, %v215
        %v219 = vlaneseq
        %v220 = vand.u32 %v219, 127
        %v221 = vadd.s32 %v220, 128
        %v222 = vadd.s32 %v220, 256
        %v223 = vadd.s32 %v220, 384
        %v224 = vadd.s32 %v220, 512
        %v225 = vadd.s32 %v220, 640
        %v226 = vadd.s32 %v220, 768
        %v227 = vadd.s32 %v220, 896
        %v228 = vadd.s32 %v220, 1024
        %v229 = vadd.s32 %v220, 1152
        %v230 = vadd.s32 %v220, 1280
        %v231 = vadd.s32 %v220, 1408
        %v232 = vadd.s32 %v220, 1536
        %v233 = vadd.s32 %v220, 1664
        %v234 = vadd.s32 %v220, 1792
        %v235 = vadd.s32 %v220, 1920
        %v236 = vshra.s32 %v220, 1
        %v237 = vshra.s32 %v221, 1
        %v238 = vshra.s32 %v222, 1
        %v239 = vshra.s32 %v223, 1
        %v240 = vshra.s32 %v224, 1
        %v241 = vshra.s32 %v225, 1
        %v242 = vshra.s32 %v226, 1
        %v243 = vshra.s32 %v227, 1
        %v244 = vshra.s32 %v228, 1
        %v245 = vshra.s32 %v229, 1
        %v246 = vshra.s32 %v230, 1
        %v247 = vshra.s32 %v231, 1
        %v248 = vshra.s32 %v232, 1
        %v249 = vshra.s32 %v233, 1
        %v250 = vshra.s32 %v234, 1
        %v251 = vshra.s32 %v235, 1
        %v252 = vand.u32 %v236, 31
        %v253 = vand.u32 %v237, 31
        %v254 = vand.u32 %v238, 31
        %v255 = vand.u32 %v239, 31
        %v256 = vand.u32 %v240, 31
        %v257 = vand.u32 %v241, 31
        %v258 = vand.u32 %v242, 31
        %v259 = vand.u32 %v243, 31
        %v260 = vand.u32 %v244, 31
        %v261 = vand.u32 %v245, 31
        %v262 = vand.u32 %v246, 31
        %v263 = vand.u32 %v247, 31
        %v264 = vand.u32 %v248, 31
        %v265 = vand.u32 %v249, 31
        %v266 = vand.u32 %v250, 31
        %v267 = vand.u32 %v251, 31
        %v268 = vshra.s32 %v236, 5
        %v269 = vshra.s32 %v237, 5
        %v270 = vshra.s32 %v238, 5
        %v271 = vshra.s32 %v239, 5
        %v272 = vshra.s32 %v240, 5
        %v273 = vshra.s32 %v241, 5
        %v274 = vshra.s32 %v242, 5
        %v275 = vshra.s32 %v243, 5
        %v276 = vshra.s32 %v244, 5
        %v277 = vshra.s32 %v245, 5
        %v278 = vshra.s32 %v246, 5
        %v279 = vshra.s32 %v247, 5
        %v280 = vshra.s32 %v248, 5
        %v281 = vshra.s32 %v249, 5
        %v282 = vshra.s32 %v250, 5
        %v283 = vshra.s32 %v251, 5
        %vm284 = vcmp.ne.s32.totalorder %v252, 0
        %vm285 = vcmp.ne.s32.totalorder %v253, 0
        %vm286 = vcmp.ne.s32.totalorder %v254, 0
        %vm287 = vcmp.ne.s32.totalorder %v255, 0
        %vm288 = vcmp.ne.s32.totalorder %v256, 0
        %vm289 = vcmp.ne.s32.totalorder %v257, 0
        %vm290 = vcmp.ne.s32.totalorder %v258, 0
        %vm291 = vcmp.ne.s32.totalorder %v259, 0
        %vm292 = vcmp.ne.s32.totalorder %v260, 0
        %vm293 = vcmp.ne.s32.totalorder %v261, 0
        %vm294 = vcmp.ne.s32.totalorder %v262, 0
        %vm295 = vcmp.ne.s32.totalorder %v263, 0
        %vm296 = vcmp.ne.s32.totalorder %v264, 0
        %vm297 = vcmp.ne.s32.totalorder %v265, 0
        %vm298 = vcmp.ne.s32.totalorder %v266, 0
        %vm299 = vcmp.ne.s32.totalorder %v267, 0
        %vm300 = vcmp.ne.s32.totalorder %v252, 31
        %vm301 = vcmp.ne.s32.totalorder %v253, 31
        %vm302 = vcmp.ne.s32.totalorder %v254, 31
        %vm303 = vcmp.ne.s32.totalorder %v255, 31
        %vm304 = vcmp.ne.s32.totalorder %v256, 31
        %vm305 = vcmp.ne.s32.totalorder %v257, 31
        %vm306 = vcmp.ne.s32.totalorder %v258, 31
        %vm307 = vcmp.ne.s32.totalorder %v259, 31
        %vm308 = vcmp.ne.s32.totalorder %v260, 31
        %vm309 = vcmp.ne.s32.totalorder %v261, 31
        %vm310 = vcmp.ne.s32.totalorder %v262, 31
        %vm311 = vcmp.ne.s32.totalorder %v263, 31
        %vm312 = vcmp.ne.s32.totalorder %v264, 31
        %vm313 = vcmp.ne.s32.totalorder %v265, 31
        %vm314 = vcmp.ne.s32.totalorder %v266, 31
        %vm315 = vcmp.ne.s32.totalorder %v267, 31
        %vm316 = vcmp.ne.s32.totalorder %v268, 0
        %vm317 = vcmp.ne.s32.totalorder %v269, 0
        %vm318 = vcmp.ne.s32.totalorder %v270, 0
        %vm319 = vcmp.ne.s32.totalorder %v271, 0
        %vm320 = vcmp.ne.s32.totalorder %v272, 0
        %vm321 = vcmp.ne.s32.totalorder %v273, 0
        %vm322 = vcmp.ne.s32.totalorder %v274, 0
        %vm323 = vcmp.ne.s32.totalorder %v275, 0
        %vm324 = vcmp.ne.s32.totalorder %v276, 0
        %vm325 = vcmp.ne.s32.totalorder %v277, 0
        %vm326 = vcmp.ne.s32.totalorder %v278, 0
        %vm327 = vcmp.ne.s32.totalorder %v279, 0
        %vm328 = vcmp.ne.s32.totalorder %v280, 0
        %vm329 = vcmp.ne.s32.totalorder %v281, 0
        %vm330 = vcmp.ne.s32.totalorder %v282, 0
        %vm331 = vcmp.ne.s32.totalorder %v283, 0
        %vm332 = vcmp.ne.s32.totalorder %v268, 31
        %vm333 = vcmp.ne.s32.totalorder %v269, 31
        %vm334 = vcmp.ne.s32.totalorder %v270, 31
        %vm335 = vcmp.ne.s32.totalorder %v271, 31
        %vm336 = vcmp.ne.s32.totalorder %v272, 31
        %vm337 = vcmp.ne.s32.totalorder %v273, 31
        %vm338 = vcmp.ne.s32.totalorder %v274, 31
        %vm339 = vcmp.ne.s32.totalorder %v275, 31
        %vm340 = vcmp.ne.s32.totalorder %v276, 31
        %vm341 = vcmp.ne.s32.totalorder %v277, 31
        %vm342 = vcmp.ne.s32.totalorder %v278, 31
        %vm343 = vcmp.ne.s32.totalorder %v279, 31
        %vm344 = vcmp.ne.s32.totalorder %v280, 31
        %vm345 = vcmp.ne.s32.totalorder %v281, 31
        %vm346 = vcmp.ne.s32.totalorder %v282, 31
        %vm347 = vcmp.ne.s32.totalorder %v283, 31
        %vm348 = vmand %vm316, %vm284
        %vm349 = vmand %vm317, %vm285
        %vm350 = vmand %vm318, %vm286
        %vm351 = vmand %vm319, %vm287
        %vm352 = vmand %vm320, %vm288
        %vm353 = vmand %vm321, %vm289
        %vm354 = vmand %vm322, %vm290
        %vm355 = vmand %vm323, %vm291
        %vm356 = vmand %vm324, %vm292
        %vm357 = vmand %vm325, %vm293
        %vm358 = vmand %vm326, %vm294
        %vm359 = vmand %vm327, %vm295
        %vm360 = vmand %vm328, %vm296
        %vm361 = vmand %vm329, %vm297
        %vm362 = vmand %vm330, %vm298
        %vm363 = vmand %vm331, %vm299
        %v364 = vsel %vm348, 1, 0
        %v365 = vsel %vm349, 1, 0
        %v366 = vsel %vm350, 1, 0
        %v367 = vsel %vm351, 1, 0
        %v368 = vsel %vm352, 1, 0
        %v369 = vsel %vm353, 1, 0
        %v370 = vsel %vm354, 1, 0
        %v371 = vsel %vm355, 1, 0
        %v372 = vsel %vm356, 1, 0
        %v373 = vsel %vm357, 1, 0
        %v374 = vsel %vm358, 1, 0
        %v375 = vsel %vm359, 1, 0
        %v376 = vsel %vm360, 1, 0
        %v377 = vsel %vm361, 1, 0
        %v378 = vsel %vm362, 1, 0
        %v379 = vsel %vm363, 1, 0
        %v380 = vcvt.s32.f32 %v364
        %v381 = vcvt.s32.f32 %v365
        %v382 = vcvt.s32.f32 %v366
        %v383 = vcvt.s32.f32 %v367
        %v384 = vcvt.s32.f32 %v368
        %v385 = vcvt.s32.f32 %v369
        %v386 = vcvt.s32.f32 %v370
        %v387 = vcvt.s32.f32 %v371
        %v388 = vcvt.s32.f32 %v372
        %v389 = vcvt.s32.f32 %v373
        %v390 = vcvt.s32.f32 %v374
        %v391 = vcvt.s32.f32 %v375
        %v392 = vcvt.s32.f32 %v376
        %v393 = vcvt.s32.f32 %v377
        %v394 = vcvt.s32.f32 %v378
        %v395 = vcvt.s32.f32 %v379
        %v396 = vsel %vm316, 1, 0
        %v397 = vsel %vm317, 1, 0
        %v398 = vsel %vm318, 1, 0
        %v399 = vsel %vm319, 1, 0
        %v400 = vsel %vm320, 1, 0
        %v401 = vsel %vm321, 1, 0
        %v402 = vsel %vm322, 1, 0
        %v403 = vsel %vm323, 1, 0
        %v404 = vsel %vm324, 1, 0
        %v405 = vsel %vm325, 1, 0
        %v406 = vsel %vm326, 1, 0
        %v407 = vsel %vm327, 1, 0
        %v408 = vsel %vm328, 1, 0
        %v409 = vsel %vm329, 1, 0
        %v410 = vsel %vm330, 1, 0
        %v411 = vsel %vm331, 1, 0
        %v412 = vcvt.s32.f32 %v396
        %v413 = vcvt.s32.f32 %v397
        %v414 = vcvt.s32.f32 %v398
        %v415 = vcvt.s32.f32 %v399
        %v416 = vcvt.s32.f32 %v400
        %v417 = vcvt.s32.f32 %v401
        %v418 = vcvt.s32.f32 %v402
        %v419 = vcvt.s32.f32 %v403
        %v420 = vcvt.s32.f32 %v404
        %v421 = vcvt.s32.f32 %v405
        %v422 = vcvt.s32.f32 %v406
        %v423 = vcvt.s32.f32 %v407
        %v424 = vcvt.s32.f32 %v408
        %v425 = vcvt.s32.f32 %v409
        %v426 = vcvt.s32.f32 %v410
        %v427 = vcvt.s32.f32 %v411
        %vm428 = vmand %vm316, %vm300
        %vm429 = vmand %vm317, %vm301
        %vm430 = vmand %vm318, %vm302
        %vm431 = vmand %vm319, %vm303
        %vm432 = vmand %vm320, %vm304
        %vm433 = vmand %vm321, %vm305
        %vm434 = vmand %vm322, %vm306
        %vm435 = vmand %vm323, %vm307
        %vm436 = vmand %vm324, %vm308
        %vm437 = vmand %vm325, %vm309
        %vm438 = vmand %vm326, %vm310
        %vm439 = vmand %vm327, %vm311
        %vm440 = vmand %vm328, %vm312
        %vm441 = vmand %vm329, %vm313
        %vm442 = vmand %vm330, %vm314
        %vm443 = vmand %vm331, %vm315
        %v444 = vsel %vm428, 1, 0
        %v445 = vsel %vm429, 1, 0
        %v446 = vsel %vm430, 1, 0
        %v447 = vsel %vm431, 1, 0
        %v448 = vsel %vm432, 1, 0
        %v449 = vsel %vm433, 1, 0
        %v450 = vsel %vm434, 1, 0
        %v451 = vsel %vm435, 1, 0
        %v452 = vsel %vm436, 1, 0
        %v453 = vsel %vm437, 1, 0
        %v454 = vsel %vm438, 1, 0
        %v455 = vsel %vm439, 1, 0
        %v456 = vsel %vm440, 1, 0
        %v457 = vsel %vm441, 1, 0
        %v458 = vsel %vm442, 1, 0
        %v459 = vsel %vm443, 1, 0
        %v460 = vcvt.s32.f32 %v444
        %v461 = vcvt.s32.f32 %v445
        %v462 = vcvt.s32.f32 %v446
        %v463 = vcvt.s32.f32 %v447
        %v464 = vcvt.s32.f32 %v448
        %v465 = vcvt.s32.f32 %v449
        %v466 = vcvt.s32.f32 %v450
        %v467 = vcvt.s32.f32 %v451
        %v468 = vcvt.s32.f32 %v452
        %v469 = vcvt.s32.f32 %v453
        %v470 = vcvt.s32.f32 %v454
        %v471 = vcvt.s32.f32 %v455
        %v472 = vcvt.s32.f32 %v456
        %v473 = vcvt.s32.f32 %v457
        %v474 = vcvt.s32.f32 %v458
        %v475 = vcvt.s32.f32 %v459
        %v476 = vsel %vm284, 1, 0
        %v477 = vsel %vm285, 1, 0
        %v478 = vsel %vm286, 1, 0
        %v479 = vsel %vm287, 1, 0
        %v480 = vsel %vm288, 1, 0
        %v481 = vsel %vm289, 1, 0
        %v482 = vsel %vm290, 1, 0
        %v483 = vsel %vm291, 1, 0
        %v484 = vsel %vm292, 1, 0
        %v485 = vsel %vm293, 1, 0
        %v486 = vsel %vm294, 1, 0
        %v487 = vsel %vm295, 1, 0
        %v488 = vsel %vm296, 1, 0
        %v489 = vsel %vm297, 1, 0
        %v490 = vsel %vm298, 1, 0
        %v491 = vsel %vm299, 1, 0
        %v492 = vcvt.s32.f32 %v476
        %v493 = vcvt.s32.f32 %v477
        %v494 = vcvt.s32.f32 %v478
        %v495 = vcvt.s32.f32 %v479
        %v496 = vcvt.s32.f32 %v480
        %v497 = vcvt.s32.f32 %v481
        %v498 = vcvt.s32.f32 %v482
        %v499 = vcvt.s32.f32 %v483
        %v500 = vcvt.s32.f32 %v484
        %v501 = vcvt.s32.f32 %v485
        %v502 = vcvt.s32.f32 %v486
        %v503 = vcvt.s32.f32 %v487
        %v504 = vcvt.s32.f32 %v488
        %v505 = vcvt.s32.f32 %v489
        %v506 = vcvt.s32.f32 %v490
        %v507 = vcvt.s32.f32 %v491
        %v508 = vsel %vm300, 1, 0
        %v509 = vsel %vm301, 1, 0
        %v510 = vsel %vm302, 1, 0
        %v511 = vsel %vm303, 1, 0
        %v512 = vsel %vm304, 1, 0
        %v513 = vsel %vm305, 1, 0
        %v514 = vsel %vm306, 1, 0
        %v515 = vsel %vm307, 1, 0
        %v516 = vsel %vm308, 1, 0
        %v517 = vsel %vm309, 1, 0
        %v518 = vsel %vm310, 1, 0
        %v519 = vsel %vm311, 1, 0
        %v520 = vsel %vm312, 1, 0
        %v521 = vsel %vm313, 1, 0
        %v522 = vsel %vm314, 1, 0
        %v523 = vsel %vm315, 1, 0
        %v524 = vcvt.s32.f32 %v508
        %v525 = vcvt.s32.f32 %v509
        %v526 = vcvt.s32.f32 %v510
        %v527 = vcvt.s32.f32 %v511
        %v528 = vcvt.s32.f32 %v512
        %v529 = vcvt.s32.f32 %v513
        %v530 = vcvt.s32.f32 %v514
        %v531 = vcvt.s32.f32 %v515
        %v532 = vcvt.s32.f32 %v516
        %v533 = vcvt.s32.f32 %v517
        %v534 = vcvt.s32.f32 %v518
        %v535 = vcvt.s32.f32 %v519
        %v536 = vcvt.s32.f32 %v520
        %v537 = vcvt.s32.f32 %v521
        %v538 = vcvt.s32.f32 %v522
        %v539 = vcvt.s32.f32 %v523
        %vm540 = vmand %vm332, %vm284
        %vm541 = vmand %vm333, %vm285
        %vm542 = vmand %vm334, %vm286
        %vm543 = vmand %vm335, %vm287
        %vm544 = vmand %vm336, %vm288
        %vm545 = vmand %vm337, %vm289
        %vm546 = vmand %vm338, %vm290
        %vm547 = vmand %vm339, %vm291
        %vm548 = vmand %vm340, %vm292
        %vm549 = vmand %vm341, %vm293
        %vm550 = vmand %vm342, %vm294
        %vm551 = vmand %vm343, %vm295
        %vm552 = vmand %vm344, %vm296
        %vm553 = vmand %vm345, %vm297
        %vm554 = vmand %vm346, %vm298
        %vm555 = vmand %vm347, %vm299
        %v556 = vsel %vm540, 1, 0
        %v557 = vsel %vm541, 1, 0
        %v558 = vsel %vm542, 1, 0
        %v559 = vsel %vm543, 1, 0
        %v560 = vsel %vm544, 1, 0
        %v561 = vsel %vm545, 1, 0
        %v562 = vsel %vm546, 1, 0
        %v563 = vsel %vm547, 1, 0
        %v564 = vsel %vm548, 1, 0
        %v565 = vsel %vm549, 1, 0
        %v566 = vsel %vm550, 1, 0
        %v567 = vsel %vm551, 1, 0
        %v568 = vsel %vm552, 1, 0
        %v569 = vsel %vm553, 1, 0
        %v570 = vsel %vm554, 1, 0
        %v571 = vsel %vm555, 1, 0
        %v572 = vcvt.s32.f32 %v556
        %v573 = vcvt.s32.f32 %v557
        %v574 = vcvt.s32.f32 %v558
        %v575 = vcvt.s32.f32 %v559
        %v576 = vcvt.s32.f32 %v560
        %v577 = vcvt.s32.f32 %v561
        %v578 = vcvt.s32.f32 %v562
        %v579 = vcvt.s32.f32 %v563
        %v580 = vcvt.s32.f32 %v564
        %v581 = vcvt.s32.f32 %v565
        %v582 = vcvt.s32.f32 %v566
        %v583 = vcvt.s32.f32 %v567
        %v584 = vcvt.s32.f32 %v568
        %v585 = vcvt.s32.f32 %v569
        %v586 = vcvt.s32.f32 %v570
        %v587 = vcvt.s32.f32 %v571
        %v588 = vsel %vm332, 1, 0
        %v589 = vsel %vm333, 1, 0
        %v590 = vsel %vm334, 1, 0
        %v591 = vsel %vm335, 1, 0
        %v592 = vsel %vm336, 1, 0
        %v593 = vsel %vm337, 1, 0
        %v594 = vsel %vm338, 1, 0
        %v595 = vsel %vm339, 1, 0
        %v596 = vsel %vm340, 1, 0
        %v597 = vsel %vm341, 1, 0
        %v598 = vsel %vm342, 1, 0
        %v599 = vsel %vm343, 1, 0
        %v600 = vsel %vm344, 1, 0
        %v601 = vsel %vm345, 1, 0
        %v602 = vsel %vm346, 1, 0
        %v603 = vsel %vm347, 1, 0
        %v604 = vcvt.s32.f32 %v588
        %v605 = vcvt.s32.f32 %v589
        %v606 = vcvt.s32.f32 %v590
        %v607 = vcvt.s32.f32 %v591
        %v608 = vcvt.s32.f32 %v592
        %v609 = vcvt.s32.f32 %v593
        %v610 = vcvt.s32.f32 %v594
        %v611 = vcvt.s32.f32 %v595
        %v612 = vcvt.s32.f32 %v596
        %v613 = vcvt.s32.f32 %v597
        %v614 = vcvt.s32.f32 %v598
        %v615 = vcvt.s32.f32 %v599
        %v616 = vcvt.s32.f32 %v600
        %v617 = vcvt.s32.f32 %v601
        %v618 = vcvt.s32.f32 %v602
        %v619 = vcvt.s32.f32 %v603
        %vm620 = vmand %vm332, %vm300
        %vm621 = vmand %vm333, %vm301
        %vm622 = vmand %vm334, %vm302
        %vm623 = vmand %vm335, %vm303
        %vm624 = vmand %vm336, %vm304
        %vm625 = vmand %vm337, %vm305
        %vm626 = vmand %vm338, %vm306
        %vm627 = vmand %vm339, %vm307
        %vm628 = vmand %vm340, %vm308
        %vm629 = vmand %vm341, %vm309
        %vm630 = vmand %vm342, %vm310
        %vm631 = vmand %vm343, %vm311
        %vm632 = vmand %vm344, %vm312
        %vm633 = vmand %vm345, %vm313
        %vm634 = vmand %vm346, %vm314
        %vm635 = vmand %vm347, %vm315
        %v636 = vsel %vm620, 1, 0
        %v637 = vsel %vm621, 1, 0
        %v638 = vsel %vm622, 1, 0
        %v639 = vsel %vm623, 1, 0
        %v640 = vsel %vm624, 1, 0
        %v641 = vsel %vm625, 1, 0
        %v642 = vsel %vm626, 1, 0
        %v643 = vsel %vm627, 1, 0
        %v644 = vsel %vm628, 1, 0
        %v645 = vsel %vm629, 1, 0
        %v646 = vsel %vm630, 1, 0
        %v647 = vsel %vm631, 1, 0
        %v648 = vsel %vm632, 1, 0
        %v649 = vsel %vm633, 1, 0
        %v650 = vsel %vm634, 1, 0
        %v651 = vsel %vm635, 1, 0
        %v652 = vcvt.s32.f32 %v636
        %v653 = vcvt.s32.f32 %v637
        %v654 = vcvt.s32.f32 %v638
        %v655 = vcvt.s32.f32 %v639
        %v656 = vcvt.s32.f32 %v640
        %v657 = vcvt.s32.f32 %v641
        %v658 = vcvt.s32.f32 %v642
        %v659 = vcvt.s32.f32 %v643
        %v660 = vcvt.s32.f32 %v644
        %v661 = vcvt.s32.f32 %v645
        %v662 = vcvt.s32.f32 %v646
        %v663 = vcvt.s32.f32 %v647
        %v664 = vcvt.s32.f32 %v648
        %v665 = vcvt.s32.f32 %v649
        %v666 = vcvt.s32.f32 %v650
        %v667 = vcvt.s32.f32 %v651
        %v668 = vand.u32 %v236, 7
        %v669 = vshra.s32 %v236, 3
        %vm670 = vcmp.ne.s32.totalorder %v668, 0
        %vm671 = vcmp.ne.s32.totalorder %v668, 7
        %vm672 = vcmp.ne.s32.totalorder %v669, 0
        %vm673 = vcmp.ne.s32.totalorder %v669, 7
        %vm674 = vmand %vm672, %vm670
        %v675 = vsel %vm674, 1, 0
        %v676 = vcvt.s32.f32 %v675
        %v677 = vsel %vm672, 1, 0
        %v678 = vcvt.s32.f32 %v677
        %vm679 = vmand %vm672, %vm671
        %v680 = vsel %vm679, 1, 0
        %v681 = vcvt.s32.f32 %v680
        %v682 = vsel %vm670, 1, 0
        %v683 = vcvt.s32.f32 %v682
        %v684 = vsel %vm671, 1, 0
        %v685 = vcvt.s32.f32 %v684
        %vm686 = vmand %vm673, %vm670
        %v687 = vsel %vm686, 1, 0
        %v688 = vcvt.s32.f32 %v687
        %v689 = vsel %vm673, 1, 0
        %v690 = vcvt.s32.f32 %v689
        %vm691 = vmand %vm673, %vm671
        %v692 = vsel %vm691, 1, 0
        %v693 = vcvt.s32.f32 %v692
        %v694 = vand.u32 %v236, 1
        %v695 = vshra.s32 %v236, 1
        %vm696 = vcmp.ne.s32.totalorder %v694, 0
        %vm697 = vcmp.ne.s32.totalorder %v694, 1
        %vm698 = vcmp.ne.s32.totalorder %v695, 0
        %vm699 = vcmp.ne.s32.totalorder %v695, 1
        %vm700 = vmand %vm698, %vm696
        %v701 = vsel %vm700, 1, 0
        %v702 = vcvt.s32.f32 %v701
        %v703 = vsel %vm698, 1, 0
        %v704 = vcvt.s32.f32 %v703
        %vm705 = vmand %vm698, %vm697
        %v706 = vsel %vm705, 1, 0
        %v707 = vcvt.s32.f32 %v706
        %v708 = vsel %vm696, 1, 0
        %v709 = vcvt.s32.f32 %v708
        %v710 = vsel %vm697, 1, 0
        %v711 = vcvt.s32.f32 %v710
        %vm712 = vmand %vm699, %vm696
        %v713 = vsel %vm712, 1, 0
        %v714 = vcvt.s32.f32 %v713
        %v715 = vsel %vm699, 1, 0
        %v716 = vcvt.s32.f32 %v715
        %vm717 = vmand %vm699, %vm697
        %v718 = vsel %vm717, 1, 0
        %v719 = vcvt.s32.f32 %v718
        %v720 = vld [vmem:[%s1] sm:$0xff]
        %v721 = vld [vmem:[%s2] sm:$0xff]
        %v724 = vlaneseq
        %v725 = vshrl.u32 %v724, 7
        %v726 = vsub.s32 0, %v725
        %v727 = vrot.slane %v217, %v726
        %v728 = vlaneseq
        %v729 = vshrl.u32 %v728, 7
        %v730 = vsub.s32 1, %v729
        %v731 = vrot.slane %v217, %v730
        %v732 = vlaneseq
        %v733 = vshrl.u32 %v732, 7
        %v734 = vsub.s32 2, %v733
        %v735 = vrot.slane %v217, %v734
        %v736 = vlaneseq
        %v737 = vshrl.u32 %v736, 7
        %v738 = vsub.s32 3, %v737
        %v739 = vrot.slane %v217, %v738
        %v740 = vlaneseq
        %v741 = vshrl.u32 %v740, 7
        %v742 = vsub.s32 4, %v741
        %v743 = vrot.slane %v217, %v742
        %v744 = vlaneseq
        %v745 = vshrl.u32 %v744, 7
        %v746 = vsub.s32 5, %v745
        %v747 = vrot.slane %v217, %v746
        %v748 = vlaneseq
        %v749 = vshrl.u32 %v748, 7
        %v750 = vsub.s32 6, %v749
        %v751 = vrot.slane %v217, %v750
        %v752 = vlaneseq
        %v753 = vshrl.u32 %v752, 7
        %v754 = vsub.s32 7, %v753
        %v755 = vrot.slane %v217, %v754
        %v756 = vlaneseq
        %v757 = vshrl.u32 %v756, 7
        %v758 = vsub.s32 0, %v757
        %v759 = vrot.slane %v218, %v758
        %v760 = vlaneseq
        %v761 = vshrl.u32 %v760, 7
        %v762 = vsub.s32 1, %v761
        %v763 = vrot.slane %v218, %v762
        %v764 = vlaneseq
        %v765 = vshrl.u32 %v764, 7
        %v766 = vsub.s32 2, %v765
        %v767 = vrot.slane %v218, %v766
        %v768 = vlaneseq
        %v769 = vshrl.u32 %v768, 7
        %v770 = vsub.s32 3, %v769
        %v771 = vrot.slane %v218, %v770
        %v772 = vlaneseq
        %v773 = vshrl.u32 %v772, 7
        %v774 = vsub.s32 4, %v773
        %v775 = vrot.slane %v218, %v774
        %v776 = vlaneseq
        %v777 = vshrl.u32 %v776, 7
        %v778 = vsub.s32 5, %v777
        %v779 = vrot.slane %v218, %v778
        %v780 = vlaneseq
        %v781 = vshrl.u32 %v780, 7
        %v782 = vsub.s32 6, %v781
        %v783 = vrot.slane %v218, %v782
        %v784 = vlaneseq
        %v785 = vshrl.u32 %v784, 7
        %v786 = vsub.s32 7, %v785
        %v787 = vrot.slane %v218, %v786
        %804 = vrot.lane.b32.xlu0 %v727, 66
        %v805 = vpop.permute.xlu0 %804
        %806 = vrot.lane.b32.xlu0 %v731, 66
        %v807 = vpop.permute.xlu0 %806
        %808 = vrot.lane.b32.xlu0 %v735, 66
        %v809 = vpop.permute.xlu0 %808
        %810 = vrot.lane.b32.xlu0 %v739, 66
        %v811 = vpop.permute.xlu0 %810
        %812 = vrot.lane.b32.xlu0 %v743, 66
        %v813 = vpop.permute.xlu0 %812
        %814 = vrot.lane.b32.xlu0 %v747, 66
        %v815 = vpop.permute.xlu0 %814
        %816 = vrot.lane.b32.xlu0 %v751, 66
        %v817 = vpop.permute.xlu0 %816
        %818 = vrot.lane.b32.xlu0 %v755, 66
        %v819 = vpop.permute.xlu0 %818
        %820 = vrot.lane.b32.xlu0 %v759, 66
        %v821 = vpop.permute.xlu0 %820
        %822 = vrot.lane.b32.xlu0 %v763, 66
        %v823 = vpop.permute.xlu0 %822
        %824 = vrot.lane.b32.xlu0 %v767, 66
        %v825 = vpop.permute.xlu0 %824
        %826 = vrot.lane.b32.xlu0 %v771, 66
        %v827 = vpop.permute.xlu0 %826
        %828 = vrot.lane.b32.xlu0 %v775, 66
        %v829 = vpop.permute.xlu0 %828
        %830 = vrot.lane.b32.xlu0 %v779, 66
        %v831 = vpop.permute.xlu0 %830
        %832 = vrot.lane.b32.xlu0 %v783, 66
        %v833 = vpop.permute.xlu0 %832
        %834 = vrot.lane.b32.xlu0 %v787, 66
        %v835 = vpop.permute.xlu0 %834
        %vm836 = vcmp.lt.s32.totalorder %v220, 66
        %v837 = vsel %vm836, %v833, %v835
        %v838 = vsel %vm836, %v831, %v833
        %v839 = vsel %vm836, %v829, %v831
        %v840 = vsel %vm836, %v827, %v829
        %v841 = vsel %vm836, %v825, %v827
        %v842 = vsel %vm836, %v823, %v825
        %v843 = vsel %vm836, %v821, %v823
        %v844 = vsel %vm836, %v819, %v821
        %v845 = vsel %vm836, %v817, %v819
        %v846 = vsel %vm836, %v815, %v817
        %v847 = vsel %vm836, %v813, %v815
        %v848 = vsel %vm836, %v811, %v813
        %v849 = vsel %vm836, %v809, %v811
        %v850 = vsel %vm836, %v807, %v809
        %v851 = vsel %vm836, %v805, %v807
        %v852 = vsel %vm836, %v835, %v805
        %v853 = vmul.f32 %v852, %v380
        %v854 = vmul.f32 %v851, %v381
        %v855 = vmul.f32 %v850, %v382
        %v856 = vmul.f32 %v849, %v383
        %v857 = vmul.f32 %v848, %v384
        %v858 = vmul.f32 %v847, %v385
        %v859 = vmul.f32 %v846, %v386
        %v860 = vmul.f32 %v845, %v387
        %v861 = vmul.f32 %v844, %v388
        %v862 = vmul.f32 %v843, %v389
        %v863 = vmul.f32 %v842, %v390
        %v864 = vmul.f32 %v841, %v391
        %v865 = vmul.f32 %v840, %v392
        %v866 = vmul.f32 %v839, %v393
        %v867 = vmul.f32 %v838, %v394
        %v868 = vmul.f32 %v837, %v395
        %869 = vrot.lane.b32.xlu0 %v727, 64
        %v870 = vpop.permute.xlu0 %869
        %871 = vrot.lane.b32.xlu0 %v731, 64
        %v872 = vpop.permute.xlu0 %871
        %873 = vrot.lane.b32.xlu0 %v735, 64
        %v874 = vpop.permute.xlu0 %873
        %875 = vrot.lane.b32.xlu0 %v739, 64
        %v876 = vpop.permute.xlu0 %875
        %877 = vrot.lane.b32.xlu0 %v743, 64
        %v878 = vpop.permute.xlu0 %877
        %879 = vrot.lane.b32.xlu0 %v747, 64
        %v880 = vpop.permute.xlu0 %879
        %881 = vrot.lane.b32.xlu0 %v751, 64
        %v882 = vpop.permute.xlu0 %881
        %883 = vrot.lane.b32.xlu0 %v755, 64
        %v884 = vpop.permute.xlu0 %883
        %885 = vrot.lane.b32.xlu0 %v759, 64
        %v886 = vpop.permute.xlu0 %885
        %887 = vrot.lane.b32.xlu0 %v763, 64
        %v888 = vpop.permute.xlu0 %887
        %889 = vrot.lane.b32.xlu0 %v767, 64
        %v890 = vpop.permute.xlu0 %889
        %891 = vrot.lane.b32.xlu0 %v771, 64
        %v892 = vpop.permute.xlu0 %891
        %893 = vrot.lane.b32.xlu0 %v775, 64
        %v894 = vpop.permute.xlu0 %893
        %895 = vrot.lane.b32.xlu0 %v779, 64
        %v896 = vpop.permute.xlu0 %895
        %897 = vrot.lane.b32.xlu0 %v783, 64
        %v898 = vpop.permute.xlu0 %897
        %899 = vrot.lane.b32.xlu0 %v787, 64
        %v900 = vpop.permute.xlu0 %899
        %vm901 = vcmp.lt.s32.totalorder %v220, 64
        %v902 = vsel %vm901, %v898, %v900
        %v903 = vsel %vm901, %v896, %v898
        %v904 = vsel %vm901, %v894, %v896
        %v905 = vsel %vm901, %v892, %v894
        %v906 = vsel %vm901, %v890, %v892
        %v907 = vsel %vm901, %v888, %v890
        %v908 = vsel %vm901, %v886, %v888
        %v909 = vsel %vm901, %v884, %v886
        %v910 = vsel %vm901, %v882, %v884
        %v911 = vsel %vm901, %v880, %v882
        %v912 = vsel %vm901, %v878, %v880
        %v913 = vsel %vm901, %v876, %v878
        %v914 = vsel %vm901, %v874, %v876
        %v915 = vsel %vm901, %v872, %v874
        %v916 = vsel %vm901, %v870, %v872
        %v917 = vsel %vm901, %v900, %v870
        %v918 = vmul.f32 %v917, %v412
        %v919 = vmul.f32 %v916, %v413
        %v920 = vmul.f32 %v915, %v414
        %v921 = vmul.f32 %v914, %v415
        %v922 = vmul.f32 %v913, %v416
        %v923 = vmul.f32 %v912, %v417
        %v924 = vmul.f32 %v911, %v418
        %v925 = vmul.f32 %v910, %v419
        %v926 = vmul.f32 %v909, %v420
        %v927 = vmul.f32 %v908, %v421
        %v928 = vmul.f32 %v907, %v422
        %v929 = vmul.f32 %v906, %v423
        %v930 = vmul.f32 %v905, %v424
        %v931 = vmul.f32 %v904, %v425
        %v932 = vmul.f32 %v903, %v426
        %v933 = vmul.f32 %v902, %v427
        %934 = vrot.lane.b32.xlu0 %v727, 62
        %v935 = vpop.permute.xlu0 %934
        %936 = vrot.lane.b32.xlu0 %v731, 62
        %v937 = vpop.permute.xlu0 %936
        %938 = vrot.lane.b32.xlu0 %v735, 62
        %v939 = vpop.permute.xlu0 %938
        %940 = vrot.lane.b32.xlu0 %v739, 62
        %v941 = vpop.permute.xlu0 %940
        %942 = vrot.lane.b32.xlu0 %v743, 62
        %v943 = vpop.permute.xlu0 %942
        %944 = vrot.lane.b32.xlu0 %v747, 62
        %v945 = vpop.permute.xlu0 %944
        %946 = vrot.lane.b32.xlu0 %v751, 62
        %v947 = vpop.permute.xlu0 %946
        %948 = vrot.lane.b32.xlu0 %v755, 62
        %v949 = vpop.permute.xlu0 %948
        %950 = vrot.lane.b32.xlu0 %v759, 62
        %v951 = vpop.permute.xlu0 %950
        %952 = vrot.lane.b32.xlu0 %v763, 62
        %v953 = vpop.permute.xlu0 %952
        %954 = vrot.lane.b32.xlu0 %v767, 62
        %v955 = vpop.permute.xlu0 %954
        %956 = vrot.lane.b32.xlu0 %v771, 62
        %v957 = vpop.permute.xlu0 %956
        %958 = vrot.lane.b32.xlu0 %v775, 62
        %v959 = vpop.permute.xlu0 %958
        %960 = vrot.lane.b32.xlu0 %v779, 62
        %v961 = vpop.permute.xlu0 %960
        %962 = vrot.lane.b32.xlu0 %v783, 62
        %v963 = vpop.permute.xlu0 %962
        %964 = vrot.lane.b32.xlu0 %v787, 62
        %v965 = vpop.permute.xlu0 %964
        %vm966 = vcmp.lt.s32.totalorder %v220, 62
        %v967 = vsel %vm966, %v963, %v965
        %v968 = vsel %vm966, %v961, %v963
        %v969 = vsel %vm966, %v959, %v961
        %v970 = vsel %vm966, %v957, %v959
        %v971 = vsel %vm966, %v955, %v957
        %v972 = vsel %vm966, %v953, %v955
        %v973 = vsel %vm966, %v951, %v953
        %v974 = vsel %vm966, %v949, %v951
        %v975 = vsel %vm966, %v947, %v949
        %v976 = vsel %vm966, %v945, %v947
        %v977 = vsel %vm966, %v943, %v945
        %v978 = vsel %vm966, %v941, %v943
        %v979 = vsel %vm966, %v939, %v941
        %v980 = vsel %vm966, %v937, %v939
        %v981 = vsel %vm966, %v935, %v937
        %v982 = vsel %vm966, %v965, %v935
        %v983 = vmul.f32 %v982, %v460
        %v984 = vmul.f32 %v981, %v461
        %v985 = vmul.f32 %v980, %v462
        %v986 = vmul.f32 %v979, %v463
        %v987 = vmul.f32 %v978, %v464
        %v988 = vmul.f32 %v977, %v465
        %v989 = vmul.f32 %v976, %v466
        %v990 = vmul.f32 %v975, %v467
        %v991 = vmul.f32 %v974, %v468
        %v992 = vmul.f32 %v973, %v469
        %v993 = vmul.f32 %v972, %v470
        %v994 = vmul.f32 %v971, %v471
        %v995 = vmul.f32 %v970, %v472
        %v996 = vmul.f32 %v969, %v473
        %v997 = vmul.f32 %v968, %v474
        %v998 = vmul.f32 %v967, %v475
        %999 = vrot.lane.b32.xlu0 %v727, 2
        %v1000 = vpop.permute.xlu0 %999
        %1001 = vrot.lane.b32.xlu0 %v731, 2
        %v1002 = vpop.permute.xlu0 %1001
        %1003 = vrot.lane.b32.xlu0 %v735, 2
        %v1004 = vpop.permute.xlu0 %1003
        %1005 = vrot.lane.b32.xlu0 %v739, 2
        %v1006 = vpop.permute.xlu0 %1005
        %1007 = vrot.lane.b32.xlu0 %v743, 2
        %v1008 = vpop.permute.xlu0 %1007
        %1009 = vrot.lane.b32.xlu0 %v747, 2
        %v1010 = vpop.permute.xlu0 %1009
        %1011 = vrot.lane.b32.xlu0 %v751, 2
        %v1012 = vpop.permute.xlu0 %1011
        %1013 = vrot.lane.b32.xlu0 %v755, 2
        %v1014 = vpop.permute.xlu0 %1013
        %1015 = vrot.lane.b32.xlu0 %v759, 2
        %v1016 = vpop.permute.xlu0 %1015
        %1017 = vrot.lane.b32.xlu0 %v763, 2
        %v1018 = vpop.permute.xlu0 %1017
        %1019 = vrot.lane.b32.xlu0 %v767, 2
        %v1020 = vpop.permute.xlu0 %1019
        %1021 = vrot.lane.b32.xlu0 %v771, 2
        %v1022 = vpop.permute.xlu0 %1021
        %1023 = vrot.lane.b32.xlu0 %v775, 2
        %v1024 = vpop.permute.xlu0 %1023
        %1025 = vrot.lane.b32.xlu0 %v779, 2
        %v1026 = vpop.permute.xlu0 %1025
        %1027 = vrot.lane.b32.xlu0 %v783, 2
        %v1028 = vpop.permute.xlu0 %1027
        %1029 = vrot.lane.b32.xlu0 %v787, 2
        %v1030 = vpop.permute.xlu0 %1029
        %vm1031 = vcmp.lt.s32.totalorder %v220, 2
        %v1032 = vsel %vm1031, %v1028, %v1030
        %v1033 = vsel %vm1031, %v1026, %v1028
        %v1034 = vsel %vm1031, %v1024, %v1026
        %v1035 = vsel %vm1031, %v1022, %v1024
        %v1036 = vsel %vm1031, %v1020, %v1022
        %v1037 = vsel %vm1031, %v1018, %v1020
        %v1038 = vsel %vm1031, %v1016, %v1018
        %v1039 = vsel %vm1031, %v1014, %v1016
        %v1040 = vsel %vm1031, %v1012, %v1014
        %v1041 = vsel %vm1031, %v1010, %v1012
        %v1042 = vsel %vm1031, %v1008, %v1010
        %v1043 = vsel %vm1031, %v1006, %v1008
        %v1044 = vsel %vm1031, %v1004, %v1006
        %v1045 = vsel %vm1031, %v1002, %v1004
        %v1046 = vsel %vm1031, %v1000, %v1002
        %v1047 = vsel %vm1031, %v1030, %v1000
        %v1048 = vmul.f32 %v1047, %v492
        %v1049 = vmul.f32 %v1046, %v493
        %v1050 = vmul.f32 %v1045, %v494
        %v1051 = vmul.f32 %v1044, %v495
        %v1052 = vmul.f32 %v1043, %v496
        %v1053 = vmul.f32 %v1042, %v497
        %v1054 = vmul.f32 %v1041, %v498
        %v1055 = vmul.f32 %v1040, %v499
        %v1056 = vmul.f32 %v1039, %v500
        %v1057 = vmul.f32 %v1038, %v501
        %v1058 = vmul.f32 %v1037, %v502
        %v1059 = vmul.f32 %v1036, %v503
        %v1060 = vmul.f32 %v1035, %v504
        %v1061 = vmul.f32 %v1034, %v505
        %v1062 = vmul.f32 %v1033, %v506
        %v1063 = vmul.f32 %v1032, %v507
        %1064 = vrot.lane.b32.xlu0 %v727, 126
        %v1065 = vpop.permute.xlu0 %1064
        %1066 = vrot.lane.b32.xlu0 %v731, 126
        %v1067 = vpop.permute.xlu0 %1066
        %1068 = vrot.lane.b32.xlu0 %v735, 126
        %v1069 = vpop.permute.xlu0 %1068
        %1070 = vrot.lane.b32.xlu0 %v739, 126
        %v1071 = vpop.permute.xlu0 %1070
        %1072 = vrot.lane.b32.xlu0 %v743, 126
        %v1073 = vpop.permute.xlu0 %1072
        %1074 = vrot.lane.b32.xlu0 %v747, 126
        %v1075 = vpop.permute.xlu0 %1074
        %1076 = vrot.lane.b32.xlu0 %v751, 126
        %v1077 = vpop.permute.xlu0 %1076
        %1078 = vrot.lane.b32.xlu0 %v755, 126
        %v1079 = vpop.permute.xlu0 %1078
        %1080 = vrot.lane.b32.xlu0 %v759, 126
        %v1081 = vpop.permute.xlu0 %1080
        %1082 = vrot.lane.b32.xlu0 %v763, 126
        %v1083 = vpop.permute.xlu0 %1082
        %1084 = vrot.lane.b32.xlu0 %v767, 126
        %v1085 = vpop.permute.xlu0 %1084
        %1086 = vrot.lane.b32.xlu0 %v771, 126
        %v1087 = vpop.permute.xlu0 %1086
        %1088 = vrot.lane.b32.xlu0 %v775, 126
        %v1089 = vpop.permute.xlu0 %1088
        %1090 = vrot.lane.b32.xlu0 %v779, 126
        %v1091 = vpop.permute.xlu0 %1090
        %1092 = vrot.lane.b32.xlu0 %v783, 126
        %v1093 = vpop.permute.xlu0 %1092
        %1094 = vrot.lane.b32.xlu0 %v787, 126
        %v1095 = vpop.permute.xlu0 %1094
        %vm1096 = vcmp.lt.s32.totalorder %v220, 126
        %v1097 = vsel %vm1096, %v1093, %v1095
        %v1098 = vsel %vm1096, %v1091, %v1093
        %v1099 = vsel %vm1096, %v1089, %v1091
        %v1100 = vsel %vm1096, %v1087, %v1089
        %v1101 = vsel %vm1096, %v1085, %v1087
        %v1102 = vsel %vm1096, %v1083, %v1085
        %v1103 = vsel %vm1096, %v1081, %v1083
        %v1104 = vsel %vm1096, %v1079, %v1081
        %v1105 = vsel %vm1096, %v1077, %v1079
        %v1106 = vsel %vm1096, %v1075, %v1077
        %v1107 = vsel %vm1096, %v1073, %v1075
        %v1108 = vsel %vm1096, %v1071, %v1073
        %v1109 = vsel %vm1096, %v1069, %v1071
        %v1110 = vsel %vm1096, %v1067, %v1069
        %v1111 = vsel %vm1096, %v1065, %v1067
        %v1112 = vsel %vm1096, %v1095, %v1065
        %v1113 = vmul.f32 %v1111, %v524
        %v1114 = vmul.f32 %v1110, %v525
        %v1115 = vmul.f32 %v1109, %v526
        %v1116 = vmul.f32 %v1108, %v527
        %v1117 = vmul.f32 %v1107, %v528
        %v1118 = vmul.f32 %v1106, %v529
        %v1119 = vmul.f32 %v1105, %v530
        %v1120 = vmul.f32 %v1104, %v531
        %v1121 = vmul.f32 %v1103, %v532
        %v1122 = vmul.f32 %v1102, %v533
        %v1123 = vmul.f32 %v1101, %v534
        %v1124 = vmul.f32 %v1100, %v535
        %v1125 = vmul.f32 %v1099, %v536
        %v1126 = vmul.f32 %v1098, %v537
        %v1127 = vmul.f32 %v1097, %v538
        %v1128 = vmul.f32 %v1112, %v539
        %v1129 = vmul.f32 %v851, %v572
        %v1130 = vmul.f32 %v850, %v573
        %v1131 = vmul.f32 %v849, %v574
        %v1132 = vmul.f32 %v848, %v575
        %v1133 = vmul.f32 %v847, %v576
        %v1134 = vmul.f32 %v846, %v577
        %v1135 = vmul.f32 %v845, %v578
        %v1136 = vmul.f32 %v844, %v579
        %v1137 = vmul.f32 %v843, %v580
        %v1138 = vmul.f32 %v842, %v581
        %v1139 = vmul.f32 %v841, %v582
        %v1140 = vmul.f32 %v840, %v583
        %v1141 = vmul.f32 %v839, %v584
        %v1142 = vmul.f32 %v838, %v585
        %v1143 = vmul.f32 %v837, %v586
        %v1144 = vmul.f32 %v852, %v587
        %v1145 = vmul.f32 %v916, %v604
        %v1146 = vmul.f32 %v915, %v605
        %v1147 = vmul.f32 %v914, %v606
        %v1148 = vmul.f32 %v913, %v607
        %v1149 = vmul.f32 %v912, %v608
        %v1150 = vmul.f32 %v911, %v609
        %v1151 = vmul.f32 %v910, %v610
        %v1152 = vmul.f32 %v909, %v611
        %v1153 = vmul.f32 %v908, %v612
        %v1154 = vmul.f32 %v907, %v613
        %v1155 = vmul.f32 %v906, %v614
        %v1156 = vmul.f32 %v905, %v615
        %v1157 = vmul.f32 %v904, %v616
        %v1158 = vmul.f32 %v903, %v617
        %v1159 = vmul.f32 %v902, %v618
        %v1160 = vmul.f32 %v917, %v619
        %v1161 = vmul.f32 %v981, %v652
        %v1162 = vmul.f32 %v980, %v653
        %v1163 = vmul.f32 %v979, %v654
        %v1164 = vmul.f32 %v978, %v655
        %v1165 = vmul.f32 %v977, %v656
        %v1166 = vmul.f32 %v976, %v657
        %v1167 = vmul.f32 %v975, %v658
        %v1168 = vmul.f32 %v974, %v659
        %v1169 = vmul.f32 %v973, %v660
        %v1170 = vmul.f32 %v972, %v661
        %v1171 = vmul.f32 %v971, %v662
        %v1172 = vmul.f32 %v970, %v663
        %v1173 = vmul.f32 %v969, %v664
        %v1174 = vmul.f32 %v968, %v665
        %v1175 = vmul.f32 %v967, %v666
        %v1176 = vmul.f32 %v982, %v667
        %v1193 = vrot.slane %v918, 7
        %v1194 = vrot.slane %v919, 7
        %v1195 = vrot.slane %v920, 7
        %v1196 = vrot.slane %v921, 7
        %v1197 = vrot.slane %v922, 7
        %v1198 = vrot.slane %v923, 7
        %v1199 = vrot.slane %v924, 7
        %v1200 = vrot.slane %v925, 7
        %v1201 = vrot.slane %v926, 7
        %v1202 = vrot.slane %v927, 7
        %v1203 = vrot.slane %v928, 7
        %v1204 = vrot.slane %v929, 7
        %v1205 = vrot.slane %v930, 7
        %v1206 = vrot.slane %v931, 7
        %v1207 = vrot.slane %v932, 7
        %v1208 = vrot.slane %v933, 7
        %v1241 = vrot.slane %v983, 6
        %v1242 = vrot.slane %v984, 6
        %v1243 = vrot.slane %v985, 6
        %v1244 = vrot.slane %v986, 6
        %v1245 = vrot.slane %v987, 6
        %v1246 = vrot.slane %v988, 6
        %v1247 = vrot.slane %v989, 6
        %v1248 = vrot.slane %v990, 6
        %v1249 = vrot.slane %v991, 6
        %v1250 = vrot.slane %v992, 6
        %v1251 = vrot.slane %v993, 6
        %v1252 = vrot.slane %v994, 6
        %v1253 = vrot.slane %v995, 6
        %v1254 = vrot.slane %v996, 6
        %v1255 = vrot.slane %v997, 6
        %v1256 = vrot.slane %v998, 6
        %v1289 = vrot.slane %v1048, 5
        %v1290 = vrot.slane %v1049, 5
        %v1291 = vrot.slane %v1050, 5
        %v1292 = vrot.slane %v1051, 5
        %v1293 = vrot.slane %v1052, 5
        %v1294 = vrot.slane %v1053, 5
        %v1295 = vrot.slane %v1054, 5
        %v1296 = vrot.slane %v1055, 5
        %v1297 = vrot.slane %v1056, 5
        %v1298 = vrot.slane %v1057, 5
        %v1299 = vrot.slane %v1058, 5
        %v1300 = vrot.slane %v1059, 5
        %v1301 = vrot.slane %v1060, 5
        %v1302 = vrot.slane %v1061, 5
        %v1303 = vrot.slane %v1062, 5
        %v1304 = vrot.slane %v1063, 5
        %v1337 = vrot.slane %v1113, 3
        %v1338 = vrot.slane %v1114, 3
        %v1339 = vrot.slane %v1115, 3
        %v1340 = vrot.slane %v1116, 3
        %v1341 = vrot.slane %v1117, 3
        %v1342 = vrot.slane %v1118, 3
        %v1343 = vrot.slane %v1119, 3
        %v1344 = vrot.slane %v1120, 3
        %v1345 = vrot.slane %v1121, 3
        %v1346 = vrot.slane %v1122, 3
        %v1347 = vrot.slane %v1123, 3
        %v1348 = vrot.slane %v1124, 3
        %v1349 = vrot.slane %v1125, 3
        %v1350 = vrot.slane %v1126, 3
        %v1351 = vrot.slane %v1127, 3
        %v1352 = vrot.slane %v1128, 3
        %v1385 = vrot.slane %v1129, 2
        %v1386 = vrot.slane %v1130, 2
        %v1387 = vrot.slane %v1131, 2
        %v1388 = vrot.slane %v1132, 2
        %v1389 = vrot.slane %v1133, 2
        %v1390 = vrot.slane %v1134, 2
        %v1391 = vrot.slane %v1135, 2
        %v1392 = vrot.slane %v1136, 2
        %v1393 = vrot.slane %v1137, 2
        %v1394 = vrot.slane %v1138, 2
        %v1395 = vrot.slane %v1139, 2
        %v1396 = vrot.slane %v1140, 2
        %v1397 = vrot.slane %v1141, 2
        %v1398 = vrot.slane %v1142, 2
        %v1399 = vrot.slane %v1143, 2
        %v1400 = vrot.slane %v1144, 2
        %v1433 = vrot.slane %v1145, 1
        %v1434 = vrot.slane %v1146, 1
        %v1435 = vrot.slane %v1147, 1
        %v1436 = vrot.slane %v1148, 1
        %v1437 = vrot.slane %v1149, 1
        %v1438 = vrot.slane %v1150, 1
        %v1439 = vrot.slane %v1151, 1
        %v1440 = vrot.slane %v1152, 1
        %v1441 = vrot.slane %v1153, 1
        %v1442 = vrot.slane %v1154, 1
        %v1443 = vrot.slane %v1155, 1
        %v1444 = vrot.slane %v1156, 1
        %v1445 = vrot.slane %v1157, 1
        %v1446 = vrot.slane %v1158, 1
        %v1447 = vrot.slane %v1159, 1
        %v1448 = vrot.slane %v1160, 1
        %vm1465 = vcmask 1040384
        %v1466 = vsel %vm1465, %v853, %v1193
        %v1467 = vsel %vm1465, %v854, %v1194
        %v1468 = vsel %vm1465, %v855, %v1195
        %v1469 = vsel %vm1465, %v856, %v1196
        %v1470 = vsel %vm1465, %v857, %v1197
        %v1471 = vsel %vm1465, %v858, %v1198
        %v1472 = vsel %vm1465, %v859, %v1199
        %v1473 = vsel %vm1465, %v860, %v1200
        %v1474 = vsel %vm1465, %v861, %v1201
        %v1475 = vsel %vm1465, %v862, %v1202
        %v1476 = vsel %vm1465, %v863, %v1203
        %v1477 = vsel %vm1465, %v864, %v1204
        %v1478 = vsel %vm1465, %v865, %v1205
        %v1479 = vsel %vm1465, %v866, %v1206
        %v1480 = vsel %vm1465, %v867, %v1207
        %v1481 = vsel %vm1465, %v868, %v1208
        %vm1482 = vcmask 1041408
        %v1483 = vsel %vm1482, %v1466, %v1241
        %v1484 = vsel %vm1482, %v1467, %v1242
        %v1485 = vsel %vm1482, %v1468, %v1243
        %v1486 = vsel %vm1482, %v1469, %v1244
        %v1487 = vsel %vm1482, %v1470, %v1245
        %v1488 = vsel %vm1482, %v1471, %v1246
        %v1489 = vsel %vm1482, %v1472, %v1247
        %v1490 = vsel %vm1482, %v1473, %v1248
        %v1491 = vsel %vm1482, %v1474, %v1249
        %v1492 = vsel %vm1482, %v1475, %v1250
        %v1493 = vsel %vm1482, %v1476, %v1251
        %v1494 = vsel %vm1482, %v1477, %v1252
        %v1495 = vsel %vm1482, %v1478, %v1253
        %v1496 = vsel %vm1482, %v1479, %v1254
        %v1497 = vsel %vm1482, %v1480, %v1255
        %v1498 = vsel %vm1482, %v1481, %v1256
        %vm1499 = vcmask 1042432
        %v1500 = vsel %vm1499, %v1483, %v1289
        %v1501 = vsel %vm1499, %v1484, %v1290
        %v1502 = vsel %vm1499, %v1485, %v1291
        %v1503 = vsel %vm1499, %v1486, %v1292
        %v1504 = vsel %vm1499, %v1487, %v1293
        %v1505 = vsel %vm1499, %v1488, %v1294
        %v1506 = vsel %vm1499, %v1489, %v1295
        %v1507 = vsel %vm1499, %v1490, %v1296
        %v1508 = vsel %vm1499, %v1491, %v1297
        %v1509 = vsel %vm1499, %v1492, %v1298
        %v1510 = vsel %vm1499, %v1493, %v1299
        %v1511 = vsel %vm1499, %v1494, %v1300
        %v1512 = vsel %vm1499, %v1495, %v1301
        %v1513 = vsel %vm1499, %v1496, %v1302
        %v1514 = vsel %vm1499, %v1497, %v1303
        %v1515 = vsel %vm1499, %v1498, %v1304
        %vm1516 = vcmask 1043456
        %v1517 = vsel %vm1516, %v1500, %v727
        %v1518 = vsel %vm1516, %v1501, %v731
        %v1519 = vsel %vm1516, %v1502, %v735
        %v1520 = vsel %vm1516, %v1503, %v739
        %v1521 = vsel %vm1516, %v1504, %v743
        %v1522 = vsel %vm1516, %v1505, %v747
        %v1523 = vsel %vm1516, %v1506, %v751
        %v1524 = vsel %vm1516, %v1507, %v755
        %v1525 = vsel %vm1516, %v1508, %v759
        %v1526 = vsel %vm1516, %v1509, %v763
        %v1527 = vsel %vm1516, %v1510, %v767
        %v1528 = vsel %vm1516, %v1511, %v771
        %v1529 = vsel %vm1516, %v1512, %v775
        %v1530 = vsel %vm1516, %v1513, %v779
        %v1531 = vsel %vm1516, %v1514, %v783
        %v1532 = vsel %vm1516, %v1515, %v787
        %vm1533 = vcmask 1044480
        %v1534 = vsel %vm1533, %v1517, %v1337
        %v1535 = vsel %vm1533, %v1518, %v1338
        %v1536 = vsel %vm1533, %v1519, %v1339
        %v1537 = vsel %vm1533, %v1520, %v1340
        %v1538 = vsel %vm1533, %v1521, %v1341
        %v1539 = vsel %vm1533, %v1522, %v1342
        %v1540 = vsel %vm1533, %v1523, %v1343
        %v1541 = vsel %vm1533, %v1524, %v1344
        %v1542 = vsel %vm1533, %v1525, %v1345
        %v1543 = vsel %vm1533, %v1526, %v1346
        %v1544 = vsel %vm1533, %v1527, %v1347
        %v1545 = vsel %vm1533, %v1528, %v1348
        %v1546 = vsel %vm1533, %v1529, %v1349
        %v1547 = vsel %vm1533, %v1530, %v1350
        %v1548 = vsel %vm1533, %v1531, %v1351
        %v1549 = vsel %vm1533, %v1532, %v1352
        %vm1550 = vcmask 1045504
        %v1551 = vsel %vm1550, %v1534, %v1385
        %v1552 = vsel %vm1550, %v1535, %v1386
        %v1553 = vsel %vm1550, %v1536, %v1387
        %v1554 = vsel %vm1550, %v1537, %v1388
        %v1555 = vsel %vm1550, %v1538, %v1389
        %v1556 = vsel %vm1550, %v1539, %v1390
        %v1557 = vsel %vm1550, %v1540, %v1391
        %v1558 = vsel %vm1550, %v1541, %v1392
        %v1559 = vsel %vm1550, %v1542, %v1393
        %v1560 = vsel %vm1550, %v1543, %v1394
        %v1561 = vsel %vm1550, %v1544, %v1395
        %v1562 = vsel %vm1550, %v1545, %v1396
        %v1563 = vsel %vm1550, %v1546, %v1397
        %v1564 = vsel %vm1550, %v1547, %v1398
        %v1565 = vsel %vm1550, %v1548, %v1399
        %v1566 = vsel %vm1550, %v1549, %v1400
        %vm1567 = vcmask 1046528
        %v1568 = vsel %vm1567, %v1551, %v1433
        %v1569 = vsel %vm1567, %v1552, %v1434
        %v1570 = vsel %vm1567, %v1553, %v1435
        %v1571 = vsel %vm1567, %v1554, %v1436
        %v1572 = vsel %vm1567, %v1555, %v1437
        %v1573 = vsel %vm1567, %v1556, %v1438
        %v1574 = vsel %vm1567, %v1557, %v1439
        %v1575 = vsel %vm1567, %v1558, %v1440
        %v1576 = vsel %vm1567, %v1559, %v1441
        %v1577 = vsel %vm1567, %v1560, %v1442
        %v1578 = vsel %vm1567, %v1561, %v1443
        %v1579 = vsel %vm1567, %v1562, %v1444
        %v1580 = vsel %vm1567, %v1563, %v1445
        %v1581 = vsel %vm1567, %v1564, %v1446
        %v1582 = vsel %vm1567, %v1565, %v1447
        %v1583 = vsel %vm1567, %v1566, %v1448
        %1585 = vset.pattern.permute.xlu0 0
        %1586 = vperm.xlu0 %1585, %v721
        %v1587 = vpop.permute.xlu0 %1586
        %vm1589 = vcmask 72704
        %v1591 = vsel %vm1589, %v720, 0
        %v1594 = vsel %vm1465, %v1161, 0
        %v1597 = vsel %vm1465, %v1162, 0
        %v1600 = vsel %vm1465, %v1163, 0
        %v1603 = vsel %vm1465, %v1164, 0
        %v1606 = vsel %vm1465, %v1165, 0
        %v1609 = vsel %vm1465, %v1166, 0
        %v1612 = vsel %vm1465, %v1167, 0
        %v1615 = vsel %vm1465, %v1168, 0
        %v1618 = vsel %vm1465, %v1169, 0
        %v1621 = vsel %vm1465, %v1170, 0
        %v1624 = vsel %vm1465, %v1171, 0
        %v1627 = vsel %vm1465, %v1172, 0
        %v1630 = vsel %vm1465, %v1173, 0
        %v1633 = vsel %vm1465, %v1174, 0
        %v1636 = vsel %vm1465, %v1175, 0
        %v1639 = vsel %vm1465, %v1176, 0
        %1641 = vmatprep.subr.mxu0 0.0
        %1642 = vmatpush1.msra.mxu0 0.0
        %1643 = vmatprep.subr.mxu0 0.0
        %1644 = vmatpush1.msra.mxu0 0.0
        %1645 = vmatprep.subr.mxu0 0.0
        %1646 = vmatpush1.msra.mxu0 0.0
        %1647 = vmatprep.subr.mxu0 0.0
        %1648 = vmatpush1.msra.mxu0 0.0
        %1649 = vmatprep.subr.mxu0 0.0
        %1650 = vmatpush1.msra.mxu0 0.0
        %1651 = vmatprep.subr.mxu0 0.0
        %1652 = vmatpush1.msra.mxu0 0.0
        %1653 = vmatprep.subr.mxu0 0.0
        %1654 = vmatpush1.msra.mxu0 0.0
        %1655 = vmatprep.subr.mxu0 0.0
        %1656 = vmatpush1.msra.mxu0 0.0
        %1657 = vmatprep.subr.mxu0 0.0
        %1658 = vmatpush1.msra.mxu0 0.0
        %1659 = vmatprep.subr.mxu0 0.0
        %1660 = vmatpush1.msra.mxu0 0.0
        %1661 = vmatprep.subr.mxu0 0.0
        %1662 = vmatpush1.msra.mxu0 0.0
        %1663 = vmatprep.subr.mxu0 0.0
        %1664 = vmatpush1.msra.mxu0 0.0
        %1665 = vmatprep.subr.mxu0 0.0
        %1666 = vmatpush1.msra.mxu0 0.0
        %1667 = vmatprep.subr.mxu0 0.0
        %1668 = vmatpush1.msra.mxu0 0.0
        %1669 = vmatprep.subr.mxu0 %v1597
        %1670 = vmatpush1.msra.mxu0 %v1594
        %1671 = vmatprep.subr.mxu0 %v1569
        %1672 = vmatpush1.msra.mxu0 %v1568
        %1673 = vmatprep.subr.mxu0 0.0
        %1674 = vmatpush2.msra.mxu0 0.0
        %1675 = vmatprep.subr.mxu0 0.0
        %1676 = vmatpush2.msra.mxu0 0.0
        %1677 = vmatprep.subr.mxu0 0.0
        %1678 = vmatpush2.msra.mxu0 0.0
        %1679 = vmatprep.subr.mxu0 0.0
        %1680 = vmatpush2.msra.mxu0 0.0
        %1681 = vmatprep.subr.mxu0 0.0
        %1682 = vmatpush2.msra.mxu0 0.0
        %1683 = vmatprep.subr.mxu0 0.0
        %1684 = vmatpush2.msra.mxu0 0.0
        %1685 = vmatprep.subr.mxu0 0.0
        %1686 = vmatpush2.msra.mxu0 0.0
        %1687 = vmatprep.subr.mxu0 0.0
        %1688 = vmatpush2.msra.mxu0 0.0
        %1689 = vmatprep.subr.mxu0 0.0
        %1690 = vmatpush2.msra.mxu0 0.0
        %1691 = vmatprep.subr.mxu0 0.0
        %1692 = vmatpush2.msra.mxu0 0.0
        %1693 = vmatprep.subr.mxu0 0.0
        %1694 = vmatpush2.msra.mxu0 0.0
        %1695 = vmatprep.subr.mxu0 0.0
        %1696 = vmatpush2.msra.mxu0 0.0
        %1697 = vmatprep.subr.mxu0 0.0
        %1698 = vmatpush2.msra.mxu0 0.0
        %1699 = vmatprep.subr.mxu0 0.0
        %1700 = vmatpush2.msra.mxu0 0.0
        %1701 = vmatprep.subr.mxu0 0.0
        %1702 = vmatpush2.msra.mxu0 0.0
        %1703 = vmatprep.subr.mxu0 0.0
        %1704 = vmatpush2.msra.mxu0 0.0
        %1705 = vmatprep.mubr.f32.mxu0 0.0
        %1706 = vmatmul.mubr.f32.gmra.mxu0 %v1591
        %v1707 = vpop.f32.mrf.mxu0
        %v1708 = vadd.f32 %v1587, %v1707
        %v1709 = vpop.f32.mrf.mxu0
        %v1710 = vadd.f32 %v1587, %v1709
        %1711 = vdwg.mxu0
        %1712 = vmatprep.subr.mxu0 0.0
        %1713 = vmatpush1.msra.mxu0 0.0
        %1714 = vmatprep.subr.mxu0 0.0
        %1715 = vmatpush1.msra.mxu0 0.0
        %1716 = vmatprep.subr.mxu0 0.0
        %1717 = vmatpush1.msra.mxu0 0.0
        %1718 = vmatprep.subr.mxu0 0.0
        %1719 = vmatpush1.msra.mxu0 0.0
        %1720 = vmatprep.subr.mxu0 0.0
        %1721 = vmatpush1.msra.mxu0 0.0
        %1722 = vmatprep.subr.mxu0 0.0
        %1723 = vmatpush1.msra.mxu0 0.0
        %1724 = vmatprep.subr.mxu0 0.0
        %1725 = vmatpush1.msra.mxu0 0.0
        %1726 = vmatprep.subr.mxu0 0.0
        %1727 = vmatpush1.msra.mxu0 0.0
        %1728 = vmatprep.subr.mxu0 0.0
        %1729 = vmatpush1.msra.mxu0 0.0
        %1730 = vmatprep.subr.mxu0 0.0
        %1731 = vmatpush1.msra.mxu0 0.0
        %1732 = vmatprep.subr.mxu0 0.0
        %1733 = vmatpush1.msra.mxu0 0.0
        %1734 = vmatprep.subr.mxu0 0.0
        %1735 = vmatpush1.msra.mxu0 0.0
        %1736 = vmatprep.subr.mxu0 0.0
        %1737 = vmatpush1.msra.mxu0 0.0
        %1738 = vmatprep.subr.mxu0 0.0
        %1739 = vmatpush1.msra.mxu0 0.0
        %1740 = vmatprep.subr.mxu0 %v1603
        %1741 = vmatpush1.msra.mxu0 %v1600
        %1742 = vmatprep.subr.mxu0 %v1571
        %1743 = vmatpush1.msra.mxu0 %v1570
        %1744 = vmatprep.subr.mxu0 0.0
        %1745 = vmatpush2.msra.mxu0 0.0
        %1746 = vmatprep.subr.mxu0 0.0
        %1747 = vmatpush2.msra.mxu0 0.0
        %1748 = vmatprep.subr.mxu0 0.0
        %1749 = vmatpush2.msra.mxu0 0.0
        %1750 = vmatprep.subr.mxu0 0.0
        %1751 = vmatpush2.msra.mxu0 0.0
        %1752 = vmatprep.subr.mxu0 0.0
        %1753 = vmatpush2.msra.mxu0 0.0
        %1754 = vmatprep.subr.mxu0 0.0
        %1755 = vmatpush2.msra.mxu0 0.0
        %1756 = vmatprep.subr.mxu0 0.0
        %1757 = vmatpush2.msra.mxu0 0.0
        %1758 = vmatprep.subr.mxu0 0.0
        %1759 = vmatpush2.msra.mxu0 0.0
        %1760 = vmatprep.subr.mxu0 0.0
        %1761 = vmatpush2.msra.mxu0 0.0
        %1762 = vmatprep.subr.mxu0 0.0
        %1763 = vmatpush2.msra.mxu0 0.0
        %1764 = vmatprep.subr.mxu0 0.0
        %1765 = vmatpush2.msra.mxu0 0.0
        %1766 = vmatprep.subr.mxu0 0.0
        %1767 = vmatpush2.msra.mxu0 0.0
        %1768 = vmatprep.subr.mxu0 0.0
        %1769 = vmatpush2.msra.mxu0 0.0
        %1770 = vmatprep.subr.mxu0 0.0
        %1771 = vmatpush2.msra.mxu0 0.0
        %1772 = vmatprep.subr.mxu0 0.0
        %1773 = vmatpush2.msra.mxu0 0.0
        %1774 = vmatprep.subr.mxu0 0.0
        %1775 = vmatpush2.msra.mxu0 0.0
        %1776 = vmatprep.mubr.f32.mxu0 0.0
        %1777 = vmatmul.mubr.f32.gmra.mxu0 %v1591
        %v1778 = vpop.f32.mrf.mxu0
        %v1779 = vadd.f32 %v1587, %v1778
        %v1780 = vpop.f32.mrf.mxu0
        %v1781 = vadd.f32 %v1587, %v1780
        %1782 = vdwg.mxu0
        %1783 = vmatprep.subr.mxu0 0.0
        %1784 = vmatpush1.msra.mxu0 0.0
        %1785 = vmatprep.subr.mxu0 0.0
        %1786 = vmatpush1.msra.mxu0 0.0
        %1787 = vmatprep.subr.mxu0 0.0
        %1788 = vmatpush1.msra.mxu0 0.0
        %1789 = vmatprep.subr.mxu0 0.0
        %1790 = vmatpush1.msra.mxu0 0.0
        %1791 = vmatprep.subr.mxu0 0.0
        %1792 = vmatpush1.msra.mxu0 0.0
        %1793 = vmatprep.subr.mxu0 0.0
        %1794 = vmatpush1.msra.mxu0 0.0
        %1795 = vmatprep.subr.mxu0 0.0
        %1796 = vmatpush1.msra.mxu0 0.0
        %1797 = vmatprep.subr.mxu0 0.0
        %1798 = vmatpush1.msra.mxu0 0.0
        %1799 = vmatprep.subr.mxu0 0.0
        %1800 = vmatpush1.msra.mxu0 0.0
        %1801 = vmatprep.subr.mxu0 0.0
        %1802 = vmatpush1.msra.mxu0 0.0
        %1803 = vmatprep.subr.mxu0 0.0
        %1804 = vmatpush1.msra.mxu0 0.0
        %1805 = vmatprep.subr.mxu0 0.0
        %1806 = vmatpush1.msra.mxu0 0.0
        %1807 = vmatprep.subr.mxu0 0.0
        %1808 = vmatpush1.msra.mxu0 0.0
        %1809 = vmatprep.subr.mxu0 0.0
        %1810 = vmatpush1.msra.mxu0 0.0
        %1811 = vmatprep.subr.mxu0 %v1609
        %1812 = vmatpush1.msra.mxu0 %v1606
        %1813 = vmatprep.subr.mxu0 %v1573
        %1814 = vmatpush1.msra.mxu0 %v1572
        %1815 = vmatprep.subr.mxu0 0.0
        %1816 = vmatpush2.msra.mxu0 0.0
        %1817 = vmatprep.subr.mxu0 0.0
        %1818 = vmatpush2.msra.mxu0 0.0
        %1819 = vmatprep.subr.mxu0 0.0
        %1820 = vmatpush2.msra.mxu0 0.0
        %1821 = vmatprep.subr.mxu0 0.0
        %1822 = vmatpush2.msra.mxu0 0.0
        %1823 = vmatprep.subr.mxu0 0.0
        %1824 = vmatpush2.msra.mxu0 0.0
        %1825 = vmatprep.subr.mxu0 0.0
        %1826 = vmatpush2.msra.mxu0 0.0
        %1827 = vmatprep.subr.mxu0 0.0
        %1828 = vmatpush2.msra.mxu0 0.0
        %1829 = vmatprep.subr.mxu0 0.0
        %1830 = vmatpush2.msra.mxu0 0.0
        %1831 = vmatprep.subr.mxu0 0.0
        %1832 = vmatpush2.msra.mxu0 0.0
        %1833 = vmatprep.subr.mxu0 0.0
        %1834 = vmatpush2.msra.mxu0 0.0
        %1835 = vmatprep.subr.mxu0 0.0
        %1836 = vmatpush2.msra.mxu0 0.0
        %1837 = vmatprep.subr.mxu0 0.0
        %1838 = vmatpush2.msra.mxu0 0.0
        %1839 = vmatprep.subr.mxu0 0.0
        %1840 = vmatpush2.msra.mxu0 0.0
        %1841 = vmatprep.subr.mxu0 0.0
        %1842 = vmatpush2.msra.mxu0 0.0
        %1843 = vmatprep.subr.mxu0 0.0
        %1844 = vmatpush2.msra.mxu0 0.0
        %1845 = vmatprep.subr.mxu0 0.0
        %1846 = vmatpush2.msra.mxu0 0.0
        %1847 = vmatprep.mubr.f32.mxu0 0.0
        %1848 = vmatmul.mubr.f32.gmra.mxu0 %v1591
        %v1849 = vpop.f32.mrf.mxu0
        %v1850 = vadd.f32 %v1587, %v1849
        %v1851 = vpop.f32.mrf.mxu0
        %v1852 = vadd.f32 %v1587, %v1851
        %1853 = vdwg.mxu0
        %1854 = vmatprep.subr.mxu0 0.0
        %1855 = vmatpush1.msra.mxu0 0.0
        %1856 = vmatprep.subr.mxu0 0.0
        %1857 = vmatpush1.msra.mxu0 0.0
        %1858 = vmatprep.subr.mxu0 0.0
        %1859 = vmatpush1.msra.mxu0 0.0
        %1860 = vmatprep.subr.mxu0 0.0
        %1861 = vmatpush1.msra.mxu0 0.0
        %1862 = vmatprep.subr.mxu0 0.0
        %1863 = vmatpush1.msra.mxu0 0.0
        %1864 = vmatprep.subr.mxu0 0.0
        %1865 = vmatpush1.msra.mxu0 0.0
        %1866 = vmatprep.subr.mxu0 0.0
        %1867 = vmatpush1.msra.mxu0 0.0
        %1868 = vmatprep.subr.mxu0 0.0
        %1869 = vmatpush1.msra.mxu0 0.0
        %1870 = vmatprep.subr.mxu0 0.0
        %1871 = vmatpush1.msra.mxu0 0.0
        %1872 = vmatprep.subr.mxu0 0.0
        %1873 = vmatpush1.msra.mxu0 0.0
        %1874 = vmatprep.subr.mxu0 0.0
        %1875 = vmatpush1.msra.mxu0 0.0
        %1876 = vmatprep.subr.mxu0 0.0
        %1877 = vmatpush1.msra.mxu0 0.0
        %1878 = vmatprep.subr.mxu0 0.0
        %1879 = vmatpush1.msra.mxu0 0.0
        %1880 = vmatprep.subr.mxu0 0.0
        %1881 = vmatpush1.msra.mxu0 0.0
        %1882 = vmatprep.subr.mxu0 %v1615
        %1883 = vmatpush1.msra.mxu0 %v1612
        %1884 = vmatprep.subr.mxu0 %v1575
        %1885 = vmatpush1.msra.mxu0 %v1574
        %1886 = vmatprep.subr.mxu0 0.0
        %1887 = vmatpush2.msra.mxu0 0.0
        %1888 = vmatprep.subr.mxu0 0.0
        %1889 = vmatpush2.msra.mxu0 0.0
        %1890 = vmatprep.subr.mxu0 0.0
        %1891 = vmatpush2.msra.mxu0 0.0
        %1892 = vmatprep.subr.mxu0 0.0
        %1893 = vmatpush2.msra.mxu0 0.0
        %1894 = vmatprep.subr.mxu0 0.0
        %1895 = vmatpush2.msra.mxu0 0.0
        %1896 = vmatprep.subr.mxu0 0.0
        %1897 = vmatpush2.msra.mxu0 0.0
        %1898 = vmatprep.subr.mxu0 0.0
        %1899 = vmatpush2.msra.mxu0 0.0
        %1900 = vmatprep.subr.mxu0 0.0
        %1901 = vmatpush2.msra.mxu0 0.0
        %1902 = vmatprep.subr.mxu0 0.0
        %1903 = vmatpush2.msra.mxu0 0.0
        %1904 = vmatprep.subr.mxu0 0.0
        %1905 = vmatpush2.msra.mxu0 0.0
        %1906 = vmatprep.subr.mxu0 0.0
        %1907 = vmatpush2.msra.mxu0 0.0
        %1908 = vmatprep.subr.mxu0 0.0
        %1909 = vmatpush2.msra.mxu0 0.0
        %1910 = vmatprep.subr.mxu0 0.0
        %1911 = vmatpush2.msra.mxu0 0.0
        %1912 = vmatprep.subr.mxu0 0.0
        %1913 = vmatpush2.msra.mxu0 0.0
        %1914 = vmatprep.subr.mxu0 0.0
        %1915 = vmatpush2.msra.mxu0 0.0
        %1916 = vmatprep.subr.mxu0 0.0
        %1917 = vmatpush2.msra.mxu0 0.0
        %1918 = vmatprep.mubr.f32.mxu0 0.0
        %1919 = vmatmul.mubr.f32.gmra.mxu0 %v1591
        %v1920 = vpop.f32.mrf.mxu0
        %v1921 = vadd.f32 %v1587, %v1920
        %v1922 = vpop.f32.mrf.mxu0
        %v1923 = vadd.f32 %v1587, %v1922
        %1924 = vdwg.mxu0
        %1925 = vmatprep.subr.mxu0 0.0
        %1926 = vmatpush1.msra.mxu0 0.0
        %1927 = vmatprep.subr.mxu0 0.0
        %1928 = vmatpush1.msra.mxu0 0.0
        %1929 = vmatprep.subr.mxu0 0.0
        %1930 = vmatpush1.msra.mxu0 0.0
        %1931 = vmatprep.subr.mxu0 0.0
        %1932 = vmatpush1.msra.mxu0 0.0
        %1933 = vmatprep.subr.mxu0 0.0
        %1934 = vmatpush1.msra.mxu0 0.0
        %1935 = vmatprep.subr.mxu0 0.0
        %1936 = vmatpush1.msra.mxu0 0.0
        %1937 = vmatprep.subr.mxu0 0.0
        %1938 = vmatpush1.msra.mxu0 0.0
        %1939 = vmatprep.subr.mxu0 0.0
        %1940 = vmatpush1.msra.mxu0 0.0
        %1941 = vmatprep.subr.mxu0 0.0
        %1942 = vmatpush1.msra.mxu0 0.0
        %1943 = vmatprep.subr.mxu0 0.0
        %1944 = vmatpush1.msra.mxu0 0.0
        %1945 = vmatprep.subr.mxu0 0.0
        %1946 = vmatpush1.msra.mxu0 0.0
        %1947 = vmatprep.subr.mxu0 0.0
        %1948 = vmatpush1.msra.mxu0 0.0
        %1949 = vmatprep.subr.mxu0 0.0
        %1950 = vmatpush1.msra.mxu0 0.0
        %1951 = vmatprep.subr.mxu0 0.0
        %1952 = vmatpush1.msra.mxu0 0.0
        %1953 = vmatprep.subr.mxu0 %v1621
        %1954 = vmatpush1.msra.mxu0 %v1618
        %1955 = vmatprep.subr.mxu0 %v1577
        %1956 = vmatpush1.msra.mxu0 %v1576
        %1957 = vmatprep.subr.mxu0 0.0
        %1958 = vmatpush2.msra.mxu0 0.0
        %1959 = vmatprep.subr.mxu0 0.0
        %1960 = vmatpush2.msra.mxu0 0.0
        %1961 = vmatprep.subr.mxu0 0.0
        %1962 = vmatpush2.msra.mxu0 0.0
        %1963 = vmatprep.subr.mxu0 0.0
        %1964 = vmatpush2.msra.mxu0 0.0
        %1965 = vmatprep.subr.mxu0 0.0
        %1966 = vmatpush2.msra.mxu0 0.0
        %1967 = vmatprep.subr.mxu0 0.0
        %1968 = vmatpush2.msra.mxu0 0.0
        %1969 = vmatprep.subr.mxu0 0.0
        %1970 = vmatpush2.msra.mxu0 0.0
        %1971 = vmatprep.subr.mxu0 0.0
        %1972 = vmatpush2.msra.mxu0 0.0
        %1973 = vmatprep.subr.mxu0 0.0
        %1974 = vmatpush2.msra.mxu0 0.0
        %1975 = vmatprep.subr.mxu0 0.0
        %1976 = vmatpush2.msra.mxu0 0.0
        %1977 = vmatprep.subr.mxu0 0.0
        %1978 = vmatpush2.msra.mxu0 0.0
        %1979 = vmatprep.subr.mxu0 0.0
        %1980 = vmatpush2.msra.mxu0 0.0
        %1981 = vmatprep.subr.mxu0 0.0
        %1982 = vmatpush2.msra.mxu0 0.0
        %1983 = vmatprep.subr.mxu0 0.0
        %1984 = vmatpush2.msra.mxu0 0.0
        %1985 = vmatprep.subr.mxu0 0.0
        %1986 = vmatpush2.msra.mxu0 0.0
        %1987 = vmatprep.subr.mxu0 0.0
        %1988 = vmatpush2.msra.mxu0 0.0
        %1989 = vmatprep.mubr.f32.mxu0 0.0
        %1990 = vmatmul.mubr.f32.gmra.mxu0 %v1591
        %v1991 = vpop.f32.mrf.mxu0
        %v1992 = vadd.f32 %v1587, %v1991
        %v1993 = vpop.f32.mrf.mxu0
        %v1994 = vadd.f32 %v1587, %v1993
        %1995 = vdwg.mxu0
        %1996 = vmatprep.subr.mxu0 0.0
        %1997 = vmatpush1.msra.mxu0 0.0
        %1998 = vmatprep.subr.mxu0 0.0
        %1999 = vmatpush1.msra.mxu0 0.0
        %2000 = vmatprep.subr.mxu0 0.0
        %2001 = vmatpush1.msra.mxu0 0.0
        %2002 = vmatprep.subr.mxu0 0.0
        %2003 = vmatpush1.msra.mxu0 0.0
        %2004 = vmatprep.subr.mxu0 0.0
        %2005 = vmatpush1.msra.mxu0 0.0
        %2006 = vmatprep.subr.mxu0 0.0
        %2007 = vmatpush1.msra.mxu0 0.0
        %2008 = vmatprep.subr.mxu0 0.0
        %2009 = vmatpush1.msra.mxu0 0.0
        %2010 = vmatprep.subr.mxu0 0.0
        %2011 = vmatpush1.msra.mxu0 0.0
        %2012 = vmatprep.subr.mxu0 0.0
        %2013 = vmatpush1.msra.mxu0 0.0
        %2014 = vmatprep.subr.mxu0 0.0
        %2015 = vmatpush1.msra.mxu0 0.0
        %2016 = vmatprep.subr.mxu0 0.0
        %2017 = vmatpush1.msra.mxu0 0.0
        %2018 = vmatprep.subr.mxu0 0.0
        %2019 = vmatpush1.msra.mxu0 0.0
        %2020 = vmatprep.subr.mxu0 0.0
        %2021 = vmatpush1.msra.mxu0 0.0
        %2022 = vmatprep.subr.mxu0 0.0
        %2023 = vmatpush1.msra.mxu0 0.0
        %2024 = vmatprep.subr.mxu0 %v1627
        %2025 = vmatpush1.msra.mxu0 %v1624
        %2026 = vmatprep.subr.mxu0 %v1579
        %2027 = vmatpush1.msra.mxu0 %v1578
        %2028 = vmatprep.subr.mxu0 0.0
        %2029 = vmatpush2.msra.mxu0 0.0
        %2030 = vmatprep.subr.mxu0 0.0
        %2031 = vmatpush2.msra.mxu0 0.0
        %2032 = vmatprep.subr.mxu0 0.0
        %2033 = vmatpush2.msra.mxu0 0.0
        %2034 = vmatprep.subr.mxu0 0.0
        %2035 = vmatpush2.msra.mxu0 0.0
        %2036 = vmatprep.subr.mxu0 0.0
        %2037 = vmatpush2.msra.mxu0 0.0
        %2038 = vmatprep.subr.mxu0 0.0
        %2039 = vmatpush2.msra.mxu0 0.0
        %2040 = vmatprep.subr.mxu0 0.0
        %2041 = vmatpush2.msra.mxu0 0.0
        %2042 = vmatprep.subr.mxu0 0.0
        %2043 = vmatpush2.msra.mxu0 0.0
        %2044 = vmatprep.subr.mxu0 0.0
        %2045 = vmatpush2.msra.mxu0 0.0
        %2046 = vmatprep.subr.mxu0 0.0
        %2047 = vmatpush2.msra.mxu0 0.0
        %2048 = vmatprep.subr.mxu0 0.0
        %2049 = vmatpush2.msra.mxu0 0.0
        %2050 = vmatprep.subr.mxu0 0.0
        %2051 = vmatpush2.msra.mxu0 0.0
        %2052 = vmatprep.subr.mxu0 0.0
        %2053 = vmatpush2.msra.mxu0 0.0
        %2054 = vmatprep.subr.mxu0 0.0
        %2055 = vmatpush2.msra.mxu0 0.0
        %2056 = vmatprep.subr.mxu0 0.0
        %2057 = vmatpush2.msra.mxu0 0.0
        %2058 = vmatprep.subr.mxu0 0.0
        %2059 = vmatpush2.msra.mxu0 0.0
        %2060 = vmatprep.mubr.f32.mxu0 0.0
        %2061 = vmatmul.mubr.f32.gmra.mxu0 %v1591
        %v2062 = vpop.f32.mrf.mxu0
        %v2063 = vadd.f32 %v1587, %v2062
        %v2064 = vpop.f32.mrf.mxu0
        %v2065 = vadd.f32 %v1587, %v2064
        %2066 = vdwg.mxu0
        %2067 = vmatprep.subr.mxu0 0.0
        %2068 = vmatpush1.msra.mxu0 0.0
        %2069 = vmatprep.subr.mxu0 0.0
        %2070 = vmatpush1.msra.mxu0 0.0
        %2071 = vmatprep.subr.mxu0 0.0
        %2072 = vmatpush1.msra.mxu0 0.0
        %2073 = vmatprep.subr.mxu0 0.0
        %2074 = vmatpush1.msra.mxu0 0.0
        %2075 = vmatprep.subr.mxu0 0.0
        %2076 = vmatpush1.msra.mxu0 0.0
        %2077 = vmatprep.subr.mxu0 0.0
        %2078 = vmatpush1.msra.mxu0 0.0
        %2079 = vmatprep.subr.mxu0 0.0
        %2080 = vmatpush1.msra.mxu0 0.0
        %2081 = vmatprep.subr.mxu0 0.0
        %2082 = vmatpush1.msra.mxu0 0.0
        %2083 = vmatprep.subr.mxu0 0.0
        %2084 = vmatpush1.msra.mxu0 0.0
        %2085 = vmatprep.subr.mxu0 0.0
        %2086 = vmatpush1.msra.mxu0 0.0
        %2087 = vmatprep.subr.mxu0 0.0
        %2088 = vmatpush1.msra.mxu0 0.0
        %2089 = vmatprep.subr.mxu0 0.0
        %2090 = vmatpush1.msra.mxu0 0.0
        %2091 = vmatprep.subr.mxu0 0.0
        %2092 = vmatpush1.msra.mxu0 0.0
        %2093 = vmatprep.subr.mxu0 0.0
        %2094 = vmatpush1.msra.mxu0 0.0
        %2095 = vmatprep.subr.mxu0 %v1633
        %2096 = vmatpush1.msra.mxu0 %v1630
        %2097 = vmatprep.subr.mxu0 %v1581
        %2098 = vmatpush1.msra.mxu0 %v1580
        %2099 = vmatprep.subr.mxu0 0.0
        %2100 = vmatpush2.msra.mxu0 0.0
        %2101 = vmatprep.subr.mxu0 0.0
        %2102 = vmatpush2.msra.mxu0 0.0
        %2103 = vmatprep.subr.mxu0 0.0
        %2104 = vmatpush2.msra.mxu0 0.0
        %2105 = vmatprep.subr.mxu0 0.0
        %2106 = vmatpush2.msra.mxu0 0.0
        %2107 = vmatprep.subr.mxu0 0.0
        %2108 = vmatpush2.msra.mxu0 0.0
        %2109 = vmatprep.subr.mxu0 0.0
        %2110 = vmatpush2.msra.mxu0 0.0
        %2111 = vmatprep.subr.mxu0 0.0
        %2112 = vmatpush2.msra.mxu0 0.0
        %2113 = vmatprep.subr.mxu0 0.0
        %2114 = vmatpush2.msra.mxu0 0.0
        %2115 = vmatprep.subr.mxu0 0.0
        %2116 = vmatpush2.msra.mxu0 0.0
        %2117 = vmatprep.subr.mxu0 0.0
        %2118 = vmatpush2.msra.mxu0 0.0
        %2119 = vmatprep.subr.mxu0 0.0
        %2120 = vmatpush2.msra.mxu0 0.0
        %2121 = vmatprep.subr.mxu0 0.0
        %2122 = vmatpush2.msra.mxu0 0.0
        %2123 = vmatprep.subr.mxu0 0.0
        %2124 = vmatpush2.msra.mxu0 0.0
        %2125 = vmatprep.subr.mxu0 0.0
        %2126 = vmatpush2.msra.mxu0 0.0
        %2127 = vmatprep.subr.mxu0 0.0
        %2128 = vmatpush2.msra.mxu0 0.0
        %2129 = vmatprep.subr.mxu0 0.0
        %2130 = vmatpush2.msra.mxu0 0.0
        %2131 = vmatprep.mubr.f32.mxu0 0.0
        %2132 = vmatmul.mubr.f32.gmra.mxu0 %v1591
        %v2133 = vpop.f32.mrf.mxu0
        %v2134 = vadd.f32 %v1587, %v2133
        %v2135 = vpop.f32.mrf.mxu0
        %v2136 = vadd.f32 %v1587, %v2135
        %2137 = vdwg.mxu0
        %2138 = vmatprep.subr.mxu0 0.0
        %2139 = vmatpush1.msra.mxu0 0.0
        %2140 = vmatprep.subr.mxu0 0.0
        %2141 = vmatpush1.msra.mxu0 0.0
        %2142 = vmatprep.subr.mxu0 0.0
        %2143 = vmatpush1.msra.mxu0 0.0
        %2144 = vmatprep.subr.mxu0 0.0
        %2145 = vmatpush1.msra.mxu0 0.0
        %2146 = vmatprep.subr.mxu0 0.0
        %2147 = vmatpush1.msra.mxu0 0.0
        %2148 = vmatprep.subr.mxu0 0.0
        %2149 = vmatpush1.msra.mxu0 0.0
        %2150 = vmatprep.subr.mxu0 0.0
        %2151 = vmatpush1.msra.mxu0 0.0
        %2152 = vmatprep.subr.mxu0 0.0
        %2153 = vmatpush1.msra.mxu0 0.0
        %2154 = vmatprep.subr.mxu0 0.0
        %2155 = vmatpush1.msra.mxu0 0.0
        %2156 = vmatprep.subr.mxu0 0.0
        %2157 = vmatpush1.msra.mxu0 0.0
        %2158 = vmatprep.subr.mxu0 0.0
        %2159 = vmatpush1.msra.mxu0 0.0
        %2160 = vmatprep.subr.mxu0 0.0
        %2161 = vmatpush1.msra.mxu0 0.0
        %2162 = vmatprep.subr.mxu0 0.0
        %2163 = vmatpush1.msra.mxu0 0.0
        %2164 = vmatprep.subr.mxu0 0.0
        %2165 = vmatpush1.msra.mxu0 0.0
        %2166 = vmatprep.subr.mxu0 %v1639
        %2167 = vmatpush1.msra.mxu0 %v1636
        %2168 = vmatprep.subr.mxu0 %v1583
        %2169 = vmatpush1.msra.mxu0 %v1582
        %2170 = vmatprep.subr.mxu0 0.0
        %2171 = vmatpush2.msra.mxu0 0.0
        %2172 = vmatprep.subr.mxu0 0.0
        %2173 = vmatpush2.msra.mxu0 0.0
        %2174 = vmatprep.subr.mxu0 0.0
        %2175 = vmatpush2.msra.mxu0 0.0
        %2176 = vmatprep.subr.mxu0 0.0
        %2177 = vmatpush2.msra.mxu0 0.0
        %2178 = vmatprep.subr.mxu0 0.0
        %2179 = vmatpush2.msra.mxu0 0.0
        %2180 = vmatprep.subr.mxu0 0.0
        %2181 = vmatpush2.msra.mxu0 0.0
        %2182 = vmatprep.subr.mxu0 0.0
        %2183 = vmatpush2.msra.mxu0 0.0
        %2184 = vmatprep.subr.mxu0 0.0
        %2185 = vmatpush2.msra.mxu0 0.0
        %2186 = vmatprep.subr.mxu0 0.0
        %2187 = vmatpush2.msra.mxu0 0.0
        %2188 = vmatprep.subr.mxu0 0.0
        %2189 = vmatpush2.msra.mxu0 0.0
        %2190 = vmatprep.subr.mxu0 0.0
        %2191 = vmatpush2.msra.mxu0 0.0
        %2192 = vmatprep.subr.mxu0 0.0
        %2193 = vmatpush2.msra.mxu0 0.0
        %2194 = vmatprep.subr.mxu0 0.0
        %2195 = vmatpush2.msra.mxu0 0.0
        %2196 = vmatprep.subr.mxu0 0.0
        %2197 = vmatpush2.msra.mxu0 0.0
        %2198 = vmatprep.subr.mxu0 0.0
        %2199 = vmatpush2.msra.mxu0 0.0
        %2200 = vmatprep.subr.mxu0 0.0
        %2201 = vmatpush2.msra.mxu0 0.0
        %2202 = vmatprep.mubr.f32.mxu0 0.0
        %2203 = vmatmul.mubr.f32.gmra.mxu0 %v1591
        %v2204 = vpop.f32.mrf.mxu0
        %v2205 = vadd.f32 %v1587, %v2204
        %v2206 = vpop.f32.mrf.mxu0
        %v2207 = vadd.f32 %v1587, %v2206
        %2208 = vdwg.mxu0
        %v2209 = vmax.f32 %v1708, 0.0
        %v2210 = vmax.f32 %v1710, 0.0
        %v2211 = vmax.f32 %v1779, 0.0
        %v2212 = vmax.f32 %v1781, 0.0
        %v2213 = vmax.f32 %v1850, 0.0
        %v2214 = vmax.f32 %v1852, 0.0
        %v2215 = vmax.f32 %v1921, 0.0
        %v2216 = vmax.f32 %v1923, 0.0
        %v2217 = vmax.f32 %v1992, 0.0
        %v2218 = vmax.f32 %v1994, 0.0
        %v2219 = vmax.f32 %v2063, 0.0
        %v2220 = vmax.f32 %v2065, 0.0
        %v2221 = vmax.f32 %v2134, 0.0
        %v2222 = vmax.f32 %v2136, 0.0
        %v2223 = vmax.f32 %v2205, 0.0
        %v2224 = vmax.f32 %v2207, 0.0
        %v2225 = vld [vmem:[%s1 + $0x18] sm:$0xff]
        %v2226 = vld [vmem:[%s2 + $0x8] sm:$0xff]
        %2227 = vrot.lane.b32.xlu0 %v2209, 66
        %v2228 = vpop.permute.xlu0 %2227
        %2229 = vrot.lane.b32.xlu0 %v2210, 66
        %v2230 = vpop.permute.xlu0 %2229
        %2231 = vrot.lane.b32.xlu0 %v2211, 66
        %v2232 = vpop.permute.xlu0 %2231
        %2233 = vrot.lane.b32.xlu0 %v2212, 66
        %v2234 = vpop.permute.xlu0 %2233
        %2235 = vrot.lane.b32.xlu0 %v2213, 66
        %v2236 = vpop.permute.xlu0 %2235
        %2237 = vrot.lane.b32.xlu0 %v2214, 66
        %v2238 = vpop.permute.xlu0 %2237
        %2239 = vrot.lane.b32.xlu0 %v2215, 66
        %v2240 = vpop.permute.xlu0 %2239
        %2241 = vrot.lane.b32.xlu0 %v2216, 66
        %v2242 = vpop.permute.xlu0 %2241
        %2243 = vrot.lane.b32.xlu0 %v2217, 66
        %v2244 = vpop.permute.xlu0 %2243
        %2245 = vrot.lane.b32.xlu0 %v2218, 66
        %v2246 = vpop.permute.xlu0 %2245
        %2247 = vrot.lane.b32.xlu0 %v2219, 66
        %v2248 = vpop.permute.xlu0 %2247
        %2249 = vrot.lane.b32.xlu0 %v2220, 66
        %v2250 = vpop.permute.xlu0 %2249
        %2251 = vrot.lane.b32.xlu0 %v2221, 66
        %v2252 = vpop.permute.xlu0 %2251
        %2253 = vrot.lane.b32.xlu0 %v2222, 66
        %v2254 = vpop.permute.xlu0 %2253
        %2255 = vrot.lane.b32.xlu0 %v2223, 66
        %v2256 = vpop.permute.xlu0 %2255
        %2257 = vrot.lane.b32.xlu0 %v2224, 66
        %v2258 = vpop.permute.xlu0 %2257
        %v2259 = vsel %vm836, %v2256, %v2258
        %v2260 = vsel %vm836, %v2254, %v2256
        %v2261 = vsel %vm836, %v2252, %v2254
        %v2262 = vsel %vm836, %v2250, %v2252
        %v2263 = vsel %vm836, %v2248, %v2250
        %v2264 = vsel %vm836, %v2246, %v2248
        %v2265 = vsel %vm836, %v2244, %v2246
        %v2266 = vsel %vm836, %v2242, %v2244
        %v2267 = vsel %vm836, %v2240, %v2242
        %v2268 = vsel %vm836, %v2238, %v2240
        %v2269 = vsel %vm836, %v2236, %v2238
        %v2270 = vsel %vm836, %v2234, %v2236
        %v2271 = vsel %vm836, %v2232, %v2234
        %v2272 = vsel %vm836, %v2230, %v2232
        %v2273 = vsel %vm836, %v2228, %v2230
        %v2274 = vsel %vm836, %v2258, %v2228
        %v2275 = vmul.f32 %v2274, %v380
        %v2276 = vmul.f32 %v2273, %v381
        %v2277 = vmul.f32 %v2272, %v382
        %v2278 = vmul.f32 %v2271, %v383
        %v2279 = vmul.f32 %v2270, %v384
        %v2280 = vmul.f32 %v2269, %v385
        %v2281 = vmul.f32 %v2268, %v386
        %v2282 = vmul.f32 %v2267, %v387
        %v2283 = vmul.f32 %v2266, %v388
        %v2284 = vmul.f32 %v2265, %v389
        %v2285 = vmul.f32 %v2264, %v390
        %v2286 = vmul.f32 %v2263, %v391
        %v2287 = vmul.f32 %v2262, %v392
        %v2288 = vmul.f32 %v2261, %v393
        %v2289 = vmul.f32 %v2260, %v394
        %v2290 = vmul.f32 %v2259, %v395
        %2291 = vrot.lane.b32.xlu0 %v2209, 64
        %v2292 = vpop.permute.xlu0 %2291
        %2293 = vrot.lane.b32.xlu0 %v2210, 64
        %v2294 = vpop.permute.xlu0 %2293
        %2295 = vrot.lane.b32.xlu0 %v2211, 64
        %v2296 = vpop.permute.xlu0 %2295
        %2297 = vrot.lane.b32.xlu0 %v2212, 64
        %v2298 = vpop.permute.xlu0 %2297
        %2299 = vrot.lane.b32.xlu0 %v2213, 64
        %v2300 = vpop.permute.xlu0 %2299
        %2301 = vrot.lane.b32.xlu0 %v2214, 64
        %v2302 = vpop.permute.xlu0 %2301
        %2303 = vrot.lane.b32.xlu0 %v2215, 64
        %v2304 = vpop.permute.xlu0 %2303
        %2305 = vrot.lane.b32.xlu0 %v2216, 64
        %v2306 = vpop.permute.xlu0 %2305
        %2307 = vrot.lane.b32.xlu0 %v2217, 64
        %v2308 = vpop.permute.xlu0 %2307
        %2309 = vrot.lane.b32.xlu0 %v2218, 64
        %v2310 = vpop.permute.xlu0 %2309
        %2311 = vrot.lane.b32.xlu0 %v2219, 64
        %v2312 = vpop.permute.xlu0 %2311
        %2313 = vrot.lane.b32.xlu0 %v2220, 64
        %v2314 = vpop.permute.xlu0 %2313
        %2315 = vrot.lane.b32.xlu0 %v2221, 64
        %v2316 = vpop.permute.xlu0 %2315
        %2317 = vrot.lane.b32.xlu0 %v2222, 64
        %v2318 = vpop.permute.xlu0 %2317
        %2319 = vrot.lane.b32.xlu0 %v2223, 64
        %v2320 = vpop.permute.xlu0 %2319
        %2321 = vrot.lane.b32.xlu0 %v2224, 64
        %v2322 = vpop.permute.xlu0 %2321
        %v2323 = vsel %vm901, %v2320, %v2322
        %v2324 = vsel %vm901, %v2318, %v2320
        %v2325 = vsel %vm901, %v2316, %v2318
        %v2326 = vsel %vm901, %v2314, %v2316
        %v2327 = vsel %vm901, %v2312, %v2314
        %v2328 = vsel %vm901, %v2310, %v2312
        %v2329 = vsel %vm901, %v2308, %v2310
        %v2330 = vsel %vm901, %v2306, %v2308
        %v2331 = vsel %vm901, %v2304, %v2306
        %v2332 = vsel %vm901, %v2302, %v2304
        %v2333 = vsel %vm901, %v2300, %v2302
        %v2334 = vsel %vm901, %v2298, %v2300
        %v2335 = vsel %vm901, %v2296, %v2298
        %v2336 = vsel %vm901, %v2294, %v2296
        %v2337 = vsel %vm901, %v2292, %v2294
        %v2338 = vsel %vm901, %v2322, %v2292
        %v2339 = vmul.f32 %v2338, %v412
        %v2340 = vmul.f32 %v2337, %v413
        %v2341 = vmul.f32 %v2336, %v414
        %v2342 = vmul.f32 %v2335, %v415
        %v2343 = vmul.f32 %v2334, %v416
        %v2344 = vmul.f32 %v2333, %v417
        %v2345 = vmul.f32 %v2332, %v418
        %v2346 = vmul.f32 %v2331, %v419
        %v2347 = vmul.f32 %v2330, %v420
        %v2348 = vmul.f32 %v2329, %v421
        %v2349 = vmul.f32 %v2328, %v422
        %v2350 = vmul.f32 %v2327, %v423
        %v2351 = vmul.f32 %v2326, %v424
        %v2352 = vmul.f32 %v2325, %v425
        %v2353 = vmul.f32 %v2324, %v426
        %v2354 = vmul.f32 %v2323, %v427
        %2355 = vrot.lane.b32.xlu0 %v2209, 62
        %v2356 = vpop.permute.xlu0 %2355
        %2357 = vrot.lane.b32.xlu0 %v2210, 62
        %v2358 = vpop.permute.xlu0 %2357
        %2359 = vrot.lane.b32.xlu0 %v2211, 62
        %v2360 = vpop.permute.xlu0 %2359
        %2361 = vrot.lane.b32.xlu0 %v2212, 62
        %v2362 = vpop.permute.xlu0 %2361
        %2363 = vrot.lane.b32.xlu0 %v2213, 62
        %v2364 = vpop.permute.xlu0 %2363
        %2365 = vrot.lane.b32.xlu0 %v2214, 62
        %v2366 = vpop.permute.xlu0 %2365
        %2367 = vrot.lane.b32.xlu0 %v2215, 62
        %v2368 = vpop.permute.xlu0 %2367
        %2369 = vrot.lane.b32.xlu0 %v2216, 62
        %v2370 = vpop.permute.xlu0 %2369
        %2371 = vrot.lane.b32.xlu0 %v2217, 62
        %v2372 = vpop.permute.xlu0 %2371
        %2373 = vrot.lane.b32.xlu0 %v2218, 62
        %v2374 = vpop.permute.xlu0 %2373
        %2375 = vrot.lane.b32.xlu0 %v2219, 62
        %v2376 = vpop.permute.xlu0 %2375
        %2377 = vrot.lane.b32.xlu0 %v2220, 62
        %v2378 = vpop.permute.xlu0 %2377
        %2379 = vrot.lane.b32.xlu0 %v2221, 62
        %v2380 = vpop.permute.xlu0 %2379
        %2381 = vrot.lane.b32.xlu0 %v2222, 62
        %v2382 = vpop.permute.xlu0 %2381
        %2383 = vrot.lane.b32.xlu0 %v2223, 62
        %v2384 = vpop.permute.xlu0 %2383
        %2385 = vrot.lane.b32.xlu0 %v2224, 62
        %v2386 = vpop.permute.xlu0 %2385
        %v2387 = vsel %vm966, %v2384, %v2386
        %v2388 = vsel %vm966, %v2382, %v2384
        %v2389 = vsel %vm966, %v2380, %v2382
        %v2390 = vsel %vm966, %v2378, %v2380
        %v2391 = vsel %vm966, %v2376, %v2378
        %v2392 = vsel %vm966, %v2374, %v2376
        %v2393 = vsel %vm966, %v2372, %v2374
        %v2394 = vsel %vm966, %v2370, %v2372
        %v2395 = vsel %vm966, %v2368, %v2370
        %v2396 = vsel %vm966, %v2366, %v2368
        %v2397 = vsel %vm966, %v2364, %v2366
        %v2398 = vsel %vm966, %v2362, %v2364
        %v2399 = vsel %vm966, %v2360, %v2362
        %v2400 = vsel %vm966, %v2358, %v2360
        %v2401 = vsel %vm966, %v2356, %v2358
        %v2402 = vsel %vm966, %v2386, %v2356
        %v2403 = vmul.f32 %v2402, %v460
        %v2404 = vmul.f32 %v2401, %v461
        %v2405 = vmul.f32 %v2400, %v462
        %v2406 = vmul.f32 %v2399, %v463
        %v2407 = vmul.f32 %v2398, %v464
        %v2408 = vmul.f32 %v2397, %v465
        %v2409 = vmul.f32 %v2396, %v466
        %v2410 = vmul.f32 %v2395, %v467
        %v2411 = vmul.f32 %v2394, %v468
        %v2412 = vmul.f32 %v2393, %v469
        %v2413 = vmul.f32 %v2392, %v470
        %v2414 = vmul.f32 %v2391, %v471
        %v2415 = vmul.f32 %v2390, %v472
        %v2416 = vmul.f32 %v2389, %v473
        %v2417 = vmul.f32 %v2388, %v474
        %v2418 = vmul.f32 %v2387, %v475
        %2419 = vrot.lane.b32.xlu0 %v2209, 2
        %v2420 = vpop.permute.xlu0 %2419
        %2421 = vrot.lane.b32.xlu0 %v2210, 2
        %v2422 = vpop.permute.xlu0 %2421
        %2423 = vrot.lane.b32.xlu0 %v2211, 2
        %v2424 = vpop.permute.xlu0 %2423
        %2425 = vrot.lane.b32.xlu0 %v2212, 2
        %v2426 = vpop.permute.xlu0 %2425
        %2427 = vrot.lane.b32.xlu0 %v2213, 2
        %v2428 = vpop.permute.xlu0 %2427
        %2429 = vrot.lane.b32.xlu0 %v2214, 2
        %v2430 = vpop.permute.xlu0 %2429
        %2431 = vrot.lane.b32.xlu0 %v2215, 2
        %v2432 = vpop.permute.xlu0 %2431
        %2433 = vrot.lane.b32.xlu0 %v2216, 2
        %v2434 = vpop.permute.xlu0 %2433
        %2435 = vrot.lane.b32.xlu0 %v2217, 2
        %v2436 = vpop.permute.xlu0 %2435
        %2437 = vrot.lane.b32.xlu0 %v2218, 2
        %v2438 = vpop.permute.xlu0 %2437
        %2439 = vrot.lane.b32.xlu0 %v2219, 2
        %v2440 = vpop.permute.xlu0 %2439
        %2441 = vrot.lane.b32.xlu0 %v2220, 2
        %v2442 = vpop.permute.xlu0 %2441
        %2443 = vrot.lane.b32.xlu0 %v2221, 2
        %v2444 = vpop.permute.xlu0 %2443
        %2445 = vrot.lane.b32.xlu0 %v2222, 2
        %v2446 = vpop.permute.xlu0 %2445
        %2447 = vrot.lane.b32.xlu0 %v2223, 2
        %v2448 = vpop.permute.xlu0 %2447
        %2449 = vrot.lane.b32.xlu0 %v2224, 2
        %v2450 = vpop.permute.xlu0 %2449
        %v2451 = vsel %vm1031, %v2448, %v2450
        %v2452 = vsel %vm1031, %v2446, %v2448
        %v2453 = vsel %vm1031, %v2444, %v2446
        %v2454 = vsel %vm1031, %v2442, %v2444
        %v2455 = vsel %vm1031, %v2440, %v2442
        %v2456 = vsel %vm1031, %v2438, %v2440
        %v2457 = vsel %vm1031, %v2436, %v2438
        %v2458 = vsel %vm1031, %v2434, %v2436
        %v2459 = vsel %vm1031, %v2432, %v2434
        %v2460 = vsel %vm1031, %v2430, %v2432
        %v2461 = vsel %vm1031, %v2428, %v2430
        %v2462 = vsel %vm1031, %v2426, %v2428
        %v2463 = vsel %vm1031, %v2424, %v2426
        %v2464 = vsel %vm1031, %v2422, %v2424
        %v2465 = vsel %vm1031, %v2420, %v2422
        %v2466 = vsel %vm1031, %v2450, %v2420
        %v2467 = vmul.f32 %v2466, %v492
        %v2468 = vmul.f32 %v2465, %v493
        %v2469 = vmul.f32 %v2464, %v494
        %v2470 = vmul.f32 %v2463, %v495
        %v2471 = vmul.f32 %v2462, %v496
        %v2472 = vmul.f32 %v2461, %v497
        %v2473 = vmul.f32 %v2460, %v498
        %v2474 = vmul.f32 %v2459, %v499
        %v2475 = vmul.f32 %v2458, %v500
        %v2476 = vmul.f32 %v2457, %v501
        %v2477 = vmul.f32 %v2456, %v502
        %v2478 = vmul.f32 %v2455, %v503
        %v2479 = vmul.f32 %v2454, %v504
        %v2480 = vmul.f32 %v2453, %v505
        %v2481 = vmul.f32 %v2452, %v506
        %v2482 = vmul.f32 %v2451, %v507
        %2483 = vrot.lane.b32.xlu0 %v2209, 126
        %v2484 = vpop.permute.xlu0 %2483
        %2485 = vrot.lane.b32.xlu0 %v2210, 126
        %v2486 = vpop.permute.xlu0 %2485
        %2487 = vrot.lane.b32.xlu0 %v2211, 126
        %v2488 = vpop.permute.xlu0 %2487
        %2489 = vrot.lane.b32.xlu0 %v2212, 126
        %v2490 = vpop.permute.xlu0 %2489
        %2491 = vrot.lane.b32.xlu0 %v2213, 126
        %v2492 = vpop.permute.xlu0 %2491
        %2493 = vrot.lane.b32.xlu0 %v2214, 126
        %v2494 = vpop.permute.xlu0 %2493
        %2495 = vrot.lane.b32.xlu0 %v2215, 126
        %v2496 = vpop.permute.xlu0 %2495
        %2497 = vrot.lane.b32.xlu0 %v2216, 126
        %v2498 = vpop.permute.xlu0 %2497
        %2499 = vrot.lane.b32.xlu0 %v2217, 126
        %v2500 = vpop.permute.xlu0 %2499
        %2501 = vrot.lane.b32.xlu0 %v2218, 126
        %v2502 = vpop.permute.xlu0 %2501
        %2503 = vrot.lane.b32.xlu0 %v2219, 126
        %v2504 = vpop.permute.xlu0 %2503
        %2505 = vrot.lane.b32.xlu0 %v2220, 126
        %v2506 = vpop.permute.xlu0 %2505
        %2507 = vrot.lane.b32.xlu0 %v2221, 126
        %v2508 = vpop.permute.xlu0 %2507
        %2509 = vrot.lane.b32.xlu0 %v2222, 126
        %v2510 = vpop.permute.xlu0 %2509
        %2511 = vrot.lane.b32.xlu0 %v2223, 126
        %v2512 = vpop.permute.xlu0 %2511
        %2513 = vrot.lane.b32.xlu0 %v2224, 126
        %v2514 = vpop.permute.xlu0 %2513
        %v2515 = vsel %vm1096, %v2512, %v2514
        %v2516 = vsel %vm1096, %v2510, %v2512
        %v2517 = vsel %vm1096, %v2508, %v2510
        %v2518 = vsel %vm1096, %v2506, %v2508
        %v2519 = vsel %vm1096, %v2504, %v2506
        %v2520 = vsel %vm1096, %v2502, %v2504
        %v2521 = vsel %vm1096, %v2500, %v2502
        %v2522 = vsel %vm1096, %v2498, %v2500
        %v2523 = vsel %vm1096, %v2496, %v2498
        %v2524 = vsel %vm1096, %v2494, %v2496
        %v2525 = vsel %vm1096, %v2492, %v2494
        %v2526 = vsel %vm1096, %v2490, %v2492
        %v2527 = vsel %vm1096, %v2488, %v2490
        %v2528 = vsel %vm1096, %v2486, %v2488
        %v2529 = vsel %vm1096, %v2484, %v2486
        %v2530 = vsel %vm1096, %v2514, %v2484
        %v2531 = vmul.f32 %v2529, %v524
        %v2532 = vmul.f32 %v2528, %v525
        %v2533 = vmul.f32 %v2527, %v526
        %v2534 = vmul.f32 %v2526, %v527
        %v2535 = vmul.f32 %v2525, %v528
        %v2536 = vmul.f32 %v2524, %v529
        %v2537 = vmul.f32 %v2523, %v530
        %v2538 = vmul.f32 %v2522, %v531
        %v2539 = vmul.f32 %v2521, %v532
        %v2540 = vmul.f32 %v2520, %v533
        %v2541 = vmul.f32 %v2519, %v534
        %v2542 = vmul.f32 %v2518, %v535
        %v2543 = vmul.f32 %v2517, %v536
        %v2544 = vmul.f32 %v2516, %v537
        %v2545 = vmul.f32 %v2515, %v538
        %v2546 = vmul.f32 %v2530, %v539
        %v2547 = vmul.f32 %v2273, %v572
        %v2548 = vmul.f32 %v2272, %v573
        %v2549 = vmul.f32 %v2271, %v574
        %v2550 = vmul.f32 %v2270, %v575
        %v2551 = vmul.f32 %v2269, %v576
        %v2552 = vmul.f32 %v2268, %v577
        %v2553 = vmul.f32 %v2267, %v578
        %v2554 = vmul.f32 %v2266, %v579
        %v2555 = vmul.f32 %v2265, %v580
        %v2556 = vmul.f32 %v2264, %v581
        %v2557 = vmul.f32 %v2263, %v582
        %v2558 = vmul.f32 %v2262, %v583
        %v2559 = vmul.f32 %v2261, %v584
        %v2560 = vmul.f32 %v2260, %v585
        %v2561 = vmul.f32 %v2259, %v586
        %v2562 = vmul.f32 %v2274, %v587
        %v2563 = vmul.f32 %v2337, %v604
        %v2564 = vmul.f32 %v2336, %v605
        %v2565 = vmul.f32 %v2335, %v606
        %v2566 = vmul.f32 %v2334, %v607
        %v2567 = vmul.f32 %v2333, %v608
        %v2568 = vmul.f32 %v2332, %v609
        %v2569 = vmul.f32 %v2331, %v610
        %v2570 = vmul.f32 %v2330, %v611
        %v2571 = vmul.f32 %v2329, %v612
        %v2572 = vmul.f32 %v2328, %v613
        %v2573 = vmul.f32 %v2327, %v614
        %v2574 = vmul.f32 %v2326, %v615
        %v2575 = vmul.f32 %v2325, %v616
        %v2576 = vmul.f32 %v2324, %v617
        %v2577 = vmul.f32 %v2323, %v618
        %v2578 = vmul.f32 %v2338, %v619
        %v2579 = vmul.f32 %v2401, %v652
        %v2580 = vmul.f32 %v2400, %v653
        %v2581 = vmul.f32 %v2399, %v654
        %v2582 = vmul.f32 %v2398, %v655
        %v2583 = vmul.f32 %v2397, %v656
        %v2584 = vmul.f32 %v2396, %v657
        %v2585 = vmul.f32 %v2395, %v658
        %v2586 = vmul.f32 %v2394, %v659
        %v2587 = vmul.f32 %v2393, %v660
        %v2588 = vmul.f32 %v2392, %v661
        %v2589 = vmul.f32 %v2391, %v662
        %v2590 = vmul.f32 %v2390, %v663
        %v2591 = vmul.f32 %v2389, %v664
        %v2592 = vmul.f32 %v2388, %v665
        %v2593 = vmul.f32 %v2387, %v666
        %v2594 = vmul.f32 %v2402, %v667
        %2596 = vset.pattern.permute.xlu0 0
        %2597 = vperm.xlu0 %2596, %v2226
        %v2598 = vpop.permute.xlu0 %2597
        %vm2600 = vcmask 588800
        %v2602 = vsel %vm2600, %v2225, 0
        %2604 = vmatprep.subr.mxu0 0.0
        %2605 = vmatpush1.msra.mxu0 0.0
        %2606 = vmatprep.subr.mxu0 0.0
        %2607 = vmatpush1.msra.mxu0 0.0
        %2608 = vmatprep.subr.mxu0 0.0
        %2609 = vmatpush1.msra.mxu0 0.0
        %2610 = vmatprep.subr.mxu0 0.0
        %2611 = vmatpush1.msra.mxu0 0.0
        %2612 = vmatprep.subr.mxu0 0.0
        %2613 = vmatpush1.msra.mxu0 0.0
        %2614 = vmatprep.subr.mxu0 0.0
        %2615 = vmatpush1.msra.mxu0 0.0
        %2616 = vmatprep.subr.mxu0 0.0
        %2617 = vmatpush1.msra.mxu0 0.0
        %2618 = vmatprep.subr.mxu0 %v2580
        %2619 = vmatpush1.msra.mxu0 %v2579
        %2620 = vmatprep.subr.mxu0 %v2564
        %2621 = vmatpush1.msra.mxu0 %v2563
        %2622 = vmatprep.subr.mxu0 %v2548
        %2623 = vmatpush1.msra.mxu0 %v2547
        %2624 = vmatprep.subr.mxu0 %v2532
        %2625 = vmatpush1.msra.mxu0 %v2531
        %2626 = vmatprep.subr.mxu0 %v2210
        %2627 = vmatpush1.msra.mxu0 %v2209
        %2628 = vmatprep.subr.mxu0 %v2468
        %2629 = vmatpush1.msra.mxu0 %v2467
        %2630 = vmatprep.subr.mxu0 %v2404
        %2631 = vmatpush1.msra.mxu0 %v2403
        %2632 = vmatprep.subr.mxu0 %v2340
        %2633 = vmatpush1.msra.mxu0 %v2339
        %2634 = vmatprep.subr.mxu0 %v2276
        %2635 = vmatpush1.msra.mxu0 %v2275
        %2636 = vmatprep.subr.mxu0 0.0
        %2637 = vmatpush2.msra.mxu0 0.0
        %2638 = vmatprep.subr.mxu0 0.0
        %2639 = vmatpush2.msra.mxu0 0.0
        %2640 = vmatprep.subr.mxu0 0.0
        %2641 = vmatpush2.msra.mxu0 0.0
        %2642 = vmatprep.subr.mxu0 0.0
        %2643 = vmatpush2.msra.mxu0 0.0
        %2644 = vmatprep.subr.mxu0 0.0
        %2645 = vmatpush2.msra.mxu0 0.0
        %2646 = vmatprep.subr.mxu0 0.0
        %2647 = vmatpush2.msra.mxu0 0.0
        %2648 = vmatprep.subr.mxu0 0.0
        %2649 = vmatpush2.msra.mxu0 0.0
        %2650 = vmatprep.subr.mxu0 0.0
        %2651 = vmatpush2.msra.mxu0 0.0
        %2652 = vmatprep.subr.mxu0 0.0
        %2653 = vmatpush2.msra.mxu0 0.0
        %2654 = vmatprep.subr.mxu0 0.0
        %2655 = vmatpush2.msra.mxu0 0.0
        %2656 = vmatprep.subr.mxu0 0.0
        %2657 = vmatpush2.msra.mxu0 0.0
        %2658 = vmatprep.subr.mxu0 0.0
        %2659 = vmatpush2.msra.mxu0 0.0
        %2660 = vmatprep.subr.mxu0 0.0
        %2661 = vmatpush2.msra.mxu0 0.0
        %2662 = vmatprep.subr.mxu0 0.0
        %2663 = vmatpush2.msra.mxu0 0.0
        %2664 = vmatprep.subr.mxu0 0.0
        %2665 = vmatpush2.msra.mxu0 0.0
        %2666 = vmatprep.subr.mxu0 0.0
        %2667 = vmatpush2.msra.mxu0 0.0
        %2668 = vmatprep.mubr.f32.mxu0 0.0
        %2669 = vmatmul.mubr.f32.gmra.mxu0 %v2602
        %v2670 = vpop.f32.mrf.mxu0
        %v2671 = vadd.f32 %v2598, %v2670
        %v2672 = vpop.f32.mrf.mxu0
        %v2673 = vadd.f32 %v2598, %v2672
        %2674 = vdwg.mxu0
        %2675 = vmatprep.subr.mxu0 0.0
        %2676 = vmatpush1.msra.mxu0 0.0
        %2677 = vmatprep.subr.mxu0 0.0
        %2678 = vmatpush1.msra.mxu0 0.0
        %2679 = vmatprep.subr.mxu0 0.0
        %2680 = vmatpush1.msra.mxu0 0.0
        %2681 = vmatprep.subr.mxu0 0.0
        %2682 = vmatpush1.msra.mxu0 0.0
        %2683 = vmatprep.subr.mxu0 0.0
        %2684 = vmatpush1.msra.mxu0 0.0
        %2685 = vmatprep.subr.mxu0 0.0
        %2686 = vmatpush1.msra.mxu0 0.0
        %2687 = vmatprep.subr.mxu0 0.0
        %2688 = vmatpush1.msra.mxu0 0.0
        %2689 = vmatprep.subr.mxu0 %v2582
        %2690 = vmatpush1.msra.mxu0 %v2581
        %2691 = vmatprep.subr.mxu0 %v2566
        %2692 = vmatpush1.msra.mxu0 %v2565
        %2693 = vmatprep.subr.mxu0 %v2550
        %2694 = vmatpush1.msra.mxu0 %v2549
        %2695 = vmatprep.subr.mxu0 %v2534
        %2696 = vmatpush1.msra.mxu0 %v2533
        %2697 = vmatprep.subr.mxu0 %v2212
        %2698 = vmatpush1.msra.mxu0 %v2211
        %2699 = vmatprep.subr.mxu0 %v2470
        %2700 = vmatpush1.msra.mxu0 %v2469
        %2701 = vmatprep.subr.mxu0 %v2406
        %2702 = vmatpush1.msra.mxu0 %v2405
        %2703 = vmatprep.subr.mxu0 %v2342
        %2704 = vmatpush1.msra.mxu0 %v2341
        %2705 = vmatprep.subr.mxu0 %v2278
        %2706 = vmatpush1.msra.mxu0 %v2277
        %2707 = vmatprep.subr.mxu0 0.0
        %2708 = vmatpush2.msra.mxu0 0.0
        %2709 = vmatprep.subr.mxu0 0.0
        %2710 = vmatpush2.msra.mxu0 0.0
        %2711 = vmatprep.subr.mxu0 0.0
        %2712 = vmatpush2.msra.mxu0 0.0
        %2713 = vmatprep.subr.mxu0 0.0
        %2714 = vmatpush2.msra.mxu0 0.0
        %2715 = vmatprep.subr.mxu0 0.0
        %2716 = vmatpush2.msra.mxu0 0.0
        %2717 = vmatprep.subr.mxu0 0.0
        %2718 = vmatpush2.msra.mxu0 0.0
        %2719 = vmatprep.subr.mxu0 0.0
        %2720 = vmatpush2.msra.mxu0 0.0
        %2721 = vmatprep.subr.mxu0 0.0
        %2722 = vmatpush2.msra.mxu0 0.0
        %2723 = vmatprep.subr.mxu0 0.0
        %2724 = vmatpush2.msra.mxu0 0.0
        %2725 = vmatprep.subr.mxu0 0.0
        %2726 = vmatpush2.msra.mxu0 0.0
        %2727 = vmatprep.subr.mxu0 0.0
        %2728 = vmatpush2.msra.mxu0 0.0
        %2729 = vmatprep.subr.mxu0 0.0
        %2730 = vmatpush2.msra.mxu0 0.0
        %2731 = vmatprep.subr.mxu0 0.0
        %2732 = vmatpush2.msra.mxu0 0.0
        %2733 = vmatprep.subr.mxu0 0.0
        %2734 = vmatpush2.msra.mxu0 0.0
        %2735 = vmatprep.subr.mxu0 0.0
        %2736 = vmatpush2.msra.mxu0 0.0
        %2737 = vmatprep.subr.mxu0 0.0
        %2738 = vmatpush2.msra.mxu0 0.0
        %2739 = vmatprep.mubr.f32.mxu0 0.0
        %2740 = vmatmul.mubr.f32.gmra.mxu0 %v2602
        %v2741 = vpop.f32.mrf.mxu0
        %v2742 = vadd.f32 %v2598, %v2741
        %v2743 = vpop.f32.mrf.mxu0
        %v2744 = vadd.f32 %v2598, %v2743
        %2745 = vdwg.mxu0
        %2746 = vmatprep.subr.mxu0 0.0
        %2747 = vmatpush1.msra.mxu0 0.0
        %2748 = vmatprep.subr.mxu0 0.0
        %2749 = vmatpush1.msra.mxu0 0.0
        %2750 = vmatprep.subr.mxu0 0.0
        %2751 = vmatpush1.msra.mxu0 0.0
        %2752 = vmatprep.subr.mxu0 0.0
        %2753 = vmatpush1.msra.mxu0 0.0
        %2754 = vmatprep.subr.mxu0 0.0
        %2755 = vmatpush1.msra.mxu0 0.0
        %2756 = vmatprep.subr.mxu0 0.0
        %2757 = vmatpush1.msra.mxu0 0.0
        %2758 = vmatprep.subr.mxu0 0.0
        %2759 = vmatpush1.msra.mxu0 0.0
        %2760 = vmatprep.subr.mxu0 %v2584
        %2761 = vmatpush1.msra.mxu0 %v2583
        %2762 = vmatprep.subr.mxu0 %v2568
        %2763 = vmatpush1.msra.mxu0 %v2567
        %2764 = vmatprep.subr.mxu0 %v2552
        %2765 = vmatpush1.msra.mxu0 %v2551
        %2766 = vmatprep.subr.mxu0 %v2536
        %2767 = vmatpush1.msra.mxu0 %v2535
        %2768 = vmatprep.subr.mxu0 %v2214
        %2769 = vmatpush1.msra.mxu0 %v2213
        %2770 = vmatprep.subr.mxu0 %v2472
        %2771 = vmatpush1.msra.mxu0 %v2471
        %2772 = vmatprep.subr.mxu0 %v2408
        %2773 = vmatpush1.msra.mxu0 %v2407
        %2774 = vmatprep.subr.mxu0 %v2344
        %2775 = vmatpush1.msra.mxu0 %v2343
        %2776 = vmatprep.subr.mxu0 %v2280
        %2777 = vmatpush1.msra.mxu0 %v2279
        %2778 = vmatprep.subr.mxu0 0.0
        %2779 = vmatpush2.msra.mxu0 0.0
        %2780 = vmatprep.subr.mxu0 0.0
        %2781 = vmatpush2.msra.mxu0 0.0
        %2782 = vmatprep.subr.mxu0 0.0
        %2783 = vmatpush2.msra.mxu0 0.0
        %2784 = vmatprep.subr.mxu0 0.0
        %2785 = vmatpush2.msra.mxu0 0.0
        %2786 = vmatprep.subr.mxu0 0.0
        %2787 = vmatpush2.msra.mxu0 0.0
        %2788 = vmatprep.subr.mxu0 0.0
        %2789 = vmatpush2.msra.mxu0 0.0
        %2790 = vmatprep.subr.mxu0 0.0
        %2791 = vmatpush2.msra.mxu0 0.0
        %2792 = vmatprep.subr.mxu0 0.0
        %2793 = vmatpush2.msra.mxu0 0.0
        %2794 = vmatprep.subr.mxu0 0.0
        %2795 = vmatpush2.msra.mxu0 0.0
        %2796 = vmatprep.subr.mxu0 0.0
        %2797 = vmatpush2.msra.mxu0 0.0
        %2798 = vmatprep.subr.mxu0 0.0
        %2799 = vmatpush2.msra.mxu0 0.0
        %2800 = vmatprep.subr.mxu0 0.0
        %2801 = vmatpush2.msra.mxu0 0.0
        %2802 = vmatprep.subr.mxu0 0.0
        %2803 = vmatpush2.msra.mxu0 0.0
        %2804 = vmatprep.subr.mxu0 0.0
        %2805 = vmatpush2.msra.mxu0 0.0
        %2806 = vmatprep.subr.mxu0 0.0
        %2807 = vmatpush2.msra.mxu0 0.0
        %2808 = vmatprep.subr.mxu0 0.0
        %2809 = vmatpush2.msra.mxu0 0.0
        %2810 = vmatprep.mubr.f32.mxu0 0.0
        %2811 = vmatmul.mubr.f32.gmra.mxu0 %v2602
        %v2812 = vpop.f32.mrf.mxu0
        %v2813 = vadd.f32 %v2598, %v2812
        %v2814 = vpop.f32.mrf.mxu0
        %v2815 = vadd.f32 %v2598, %v2814
        %2816 = vdwg.mxu0
        %2817 = vmatprep.subr.mxu0 0.0
        %2818 = vmatpush1.msra.mxu0 0.0
        %2819 = vmatprep.subr.mxu0 0.0
        %2820 = vmatpush1.msra.mxu0 0.0
        %2821 = vmatprep.subr.mxu0 0.0
        %2822 = vmatpush1.msra.mxu0 0.0
        %2823 = vmatprep.subr.mxu0 0.0
        %2824 = vmatpush1.msra.mxu0 0.0
        %2825 = vmatprep.subr.mxu0 0.0
        %2826 = vmatpush1.msra.mxu0 0.0
        %2827 = vmatprep.subr.mxu0 0.0
        %2828 = vmatpush1.msra.mxu0 0.0
        %2829 = vmatprep.subr.mxu0 0.0
        %2830 = vmatpush1.msra.mxu0 0.0
        %2831 = vmatprep.subr.mxu0 %v2586
        %2832 = vmatpush1.msra.mxu0 %v2585
        %2833 = vmatprep.subr.mxu0 %v2570
        %2834 = vmatpush1.msra.mxu0 %v2569
        %2835 = vmatprep.subr.mxu0 %v2554
        %2836 = vmatpush1.msra.mxu0 %v2553
        %2837 = vmatprep.subr.mxu0 %v2538
        %2838 = vmatpush1.msra.mxu0 %v2537
        %2839 = vmatprep.subr.mxu0 %v2216
        %2840 = vmatpush1.msra.mxu0 %v2215
        %2841 = vmatprep.subr.mxu0 %v2474
        %2842 = vmatpush1.msra.mxu0 %v2473
        %2843 = vmatprep.subr.mxu0 %v2410
        %2844 = vmatpush1.msra.mxu0 %v2409
        %2845 = vmatprep.subr.mxu0 %v2346
        %2846 = vmatpush1.msra.mxu0 %v2345
        %2847 = vmatprep.subr.mxu0 %v2282
        %2848 = vmatpush1.msra.mxu0 %v2281
        %2849 = vmatprep.subr.mxu0 0.0
        %2850 = vmatpush2.msra.mxu0 0.0
        %2851 = vmatprep.subr.mxu0 0.0
        %2852 = vmatpush2.msra.mxu0 0.0
        %2853 = vmatprep.subr.mxu0 0.0
        %2854 = vmatpush2.msra.mxu0 0.0
        %2855 = vmatprep.subr.mxu0 0.0
        %2856 = vmatpush2.msra.mxu0 0.0
        %2857 = vmatprep.subr.mxu0 0.0
        %2858 = vmatpush2.msra.mxu0 0.0
        %2859 = vmatprep.subr.mxu0 0.0
        %2860 = vmatpush2.msra.mxu0 0.0
        %2861 = vmatprep.subr.mxu0 0.0
        %2862 = vmatpush2.msra.mxu0 0.0
        %2863 = vmatprep.subr.mxu0 0.0
        %2864 = vmatpush2.msra.mxu0 0.0
        %2865 = vmatprep.subr.mxu0 0.0
        %2866 = vmatpush2.msra.mxu0 0.0
        %2867 = vmatprep.subr.mxu0 0.0
        %2868 = vmatpush2.msra.mxu0 0.0
        %2869 = vmatprep.subr.mxu0 0.0
        %2870 = vmatpush2.msra.mxu0 0.0
        %2871 = vmatprep.subr.mxu0 0.0
        %2872 = vmatpush2.msra.mxu0 0.0
        %2873 = vmatprep.subr.mxu0 0.0
        %2874 = vmatpush2.msra.mxu0 0.0
        %2875 = vmatprep.subr.mxu0 0.0
        %2876 = vmatpush2.msra.mxu0 0.0
        %2877 = vmatprep.subr.mxu0 0.0
        %2878 = vmatpush2.msra.mxu0 0.0
        %2879 = vmatprep.subr.mxu0 0.0
        %2880 = vmatpush2.msra.mxu0 0.0
        %2881 = vmatprep.mubr.f32.mxu0 0.0
        %2882 = vmatmul.mubr.f32.gmra.mxu0 %v2602
        %v2883 = vpop.f32.mrf.mxu0
        %v2884 = vadd.f32 %v2598, %v2883
        %v2885 = vpop.f32.mrf.mxu0
        %v2886 = vadd.f32 %v2598, %v2885
        %2887 = vdwg.mxu0
        %2888 = vmatprep.subr.mxu0 0.0
        %2889 = vmatpush1.msra.mxu0 0.0
        %2890 = vmatprep.subr.mxu0 0.0
        %2891 = vmatpush1.msra.mxu0 0.0
        %2892 = vmatprep.subr.mxu0 0.0
        %2893 = vmatpush1.msra.mxu0 0.0
        %2894 = vmatprep.subr.mxu0 0.0
        %2895 = vmatpush1.msra.mxu0 0.0
        %2896 = vmatprep.subr.mxu0 0.0
        %2897 = vmatpush1.msra.mxu0 0.0
        %2898 = vmatprep.subr.mxu0 0.0
        %2899 = vmatpush1.msra.mxu0 0.0
        %2900 = vmatprep.subr.mxu0 0.0
        %2901 = vmatpush1.msra.mxu0 0.0
        %2902 = vmatprep.subr.mxu0 %v2588
        %2903 = vmatpush1.msra.mxu0 %v2587
        %2904 = vmatprep.subr.mxu0 %v2572
        %2905 = vmatpush1.msra.mxu0 %v2571
        %2906 = vmatprep.subr.mxu0 %v2556
        %2907 = vmatpush1.msra.mxu0 %v2555
        %2908 = vmatprep.subr.mxu0 %v2540
        %2909 = vmatpush1.msra.mxu0 %v2539
        %2910 = vmatprep.subr.mxu0 %v2218
        %2911 = vmatpush1.msra.mxu0 %v2217
        %2912 = vmatprep.subr.mxu0 %v2476
        %2913 = vmatpush1.msra.mxu0 %v2475
        %2914 = vmatprep.subr.mxu0 %v2412
        %2915 = vmatpush1.msra.mxu0 %v2411
        %2916 = vmatprep.subr.mxu0 %v2348
        %2917 = vmatpush1.msra.mxu0 %v2347
        %2918 = vmatprep.subr.mxu0 %v2284
        %2919 = vmatpush1.msra.mxu0 %v2283
        %2920 = vmatprep.subr.mxu0 0.0
        %2921 = vmatpush2.msra.mxu0 0.0
        %2922 = vmatprep.subr.mxu0 0.0
        %2923 = vmatpush2.msra.mxu0 0.0
        %2924 = vmatprep.subr.mxu0 0.0
        %2925 = vmatpush2.msra.mxu0 0.0
        %2926 = vmatprep.subr.mxu0 0.0
        %2927 = vmatpush2.msra.mxu0 0.0
        %2928 = vmatprep.subr.mxu0 0.0
        %2929 = vmatpush2.msra.mxu0 0.0
        %2930 = vmatprep.subr.mxu0 0.0
        %2931 = vmatpush2.msra.mxu0 0.0
        %2932 = vmatprep.subr.mxu0 0.0
        %2933 = vmatpush2.msra.mxu0 0.0
        %2934 = vmatprep.subr.mxu0 0.0
        %2935 = vmatpush2.msra.mxu0 0.0
        %2936 = vmatprep.subr.mxu0 0.0
        %2937 = vmatpush2.msra.mxu0 0.0
        %2938 = vmatprep.subr.mxu0 0.0
        %2939 = vmatpush2.msra.mxu0 0.0
        %2940 = vmatprep.subr.mxu0 0.0
        %2941 = vmatpush2.msra.mxu0 0.0
        %2942 = vmatprep.subr.mxu0 0.0
        %2943 = vmatpush2.msra.mxu0 0.0
        %2944 = vmatprep.subr.mxu0 0.0
        %2945 = vmatpush2.msra.mxu0 0.0
        %2946 = vmatprep.subr.mxu0 0.0
        %2947 = vmatpush2.msra.mxu0 0.0
        %2948 = vmatprep.subr.mxu0 0.0
        %2949 = vmatpush2.msra.mxu0 0.0
        %2950 = vmatprep.subr.mxu0 0.0
        %2951 = vmatpush2.msra.mxu0 0.0
        %2952 = vmatprep.mubr.f32.mxu0 0.0
        %2953 = vmatmul.mubr.f32.gmra.mxu0 %v2602
        %v2954 = vpop.f32.mrf.mxu0
        %v2955 = vadd.f32 %v2598, %v2954
        %v2956 = vpop.f32.mrf.mxu0
        %v2957 = vadd.f32 %v2598, %v2956
        %2958 = vdwg.mxu0
        %2959 = vmatprep.subr.mxu0 0.0
        %2960 = vmatpush1.msra.mxu0 0.0
        %2961 = vmatprep.subr.mxu0 0.0
        %2962 = vmatpush1.msra.mxu0 0.0
        %2963 = vmatprep.subr.mxu0 0.0
        %2964 = vmatpush1.msra.mxu0 0.0
        %2965 = vmatprep.subr.mxu0 0.0
        %2966 = vmatpush1.msra.mxu0 0.0
        %2967 = vmatprep.subr.mxu0 0.0
        %2968 = vmatpush1.msra.mxu0 0.0
        %2969 = vmatprep.subr.mxu0 0.0
        %2970 = vmatpush1.msra.mxu0 0.0
        %2971 = vmatprep.subr.mxu0 0.0
        %2972 = vmatpush1.msra.mxu0 0.0
        %2973 = vmatprep.subr.mxu0 %v2590
        %2974 = vmatpush1.msra.mxu0 %v2589
        %2975 = vmatprep.subr.mxu0 %v2574
        %2976 = vmatpush1.msra.mxu0 %v2573
        %2977 = vmatprep.subr.mxu0 %v2558
        %2978 = vmatpush1.msra.mxu0 %v2557
        %2979 = vmatprep.subr.mxu0 %v2542
        %2980 = vmatpush1.msra.mxu0 %v2541
        %2981 = vmatprep.subr.mxu0 %v2220
        %2982 = vmatpush1.msra.mxu0 %v2219
        %2983 = vmatprep.subr.mxu0 %v2478
        %2984 = vmatpush1.msra.mxu0 %v2477
        %2985 = vmatprep.subr.mxu0 %v2414
        %2986 = vmatpush1.msra.mxu0 %v2413
        %2987 = vmatprep.subr.mxu0 %v2350
        %2988 = vmatpush1.msra.mxu0 %v2349
        %2989 = vmatprep.subr.mxu0 %v2286
        %2990 = vmatpush1.msra.mxu0 %v2285
        %2991 = vmatprep.subr.mxu0 0.0
        %2992 = vmatpush2.msra.mxu0 0.0
        %2993 = vmatprep.subr.mxu0 0.0
        %2994 = vmatpush2.msra.mxu0 0.0
        %2995 = vmatprep.subr.mxu0 0.0
        %2996 = vmatpush2.msra.mxu0 0.0
        %2997 = vmatprep.subr.mxu0 0.0
        %2998 = vmatpush2.msra.mxu0 0.0
        %2999 = vmatprep.subr.mxu0 0.0
        %3000 = vmatpush2.msra.mxu0 0.0
        %3001 = vmatprep.subr.mxu0 0.0
        %3002 = vmatpush2.msra.mxu0 0.0
        %3003 = vmatprep.subr.mxu0 0.0
        %3004 = vmatpush2.msra.mxu0 0.0
        %3005 = vmatprep.subr.mxu0 0.0
        %3006 = vmatpush2.msra.mxu0 0.0
        %3007 = vmatprep.subr.mxu0 0.0
        %3008 = vmatpush2.msra.mxu0 0.0
        %3009 = vmatprep.subr.mxu0 0.0
        %3010 = vmatpush2.msra.mxu0 0.0
        %3011 = vmatprep.subr.mxu0 0.0
        %3012 = vmatpush2.msra.mxu0 0.0
        %3013 = vmatprep.subr.mxu0 0.0
        %3014 = vmatpush2.msra.mxu0 0.0
        %3015 = vmatprep.subr.mxu0 0.0
        %3016 = vmatpush2.msra.mxu0 0.0
        %3017 = vmatprep.subr.mxu0 0.0
        %3018 = vmatpush2.msra.mxu0 0.0
        %3019 = vmatprep.subr.mxu0 0.0
        %3020 = vmatpush2.msra.mxu0 0.0
        %3021 = vmatprep.subr.mxu0 0.0
        %3022 = vmatpush2.msra.mxu0 0.0
        %3023 = vmatprep.mubr.f32.mxu0 0.0
        %3024 = vmatmul.mubr.f32.gmra.mxu0 %v2602
        %v3025 = vpop.f32.mrf.mxu0
        %v3026 = vadd.f32 %v2598, %v3025
        %v3027 = vpop.f32.mrf.mxu0
        %v3028 = vadd.f32 %v2598, %v3027
        %3029 = vdwg.mxu0
        %3030 = vmatprep.subr.mxu0 0.0
        %3031 = vmatpush1.msra.mxu0 0.0
        %3032 = vmatprep.subr.mxu0 0.0
        %3033 = vmatpush1.msra.mxu0 0.0
        %3034 = vmatprep.subr.mxu0 0.0
        %3035 = vmatpush1.msra.mxu0 0.0
        %3036 = vmatprep.subr.mxu0 0.0
        %3037 = vmatpush1.msra.mxu0 0.0
        %3038 = vmatprep.subr.mxu0 0.0
        %3039 = vmatpush1.msra.mxu0 0.0
        %3040 = vmatprep.subr.mxu0 0.0
        %3041 = vmatpush1.msra.mxu0 0.0
        %3042 = vmatprep.subr.mxu0 0.0
        %3043 = vmatpush1.msra.mxu0 0.0
        %3044 = vmatprep.subr.mxu0 %v2592
        %3045 = vmatpush1.msra.mxu0 %v2591
        %3046 = vmatprep.subr.mxu0 %v2576
        %3047 = vmatpush1.msra.mxu0 %v2575
        %3048 = vmatprep.subr.mxu0 %v2560
        %3049 = vmatpush1.msra.mxu0 %v2559
        %3050 = vmatprep.subr.mxu0 %v2544
        %3051 = vmatpush1.msra.mxu0 %v2543
        %3052 = vmatprep.subr.mxu0 %v2222
        %3053 = vmatpush1.msra.mxu0 %v2221
        %3054 = vmatprep.subr.mxu0 %v2480
        %3055 = vmatpush1.msra.mxu0 %v2479
        %3056 = vmatprep.subr.mxu0 %v2416
        %3057 = vmatpush1.msra.mxu0 %v2415
        %3058 = vmatprep.subr.mxu0 %v2352
        %3059 = vmatpush1.msra.mxu0 %v2351
        %3060 = vmatprep.subr.mxu0 %v2288
        %3061 = vmatpush1.msra.mxu0 %v2287
        %3062 = vmatprep.subr.mxu0 0.0
        %3063 = vmatpush2.msra.mxu0 0.0
        %3064 = vmatprep.subr.mxu0 0.0
        %3065 = vmatpush2.msra.mxu0 0.0
        %3066 = vmatprep.subr.mxu0 0.0
        %3067 = vmatpush2.msra.mxu0 0.0
        %3068 = vmatprep.subr.mxu0 0.0
        %3069 = vmatpush2.msra.mxu0 0.0
        %3070 = vmatprep.subr.mxu0 0.0
        %3071 = vmatpush2.msra.mxu0 0.0
        %3072 = vmatprep.subr.mxu0 0.0
        %3073 = vmatpush2.msra.mxu0 0.0
        %3074 = vmatprep.subr.mxu0 0.0
        %3075 = vmatpush2.msra.mxu0 0.0
        %3076 = vmatprep.subr.mxu0 0.0
        %3077 = vmatpush2.msra.mxu0 0.0
        %3078 = vmatprep.subr.mxu0 0.0
        %3079 = vmatpush2.msra.mxu0 0.0
        %3080 = vmatprep.subr.mxu0 0.0
        %3081 = vmatpush2.msra.mxu0 0.0
        %3082 = vmatprep.subr.mxu0 0.0
        %3083 = vmatpush2.msra.mxu0 0.0
        %3084 = vmatprep.subr.mxu0 0.0
        %3085 = vmatpush2.msra.mxu0 0.0
        %3086 = vmatprep.subr.mxu0 0.0
        %3087 = vmatpush2.msra.mxu0 0.0
        %3088 = vmatprep.subr.mxu0 0.0
        %3089 = vmatpush2.msra.mxu0 0.0
        %3090 = vmatprep.subr.mxu0 0.0
        %3091 = vmatpush2.msra.mxu0 0.0
        %3092 = vmatprep.subr.mxu0 0.0
        %3093 = vmatpush2.msra.mxu0 0.0
        %3094 = vmatprep.mubr.f32.mxu0 0.0
        %3095 = vmatmul.mubr.f32.gmra.mxu0 %v2602
        %v3096 = vpop.f32.mrf.mxu0
        %v3097 = vadd.f32 %v2598, %v3096
        %v3098 = vpop.f32.mrf.mxu0
        %v3099 = vadd.f32 %v2598, %v3098
        %3100 = vdwg.mxu0
        %3101 = vmatprep.subr.mxu0 0.0
        %3102 = vmatpush1.msra.mxu0 0.0
        %3103 = vmatprep.subr.mxu0 0.0
        %3104 = vmatpush1.msra.mxu0 0.0
        %3105 = vmatprep.subr.mxu0 0.0
        %3106 = vmatpush1.msra.mxu0 0.0
        %3107 = vmatprep.subr.mxu0 0.0
        %3108 = vmatpush1.msra.mxu0 0.0
        %3109 = vmatprep.subr.mxu0 0.0
        %3110 = vmatpush1.msra.mxu0 0.0
        %3111 = vmatprep.subr.mxu0 0.0
        %3112 = vmatpush1.msra.mxu0 0.0
        %3113 = vmatprep.subr.mxu0 0.0
        %3114 = vmatpush1.msra.mxu0 0.0
        %3115 = vmatprep.subr.mxu0 %v2594
        %3116 = vmatpush1.msra.mxu0 %v2593
        %3117 = vmatprep.subr.mxu0 %v2578
        %3118 = vmatpush1.msra.mxu0 %v2577
        %3119 = vmatprep.subr.mxu0 %v2562
        %3120 = vmatpush1.msra.mxu0 %v2561
        %3121 = vmatprep.subr.mxu0 %v2546
        %3122 = vmatpush1.msra.mxu0 %v2545
        %3123 = vmatprep.subr.mxu0 %v2224
        %3124 = vmatpush1.msra.mxu0 %v2223
        %3125 = vmatprep.subr.mxu0 %v2482
        %3126 = vmatpush1.msra.mxu0 %v2481
        %3127 = vmatprep.subr.mxu0 %v2418
        %3128 = vmatpush1.msra.mxu0 %v2417
        %3129 = vmatprep.subr.mxu0 %v2354
        %3130 = vmatpush1.msra.mxu0 %v2353
        %3131 = vmatprep.subr.mxu0 %v2290
        %3132 = vmatpush1.msra.mxu0 %v2289
        %3133 = vmatprep.subr.mxu0 0.0
        %3134 = vmatpush2.msra.mxu0 0.0
        %3135 = vmatprep.subr.mxu0 0.0
        %3136 = vmatpush2.msra.mxu0 0.0
        %3137 = vmatprep.subr.mxu0 0.0
        %3138 = vmatpush2.msra.mxu0 0.0
        %3139 = vmatprep.subr.mxu0 0.0
        %3140 = vmatpush2.msra.mxu0 0.0
        %3141 = vmatprep.subr.mxu0 0.0
        %3142 = vmatpush2.msra.mxu0 0.0
        %3143 = vmatprep.subr.mxu0 0.0
        %3144 = vmatpush2.msra.mxu0 0.0
        %3145 = vmatprep.subr.mxu0 0.0
        %3146 = vmatpush2.msra.mxu0 0.0
        %3147 = vmatprep.subr.mxu0 0.0
        %3148 = vmatpush2.msra.mxu0 0.0
        %3149 = vmatprep.subr.mxu0 0.0
        %3150 = vmatpush2.msra.mxu0 0.0
        %3151 = vmatprep.subr.mxu0 0.0
        %3152 = vmatpush2.msra.mxu0 0.0
        %3153 = vmatprep.subr.mxu0 0.0
        %3154 = vmatpush2.msra.mxu0 0.0
        %3155 = vmatprep.subr.mxu0 0.0
        %3156 = vmatpush2.msra.mxu0 0.0
        %3157 = vmatprep.subr.mxu0 0.0
        %3158 = vmatpush2.msra.mxu0 0.0
        %3159 = vmatprep.subr.mxu0 0.0
        %3160 = vmatpush2.msra.mxu0 0.0
        %3161 = vmatprep.subr.mxu0 0.0
        %3162 = vmatpush2.msra.mxu0 0.0
        %3163 = vmatprep.subr.mxu0 0.0
        %3164 = vmatpush2.msra.mxu0 0.0
        %3165 = vmatprep.mubr.f32.mxu0 0.0
        %3166 = vmatmul.mubr.f32.gmra.mxu0 %v2602
        %v3167 = vpop.f32.mrf.mxu0
        %v3168 = vadd.f32 %v2598, %v3167
        %v3169 = vpop.f32.mrf.mxu0
        %v3170 = vadd.f32 %v2598, %v3169
        %3171 = vdwg.mxu0
        %v3172 = vmax.f32 %v2671, 0.0
        %v3173 = vmax.f32 %v2673, 0.0
        %v3174 = vmax.f32 %v2742, 0.0
        %v3175 = vmax.f32 %v2744, 0.0
        %v3176 = vmax.f32 %v2813, 0.0
        %v3177 = vmax.f32 %v2815, 0.0
        %v3178 = vmax.f32 %v2884, 0.0
        %v3179 = vmax.f32 %v2886, 0.0
        %v3180 = vmax.f32 %v2955, 0.0
        %v3181 = vmax.f32 %v2957, 0.0
        %v3182 = vmax.f32 %v3026, 0.0
        %v3183 = vmax.f32 %v3028, 0.0
        %v3184 = vmax.f32 %v3097, 0.0
        %v3185 = vmax.f32 %v3099, 0.0
        %v3186 = vmax.f32 %v3168, 0.0
        %v3187 = vmax.f32 %v3170, 0.0
        %v3188 = vld [vmem:[%s1 + $0x30] sm:$0xff]
        %v3189 = vld [vmem:[%s2 + $0x10] sm:$0xff]
        %3190 = vrot.lane.b32.xlu0 %v3172, 66
        %v3191 = vpop.permute.xlu0 %3190
        %3192 = vrot.lane.b32.xlu0 %v3173, 66
        %v3193 = vpop.permute.xlu0 %3192
        %3194 = vrot.lane.b32.xlu0 %v3174, 66
        %v3195 = vpop.permute.xlu0 %3194
        %3196 = vrot.lane.b32.xlu0 %v3175, 66
        %v3197 = vpop.permute.xlu0 %3196
        %3198 = vrot.lane.b32.xlu0 %v3176, 66
        %v3199 = vpop.permute.xlu0 %3198
        %3200 = vrot.lane.b32.xlu0 %v3177, 66
        %v3201 = vpop.permute.xlu0 %3200
        %3202 = vrot.lane.b32.xlu0 %v3178, 66
        %v3203 = vpop.permute.xlu0 %3202
        %3204 = vrot.lane.b32.xlu0 %v3179, 66
        %v3205 = vpop.permute.xlu0 %3204
        %3206 = vrot.lane.b32.xlu0 %v3180, 66
        %v3207 = vpop.permute.xlu0 %3206
        %3208 = vrot.lane.b32.xlu0 %v3181, 66
        %v3209 = vpop.permute.xlu0 %3208
        %3210 = vrot.lane.b32.xlu0 %v3182, 66
        %v3211 = vpop.permute.xlu0 %3210
        %3212 = vrot.lane.b32.xlu0 %v3183, 66
        %v3213 = vpop.permute.xlu0 %3212
        %3214 = vrot.lane.b32.xlu0 %v3184, 66
        %v3215 = vpop.permute.xlu0 %3214
        %3216 = vrot.lane.b32.xlu0 %v3185, 66
        %v3217 = vpop.permute.xlu0 %3216
        %3218 = vrot.lane.b32.xlu0 %v3186, 66
        %v3219 = vpop.permute.xlu0 %3218
        %3220 = vrot.lane.b32.xlu0 %v3187, 66
        %v3221 = vpop.permute.xlu0 %3220
        %v3222 = vsel %vm836, %v3219, %v3221
        %v3223 = vsel %vm836, %v3217, %v3219
        %v3224 = vsel %vm836, %v3215, %v3217
        %v3225 = vsel %vm836, %v3213, %v3215
        %v3226 = vsel %vm836, %v3211, %v3213
        %v3227 = vsel %vm836, %v3209, %v3211
        %v3228 = vsel %vm836, %v3207, %v3209
        %v3229 = vsel %vm836, %v3205, %v3207
        %v3230 = vsel %vm836, %v3203, %v3205
        %v3231 = vsel %vm836, %v3201, %v3203
        %v3232 = vsel %vm836, %v3199, %v3201
        %v3233 = vsel %vm836, %v3197, %v3199
        %v3234 = vsel %vm836, %v3195, %v3197
        %v3235 = vsel %vm836, %v3193, %v3195
        %v3236 = vsel %vm836, %v3191, %v3193
        %v3237 = vsel %vm836, %v3221, %v3191
        %v3238 = vmul.f32 %v3237, %v380
        %v3239 = vmul.f32 %v3236, %v381
        %v3240 = vmul.f32 %v3235, %v382
        %v3241 = vmul.f32 %v3234, %v383
        %v3242 = vmul.f32 %v3233, %v384
        %v3243 = vmul.f32 %v3232, %v385
        %v3244 = vmul.f32 %v3231, %v386
        %v3245 = vmul.f32 %v3230, %v387
        %v3246 = vmul.f32 %v3229, %v388
        %v3247 = vmul.f32 %v3228, %v389
        %v3248 = vmul.f32 %v3227, %v390
        %v3249 = vmul.f32 %v3226, %v391
        %v3250 = vmul.f32 %v3225, %v392
        %v3251 = vmul.f32 %v3224, %v393
        %v3252 = vmul.f32 %v3223, %v394
        %v3253 = vmul.f32 %v3222, %v395
        %3254 = vrot.lane.b32.xlu0 %v3172, 64
        %v3255 = vpop.permute.xlu0 %3254
        %3256 = vrot.lane.b32.xlu0 %v3173, 64
        %v3257 = vpop.permute.xlu0 %3256
        %3258 = vrot.lane.b32.xlu0 %v3174, 64
        %v3259 = vpop.permute.xlu0 %3258
        %3260 = vrot.lane.b32.xlu0 %v3175, 64
        %v3261 = vpop.permute.xlu0 %3260
        %3262 = vrot.lane.b32.xlu0 %v3176, 64
        %v3263 = vpop.permute.xlu0 %3262
        %3264 = vrot.lane.b32.xlu0 %v3177, 64
        %v3265 = vpop.permute.xlu0 %3264
        %3266 = vrot.lane.b32.xlu0 %v3178, 64
        %v3267 = vpop.permute.xlu0 %3266
        %3268 = vrot.lane.b32.xlu0 %v3179, 64
        %v3269 = vpop.permute.xlu0 %3268
        %3270 = vrot.lane.b32.xlu0 %v3180, 64
        %v3271 = vpop.permute.xlu0 %3270
        %3272 = vrot.lane.b32.xlu0 %v3181, 64
        %v3273 = vpop.permute.xlu0 %3272
        %3274 = vrot.lane.b32.xlu0 %v3182, 64
        %v3275 = vpop.permute.xlu0 %3274
        %3276 = vrot.lane.b32.xlu0 %v3183, 64
        %v3277 = vpop.permute.xlu0 %3276
        %3278 = vrot.lane.b32.xlu0 %v3184, 64
        %v3279 = vpop.permute.xlu0 %3278
        %3280 = vrot.lane.b32.xlu0 %v3185, 64
        %v3281 = vpop.permute.xlu0 %3280
        %3282 = vrot.lane.b32.xlu0 %v3186, 64
        %v3283 = vpop.permute.xlu0 %3282
        %3284 = vrot.lane.b32.xlu0 %v3187, 64
        %v3285 = vpop.permute.xlu0 %3284
        %v3286 = vsel %vm901, %v3283, %v3285
        %v3287 = vsel %vm901, %v3281, %v3283
        %v3288 = vsel %vm901, %v3279, %v3281
        %v3289 = vsel %vm901, %v3277, %v3279
        %v3290 = vsel %vm901, %v3275, %v3277
        %v3291 = vsel %vm901, %v3273, %v3275
        %v3292 = vsel %vm901, %v3271, %v3273
        %v3293 = vsel %vm901, %v3269, %v3271
        %v3294 = vsel %vm901, %v3267, %v3269
        %v3295 = vsel %vm901, %v3265, %v3267
        %v3296 = vsel %vm901, %v3263, %v3265
        %v3297 = vsel %vm901, %v3261, %v3263
        %v3298 = vsel %vm901, %v3259, %v3261
        %v3299 = vsel %vm901, %v3257, %v3259
        %v3300 = vsel %vm901, %v3255, %v3257
        %v3301 = vsel %vm901, %v3285, %v3255
        %v3302 = vmul.f32 %v3301, %v412
        %v3303 = vmul.f32 %v3300, %v413
        %v3304 = vmul.f32 %v3299, %v414
        %v3305 = vmul.f32 %v3298, %v415
        %v3306 = vmul.f32 %v3297, %v416
        %v3307 = vmul.f32 %v3296, %v417
        %v3308 = vmul.f32 %v3295, %v418
        %v3309 = vmul.f32 %v3294, %v419
        %v3310 = vmul.f32 %v3293, %v420
        %v3311 = vmul.f32 %v3292, %v421
        %v3312 = vmul.f32 %v3291, %v422
        %v3313 = vmul.f32 %v3290, %v423
        %v3314 = vmul.f32 %v3289, %v424
        %v3315 = vmul.f32 %v3288, %v425
        %v3316 = vmul.f32 %v3287, %v426
        %v3317 = vmul.f32 %v3286, %v427
        %3318 = vrot.lane.b32.xlu0 %v3172, 62
        %v3319 = vpop.permute.xlu0 %3318
        %3320 = vrot.lane.b32.xlu0 %v3173, 62
        %v3321 = vpop.permute.xlu0 %3320
        %3322 = vrot.lane.b32.xlu0 %v3174, 62
        %v3323 = vpop.permute.xlu0 %3322
        %3324 = vrot.lane.b32.xlu0 %v3175, 62
        %v3325 = vpop.permute.xlu0 %3324
        %3326 = vrot.lane.b32.xlu0 %v3176, 62
        %v3327 = vpop.permute.xlu0 %3326
        %3328 = vrot.lane.b32.xlu0 %v3177, 62
        %v3329 = vpop.permute.xlu0 %3328
        %3330 = vrot.lane.b32.xlu0 %v3178, 62
        %v3331 = vpop.permute.xlu0 %3330
        %3332 = vrot.lane.b32.xlu0 %v3179, 62
        %v3333 = vpop.permute.xlu0 %3332
        %3334 = vrot.lane.b32.xlu0 %v3180, 62
        %v3335 = vpop.permute.xlu0 %3334
        %3336 = vrot.lane.b32.xlu0 %v3181, 62
        %v3337 = vpop.permute.xlu0 %3336
        %3338 = vrot.lane.b32.xlu0 %v3182, 62
        %v3339 = vpop.permute.xlu0 %3338
        %3340 = vrot.lane.b32.xlu0 %v3183, 62
        %v3341 = vpop.permute.xlu0 %3340
        %3342 = vrot.lane.b32.xlu0 %v3184, 62
        %v3343 = vpop.permute.xlu0 %3342
        %3344 = vrot.lane.b32.xlu0 %v3185, 62
        %v3345 = vpop.permute.xlu0 %3344
        %3346 = vrot.lane.b32.xlu0 %v3186, 62
        %v3347 = vpop.permute.xlu0 %3346
        %3348 = vrot.lane.b32.xlu0 %v3187, 62
        %v3349 = vpop.permute.xlu0 %3348
        %v3350 = vsel %vm966, %v3347, %v3349
        %v3351 = vsel %vm966, %v3345, %v3347
        %v3352 = vsel %vm966, %v3343, %v3345
        %v3353 = vsel %vm966, %v3341, %v3343
        %v3354 = vsel %vm966, %v3339, %v3341
        %v3355 = vsel %vm966, %v3337, %v3339
        %v3356 = vsel %vm966, %v3335, %v3337
        %v3357 = vsel %vm966, %v3333, %v3335
        %v3358 = vsel %vm966, %v3331, %v3333
        %v3359 = vsel %vm966, %v3329, %v3331
        %v3360 = vsel %vm966, %v3327, %v3329
        %v3361 = vsel %vm966, %v3325, %v3327
        %v3362 = vsel %vm966, %v3323, %v3325
        %v3363 = vsel %vm966, %v3321, %v3323
        %v3364 = vsel %vm966, %v3319, %v3321
        %v3365 = vsel %vm966, %v3349, %v3319
        %v3366 = vmul.f32 %v3365, %v460
        %v3367 = vmul.f32 %v3364, %v461
        %v3368 = vmul.f32 %v3363, %v462
        %v3369 = vmul.f32 %v3362, %v463
        %v3370 = vmul.f32 %v3361, %v464
        %v3371 = vmul.f32 %v3360, %v465
        %v3372 = vmul.f32 %v3359, %v466
        %v3373 = vmul.f32 %v3358, %v467
        %v3374 = vmul.f32 %v3357, %v468
        %v3375 = vmul.f32 %v3356, %v469
        %v3376 = vmul.f32 %v3355, %v470
        %v3377 = vmul.f32 %v3354, %v471
        %v3378 = vmul.f32 %v3353, %v472
        %v3379 = vmul.f32 %v3352, %v473
        %v3380 = vmul.f32 %v3351, %v474
        %v3381 = vmul.f32 %v3350, %v475
        %3382 = vrot.lane.b32.xlu0 %v3172, 2
        %v3383 = vpop.permute.xlu0 %3382
        %3384 = vrot.lane.b32.xlu0 %v3173, 2
        %v3385 = vpop.permute.xlu0 %3384
        %3386 = vrot.lane.b32.xlu0 %v3174, 2
        %v3387 = vpop.permute.xlu0 %3386
        %3388 = vrot.lane.b32.xlu0 %v3175, 2
        %v3389 = vpop.permute.xlu0 %3388
        %3390 = vrot.lane.b32.xlu0 %v3176, 2
        %v3391 = vpop.permute.xlu0 %3390
        %3392 = vrot.lane.b32.xlu0 %v3177, 2
        %v3393 = vpop.permute.xlu0 %3392
        %3394 = vrot.lane.b32.xlu0 %v3178, 2
        %v3395 = vpop.permute.xlu0 %3394
        %3396 = vrot.lane.b32.xlu0 %v3179, 2
        %v3397 = vpop.permute.xlu0 %3396
        %3398 = vrot.lane.b32.xlu0 %v3180, 2
        %v3399 = vpop.permute.xlu0 %3398
        %3400 = vrot.lane.b32.xlu0 %v3181, 2
        %v3401 = vpop.permute.xlu0 %3400
        %3402 = vrot.lane.b32.xlu0 %v3182, 2
        %v3403 = vpop.permute.xlu0 %3402
        %3404 = vrot.lane.b32.xlu0 %v3183, 2
        %v3405 = vpop.permute.xlu0 %3404
        %3406 = vrot.lane.b32.xlu0 %v3184, 2
        %v3407 = vpop.permute.xlu0 %3406
        %3408 = vrot.lane.b32.xlu0 %v3185, 2
        %v3409 = vpop.permute.xlu0 %3408
        %3410 = vrot.lane.b32.xlu0 %v3186, 2
        %v3411 = vpop.permute.xlu0 %3410
        %3412 = vrot.lane.b32.xlu0 %v3187, 2
        %v3413 = vpop.permute.xlu0 %3412
        %v3414 = vsel %vm1031, %v3411, %v3413
        %v3415 = vsel %vm1031, %v3409, %v3411
        %v3416 = vsel %vm1031, %v3407, %v3409
        %v3417 = vsel %vm1031, %v3405, %v3407
        %v3418 = vsel %vm1031, %v3403, %v3405
        %v3419 = vsel %vm1031, %v3401, %v3403
        %v3420 = vsel %vm1031, %v3399, %v3401
        %v3421 = vsel %vm1031, %v3397, %v3399
        %v3422 = vsel %vm1031, %v3395, %v3397
        %v3423 = vsel %vm1031, %v3393, %v3395
        %v3424 = vsel %vm1031, %v3391, %v3393
        %v3425 = vsel %vm1031, %v3389, %v3391
        %v3426 = vsel %vm1031, %v3387, %v3389
        %v3427 = vsel %vm1031, %v3385, %v3387
        %v3428 = vsel %vm1031, %v3383, %v3385
        %v3429 = vsel %vm1031, %v3413, %v3383
        %v3430 = vmul.f32 %v3429, %v492
        %v3431 = vmul.f32 %v3428, %v493
        %v3432 = vmul.f32 %v3427, %v494
        %v3433 = vmul.f32 %v3426, %v495
        %v3434 = vmul.f32 %v3425, %v496
        %v3435 = vmul.f32 %v3424, %v497
        %v3436 = vmul.f32 %v3423, %v498
        %v3437 = vmul.f32 %v3422, %v499
        %v3438 = vmul.f32 %v3421, %v500
        %v3439 = vmul.f32 %v3420, %v501
        %v3440 = vmul.f32 %v3419, %v502
        %v3441 = vmul.f32 %v3418, %v503
        %v3442 = vmul.f32 %v3417, %v504
        %v3443 = vmul.f32 %v3416, %v505
        %v3444 = vmul.f32 %v3415, %v506
        %v3445 = vmul.f32 %v3414, %v507
        %3446 = vrot.lane.b32.xlu0 %v3172, 126
        %v3447 = vpop.permute.xlu0 %3446
        %3448 = vrot.lane.b32.xlu0 %v3173, 126
        %v3449 = vpop.permute.xlu0 %3448
        %3450 = vrot.lane.b32.xlu0 %v3174, 126
        %v3451 = vpop.permute.xlu0 %3450
        %3452 = vrot.lane.b32.xlu0 %v3175, 126
        %v3453 = vpop.permute.xlu0 %3452
        %3454 = vrot.lane.b32.xlu0 %v3176, 126
        %v3455 = vpop.permute.xlu0 %3454
        %3456 = vrot.lane.b32.xlu0 %v3177, 126
        %v3457 = vpop.permute.xlu0 %3456
        %3458 = vrot.lane.b32.xlu0 %v3178, 126
        %v3459 = vpop.permute.xlu0 %3458
        %3460 = vrot.lane.b32.xlu0 %v3179, 126
        %v3461 = vpop.permute.xlu0 %3460
        %3462 = vrot.lane.b32.xlu0 %v3180, 126
        %v3463 = vpop.permute.xlu0 %3462
        %3464 = vrot.lane.b32.xlu0 %v3181, 126
        %v3465 = vpop.permute.xlu0 %3464
        %3466 = vrot.lane.b32.xlu0 %v3182, 126
        %v3467 = vpop.permute.xlu0 %3466
        %3468 = vrot.lane.b32.xlu0 %v3183, 126
        %v3469 = vpop.permute.xlu0 %3468
        %3470 = vrot.lane.b32.xlu0 %v3184, 126
        %v3471 = vpop.permute.xlu0 %3470
        %3472 = vrot.lane.b32.xlu0 %v3185, 126
        %v3473 = vpop.permute.xlu0 %3472
        %3474 = vrot.lane.b32.xlu0 %v3186, 126
        %v3475 = vpop.permute.xlu0 %3474
        %3476 = vrot.lane.b32.xlu0 %v3187, 126
        %v3477 = vpop.permute.xlu0 %3476
        %v3478 = vsel %vm1096, %v3475, %v3477
        %v3479 = vsel %vm1096, %v3473, %v3475
        %v3480 = vsel %vm1096, %v3471, %v3473
        %v3481 = vsel %vm1096, %v3469, %v3471
        %v3482 = vsel %vm1096, %v3467, %v3469
        %v3483 = vsel %vm1096, %v3465, %v3467
        %v3484 = vsel %vm1096, %v3463, %v3465
        %v3485 = vsel %vm1096, %v3461, %v3463
        %v3486 = vsel %vm1096, %v3459, %v3461
        %v3487 = vsel %vm1096, %v3457, %v3459
        %v3488 = vsel %vm1096, %v3455, %v3457
        %v3489 = vsel %vm1096, %v3453, %v3455
        %v3490 = vsel %vm1096, %v3451, %v3453
        %v3491 = vsel %vm1096, %v3449, %v3451
        %v3492 = vsel %vm1096, %v3447, %v3449
        %v3493 = vsel %vm1096, %v3477, %v3447
        %v3494 = vmul.f32 %v3492, %v524
        %v3495 = vmul.f32 %v3491, %v525
        %v3496 = vmul.f32 %v3490, %v526
        %v3497 = vmul.f32 %v3489, %v527
        %v3498 = vmul.f32 %v3488, %v528
        %v3499 = vmul.f32 %v3487, %v529
        %v3500 = vmul.f32 %v3486, %v530
        %v3501 = vmul.f32 %v3485, %v531
        %v3502 = vmul.f32 %v3484, %v532
        %v3503 = vmul.f32 %v3483, %v533
        %v3504 = vmul.f32 %v3482, %v534
        %v3505 = vmul.f32 %v3481, %v535
        %v3506 = vmul.f32 %v3480, %v536
        %v3507 = vmul.f32 %v3479, %v537
        %v3508 = vmul.f32 %v3478, %v538
        %v3509 = vmul.f32 %v3493, %v539
        %v3510 = vmul.f32 %v3236, %v572
        %v3511 = vmul.f32 %v3235, %v573
        %v3512 = vmul.f32 %v3234, %v574
        %v3513 = vmul.f32 %v3233, %v575
        %v3514 = vmul.f32 %v3232, %v576
        %v3515 = vmul.f32 %v3231, %v577
        %v3516 = vmul.f32 %v3230, %v578
        %v3517 = vmul.f32 %v3229, %v579
        %v3518 = vmul.f32 %v3228, %v580
        %v3519 = vmul.f32 %v3227, %v581
        %v3520 = vmul.f32 %v3226, %v582
        %v3521 = vmul.f32 %v3225, %v583
        %v3522 = vmul.f32 %v3224, %v584
        %v3523 = vmul.f32 %v3223, %v585
        %v3524 = vmul.f32 %v3222, %v586
        %v3525 = vmul.f32 %v3237, %v587
        %v3526 = vmul.f32 %v3300, %v604
        %v3527 = vmul.f32 %v3299, %v605
        %v3528 = vmul.f32 %v3298, %v606
        %v3529 = vmul.f32 %v3297, %v607
        %v3530 = vmul.f32 %v3296, %v608
        %v3531 = vmul.f32 %v3295, %v609
        %v3532 = vmul.f32 %v3294, %v610
        %v3533 = vmul.f32 %v3293, %v611
        %v3534 = vmul.f32 %v3292, %v612
        %v3535 = vmul.f32 %v3291, %v613
        %v3536 = vmul.f32 %v3290, %v614
        %v3537 = vmul.f32 %v3289, %v615
        %v3538 = vmul.f32 %v3288, %v616
        %v3539 = vmul.f32 %v3287, %v617
        %v3540 = vmul.f32 %v3286, %v618
        %v3541 = vmul.f32 %v3301, %v619
        %v3542 = vmul.f32 %v3364, %v652
        %v3543 = vmul.f32 %v3363, %v653
        %v3544 = vmul.f32 %v3362, %v654
        %v3545 = vmul.f32 %v3361, %v655
        %v3546 = vmul.f32 %v3360, %v656
        %v3547 = vmul.f32 %v3359, %v657
        %v3548 = vmul.f32 %v3358, %v658
        %v3549 = vmul.f32 %v3357, %v659
        %v3550 = vmul.f32 %v3356, %v660
        %v3551 = vmul.f32 %v3355, %v661
        %v3552 = vmul.f32 %v3354, %v662
        %v3553 = vmul.f32 %v3353, %v663
        %v3554 = vmul.f32 %v3352, %v664
        %v3555 = vmul.f32 %v3351, %v665
        %v3556 = vmul.f32 %v3350, %v666
        %v3557 = vmul.f32 %v3365, %v667
        %3559 = vset.pattern.permute.xlu0 0
        %3560 = vperm.xlu0 %3559, %v3189
        %v3561 = vpop.permute.xlu0 %3560
        %v3564 = vsel %vm2600, %v3188, 0
        %3566 = vmatprep.subr.mxu0 0.0
        %3567 = vmatpush1.msra.mxu0 0.0
        %3568 = vmatprep.subr.mxu0 0.0
        %3569 = vmatpush1.msra.mxu0 0.0
        %3570 = vmatprep.subr.mxu0 0.0
        %3571 = vmatpush1.msra.mxu0 0.0
        %3572 = vmatprep.subr.mxu0 0.0
        %3573 = vmatpush1.msra.mxu0 0.0
        %3574 = vmatprep.subr.mxu0 0.0
        %3575 = vmatpush1.msra.mxu0 0.0
        %3576 = vmatprep.subr.mxu0 0.0
        %3577 = vmatpush1.msra.mxu0 0.0
        %3578 = vmatprep.subr.mxu0 0.0
        %3579 = vmatpush1.msra.mxu0 0.0
        %3580 = vmatprep.subr.mxu0 %v3543
        %3581 = vmatpush1.msra.mxu0 %v3542
        %3582 = vmatprep.subr.mxu0 %v3527
        %3583 = vmatpush1.msra.mxu0 %v3526
        %3584 = vmatprep.subr.mxu0 %v3511
        %3585 = vmatpush1.msra.mxu0 %v3510
        %3586 = vmatprep.subr.mxu0 %v3495
        %3587 = vmatpush1.msra.mxu0 %v3494
        %3588 = vmatprep.subr.mxu0 %v3173
        %3589 = vmatpush1.msra.mxu0 %v3172
        %3590 = vmatprep.subr.mxu0 %v3431
        %3591 = vmatpush1.msra.mxu0 %v3430
        %3592 = vmatprep.subr.mxu0 %v3367
        %3593 = vmatpush1.msra.mxu0 %v3366
        %3594 = vmatprep.subr.mxu0 %v3303
        %3595 = vmatpush1.msra.mxu0 %v3302
        %3596 = vmatprep.subr.mxu0 %v3239
        %3597 = vmatpush1.msra.mxu0 %v3238
        %3598 = vmatprep.subr.mxu0 0.0
        %3599 = vmatpush2.msra.mxu0 0.0
        %3600 = vmatprep.subr.mxu0 0.0
        %3601 = vmatpush2.msra.mxu0 0.0
        %3602 = vmatprep.subr.mxu0 0.0
        %3603 = vmatpush2.msra.mxu0 0.0
        %3604 = vmatprep.subr.mxu0 0.0
        %3605 = vmatpush2.msra.mxu0 0.0
        %3606 = vmatprep.subr.mxu0 0.0
        %3607 = vmatpush2.msra.mxu0 0.0
        %3608 = vmatprep.subr.mxu0 0.0
        %3609 = vmatpush2.msra.mxu0 0.0
        %3610 = vmatprep.subr.mxu0 0.0
        %3611 = vmatpush2.msra.mxu0 0.0
        %3612 = vmatprep.subr.mxu0 0.0
        %3613 = vmatpush2.msra.mxu0 0.0
        %3614 = vmatprep.subr.mxu0 0.0
        %3615 = vmatpush2.msra.mxu0 0.0
        %3616 = vmatprep.subr.mxu0 0.0
        %3617 = vmatpush2.msra.mxu0 0.0
        %3618 = vmatprep.subr.mxu0 0.0
        %3619 = vmatpush2.msra.mxu0 0.0
        %3620 = vmatprep.subr.mxu0 0.0
        %3621 = vmatpush2.msra.mxu0 0.0
        %3622 = vmatprep.subr.mxu0 0.0
        %3623 = vmatpush2.msra.mxu0 0.0
        %3624 = vmatprep.subr.mxu0 0.0
        %3625 = vmatpush2.msra.mxu0 0.0
        %3626 = vmatprep.subr.mxu0 0.0
        %3627 = vmatpush2.msra.mxu0 0.0
        %3628 = vmatprep.subr.mxu0 0.0
        %3629 = vmatpush2.msra.mxu0 0.0
        %3630 = vmatprep.mubr.f32.mxu0 0.0
        %3631 = vmatmul.mubr.f32.gmra.mxu0 %v3564
        %v3632 = vpop.f32.mrf.mxu0
        %v3633 = vadd.f32 %v3561, %v3632
        %v3634 = vpop.f32.mrf.mxu0
        %v3635 = vadd.f32 %v3561, %v3634
        %3636 = vdwg.mxu0
        %3637 = vmatprep.subr.mxu0 0.0
        %3638 = vmatpush1.msra.mxu0 0.0
        %3639 = vmatprep.subr.mxu0 0.0
        %3640 = vmatpush1.msra.mxu0 0.0
        %3641 = vmatprep.subr.mxu0 0.0
        %3642 = vmatpush1.msra.mxu0 0.0
        %3643 = vmatprep.subr.mxu0 0.0
        %3644 = vmatpush1.msra.mxu0 0.0
        %3645 = vmatprep.subr.mxu0 0.0
        %3646 = vmatpush1.msra.mxu0 0.0
        %3647 = vmatprep.subr.mxu0 0.0
        %3648 = vmatpush1.msra.mxu0 0.0
        %3649 = vmatprep.subr.mxu0 0.0
        %3650 = vmatpush1.msra.mxu0 0.0
        %3651 = vmatprep.subr.mxu0 %v3545
        %3652 = vmatpush1.msra.mxu0 %v3544
        %3653 = vmatprep.subr.mxu0 %v3529
        %3654 = vmatpush1.msra.mxu0 %v3528
        %3655 = vmatprep.subr.mxu0 %v3513
        %3656 = vmatpush1.msra.mxu0 %v3512
        %3657 = vmatprep.subr.mxu0 %v3497
        %3658 = vmatpush1.msra.mxu0 %v3496
        %3659 = vmatprep.subr.mxu0 %v3175
        %3660 = vmatpush1.msra.mxu0 %v3174
        %3661 = vmatprep.subr.mxu0 %v3433
        %3662 = vmatpush1.msra.mxu0 %v3432
        %3663 = vmatprep.subr.mxu0 %v3369
        %3664 = vmatpush1.msra.mxu0 %v3368
        %3665 = vmatprep.subr.mxu0 %v3305
        %3666 = vmatpush1.msra.mxu0 %v3304
        %3667 = vmatprep.subr.mxu0 %v3241
        %3668 = vmatpush1.msra.mxu0 %v3240
        %3669 = vmatprep.subr.mxu0 0.0
        %3670 = vmatpush2.msra.mxu0 0.0
        %3671 = vmatprep.subr.mxu0 0.0
        %3672 = vmatpush2.msra.mxu0 0.0
        %3673 = vmatprep.subr.mxu0 0.0
        %3674 = vmatpush2.msra.mxu0 0.0
        %3675 = vmatprep.subr.mxu0 0.0
        %3676 = vmatpush2.msra.mxu0 0.0
        %3677 = vmatprep.subr.mxu0 0.0
        %3678 = vmatpush2.msra.mxu0 0.0
        %3679 = vmatprep.subr.mxu0 0.0
        %3680 = vmatpush2.msra.mxu0 0.0
        %3681 = vmatprep.subr.mxu0 0.0
        %3682 = vmatpush2.msra.mxu0 0.0
        %3683 = vmatprep.subr.mxu0 0.0
        %3684 = vmatpush2.msra.mxu0 0.0
        %3685 = vmatprep.subr.mxu0 0.0
        %3686 = vmatpush2.msra.mxu0 0.0
        %3687 = vmatprep.subr.mxu0 0.0
        %3688 = vmatpush2.msra.mxu0 0.0
        %3689 = vmatprep.subr.mxu0 0.0
        %3690 = vmatpush2.msra.mxu0 0.0
        %3691 = vmatprep.subr.mxu0 0.0
        %3692 = vmatpush2.msra.mxu0 0.0
        %3693 = vmatprep.subr.mxu0 0.0
        %3694 = vmatpush2.msra.mxu0 0.0
        %3695 = vmatprep.subr.mxu0 0.0
        %3696 = vmatpush2.msra.mxu0 0.0
        %3697 = vmatprep.subr.mxu0 0.0
        %3698 = vmatpush2.msra.mxu0 0.0
        %3699 = vmatprep.subr.mxu0 0.0
        %3700 = vmatpush2.msra.mxu0 0.0
        %3701 = vmatprep.mubr.f32.mxu0 0.0
        %3702 = vmatmul.mubr.f32.gmra.mxu0 %v3564
        %v3703 = vpop.f32.mrf.mxu0
        %v3704 = vadd.f32 %v3561, %v3703
        %v3705 = vpop.f32.mrf.mxu0
        %v3706 = vadd.f32 %v3561, %v3705
        %3707 = vdwg.mxu0
        %3708 = vmatprep.subr.mxu0 0.0
        %3709 = vmatpush1.msra.mxu0 0.0
        %3710 = vmatprep.subr.mxu0 0.0
        %3711 = vmatpush1.msra.mxu0 0.0
        %3712 = vmatprep.subr.mxu0 0.0
        %3713 = vmatpush1.msra.mxu0 0.0
        %3714 = vmatprep.subr.mxu0 0.0
        %3715 = vmatpush1.msra.mxu0 0.0
        %3716 = vmatprep.subr.mxu0 0.0
        %3717 = vmatpush1.msra.mxu0 0.0
        %3718 = vmatprep.subr.mxu0 0.0
        %3719 = vmatpush1.msra.mxu0 0.0
        %3720 = vmatprep.subr.mxu0 0.0
        %3721 = vmatpush1.msra.mxu0 0.0
        %3722 = vmatprep.subr.mxu0 %v3547
        %3723 = vmatpush1.msra.mxu0 %v3546
        %3724 = vmatprep.subr.mxu0 %v3531
        %3725 = vmatpush1.msra.mxu0 %v3530
        %3726 = vmatprep.subr.mxu0 %v3515
        %3727 = vmatpush1.msra.mxu0 %v3514
        %3728 = vmatprep.subr.mxu0 %v3499
        %3729 = vmatpush1.msra.mxu0 %v3498
        %3730 = vmatprep.subr.mxu0 %v3177
        %3731 = vmatpush1.msra.mxu0 %v3176
        %3732 = vmatprep.subr.mxu0 %v3435
        %3733 = vmatpush1.msra.mxu0 %v3434
        %3734 = vmatprep.subr.mxu0 %v3371
        %3735 = vmatpush1.msra.mxu0 %v3370
        %3736 = vmatprep.subr.mxu0 %v3307
        %3737 = vmatpush1.msra.mxu0 %v3306
        %3738 = vmatprep.subr.mxu0 %v3243
        %3739 = vmatpush1.msra.mxu0 %v3242
        %3740 = vmatprep.subr.mxu0 0.0
        %3741 = vmatpush2.msra.mxu0 0.0
        %3742 = vmatprep.subr.mxu0 0.0
        %3743 = vmatpush2.msra.mxu0 0.0
        %3744 = vmatprep.subr.mxu0 0.0
        %3745 = vmatpush2.msra.mxu0 0.0
        %3746 = vmatprep.subr.mxu0 0.0
        %3747 = vmatpush2.msra.mxu0 0.0
        %3748 = vmatprep.subr.mxu0 0.0
        %3749 = vmatpush2.msra.mxu0 0.0
        %3750 = vmatprep.subr.mxu0 0.0
        %3751 = vmatpush2.msra.mxu0 0.0
        %3752 = vmatprep.subr.mxu0 0.0
        %3753 = vmatpush2.msra.mxu0 0.0
        %3754 = vmatprep.subr.mxu0 0.0
        %3755 = vmatpush2.msra.mxu0 0.0
        %3756 = vmatprep.subr.mxu0 0.0
        %3757 = vmatpush2.msra.mxu0 0.0
        %3758 = vmatprep.subr.mxu0 0.0
        %3759 = vmatpush2.msra.mxu0 0.0
        %3760 = vmatprep.subr.mxu0 0.0
        %3761 = vmatpush2.msra.mxu0 0.0
        %3762 = vmatprep.subr.mxu0 0.0
        %3763 = vmatpush2.msra.mxu0 0.0
        %3764 = vmatprep.subr.mxu0 0.0
        %3765 = vmatpush2.msra.mxu0 0.0
        %3766 = vmatprep.subr.mxu0 0.0
        %3767 = vmatpush2.msra.mxu0 0.0
        %3768 = vmatprep.subr.mxu0 0.0
        %3769 = vmatpush2.msra.mxu0 0.0
        %3770 = vmatprep.subr.mxu0 0.0
        %3771 = vmatpush2.msra.mxu0 0.0
        %3772 = vmatprep.mubr.f32.mxu0 0.0
        %3773 = vmatmul.mubr.f32.gmra.mxu0 %v3564
        %v3774 = vpop.f32.mrf.mxu0
        %v3775 = vadd.f32 %v3561, %v3774
        %v3776 = vpop.f32.mrf.mxu0
        %v3777 = vadd.f32 %v3561, %v3776
        %3778 = vdwg.mxu0
        %3779 = vmatprep.subr.mxu0 0.0
        %3780 = vmatpush1.msra.mxu0 0.0
        %3781 = vmatprep.subr.mxu0 0.0
        %3782 = vmatpush1.msra.mxu0 0.0
        %3783 = vmatprep.subr.mxu0 0.0
        %3784 = vmatpush1.msra.mxu0 0.0
        %3785 = vmatprep.subr.mxu0 0.0
        %3786 = vmatpush1.msra.mxu0 0.0
        %3787 = vmatprep.subr.mxu0 0.0
        %3788 = vmatpush1.msra.mxu0 0.0
        %3789 = vmatprep.subr.mxu0 0.0
        %3790 = vmatpush1.msra.mxu0 0.0
        %3791 = vmatprep.subr.mxu0 0.0
        %3792 = vmatpush1.msra.mxu0 0.0
        %3793 = vmatprep.subr.mxu0 %v3549
        %3794 = vmatpush1.msra.mxu0 %v3548
        %3795 = vmatprep.subr.mxu0 %v3533
        %3796 = vmatpush1.msra.mxu0 %v3532
        %3797 = vmatprep.subr.mxu0 %v3517
        %3798 = vmatpush1.msra.mxu0 %v3516
        %3799 = vmatprep.subr.mxu0 %v3501
        %3800 = vmatpush1.msra.mxu0 %v3500
        %3801 = vmatprep.subr.mxu0 %v3179
        %3802 = vmatpush1.msra.mxu0 %v3178
        %3803 = vmatprep.subr.mxu0 %v3437
        %3804 = vmatpush1.msra.mxu0 %v3436
        %3805 = vmatprep.subr.mxu0 %v3373
        %3806 = vmatpush1.msra.mxu0 %v3372
        %3807 = vmatprep.subr.mxu0 %v3309
        %3808 = vmatpush1.msra.mxu0 %v3308
        %3809 = vmatprep.subr.mxu0 %v3245
        %3810 = vmatpush1.msra.mxu0 %v3244
        %3811 = vmatprep.subr.mxu0 0.0
        %3812 = vmatpush2.msra.mxu0 0.0
        %3813 = vmatprep.subr.mxu0 0.0
        %3814 = vmatpush2.msra.mxu0 0.0
        %3815 = vmatprep.subr.mxu0 0.0
        %3816 = vmatpush2.msra.mxu0 0.0
        %3817 = vmatprep.subr.mxu0 0.0
        %3818 = vmatpush2.msra.mxu0 0.0
        %3819 = vmatprep.subr.mxu0 0.0
        %3820 = vmatpush2.msra.mxu0 0.0
        %3821 = vmatprep.subr.mxu0 0.0
        %3822 = vmatpush2.msra.mxu0 0.0
        %3823 = vmatprep.subr.mxu0 0.0
        %3824 = vmatpush2.msra.mxu0 0.0
        %3825 = vmatprep.subr.mxu0 0.0
        %3826 = vmatpush2.msra.mxu0 0.0
        %3827 = vmatprep.subr.mxu0 0.0
        %3828 = vmatpush2.msra.mxu0 0.0
        %3829 = vmatprep.subr.mxu0 0.0
        %3830 = vmatpush2.msra.mxu0 0.0
        %3831 = vmatprep.subr.mxu0 0.0
        %3832 = vmatpush2.msra.mxu0 0.0
        %3833 = vmatprep.subr.mxu0 0.0
        %3834 = vmatpush2.msra.mxu0 0.0
        %3835 = vmatprep.subr.mxu0 0.0
        %3836 = vmatpush2.msra.mxu0 0.0
        %3837 = vmatprep.subr.mxu0 0.0
        %3838 = vmatpush2.msra.mxu0 0.0
        %3839 = vmatprep.subr.mxu0 0.0
        %3840 = vmatpush2.msra.mxu0 0.0
        %3841 = vmatprep.subr.mxu0 0.0
        %3842 = vmatpush2.msra.mxu0 0.0
        %3843 = vmatprep.mubr.f32.mxu0 0.0
        %3844 = vmatmul.mubr.f32.gmra.mxu0 %v3564
        %v3845 = vpop.f32.mrf.mxu0
        %v3846 = vadd.f32 %v3561, %v3845
        %v3847 = vpop.f32.mrf.mxu0
        %v3848 = vadd.f32 %v3561, %v3847
        %3849 = vdwg.mxu0
        %3850 = vmatprep.subr.mxu0 0.0
        %3851 = vmatpush1.msra.mxu0 0.0
        %3852 = vmatprep.subr.mxu0 0.0
        %3853 = vmatpush1.msra.mxu0 0.0
        %3854 = vmatprep.subr.mxu0 0.0
        %3855 = vmatpush1.msra.mxu0 0.0
        %3856 = vmatprep.subr.mxu0 0.0
        %3857 = vmatpush1.msra.mxu0 0.0
        %3858 = vmatprep.subr.mxu0 0.0
        %3859 = vmatpush1.msra.mxu0 0.0
        %3860 = vmatprep.subr.mxu0 0.0
        %3861 = vmatpush1.msra.mxu0 0.0
        %3862 = vmatprep.subr.mxu0 0.0
        %3863 = vmatpush1.msra.mxu0 0.0
        %3864 = vmatprep.subr.mxu0 %v3551
        %3865 = vmatpush1.msra.mxu0 %v3550
        %3866 = vmatprep.subr.mxu0 %v3535
        %3867 = vmatpush1.msra.mxu0 %v3534
        %3868 = vmatprep.subr.mxu0 %v3519
        %3869 = vmatpush1.msra.mxu0 %v3518
        %3870 = vmatprep.subr.mxu0 %v3503
        %3871 = vmatpush1.msra.mxu0 %v3502
        %3872 = vmatprep.subr.mxu0 %v3181
        %3873 = vmatpush1.msra.mxu0 %v3180
        %3874 = vmatprep.subr.mxu0 %v3439
        %3875 = vmatpush1.msra.mxu0 %v3438
        %3876 = vmatprep.subr.mxu0 %v3375
        %3877 = vmatpush1.msra.mxu0 %v3374
        %3878 = vmatprep.subr.mxu0 %v3311
        %3879 = vmatpush1.msra.mxu0 %v3310
        %3880 = vmatprep.subr.mxu0 %v3247
        %3881 = vmatpush1.msra.mxu0 %v3246
        %3882 = vmatprep.subr.mxu0 0.0
        %3883 = vmatpush2.msra.mxu0 0.0
        %3884 = vmatprep.subr.mxu0 0.0
        %3885 = vmatpush2.msra.mxu0 0.0
        %3886 = vmatprep.subr.mxu0 0.0
        %3887 = vmatpush2.msra.mxu0 0.0
        %3888 = vmatprep.subr.mxu0 0.0
        %3889 = vmatpush2.msra.mxu0 0.0
        %3890 = vmatprep.subr.mxu0 0.0
        %3891 = vmatpush2.msra.mxu0 0.0
        %3892 = vmatprep.subr.mxu0 0.0
        %3893 = vmatpush2.msra.mxu0 0.0
        %3894 = vmatprep.subr.mxu0 0.0
        %3895 = vmatpush2.msra.mxu0 0.0
        %3896 = vmatprep.subr.mxu0 0.0
        %3897 = vmatpush2.msra.mxu0 0.0
        %3898 = vmatprep.subr.mxu0 0.0
        %3899 = vmatpush2.msra.mxu0 0.0
        %3900 = vmatprep.subr.mxu0 0.0
        %3901 = vmatpush2.msra.mxu0 0.0
        %3902 = vmatprep.subr.mxu0 0.0
        %3903 = vmatpush2.msra.mxu0 0.0
        %3904 = vmatprep.subr.mxu0 0.0
        %3905 = vmatpush2.msra.mxu0 0.0
        %3906 = vmatprep.subr.mxu0 0.0
        %3907 = vmatpush2.msra.mxu0 0.0
        %3908 = vmatprep.subr.mxu0 0.0
        %3909 = vmatpush2.msra.mxu0 0.0
        %3910 = vmatprep.subr.mxu0 0.0
        %3911 = vmatpush2.msra.mxu0 0.0
        %3912 = vmatprep.subr.mxu0 0.0
        %3913 = vmatpush2.msra.mxu0 0.0
        %3914 = vmatprep.mubr.f32.mxu0 0.0
        %3915 = vmatmul.mubr.f32.gmra.mxu0 %v3564
        %v3916 = vpop.f32.mrf.mxu0
        %v3917 = vadd.f32 %v3561, %v3916
        %v3918 = vpop.f32.mrf.mxu0
        %v3919 = vadd.f32 %v3561, %v3918
        %3920 = vdwg.mxu0
        %3921 = vmatprep.subr.mxu0 0.0
        %3922 = vmatpush1.msra.mxu0 0.0
        %3923 = vmatprep.subr.mxu0 0.0
        %3924 = vmatpush1.msra.mxu0 0.0
        %3925 = vmatprep.subr.mxu0 0.0
        %3926 = vmatpush1.msra.mxu0 0.0
        %3927 = vmatprep.subr.mxu0 0.0
        %3928 = vmatpush1.msra.mxu0 0.0
        %3929 = vmatprep.subr.mxu0 0.0
        %3930 = vmatpush1.msra.mxu0 0.0
        %3931 = vmatprep.subr.mxu0 0.0
        %3932 = vmatpush1.msra.mxu0 0.0
        %3933 = vmatprep.subr.mxu0 0.0
        %3934 = vmatpush1.msra.mxu0 0.0
        %3935 = vmatprep.subr.mxu0 %v3553
        %3936 = vmatpush1.msra.mxu0 %v3552
        %3937 = vmatprep.subr.mxu0 %v3537
        %3938 = vmatpush1.msra.mxu0 %v3536
        %3939 = vmatprep.subr.mxu0 %v3521
        %3940 = vmatpush1.msra.mxu0 %v3520
        %3941 = vmatprep.subr.mxu0 %v3505
        %3942 = vmatpush1.msra.mxu0 %v3504
        %3943 = vmatprep.subr.mxu0 %v3183
        %3944 = vmatpush1.msra.mxu0 %v3182
        %3945 = vmatprep.subr.mxu0 %v3441
        %3946 = vmatpush1.msra.mxu0 %v3440
        %3947 = vmatprep.subr.mxu0 %v3377
        %3948 = vmatpush1.msra.mxu0 %v3376
        %3949 = vmatprep.subr.mxu0 %v3313
        %3950 = vmatpush1.msra.mxu0 %v3312
        %3951 = vmatprep.subr.mxu0 %v3249
        %3952 = vmatpush1.msra.mxu0 %v3248
        %3953 = vmatprep.subr.mxu0 0.0
        %3954 = vmatpush2.msra.mxu0 0.0
        %3955 = vmatprep.subr.mxu0 0.0
        %3956 = vmatpush2.msra.mxu0 0.0
        %3957 = vmatprep.subr.mxu0 0.0
        %3958 = vmatpush2.msra.mxu0 0.0
        %3959 = vmatprep.subr.mxu0 0.0
        %3960 = vmatpush2.msra.mxu0 0.0
        %3961 = vmatprep.subr.mxu0 0.0
        %3962 = vmatpush2.msra.mxu0 0.0
        %3963 = vmatprep.subr.mxu0 0.0
        %3964 = vmatpush2.msra.mxu0 0.0
        %3965 = vmatprep.subr.mxu0 0.0
        %3966 = vmatpush2.msra.mxu0 0.0
        %3967 = vmatprep.subr.mxu0 0.0
        %3968 = vmatpush2.msra.mxu0 0.0
        %3969 = vmatprep.subr.mxu0 0.0
        %3970 = vmatpush2.msra.mxu0 0.0
        %3971 = vmatprep.subr.mxu0 0.0
        %3972 = vmatpush2.msra.mxu0 0.0
        %3973 = vmatprep.subr.mxu0 0.0
        %3974 = vmatpush2.msra.mxu0 0.0
        %3975 = vmatprep.subr.mxu0 0.0
        %3976 = vmatpush2.msra.mxu0 0.0
        %3977 = vmatprep.subr.mxu0 0.0
        %3978 = vmatpush2.msra.mxu0 0.0
        %3979 = vmatprep.subr.mxu0 0.0
        %3980 = vmatpush2.msra.mxu0 0.0
        %3981 = vmatprep.subr.mxu0 0.0
        %3982 = vmatpush2.msra.mxu0 0.0
        %3983 = vmatprep.subr.mxu0 0.0
        %3984 = vmatpush2.msra.mxu0 0.0
        %3985 = vmatprep.mubr.f32.mxu0 0.0
        %3986 = vmatmul.mubr.f32.gmra.mxu0 %v3564
        %v3987 = vpop.f32.mrf.mxu0
        %v3988 = vadd.f32 %v3561, %v3987
        %v3989 = vpop.f32.mrf.mxu0
        %v3990 = vadd.f32 %v3561, %v3989
        %3991 = vdwg.mxu0
        %3992 = vmatprep.subr.mxu0 0.0
        %3993 = vmatpush1.msra.mxu0 0.0
        %3994 = vmatprep.subr.mxu0 0.0
        %3995 = vmatpush1.msra.mxu0 0.0
        %3996 = vmatprep.subr.mxu0 0.0
        %3997 = vmatpush1.msra.mxu0 0.0
        %3998 = vmatprep.subr.mxu0 0.0
        %3999 = vmatpush1.msra.mxu0 0.0
        %4000 = vmatprep.subr.mxu0 0.0
        %4001 = vmatpush1.msra.mxu0 0.0
        %4002 = vmatprep.subr.mxu0 0.0
        %4003 = vmatpush1.msra.mxu0 0.0
        %4004 = vmatprep.subr.mxu0 0.0
        %4005 = vmatpush1.msra.mxu0 0.0
        %4006 = vmatprep.subr.mxu0 %v3555
        %4007 = vmatpush1.msra.mxu0 %v3554
        %4008 = vmatprep.subr.mxu0 %v3539
        %4009 = vmatpush1.msra.mxu0 %v3538
        %4010 = vmatprep.subr.mxu0 %v3523
        %4011 = vmatpush1.msra.mxu0 %v3522
        %4012 = vmatprep.subr.mxu0 %v3507
        %4013 = vmatpush1.msra.mxu0 %v3506
        %4014 = vmatprep.subr.mxu0 %v3185
        %4015 = vmatpush1.msra.mxu0 %v3184
        %4016 = vmatprep.subr.mxu0 %v3443
        %4017 = vmatpush1.msra.mxu0 %v3442
        %4018 = vmatprep.subr.mxu0 %v3379
        %4019 = vmatpush1.msra.mxu0 %v3378
        %4020 = vmatprep.subr.mxu0 %v3315
        %4021 = vmatpush1.msra.mxu0 %v3314
        %4022 = vmatprep.subr.mxu0 %v3251
        %4023 = vmatpush1.msra.mxu0 %v3250
        %4024 = vmatprep.subr.mxu0 0.0
        %4025 = vmatpush2.msra.mxu0 0.0
        %4026 = vmatprep.subr.mxu0 0.0
        %4027 = vmatpush2.msra.mxu0 0.0
        %4028 = vmatprep.subr.mxu0 0.0
        %4029 = vmatpush2.msra.mxu0 0.0
        %4030 = vmatprep.subr.mxu0 0.0
        %4031 = vmatpush2.msra.mxu0 0.0
        %4032 = vmatprep.subr.mxu0 0.0
        %4033 = vmatpush2.msra.mxu0 0.0
        %4034 = vmatprep.subr.mxu0 0.0
        %4035 = vmatpush2.msra.mxu0 0.0
        %4036 = vmatprep.subr.mxu0 0.0
        %4037 = vmatpush2.msra.mxu0 0.0
        %4038 = vmatprep.subr.mxu0 0.0
        %4039 = vmatpush2.msra.mxu0 0.0
        %4040 = vmatprep.subr.mxu0 0.0
        %4041 = vmatpush2.msra.mxu0 0.0
        %4042 = vmatprep.subr.mxu0 0.0
        %4043 = vmatpush2.msra.mxu0 0.0
        %4044 = vmatprep.subr.mxu0 0.0
        %4045 = vmatpush2.msra.mxu0 0.0
        %4046 = vmatprep.subr.mxu0 0.0
        %4047 = vmatpush2.msra.mxu0 0.0
        %4048 = vmatprep.subr.mxu0 0.0
        %4049 = vmatpush2.msra.mxu0 0.0
        %4050 = vmatprep.subr.mxu0 0.0
        %4051 = vmatpush2.msra.mxu0 0.0
        %4052 = vmatprep.subr.mxu0 0.0
        %4053 = vmatpush2.msra.mxu0 0.0
        %4054 = vmatprep.subr.mxu0 0.0
        %4055 = vmatpush2.msra.mxu0 0.0
        %4056 = vmatprep.mubr.f32.mxu0 0.0
        %4057 = vmatmul.mubr.f32.gmra.mxu0 %v3564
        %v4058 = vpop.f32.mrf.mxu0
        %v4059 = vadd.f32 %v3561, %v4058
        %v4060 = vpop.f32.mrf.mxu0
        %v4061 = vadd.f32 %v3561, %v4060
        %4062 = vdwg.mxu0
        %4063 = vmatprep.subr.mxu0 0.0
        %4064 = vmatpush1.msra.mxu0 0.0
        %4065 = vmatprep.subr.mxu0 0.0
        %4066 = vmatpush1.msra.mxu0 0.0
        %4067 = vmatprep.subr.mxu0 0.0
        %4068 = vmatpush1.msra.mxu0 0.0
        %4069 = vmatprep.subr.mxu0 0.0
        %4070 = vmatpush1.msra.mxu0 0.0
        %4071 = vmatprep.subr.mxu0 0.0
        %4072 = vmatpush1.msra.mxu0 0.0
        %4073 = vmatprep.subr.mxu0 0.0
        %4074 = vmatpush1.msra.mxu0 0.0
        %4075 = vmatprep.subr.mxu0 0.0
        %4076 = vmatpush1.msra.mxu0 0.0
        %4077 = vmatprep.subr.mxu0 %v3557
        %4078 = vmatpush1.msra.mxu0 %v3556
        %4079 = vmatprep.subr.mxu0 %v3541
        %4080 = vmatpush1.msra.mxu0 %v3540
        %4081 = vmatprep.subr.mxu0 %v3525
        %4082 = vmatpush1.msra.mxu0 %v3524
        %4083 = vmatprep.subr.mxu0 %v3509
        %4084 = vmatpush1.msra.mxu0 %v3508
        %4085 = vmatprep.subr.mxu0 %v3187
        %4086 = vmatpush1.msra.mxu0 %v3186
        %4087 = vmatprep.subr.mxu0 %v3445
        %4088 = vmatpush1.msra.mxu0 %v3444
        %4089 = vmatprep.subr.mxu0 %v3381
        %4090 = vmatpush1.msra.mxu0 %v3380
        %4091 = vmatprep.subr.mxu0 %v3317
        %4092 = vmatpush1.msra.mxu0 %v3316
        %4093 = vmatprep.subr.mxu0 %v3253
        %4094 = vmatpush1.msra.mxu0 %v3252
        %4095 = vmatprep.subr.mxu0 0.0
        %4096 = vmatpush2.msra.mxu0 0.0
        %4097 = vmatprep.subr.mxu0 0.0
        %4098 = vmatpush2.msra.mxu0 0.0
        %4099 = vmatprep.subr.mxu0 0.0
        %4100 = vmatpush2.msra.mxu0 0.0
        %4101 = vmatprep.subr.mxu0 0.0
        %4102 = vmatpush2.msra.mxu0 0.0
        %4103 = vmatprep.subr.mxu0 0.0
        %4104 = vmatpush2.msra.mxu0 0.0
        %4105 = vmatprep.subr.mxu0 0.0
        %4106 = vmatpush2.msra.mxu0 0.0
        %4107 = vmatprep.subr.mxu0 0.0
        %4108 = vmatpush2.msra.mxu0 0.0
        %4109 = vmatprep.subr.mxu0 0.0
        %4110 = vmatpush2.msra.mxu0 0.0
        %4111 = vmatprep.subr.mxu0 0.0
        %4112 = vmatpush2.msra.mxu0 0.0
        %4113 = vmatprep.subr.mxu0 0.0
        %4114 = vmatpush2.msra.mxu0 0.0
        %4115 = vmatprep.subr.mxu0 0.0
        %4116 = vmatpush2.msra.mxu0 0.0
        %4117 = vmatprep.subr.mxu0 0.0
        %4118 = vmatpush2.msra.mxu0 0.0
        %4119 = vmatprep.subr.mxu0 0.0
        %4120 = vmatpush2.msra.mxu0 0.0
        %4121 = vmatprep.subr.mxu0 0.0
        %4122 = vmatpush2.msra.mxu0 0.0
        %4123 = vmatprep.subr.mxu0 0.0
        %4124 = vmatpush2.msra.mxu0 0.0
        %4125 = vmatprep.subr.mxu0 0.0
        %4126 = vmatpush2.msra.mxu0 0.0
        %4127 = vmatprep.mubr.f32.mxu0 0.0
        %4128 = vmatmul.mubr.f32.gmra.mxu0 %v3564
        %v4129 = vpop.f32.mrf.mxu0
        %v4130 = vadd.f32 %v3561, %v4129
        %v4131 = vpop.f32.mrf.mxu0
        %v4132 = vadd.f32 %v3561, %v4131
        %4133 = vdwg.mxu0
        %v4134 = vmax.f32 %v3633, 0.0
        %v4135 = vmax.f32 %v3635, 0.0
        %v4136 = vmax.f32 %v3704, 0.0
        %v4137 = vmax.f32 %v3706, 0.0
        %v4138 = vmax.f32 %v3775, 0.0
        %v4139 = vmax.f32 %v3777, 0.0
        %v4140 = vmax.f32 %v3846, 0.0
        %v4141 = vmax.f32 %v3848, 0.0
        %v4142 = vmax.f32 %v3917, 0.0
        %v4143 = vmax.f32 %v3919, 0.0
        %v4144 = vmax.f32 %v3988, 0.0
        %v4145 = vmax.f32 %v3990, 0.0
        %v4146 = vmax.f32 %v4059, 0.0
        %v4147 = vmax.f32 %v4061, 0.0
        %v4148 = vmax.f32 %v4130, 0.0
        %v4149 = vmax.f32 %v4132, 0.0
        %v4150 = vadd.f32 %v4134, %v2209
        %v4151 = vadd.f32 %v4135, %v2210
        %v4152 = vadd.f32 %v4136, %v2211
        %v4153 = vadd.f32 %v4137, %v2212
        %v4154 = vadd.f32 %v4138, %v2213
        %v4155 = vadd.f32 %v4139, %v2214
        %v4156 = vadd.f32 %v4140, %v2215
        %v4157 = vadd.f32 %v4141, %v2216
        %v4158 = vadd.f32 %v4142, %v2217
        %v4159 = vadd.f32 %v4143, %v2218
        %v4160 = vadd.f32 %v4144, %v2219
        %v4161 = vadd.f32 %v4145, %v2220
        %v4162 = vadd.f32 %v4146, %v2221
        %v4163 = vadd.f32 %v4147, %v2222
        %v4164 = vadd.f32 %v4148, %v2223
        %v4165 = vadd.f32 %v4149, %v2224
        %4166 = vrot.lane.b32.xlu0 %v4150, 126
        %v4167 = vpop.permute.xlu0 %4166
        %4168 = vrot.lane.b32.xlu0 %v4151, 126
        %v4169 = vpop.permute.xlu0 %4168
        %4170 = vrot.lane.b32.xlu0 %v4152, 126
        %v4171 = vpop.permute.xlu0 %4170
        %4172 = vrot.lane.b32.xlu0 %v4153, 126
        %v4173 = vpop.permute.xlu0 %4172
        %4174 = vrot.lane.b32.xlu0 %v4154, 126
        %v4175 = vpop.permute.xlu0 %4174
        %4176 = vrot.lane.b32.xlu0 %v4155, 126
        %v4177 = vpop.permute.xlu0 %4176
        %4178 = vrot.lane.b32.xlu0 %v4156, 126
        %v4179 = vpop.permute.xlu0 %4178
        %4180 = vrot.lane.b32.xlu0 %v4157, 126
        %v4181 = vpop.permute.xlu0 %4180
        %4182 = vrot.lane.b32.xlu0 %v4158, 126
        %v4183 = vpop.permute.xlu0 %4182
        %4184 = vrot.lane.b32.xlu0 %v4159, 126
        %v4185 = vpop.permute.xlu0 %4184
        %4186 = vrot.lane.b32.xlu0 %v4160, 126
        %v4187 = vpop.permute.xlu0 %4186
        %4188 = vrot.lane.b32.xlu0 %v4161, 126
        %v4189 = vpop.permute.xlu0 %4188
        %4190 = vrot.lane.b32.xlu0 %v4162, 126
        %v4191 = vpop.permute.xlu0 %4190
        %4192 = vrot.lane.b32.xlu0 %v4163, 126
        %v4193 = vpop.permute.xlu0 %4192
        %4194 = vrot.lane.b32.xlu0 %v4164, 126
        %v4195 = vpop.permute.xlu0 %4194
        %4196 = vrot.lane.b32.xlu0 %v4165, 126
        %v4197 = vpop.permute.xlu0 %4196
        %v4198 = vsel %vm1096, %v4195, %v4197
        %v4199 = vsel %vm1096, %v4191, %v4193
        %v4200 = vsel %vm1096, %v4187, %v4189
        %v4201 = vsel %vm1096, %v4183, %v4185
        %v4202 = vsel %vm1096, %v4179, %v4181
        %v4203 = vsel %vm1096, %v4175, %v4177
        %v4204 = vsel %vm1096, %v4171, %v4173
        %v4205 = vsel %vm1096, %v4167, %v4169
        %v4206 = vmax.f32 %v4150, %v4205
        %v4207 = vmax.f32 %v4152, %v4204
        %v4208 = vmax.f32 %v4154, %v4203
        %v4209 = vmax.f32 %v4156, %v4202
        %v4210 = vmax.f32 %v4158, %v4201
        %v4211 = vmax.f32 %v4160, %v4200
        %v4212 = vmax.f32 %v4162, %v4199
        %v4213 = vmax.f32 %v4164, %v4198
        %4214 = vrot.lane.b32.xlu0 %v4150, 64
        %v4215 = vpop.permute.xlu0 %4214
        %4216 = vrot.lane.b32.xlu0 %v4151, 64
        %v4217 = vpop.permute.xlu0 %4216
        %4218 = vrot.lane.b32.xlu0 %v4152, 64
        %v4219 = vpop.permute.xlu0 %4218
        %4220 = vrot.lane.b32.xlu0 %v4153, 64
        %v4221 = vpop.permute.xlu0 %4220
        %4222 = vrot.lane.b32.xlu0 %v4154, 64
        %v4223 = vpop.permute.xlu0 %4222
        %4224 = vrot.lane.b32.xlu0 %v4155, 64
        %v4225 = vpop.permute.xlu0 %4224
        %4226 = vrot.lane.b32.xlu0 %v4156, 64
        %v4227 = vpop.permute.xlu0 %4226
        %4228 = vrot.lane.b32.xlu0 %v4157, 64
        %v4229 = vpop.permute.xlu0 %4228
        %4230 = vrot.lane.b32.xlu0 %v4158, 64
        %v4231 = vpop.permute.xlu0 %4230
        %4232 = vrot.lane.b32.xlu0 %v4159, 64
        %v4233 = vpop.permute.xlu0 %4232
        %4234 = vrot.lane.b32.xlu0 %v4160, 64
        %v4235 = vpop.permute.xlu0 %4234
        %4236 = vrot.lane.b32.xlu0 %v4161, 64
        %v4237 = vpop.permute.xlu0 %4236
        %4238 = vrot.lane.b32.xlu0 %v4162, 64
        %v4239 = vpop.permute.xlu0 %4238
        %4240 = vrot.lane.b32.xlu0 %v4163, 64
        %v4241 = vpop.permute.xlu0 %4240
        %4242 = vrot.lane.b32.xlu0 %v4164, 64
        %v4243 = vpop.permute.xlu0 %4242
        %4244 = vrot.lane.b32.xlu0 %v4165, 64
        %v4245 = vpop.permute.xlu0 %4244
        %v4246 = vsel %vm901, %v4243, %v4245
        %v4247 = vsel %vm901, %v4239, %v4241
        %v4248 = vsel %vm901, %v4235, %v4237
        %v4249 = vsel %vm901, %v4231, %v4233
        %v4250 = vsel %vm901, %v4227, %v4229
        %v4251 = vsel %vm901, %v4223, %v4225
        %v4252 = vsel %vm901, %v4219, %v4221
        %v4253 = vsel %vm901, %v4215, %v4217
        %4254 = vrot.lane.b32.xlu0 %v4150, 62
        %v4255 = vpop.permute.xlu0 %4254
        %4256 = vrot.lane.b32.xlu0 %v4151, 62
        %v4257 = vpop.permute.xlu0 %4256
        %4258 = vrot.lane.b32.xlu0 %v4152, 62
        %v4259 = vpop.permute.xlu0 %4258
        %4260 = vrot.lane.b32.xlu0 %v4153, 62
        %v4261 = vpop.permute.xlu0 %4260
        %4262 = vrot.lane.b32.xlu0 %v4154, 62
        %v4263 = vpop.permute.xlu0 %4262
        %4264 = vrot.lane.b32.xlu0 %v4155, 62
        %v4265 = vpop.permute.xlu0 %4264
        %4266 = vrot.lane.b32.xlu0 %v4156, 62
        %v4267 = vpop.permute.xlu0 %4266
        %4268 = vrot.lane.b32.xlu0 %v4157, 62
        %v4269 = vpop.permute.xlu0 %4268
        %4270 = vrot.lane.b32.xlu0 %v4158, 62
        %v4271 = vpop.permute.xlu0 %4270
        %4272 = vrot.lane.b32.xlu0 %v4159, 62
        %v4273 = vpop.permute.xlu0 %4272
        %4274 = vrot.lane.b32.xlu0 %v4160, 62
        %v4275 = vpop.permute.xlu0 %4274
        %4276 = vrot.lane.b32.xlu0 %v4161, 62
        %v4277 = vpop.permute.xlu0 %4276
        %4278 = vrot.lane.b32.xlu0 %v4162, 62
        %v4279 = vpop.permute.xlu0 %4278
        %4280 = vrot.lane.b32.xlu0 %v4163, 62
        %v4281 = vpop.permute.xlu0 %4280
        %4282 = vrot.lane.b32.xlu0 %v4164, 62
        %v4283 = vpop.permute.xlu0 %4282
        %4284 = vrot.lane.b32.xlu0 %v4165, 62
        %v4285 = vpop.permute.xlu0 %4284
        %v4286 = vsel %vm966, %v4283, %v4285
        %v4287 = vsel %vm966, %v4279, %v4281
        %v4288 = vsel %vm966, %v4275, %v4277
        %v4289 = vsel %vm966, %v4271, %v4273
        %v4290 = vsel %vm966, %v4267, %v4269
        %v4291 = vsel %vm966, %v4263, %v4265
        %v4292 = vsel %vm966, %v4259, %v4261
        %v4293 = vsel %vm966, %v4255, %v4257
        %v4294 = vmax.f32 %v4253, %v4293
        %v4295 = vmax.f32 %v4252, %v4292
        %v4296 = vmax.f32 %v4251, %v4291
        %v4297 = vmax.f32 %v4250, %v4290
        %v4298 = vmax.f32 %v4249, %v4289
        %v4299 = vmax.f32 %v4248, %v4288
        %v4300 = vmax.f32 %v4247, %v4287
        %v4301 = vmax.f32 %v4246, %v4286
        %v4302 = vmax.f32 %v4206, %v4294
        %v4303 = vmax.f32 %v4207, %v4295
        %v4304 = vmax.f32 %v4208, %v4296
        %v4305 = vmax.f32 %v4209, %v4297
        %v4306 = vmax.f32 %v4210, %v4298
        %v4307 = vmax.f32 %v4211, %v4299
        %v4308 = vmax.f32 %v4212, %v4300
        %v4309 = vmax.f32 %v4213, %v4301
        %4311 = vrot.lane.b32.xlu0 %v4302, 122
        %v4312 = vpop.permute.xlu0 %4311
        %4314 = vrot.lane.b32.xlu0 %v4302, 116
        %v4315 = vpop.permute.xlu0 %4314
        %4317 = vrot.lane.b32.xlu0 %v4302, 110
        %v4318 = vpop.permute.xlu0 %4317
        %4320 = vrot.lane.b32.xlu0 %v4302, 104
        %v4321 = vpop.permute.xlu0 %4320
        %4323 = vrot.lane.b32.xlu0 %v4302, 98
        %v4324 = vpop.permute.xlu0 %4323
        %4326 = vrot.lane.b32.xlu0 %v4302, 92
        %v4327 = vpop.permute.xlu0 %4326
        %4329 = vrot.lane.b32.xlu0 %v4302, 86
        %v4330 = vpop.permute.xlu0 %4329
        %4333 = vrot.lane.b32.xlu0 %v4303, 16
        %v4334 = vpop.permute.xlu0 %4333
        %4336 = vrot.lane.b32.xlu0 %v4303, 10
        %v4337 = vpop.permute.xlu0 %4336
        %4339 = vrot.lane.b32.xlu0 %v4303, 4
        %v4340 = vpop.permute.xlu0 %4339
        %4342 = vrot.lane.b32.xlu0 %v4303, 126
        %v4343 = vpop.permute.xlu0 %4342
        %4345 = vrot.lane.b32.xlu0 %v4303, 120
        %v4346 = vpop.permute.xlu0 %4345
        %4348 = vrot.lane.b32.xlu0 %v4303, 114
        %v4349 = vpop.permute.xlu0 %4348
        %4351 = vrot.lane.b32.xlu0 %v4303, 108
        %v4352 = vpop.permute.xlu0 %4351
        %4354 = vrot.lane.b32.xlu0 %v4303, 102
        %v4355 = vpop.permute.xlu0 %4354
        %vm4357 = vcmask 15360
        %v4358 = vsel %vm4357, %v4302, %v4312
        %vm4359 = vcmask 31744
        %v4360 = vsel %vm4359, %v4358, %v4315
        %vm4361 = vcmask 48128
        %v4362 = vsel %vm4361, %v4360, %v4318
        %vm4363 = vcmask 64512
        %v4364 = vsel %vm4363, %v4362, %v4321
        %vm4365 = vcmask 80896
        %v4366 = vsel %vm4365, %v4364, %v4324
        %vm4367 = vcmask 97280
        %v4368 = vsel %vm4367, %v4366, %v4327
        %vm4369 = vcmask 113664
        %v4370 = vsel %vm4369, %v4368, %v4330
        %vm4371 = vcmask 130048
        %v4372 = vsel %vm4371, %v4370, %v4334
        %vm4373 = vcmask 146432
        %v4374 = vsel %vm4373, %v4372, %v4337
        %vm4375 = vcmask 162816
        %v4376 = vsel %vm4375, %v4374, %v4340
        %vm4377 = vcmask 179200
        %v4378 = vsel %vm4377, %v4376, %v4343
        %vm4379 = vcmask 195584
        %v4380 = vsel %vm4379, %v4378, %v4346
        %vm4381 = vcmask 211968
        %v4382 = vsel %vm4381, %v4380, %v4349
        %vm4383 = vcmask 228352
        %v4384 = vsel %vm4383, %v4382, %v4352
        %vm4385 = vcmask 244736
        %v4386 = vsel %vm4385, %v4384, %v4355
        %4388 = vrot.lane.b32.xlu0 %v4304, 122
        %v4389 = vpop.permute.xlu0 %4388
        %4391 = vrot.lane.b32.xlu0 %v4304, 116
        %v4392 = vpop.permute.xlu0 %4391
        %4394 = vrot.lane.b32.xlu0 %v4304, 110
        %v4395 = vpop.permute.xlu0 %4394
        %4397 = vrot.lane.b32.xlu0 %v4304, 104
        %v4398 = vpop.permute.xlu0 %4397
        %4400 = vrot.lane.b32.xlu0 %v4304, 98
        %v4401 = vpop.permute.xlu0 %4400
        %4403 = vrot.lane.b32.xlu0 %v4304, 92
        %v4404 = vpop.permute.xlu0 %4403
        %4406 = vrot.lane.b32.xlu0 %v4304, 86
        %v4407 = vpop.permute.xlu0 %4406
        %4410 = vrot.lane.b32.xlu0 %v4305, 16
        %v4411 = vpop.permute.xlu0 %4410
        %4413 = vrot.lane.b32.xlu0 %v4305, 10
        %v4414 = vpop.permute.xlu0 %4413
        %4416 = vrot.lane.b32.xlu0 %v4305, 4
        %v4417 = vpop.permute.xlu0 %4416
        %4419 = vrot.lane.b32.xlu0 %v4305, 126
        %v4420 = vpop.permute.xlu0 %4419
        %4422 = vrot.lane.b32.xlu0 %v4305, 120
        %v4423 = vpop.permute.xlu0 %4422
        %4425 = vrot.lane.b32.xlu0 %v4305, 114
        %v4426 = vpop.permute.xlu0 %4425
        %4428 = vrot.lane.b32.xlu0 %v4305, 108
        %v4429 = vpop.permute.xlu0 %4428
        %4431 = vrot.lane.b32.xlu0 %v4305, 102
        %v4432 = vpop.permute.xlu0 %4431
        %v4434 = vsel %vm4357, %v4304, %v4389
        %v4435 = vsel %vm4359, %v4434, %v4392
        %v4436 = vsel %vm4361, %v4435, %v4395
        %v4437 = vsel %vm4363, %v4436, %v4398
        %v4438 = vsel %vm4365, %v4437, %v4401
        %v4439 = vsel %vm4367, %v4438, %v4404
        %v4440 = vsel %vm4369, %v4439, %v4407
        %v4441 = vsel %vm4371, %v4440, %v4411
        %v4442 = vsel %vm4373, %v4441, %v4414
        %v4443 = vsel %vm4375, %v4442, %v4417
        %v4444 = vsel %vm4377, %v4443, %v4420
        %v4445 = vsel %vm4379, %v4444, %v4423
        %v4446 = vsel %vm4381, %v4445, %v4426
        %v4447 = vsel %vm4383, %v4446, %v4429
        %v4448 = vsel %vm4385, %v4447, %v4432
        %4450 = vrot.lane.b32.xlu0 %v4306, 122
        %v4451 = vpop.permute.xlu0 %4450
        %4453 = vrot.lane.b32.xlu0 %v4306, 116
        %v4454 = vpop.permute.xlu0 %4453
        %4456 = vrot.lane.b32.xlu0 %v4306, 110
        %v4457 = vpop.permute.xlu0 %4456
        %4459 = vrot.lane.b32.xlu0 %v4306, 104
        %v4460 = vpop.permute.xlu0 %4459
        %4462 = vrot.lane.b32.xlu0 %v4306, 98
        %v4463 = vpop.permute.xlu0 %4462
        %4465 = vrot.lane.b32.xlu0 %v4306, 92
        %v4466 = vpop.permute.xlu0 %4465
        %4468 = vrot.lane.b32.xlu0 %v4306, 86
        %v4469 = vpop.permute.xlu0 %4468
        %4472 = vrot.lane.b32.xlu0 %v4307, 16
        %v4473 = vpop.permute.xlu0 %4472
        %4475 = vrot.lane.b32.xlu0 %v4307, 10
        %v4476 = vpop.permute.xlu0 %4475
        %4478 = vrot.lane.b32.xlu0 %v4307, 4
        %v4479 = vpop.permute.xlu0 %4478
        %4481 = vrot.lane.b32.xlu0 %v4307, 126
        %v4482 = vpop.permute.xlu0 %4481
        %4484 = vrot.lane.b32.xlu0 %v4307, 120
        %v4485 = vpop.permute.xlu0 %4484
        %4487 = vrot.lane.b32.xlu0 %v4307, 114
        %v4488 = vpop.permute.xlu0 %4487
        %4490 = vrot.lane.b32.xlu0 %v4307, 108
        %v4491 = vpop.permute.xlu0 %4490
        %4493 = vrot.lane.b32.xlu0 %v4307, 102
        %v4494 = vpop.permute.xlu0 %4493
        %v4496 = vsel %vm4357, %v4306, %v4451
        %v4497 = vsel %vm4359, %v4496, %v4454
        %v4498 = vsel %vm4361, %v4497, %v4457
        %v4499 = vsel %vm4363, %v4498, %v4460
        %v4500 = vsel %vm4365, %v4499, %v4463
        %v4501 = vsel %vm4367, %v4500, %v4466
        %v4502 = vsel %vm4369, %v4501, %v4469
        %v4503 = vsel %vm4371, %v4502, %v4473
        %v4504 = vsel %vm4373, %v4503, %v4476
        %v4505 = vsel %vm4375, %v4504, %v4479
        %v4506 = vsel %vm4377, %v4505, %v4482
        %v4507 = vsel %vm4379, %v4506, %v4485
        %v4508 = vsel %vm4381, %v4507, %v4488
        %v4509 = vsel %vm4383, %v4508, %v4491
        %v4510 = vsel %vm4385, %v4509, %v4494
        %4512 = vrot.lane.b32.xlu0 %v4308, 122
        %v4513 = vpop.permute.xlu0 %4512
        %4515 = vrot.lane.b32.xlu0 %v4308, 116
        %v4516 = vpop.permute.xlu0 %4515
        %4518 = vrot.lane.b32.xlu0 %v4308, 110
        %v4519 = vpop.permute.xlu0 %4518
        %4521 = vrot.lane.b32.xlu0 %v4308, 104
        %v4522 = vpop.permute.xlu0 %4521
        %4524 = vrot.lane.b32.xlu0 %v4308, 98
        %v4525 = vpop.permute.xlu0 %4524
        %4527 = vrot.lane.b32.xlu0 %v4308, 92
        %v4528 = vpop.permute.xlu0 %4527
        %4530 = vrot.lane.b32.xlu0 %v4308, 86
        %v4531 = vpop.permute.xlu0 %4530
        %4534 = vrot.lane.b32.xlu0 %v4309, 16
        %v4535 = vpop.permute.xlu0 %4534
        %4537 = vrot.lane.b32.xlu0 %v4309, 10
        %v4538 = vpop.permute.xlu0 %4537
        %4540 = vrot.lane.b32.xlu0 %v4309, 4
        %v4541 = vpop.permute.xlu0 %4540
        %4543 = vrot.lane.b32.xlu0 %v4309, 126
        %v4544 = vpop.permute.xlu0 %4543
        %4546 = vrot.lane.b32.xlu0 %v4309, 120
        %v4547 = vpop.permute.xlu0 %4546
        %4549 = vrot.lane.b32.xlu0 %v4309, 114
        %v4550 = vpop.permute.xlu0 %4549
        %4552 = vrot.lane.b32.xlu0 %v4309, 108
        %v4553 = vpop.permute.xlu0 %4552
        %4555 = vrot.lane.b32.xlu0 %v4309, 102
        %v4556 = vpop.permute.xlu0 %4555
        %v4558 = vsel %vm4357, %v4308, %v4513
        %v4559 = vsel %vm4359, %v4558, %v4516
        %v4560 = vsel %vm4361, %v4559, %v4519
        %v4561 = vsel %vm4363, %v4560, %v4522
        %v4562 = vsel %vm4365, %v4561, %v4525
        %v4563 = vsel %vm4367, %v4562, %v4528
        %v4564 = vsel %vm4369, %v4563, %v4531
        %v4565 = vsel %vm4371, %v4564, %v4535
        %v4566 = vsel %vm4373, %v4565, %v4538
        %v4567 = vsel %vm4375, %v4566, %v4541
        %v4568 = vsel %vm4377, %v4567, %v4544
        %v4569 = vsel %vm4379, %v4568, %v4547
        %v4570 = vsel %vm4381, %v4569, %v4550
        %v4571 = vsel %vm4383, %v4570, %v4553
        %v4572 = vsel %vm4385, %v4571, %v4556
        %4574 = vrot.lane.b32.xlu0 %v4448, 32
        %v4575 = vpop.permute.xlu0 %4574
        %4578 = vrot.lane.b32.xlu0 %v4510, 64
        %v4579 = vpop.permute.xlu0 %4578
        %4582 = vrot.lane.b32.xlu0 %v4572, 96
        %v4583 = vpop.permute.xlu0 %4582
        %vm4585 = vcmask 261120
        %v4586 = vsel %vm4585, %v4386, %v4575
        %vm4587 = vcmask 523264
        %v4588 = vsel %vm4587, %v4586, %v4579
        %vm4589 = vcmask 785408
        %v4590 = vsel %vm4589, %v4588, %v4583
        %v4591 = vld [vmem:[%s1 + $0x48] sm:$0xff]
        %v4592 = vld [vmem:[%s1 + $0x60] sm:$0xff]
        %v4593 = vld [vmem:[%s2 + $0x18] sm:$0xff]
        %v4594 = vld [vmem:[%s2 + $0x20] sm:$0xff]
        %4595 = vrot.lane.b32.xlu0 %v4590, 18
        %v4596 = vpop.permute.xlu0 %4595
        %v4597 = vmul.f32 %v4596, %v676
        %4598 = vrot.lane.b32.xlu0 %v4590, 16
        %v4599 = vpop.permute.xlu0 %4598
        %v4600 = vmul.f32 %v4599, %v678
        %4601 = vrot.lane.b32.xlu0 %v4590, 14
        %v4602 = vpop.permute.xlu0 %4601
        %v4603 = vmul.f32 %v4602, %v681
        %4604 = vrot.lane.b32.xlu0 %v4590, 2
        %v4605 = vpop.permute.xlu0 %4604
        %v4606 = vmul.f32 %v4605, %v683
        %4607 = vrot.lane.b32.xlu0 %v4590, 126
        %v4608 = vpop.permute.xlu0 %4607
        %v4609 = vmul.f32 %v4608, %v685
        %4610 = vrot.lane.b32.xlu0 %v4590, 114
        %v4611 = vpop.permute.xlu0 %4610
        %v4612 = vmul.f32 %v4611, %v688
        %4613 = vrot.lane.b32.xlu0 %v4590, 112
        %v4614 = vpop.permute.xlu0 %4613
        %v4615 = vmul.f32 %v4614, %v690
        %4616 = vrot.lane.b32.xlu0 %v4590, 110
        %v4617 = vpop.permute.xlu0 %4616
        %v4618 = vmul.f32 %v4617, %v693
        %4620 = vset.pattern.permute.xlu0 0
        %4621 = vperm.xlu0 %4620, %v4593
        %v4622 = vpop.permute.xlu0 %4621
        %4625 = vset.pattern.permute.xlu0 0
        %4626 = vperm.xlu0 %4625, %v4594
        %v4627 = vpop.permute.xlu0 %4626
        %v4630 = vsel %vm2600, %v4591, 0
        %v4633 = vsel %vm2600, %v4592, 0
        %4635 = vmatprep.subr.mxu0 0.0
        %4636 = vmatpush1.msra.mxu0 0.0
        %4637 = vmatprep.subr.mxu0 0.0
        %4638 = vmatpush1.msra.mxu0 0.0
        %4639 = vmatprep.subr.mxu0 0.0
        %4640 = vmatpush1.msra.mxu0 0.0
        %4641 = vmatprep.subr.mxu0 0.0
        %4642 = vmatpush1.msra.mxu0 0.0
        %4643 = vmatprep.subr.mxu0 0.0
        %4644 = vmatpush1.msra.mxu0 0.0
        %4645 = vmatprep.subr.mxu0 0.0
        %4646 = vmatpush1.msra.mxu0 0.0
        %4647 = vmatprep.subr.mxu0 0.0
        %4648 = vmatpush1.msra.mxu0 0.0
        %4649 = vmatprep.subr.mxu0 0.0
        %4650 = vmatpush1.msra.mxu0 %v4618
        %4651 = vmatprep.subr.mxu0 0.0
        %4652 = vmatpush1.msra.mxu0 %v4615
        %4653 = vmatprep.subr.mxu0 0.0
        %4654 = vmatpush1.msra.mxu0 %v4612
        %4655 = vmatprep.subr.mxu0 0.0
        %4656 = vmatpush1.msra.mxu0 %v4609
        %4657 = vmatprep.subr.mxu0 0.0
        %4658 = vmatpush1.msra.mxu0 %v4590
        %4659 = vmatprep.subr.mxu0 0.0
        %4660 = vmatpush1.msra.mxu0 %v4606
        %4661 = vmatprep.subr.mxu0 0.0
        %4662 = vmatpush1.msra.mxu0 %v4603
        %4663 = vmatprep.subr.mxu0 0.0
        %4664 = vmatpush1.msra.mxu0 %v4600
        %4665 = vmatprep.subr.mxu0 0.0
        %4666 = vmatpush1.msra.mxu0 %v4597
        %4667 = vmatprep.subr.mxu0 0.0
        %4668 = vmatpush2.msra.mxu0 0.0
        %4669 = vmatprep.subr.mxu0 0.0
        %4670 = vmatpush2.msra.mxu0 0.0
        %4671 = vmatprep.subr.mxu0 0.0
        %4672 = vmatpush2.msra.mxu0 0.0
        %4673 = vmatprep.subr.mxu0 0.0
        %4674 = vmatpush2.msra.mxu0 0.0
        %4675 = vmatprep.subr.mxu0 0.0
        %4676 = vmatpush2.msra.mxu0 0.0
        %4677 = vmatprep.subr.mxu0 0.0
        %4678 = vmatpush2.msra.mxu0 0.0
        %4679 = vmatprep.subr.mxu0 0.0
        %4680 = vmatpush2.msra.mxu0 0.0
        %4681 = vmatprep.subr.mxu0 0.0
        %4682 = vmatpush2.msra.mxu0 0.0
        %4683 = vmatprep.subr.mxu0 0.0
        %4684 = vmatpush2.msra.mxu0 0.0
        %4685 = vmatprep.subr.mxu0 0.0
        %4686 = vmatpush2.msra.mxu0 0.0
        %4687 = vmatprep.subr.mxu0 0.0
        %4688 = vmatpush2.msra.mxu0 0.0
        %4689 = vmatprep.subr.mxu0 0.0
        %4690 = vmatpush2.msra.mxu0 0.0
        %4691 = vmatprep.subr.mxu0 0.0
        %4692 = vmatpush2.msra.mxu0 0.0
        %4693 = vmatprep.subr.mxu0 0.0
        %4694 = vmatpush2.msra.mxu0 0.0
        %4695 = vmatprep.subr.mxu0 0.0
        %4696 = vmatpush2.msra.mxu0 0.0
        %4697 = vmatprep.subr.mxu0 0.0
        %4698 = vmatpush2.msra.mxu0 0.0
        %4699 = vmatprep.mubr.f32.mxu0 0.0
        %4700 = vmatmul.mubr.f32.gmra.mxu0 %v4630
        %v4701 = vpop.f32.mrf.mxu0
        %v4702 = vadd.f32 %v4622, %v4701
        %v4703 = vpop.f32.mrf.mxu0
        %4704 = vmatprep.mubr.f32.mxu0 0.0
        %4705 = vmatmul.mubr.f32.gmra.mxu0 %v4633
        %v4706 = vpop.f32.mrf.mxu0
        %v4707 = vadd.f32 %v4627, %v4706
        %v4708 = vpop.f32.mrf.mxu0
        %4709 = vdwg.mxu0
        %v4710 = vmax.f32 %v4702, 0.0
        %v4711 = vmax.f32 %v4707, 0.0
        %v4712 = vld [vmem:[%s1 + $0x78] sm:$0xff]
        %v4713 = vld [vmem:[%s1 + $0x80] sm:$0xff]
        %v4714 = vld [vmem:[%s1 + $0x90] sm:$0xff]
        %v4715 = vld [vmem:[%s1 + $0x98] sm:$0xff]
        %v4716 = vld [vmem:[%s2 + $0x28] sm:$0xff]
        %v4717 = vld [vmem:[%s2 + $0x30] sm:$0xff]
        %4718 = vrot.lane.b32.xlu0 %v4710, 18
        %v4719 = vpop.permute.xlu0 %4718
        %4720 = vrot.lane.b32.xlu0 %v4711, 18
        %v4721 = vpop.permute.xlu0 %4720
        %v4722 = vmul.f32 %v4719, %v676
        %v4723 = vmul.f32 %v4721, %v676
        %4724 = vrot.lane.b32.xlu0 %v4710, 16
        %v4725 = vpop.permute.xlu0 %4724
        %4726 = vrot.lane.b32.xlu0 %v4711, 16
        %v4727 = vpop.permute.xlu0 %4726
        %v4728 = vmul.f32 %v4725, %v678
        %v4729 = vmul.f32 %v4727, %v678
        %4730 = vrot.lane.b32.xlu0 %v4710, 14
        %v4731 = vpop.permute.xlu0 %4730
        %4732 = vrot.lane.b32.xlu0 %v4711, 14
        %v4733 = vpop.permute.xlu0 %4732
        %v4734 = vmul.f32 %v4731, %v681
        %v4735 = vmul.f32 %v4733, %v681
        %4736 = vrot.lane.b32.xlu0 %v4710, 2
        %v4737 = vpop.permute.xlu0 %4736
        %4738 = vrot.lane.b32.xlu0 %v4711, 2
        %v4739 = vpop.permute.xlu0 %4738
        %v4740 = vmul.f32 %v4737, %v683
        %v4741 = vmul.f32 %v4739, %v683
        %4742 = vrot.lane.b32.xlu0 %v4710, 126
        %v4743 = vpop.permute.xlu0 %4742
        %4744 = vrot.lane.b32.xlu0 %v4711, 126
        %v4745 = vpop.permute.xlu0 %4744
        %v4746 = vmul.f32 %v4743, %v685
        %v4747 = vmul.f32 %v4745, %v685
        %4748 = vrot.lane.b32.xlu0 %v4710, 114
        %v4749 = vpop.permute.xlu0 %4748
        %4750 = vrot.lane.b32.xlu0 %v4711, 114
        %v4751 = vpop.permute.xlu0 %4750
        %v4752 = vmul.f32 %v4749, %v688
        %v4753 = vmul.f32 %v4751, %v688
        %4754 = vrot.lane.b32.xlu0 %v4710, 112
        %v4755 = vpop.permute.xlu0 %4754
        %4756 = vrot.lane.b32.xlu0 %v4711, 112
        %v4757 = vpop.permute.xlu0 %4756
        %v4758 = vmul.f32 %v4755, %v690
        %v4759 = vmul.f32 %v4757, %v690
        %4760 = vrot.lane.b32.xlu0 %v4710, 110
        %v4761 = vpop.permute.xlu0 %4760
        %4762 = vrot.lane.b32.xlu0 %v4711, 110
        %v4763 = vpop.permute.xlu0 %4762
        %v4764 = vmul.f32 %v4761, %v693
        %v4765 = vmul.f32 %v4763, %v693
        %4767 = vset.pattern.permute.xlu0 0
        %4768 = vperm.xlu0 %4767, %v4716
        %v4769 = vpop.permute.xlu0 %4768
        %4772 = vset.pattern.permute.xlu0 0
        %4773 = vperm.xlu0 %4772, %v4717
        %v4774 = vpop.permute.xlu0 %4773
        %v4777 = vsel %vm4371, %v4713, 0
        %v4780 = vsel %vm4371, %v4715, 0
        %4782 = vmatprep.subr.mxu0 0.0
        %4783 = vmatpush1.msra.mxu0 %v4759
        %4784 = vmatprep.subr.mxu0 0.0
        %4785 = vmatpush1.msra.mxu0 %v4758
        %4786 = vmatprep.subr.mxu0 0.0
        %4787 = vmatpush1.msra.mxu0 %v4753
        %4788 = vmatprep.subr.mxu0 0.0
        %4789 = vmatpush1.msra.mxu0 %v4752
        %4790 = vmatprep.subr.mxu0 0.0
        %4791 = vmatpush1.msra.mxu0 %v4747
        %4792 = vmatprep.subr.mxu0 0.0
        %4793 = vmatpush1.msra.mxu0 %v4746
        %4794 = vmatprep.subr.mxu0 0.0
        %4795 = vmatpush1.msra.mxu0 %v4711
        %4796 = vmatprep.subr.mxu0 0.0
        %4797 = vmatpush1.msra.mxu0 %v4710
        %4798 = vmatprep.subr.mxu0 0.0
        %4799 = vmatpush1.msra.mxu0 %v4741
        %4800 = vmatprep.subr.mxu0 0.0
        %4801 = vmatpush1.msra.mxu0 %v4740
        %4802 = vmatprep.subr.mxu0 0.0
        %4803 = vmatpush1.msra.mxu0 %v4735
        %4804 = vmatprep.subr.mxu0 0.0
        %4805 = vmatpush1.msra.mxu0 %v4734
        %4806 = vmatprep.subr.mxu0 0.0
        %4807 = vmatpush1.msra.mxu0 %v4729
        %4808 = vmatprep.subr.mxu0 0.0
        %4809 = vmatpush1.msra.mxu0 %v4728
        %4810 = vmatprep.subr.mxu0 0.0
        %4811 = vmatpush1.msra.mxu0 %v4723
        %4812 = vmatprep.subr.mxu0 0.0
        %4813 = vmatpush1.msra.mxu0 %v4722
        %4814 = vmatprep.subr.mxu0 0.0
        %4815 = vmatpush2.msra.mxu0 0.0
        %4816 = vmatprep.subr.mxu0 0.0
        %4817 = vmatpush2.msra.mxu0 0.0
        %4818 = vmatprep.subr.mxu0 0.0
        %4819 = vmatpush2.msra.mxu0 0.0
        %4820 = vmatprep.subr.mxu0 0.0
        %4821 = vmatpush2.msra.mxu0 0.0
        %4822 = vmatprep.subr.mxu0 0.0
        %4823 = vmatpush2.msra.mxu0 0.0
        %4824 = vmatprep.subr.mxu0 0.0
        %4825 = vmatpush2.msra.mxu0 0.0
        %4826 = vmatprep.subr.mxu0 0.0
        %4827 = vmatpush2.msra.mxu0 0.0
        %4828 = vmatprep.subr.mxu0 0.0
        %4829 = vmatpush2.msra.mxu0 0.0
        %4830 = vmatprep.subr.mxu0 0.0
        %4831 = vmatpush2.msra.mxu0 0.0
        %4832 = vmatprep.subr.mxu0 0.0
        %4833 = vmatpush2.msra.mxu0 0.0
        %4834 = vmatprep.subr.mxu0 0.0
        %4835 = vmatpush2.msra.mxu0 0.0
        %4836 = vmatprep.subr.mxu0 0.0
        %4837 = vmatpush2.msra.mxu0 0.0
        %4838 = vmatprep.subr.mxu0 0.0
        %4839 = vmatpush2.msra.mxu0 0.0
        %4840 = vmatprep.subr.mxu0 0.0
        %4841 = vmatpush2.msra.mxu0 0.0
        %4842 = vmatprep.subr.mxu0 0.0
        %4843 = vmatpush2.msra.mxu0 %v4765
        %4844 = vmatprep.subr.mxu0 0.0
        %4845 = vmatpush2.msra.mxu0 %v4764
        %4846 = vmatprep.mubr.f32.mxu0 %v4777
        %4847 = vmatmul.mubr.f32.gmra.mxu0 %v4712
        %v4848 = vpop.f32.mrf.mxu0
        %v4849 = vadd.f32 %v4769, %v4848
        %v4850 = vpop.f32.mrf.mxu0
        %4851 = vmatprep.mubr.f32.mxu0 %v4780
        %4852 = vmatmul.mubr.f32.gmra.mxu0 %v4714
        %v4853 = vpop.f32.mrf.mxu0
        %v4854 = vadd.f32 %v4774, %v4853
        %v4855 = vpop.f32.mrf.mxu0
        %4856 = vdwg.mxu0
        %v4857 = vmax.f32 %v4849, 0.0
        %v4858 = vmax.f32 %v4854, 0.0
        %v4859 = vld [vmem:[%s1 + $0xa8] sm:$0xff]
        %v4860 = vld [vmem:[%s1 + $0xb0] sm:$0xff]
        %v4861 = vld [vmem:[%s1 + $0xc0] sm:$0xff]
        %v4862 = vld [vmem:[%s1 + $0xc8] sm:$0xff]
        %v4863 = vld [vmem:[%s2 + $0x38] sm:$0xff]
        %v4864 = vld [vmem:[%s2 + $0x40] sm:$0xff]
        %4865 = vrot.lane.b32.xlu0 %v4857, 18
        %v4866 = vpop.permute.xlu0 %4865
        %4867 = vrot.lane.b32.xlu0 %v4858, 18
        %v4868 = vpop.permute.xlu0 %4867
        %v4869 = vmul.f32 %v4866, %v676
        %v4870 = vmul.f32 %v4868, %v676
        %4871 = vrot.lane.b32.xlu0 %v4857, 16
        %v4872 = vpop.permute.xlu0 %4871
        %4873 = vrot.lane.b32.xlu0 %v4858, 16
        %v4874 = vpop.permute.xlu0 %4873
        %v4875 = vmul.f32 %v4872, %v678
        %v4876 = vmul.f32 %v4874, %v678
        %4877 = vrot.lane.b32.xlu0 %v4857, 14
        %v4878 = vpop.permute.xlu0 %4877
        %4879 = vrot.lane.b32.xlu0 %v4858, 14
        %v4880 = vpop.permute.xlu0 %4879
        %v4881 = vmul.f32 %v4878, %v681
        %v4882 = vmul.f32 %v4880, %v681
        %4883 = vrot.lane.b32.xlu0 %v4857, 2
        %v4884 = vpop.permute.xlu0 %4883
        %4885 = vrot.lane.b32.xlu0 %v4858, 2
        %v4886 = vpop.permute.xlu0 %4885
        %v4887 = vmul.f32 %v4884, %v683
        %v4888 = vmul.f32 %v4886, %v683
        %4889 = vrot.lane.b32.xlu0 %v4857, 126
        %v4890 = vpop.permute.xlu0 %4889
        %4891 = vrot.lane.b32.xlu0 %v4858, 126
        %v4892 = vpop.permute.xlu0 %4891
        %v4893 = vmul.f32 %v4890, %v685
        %v4894 = vmul.f32 %v4892, %v685
        %4895 = vrot.lane.b32.xlu0 %v4857, 114
        %v4896 = vpop.permute.xlu0 %4895
        %4897 = vrot.lane.b32.xlu0 %v4858, 114
        %v4898 = vpop.permute.xlu0 %4897
        %v4899 = vmul.f32 %v4896, %v688
        %v4900 = vmul.f32 %v4898, %v688
        %4901 = vrot.lane.b32.xlu0 %v4857, 112
        %v4902 = vpop.permute.xlu0 %4901
        %4903 = vrot.lane.b32.xlu0 %v4858, 112
        %v4904 = vpop.permute.xlu0 %4903
        %v4905 = vmul.f32 %v4902, %v690
        %v4906 = vmul.f32 %v4904, %v690
        %4907 = vrot.lane.b32.xlu0 %v4857, 110
        %v4908 = vpop.permute.xlu0 %4907
        %4909 = vrot.lane.b32.xlu0 %v4858, 110
        %v4910 = vpop.permute.xlu0 %4909
        %v4911 = vmul.f32 %v4908, %v693
        %v4912 = vmul.f32 %v4910, %v693
        %4914 = vset.pattern.permute.xlu0 0
        %4915 = vperm.xlu0 %4914, %v4863
        %v4916 = vpop.permute.xlu0 %4915
        %4919 = vset.pattern.permute.xlu0 0
        %4920 = vperm.xlu0 %4919, %v4864
        %v4921 = vpop.permute.xlu0 %4920
        %v4924 = vsel %vm4371, %v4860, 0
        %v4927 = vsel %vm4371, %v4862, 0
        %4929 = vmatprep.subr.mxu0 0.0
        %4930 = vmatpush1.msra.mxu0 %v4906
        %4931 = vmatprep.subr.mxu0 0.0
        %4932 = vmatpush1.msra.mxu0 %v4905
        %4933 = vmatprep.subr.mxu0 0.0
        %4934 = vmatpush1.msra.mxu0 %v4900
        %4935 = vmatprep.subr.mxu0 0.0
        %4936 = vmatpush1.msra.mxu0 %v4899
        %4937 = vmatprep.subr.mxu0 0.0
        %4938 = vmatpush1.msra.mxu0 %v4894
        %4939 = vmatprep.subr.mxu0 0.0
        %4940 = vmatpush1.msra.mxu0 %v4893
        %4941 = vmatprep.subr.mxu0 0.0
        %4942 = vmatpush1.msra.mxu0 %v4858
        %4943 = vmatprep.subr.mxu0 0.0
        %4944 = vmatpush1.msra.mxu0 %v4857
        %4945 = vmatprep.subr.mxu0 0.0
        %4946 = vmatpush1.msra.mxu0 %v4888
        %4947 = vmatprep.subr.mxu0 0.0
        %4948 = vmatpush1.msra.mxu0 %v4887
        %4949 = vmatprep.subr.mxu0 0.0
        %4950 = vmatpush1.msra.mxu0 %v4882
        %4951 = vmatprep.subr.mxu0 0.0
        %4952 = vmatpush1.msra.mxu0 %v4881
        %4953 = vmatprep.subr.mxu0 0.0
        %4954 = vmatpush1.msra.mxu0 %v4876
        %4955 = vmatprep.subr.mxu0 0.0
        %4956 = vmatpush1.msra.mxu0 %v4875
        %4957 = vmatprep.subr.mxu0 0.0
        %4958 = vmatpush1.msra.mxu0 %v4870
        %4959 = vmatprep.subr.mxu0 0.0
        %4960 = vmatpush1.msra.mxu0 %v4869
        %4961 = vmatprep.subr.mxu0 0.0
        %4962 = vmatpush2.msra.mxu0 0.0
        %4963 = vmatprep.subr.mxu0 0.0
        %4964 = vmatpush2.msra.mxu0 0.0
        %4965 = vmatprep.subr.mxu0 0.0
        %4966 = vmatpush2.msra.mxu0 0.0
        %4967 = vmatprep.subr.mxu0 0.0
        %4968 = vmatpush2.msra.mxu0 0.0
        %4969 = vmatprep.subr.mxu0 0.0
        %4970 = vmatpush2.msra.mxu0 0.0
        %4971 = vmatprep.subr.mxu0 0.0
        %4972 = vmatpush2.msra.mxu0 0.0
        %4973 = vmatprep.subr.mxu0 0.0
        %4974 = vmatpush2.msra.mxu0 0.0
        %4975 = vmatprep.subr.mxu0 0.0
        %4976 = vmatpush2.msra.mxu0 0.0
        %4977 = vmatprep.subr.mxu0 0.0
        %4978 = vmatpush2.msra.mxu0 0.0
        %4979 = vmatprep.subr.mxu0 0.0
        %4980 = vmatpush2.msra.mxu0 0.0
        %4981 = vmatprep.subr.mxu0 0.0
        %4982 = vmatpush2.msra.mxu0 0.0
        %4983 = vmatprep.subr.mxu0 0.0
        %4984 = vmatpush2.msra.mxu0 0.0
        %4985 = vmatprep.subr.mxu0 0.0
        %4986 = vmatpush2.msra.mxu0 0.0
        %4987 = vmatprep.subr.mxu0 0.0
        %4988 = vmatpush2.msra.mxu0 0.0
        %4989 = vmatprep.subr.mxu0 0.0
        %4990 = vmatpush2.msra.mxu0 %v4912
        %4991 = vmatprep.subr.mxu0 0.0
        %4992 = vmatpush2.msra.mxu0 %v4911
        %4993 = vmatprep.mubr.f32.mxu0 %v4924
        %4994 = vmatmul.mubr.f32.gmra.mxu0 %v4859
        %v4995 = vpop.f32.mrf.mxu0
        %v4996 = vadd.f32 %v4916, %v4995
        %v4997 = vpop.f32.mrf.mxu0
        %4998 = vmatprep.mubr.f32.mxu0 %v4927
        %4999 = vmatmul.mubr.f32.gmra.mxu0 %v4861
        %v5000 = vpop.f32.mrf.mxu0
        %v5001 = vadd.f32 %v4921, %v5000
        %v5002 = vpop.f32.mrf.mxu0
        %5003 = vdwg.mxu0
        %v5004 = vmax.f32 %v4996, 0.0
        %v5005 = vmax.f32 %v5001, 0.0
        %v5006 = vadd.f32 %v5004, %v4710
        %v5007 = vadd.f32 %v5005, %v4711
        %5008 = vrot.lane.b32.xlu0 %v5006, 18
        %v5009 = vpop.permute.xlu0 %5008
        %5010 = vrot.lane.b32.xlu0 %v5007, 18
        %v5011 = vpop.permute.xlu0 %5010
        %v5012 = vmul.f32 %v5009, %v676
        %v5013 = vmul.f32 %v5011, %v676
        %5014 = vrot.lane.b32.xlu0 %v5006, 16
        %v5015 = vpop.permute.xlu0 %5014
        %5016 = vrot.lane.b32.xlu0 %v5007, 16
        %v5017 = vpop.permute.xlu0 %5016
        %v5018 = vmul.f32 %v5015, %v678
        %v5019 = vmul.f32 %v5017, %v678
        %5020 = vrot.lane.b32.xlu0 %v5006, 14
        %v5021 = vpop.permute.xlu0 %5020
        %5022 = vrot.lane.b32.xlu0 %v5007, 14
        %v5023 = vpop.permute.xlu0 %5022
        %v5024 = vmul.f32 %v5021, %v681
        %v5025 = vmul.f32 %v5023, %v681
        %5026 = vrot.lane.b32.xlu0 %v5006, 2
        %v5027 = vpop.permute.xlu0 %5026
        %5028 = vrot.lane.b32.xlu0 %v5007, 2
        %v5029 = vpop.permute.xlu0 %5028
        %v5030 = vmul.f32 %v5027, %v683
        %v5031 = vmul.f32 %v5029, %v683
        %5032 = vrot.lane.b32.xlu0 %v5006, 126
        %v5033 = vpop.permute.xlu0 %5032
        %5034 = vrot.lane.b32.xlu0 %v5007, 126
        %v5035 = vpop.permute.xlu0 %5034
        %v5036 = vmul.f32 %v5033, %v685
        %v5037 = vmul.f32 %v5035, %v685
        %5038 = vrot.lane.b32.xlu0 %v5006, 114
        %v5039 = vpop.permute.xlu0 %5038
        %5040 = vrot.lane.b32.xlu0 %v5007, 114
        %v5041 = vpop.permute.xlu0 %5040
        %v5042 = vmul.f32 %v5039, %v688
        %v5043 = vmul.f32 %v5041, %v688
        %5044 = vrot.lane.b32.xlu0 %v5006, 112
        %v5045 = vpop.permute.xlu0 %5044
        %5046 = vrot.lane.b32.xlu0 %v5007, 112
        %v5047 = vpop.permute.xlu0 %5046
        %v5048 = vmul.f32 %v5045, %v690
        %v5049 = vmul.f32 %v5047, %v690
        %5050 = vrot.lane.b32.xlu0 %v5006, 110
        %v5051 = vpop.permute.xlu0 %5050
        %5052 = vrot.lane.b32.xlu0 %v5007, 110
        %v5053 = vpop.permute.xlu0 %5052
        %v5054 = vmul.f32 %v5051, %v693
        %v5055 = vmul.f32 %v5053, %v693
        %5056 = vmatprep.subr.mxu0 0.0
        %5057 = vmatpush1.msra.mxu0 %v5049
        %5058 = vmatprep.subr.mxu0 0.0
        %5059 = vmatpush1.msra.mxu0 %v5048
        %5060 = vmatprep.subr.mxu0 0.0
        %5061 = vmatpush1.msra.mxu0 %v5043
        %5062 = vmatprep.subr.mxu0 0.0
        %5063 = vmatpush1.msra.mxu0 %v5042
        %5064 = vmatprep.subr.mxu0 0.0
        %5065 = vmatpush1.msra.mxu0 %v5037
        %5066 = vmatprep.subr.mxu0 0.0
        %5067 = vmatpush1.msra.mxu0 %v5036
        %5068 = vmatprep.subr.mxu0 0.0
        %5069 = vmatpush1.msra.mxu0 %v5007
        %5070 = vmatprep.subr.mxu0 0.0
        %5071 = vmatpush1.msra.mxu0 %v5006
        %5072 = vmatprep.subr.mxu0 0.0
        %5073 = vmatpush1.msra.mxu0 %v5031
        %5074 = vmatprep.subr.mxu0 0.0
        %5075 = vmatpush1.msra.mxu0 %v5030
        %5076 = vmatprep.subr.mxu0 0.0
        %5077 = vmatpush1.msra.mxu0 %v5025
        %5078 = vmatprep.subr.mxu0 0.0
        %5079 = vmatpush1.msra.mxu0 %v5024
        %5080 = vmatprep.subr.mxu0 0.0
        %5081 = vmatpush1.msra.mxu0 %v5019
        %5082 = vmatprep.subr.mxu0 0.0
        %5083 = vmatpush1.msra.mxu0 %v5018
        %5084 = vmatprep.subr.mxu0 0.0
        %5085 = vmatpush1.msra.mxu0 %v5013
        %5086 = vmatprep.subr.mxu0 0.0
        %5087 = vmatpush1.msra.mxu0 %v5012
        %5088 = vmatprep.subr.mxu0 0.0
        %5089 = vmatpush2.msra.mxu0 0.0
        %5090 = vmatprep.subr.mxu0 0.0
        %5091 = vmatpush2.msra.mxu0 0.0
        %5092 = vmatprep.subr.mxu0 0.0
        %5093 = vmatpush2.msra.mxu0 0.0
        %5094 = vmatprep.subr.mxu0 0.0
        %5095 = vmatpush2.msra.mxu0 0.0
        %5096 = vmatprep.subr.mxu0 0.0
        %5097 = vmatpush2.msra.mxu0 0.0
        %5098 = vmatprep.subr.mxu0 0.0
        %5099 = vmatpush2.msra.mxu0 0.0
        %5100 = vmatprep.subr.mxu0 0.0
        %5101 = vmatpush2.msra.mxu0 0.0
        %5102 = vmatprep.subr.mxu0 0.0
        %5103 = vmatpush2.msra.mxu0 0.0
        %5104 = vmatprep.subr.mxu0 0.0
        %5105 = vmatpush2.msra.mxu0 0.0
        %5106 = vmatprep.subr.mxu0 0.0
        %5107 = vmatpush2.msra.mxu0 0.0
        %5108 = vmatprep.subr.mxu0 0.0
        %5109 = vmatpush2.msra.mxu0 0.0
        %5110 = vmatprep.subr.mxu0 0.0
        %5111 = vmatpush2.msra.mxu0 0.0
        %5112 = vmatprep.subr.mxu0 0.0
        %5113 = vmatpush2.msra.mxu0 0.0
        %5114 = vmatprep.subr.mxu0 0.0
        %5115 = vmatpush2.msra.mxu0 0.0
        %5116 = vmatprep.subr.mxu0 0.0
        %5117 = vmatpush2.msra.mxu0 %v5055
        %5118 = vmatprep.subr.mxu0 0.0
        %5119 = vmatpush2.msra.mxu0 %v5054
        %5120 = vmatprep.mubr.f32.mxu0 %v4777
        %5121 = vmatmul.mubr.f32.gmra.mxu0 %v4712
        %v5122 = vpop.f32.mrf.mxu0
        %v5123 = vadd.f32 %v4769, %v5122
        %v5124 = vpop.f32.mrf.mxu0
        %5125 = vmatprep.mubr.f32.mxu0 %v4780
        %5126 = vmatmul.mubr.f32.gmra.mxu0 %v4714
        %v5127 = vpop.f32.mrf.mxu0
        %v5128 = vadd.f32 %v4774, %v5127
        %v5129 = vpop.f32.mrf.mxu0
        %5130 = vdwg.mxu0
        %v5131 = vmax.f32 %v5123, 0.0
        %v5132 = vmax.f32 %v5128, 0.0
        %5133 = vrot.lane.b32.xlu0 %v5131, 18
        %v5134 = vpop.permute.xlu0 %5133
        %5135 = vrot.lane.b32.xlu0 %v5132, 18
        %v5136 = vpop.permute.xlu0 %5135
        %v5137 = vmul.f32 %v5134, %v676
        %v5138 = vmul.f32 %v5136, %v676
        %5139 = vrot.lane.b32.xlu0 %v5131, 16
        %v5140 = vpop.permute.xlu0 %5139
        %5141 = vrot.lane.b32.xlu0 %v5132, 16
        %v5142 = vpop.permute.xlu0 %5141
        %v5143 = vmul.f32 %v5140, %v678
        %v5144 = vmul.f32 %v5142, %v678
        %5145 = vrot.lane.b32.xlu0 %v5131, 14
        %v5146 = vpop.permute.xlu0 %5145
        %5147 = vrot.lane.b32.xlu0 %v5132, 14
        %v5148 = vpop.permute.xlu0 %5147
        %v5149 = vmul.f32 %v5146, %v681
        %v5150 = vmul.f32 %v5148, %v681
        %5151 = vrot.lane.b32.xlu0 %v5131, 2
        %v5152 = vpop.permute.xlu0 %5151
        %5153 = vrot.lane.b32.xlu0 %v5132, 2
        %v5154 = vpop.permute.xlu0 %5153
        %v5155 = vmul.f32 %v5152, %v683
        %v5156 = vmul.f32 %v5154, %v683
        %5157 = vrot.lane.b32.xlu0 %v5131, 126
        %v5158 = vpop.permute.xlu0 %5157
        %5159 = vrot.lane.b32.xlu0 %v5132, 126
        %v5160 = vpop.permute.xlu0 %5159
        %v5161 = vmul.f32 %v5158, %v685
        %v5162 = vmul.f32 %v5160, %v685
        %5163 = vrot.lane.b32.xlu0 %v5131, 114
        %v5164 = vpop.permute.xlu0 %5163
        %5165 = vrot.lane.b32.xlu0 %v5132, 114
        %v5166 = vpop.permute.xlu0 %5165
        %v5167 = vmul.f32 %v5164, %v688
        %v5168 = vmul.f32 %v5166, %v688
        %5169 = vrot.lane.b32.xlu0 %v5131, 112
        %v5170 = vpop.permute.xlu0 %5169
        %5171 = vrot.lane.b32.xlu0 %v5132, 112
        %v5172 = vpop.permute.xlu0 %5171
        %v5173 = vmul.f32 %v5170, %v690
        %v5174 = vmul.f32 %v5172, %v690
        %5175 = vrot.lane.b32.xlu0 %v5131, 110
        %v5176 = vpop.permute.xlu0 %5175
        %5177 = vrot.lane.b32.xlu0 %v5132, 110
        %v5178 = vpop.permute.xlu0 %5177
        %v5179 = vmul.f32 %v5176, %v693
        %v5180 = vmul.f32 %v5178, %v693
        %5181 = vmatprep.subr.mxu0 0.0
        %5182 = vmatpush1.msra.mxu0 %v5174
        %5183 = vmatprep.subr.mxu0 0.0
        %5184 = vmatpush1.msra.mxu0 %v5173
        %5185 = vmatprep.subr.mxu0 0.0
        %5186 = vmatpush1.msra.mxu0 %v5168
        %5187 = vmatprep.subr.mxu0 0.0
        %5188 = vmatpush1.msra.mxu0 %v5167
        %5189 = vmatprep.subr.mxu0 0.0
        %5190 = vmatpush1.msra.mxu0 %v5162
        %5191 = vmatprep.subr.mxu0 0.0
        %5192 = vmatpush1.msra.mxu0 %v5161
        %5193 = vmatprep.subr.mxu0 0.0
        %5194 = vmatpush1.msra.mxu0 %v5132
        %5195 = vmatprep.subr.mxu0 0.0
        %5196 = vmatpush1.msra.mxu0 %v5131
        %5197 = vmatprep.subr.mxu0 0.0
        %5198 = vmatpush1.msra.mxu0 %v5156
        %5199 = vmatprep.subr.mxu0 0.0
        %5200 = vmatpush1.msra.mxu0 %v5155
        %5201 = vmatprep.subr.mxu0 0.0
        %5202 = vmatpush1.msra.mxu0 %v5150
        %5203 = vmatprep.subr.mxu0 0.0
        %5204 = vmatpush1.msra.mxu0 %v5149
        %5205 = vmatprep.subr.mxu0 0.0
        %5206 = vmatpush1.msra.mxu0 %v5144
        %5207 = vmatprep.subr.mxu0 0.0
        %5208 = vmatpush1.msra.mxu0 %v5143
        %5209 = vmatprep.subr.mxu0 0.0
        %5210 = vmatpush1.msra.mxu0 %v5138
        %5211 = vmatprep.subr.mxu0 0.0
        %5212 = vmatpush1.msra.mxu0 %v5137
        %5213 = vmatprep.subr.mxu0 0.0
        %5214 = vmatpush2.msra.mxu0 0.0
        %5215 = vmatprep.subr.mxu0 0.0
        %5216 = vmatpush2.msra.mxu0 0.0
        %5217 = vmatprep.subr.mxu0 0.0
        %5218 = vmatpush2.msra.mxu0 0.0
        %5219 = vmatprep.subr.mxu0 0.0
        %5220 = vmatpush2.msra.mxu0 0.0
        %5221 = vmatprep.subr.mxu0 0.0
        %5222 = vmatpush2.msra.mxu0 0.0
        %5223 = vmatprep.subr.mxu0 0.0
        %5224 = vmatpush2.msra.mxu0 0.0
        %5225 = vmatprep.subr.mxu0 0.0
        %5226 = vmatpush2.msra.mxu0 0.0
        %5227 = vmatprep.subr.mxu0 0.0
        %5228 = vmatpush2.msra.mxu0 0.0
        %5229 = vmatprep.subr.mxu0 0.0
        %5230 = vmatpush2.msra.mxu0 0.0
        %5231 = vmatprep.subr.mxu0 0.0
        %5232 = vmatpush2.msra.mxu0 0.0
        %5233 = vmatprep.subr.mxu0 0.0
        %5234 = vmatpush2.msra.mxu0 0.0
        %5235 = vmatprep.subr.mxu0 0.0
        %5236 = vmatpush2.msra.mxu0 0.0
        %5237 = vmatprep.subr.mxu0 0.0
        %5238 = vmatpush2.msra.mxu0 0.0
        %5239 = vmatprep.subr.mxu0 0.0
        %5240 = vmatpush2.msra.mxu0 0.0
        %5241 = vmatprep.subr.mxu0 0.0
        %5242 = vmatpush2.msra.mxu0 %v5180
        %5243 = vmatprep.subr.mxu0 0.0
        %5244 = vmatpush2.msra.mxu0 %v5179
        %5245 = vmatprep.mubr.f32.mxu0 %v4924
        %5246 = vmatmul.mubr.f32.gmra.mxu0 %v4859
        %v5247 = vpop.f32.mrf.mxu0
        %v5248 = vadd.f32 %v4916, %v5247
        %v5249 = vpop.f32.mrf.mxu0
        %5250 = vmatprep.mubr.f32.mxu0 %v4927
        %5251 = vmatmul.mubr.f32.gmra.mxu0 %v4861
        %v5252 = vpop.f32.mrf.mxu0
        %v5253 = vadd.f32 %v4921, %v5252
        %v5254 = vpop.f32.mrf.mxu0
        %5255 = vdwg.mxu0
        %v5256 = vmax.f32 %v5248, 0.0
        %v5257 = vmax.f32 %v5253, 0.0
        %v5258 = vadd.f32 %v5256, %v5006
        %v5259 = vadd.f32 %v5257, %v5007
        %5260 = vrot.lane.b32.xlu0 %v5258, 18
        %v5261 = vpop.permute.xlu0 %5260
        %5262 = vrot.lane.b32.xlu0 %v5259, 18
        %v5263 = vpop.permute.xlu0 %5262
        %v5264 = vmul.f32 %v5261, %v676
        %v5265 = vmul.f32 %v5263, %v676
        %5266 = vrot.lane.b32.xlu0 %v5258, 16
        %v5267 = vpop.permute.xlu0 %5266
        %5268 = vrot.lane.b32.xlu0 %v5259, 16
        %v5269 = vpop.permute.xlu0 %5268
        %v5270 = vmul.f32 %v5267, %v678
        %v5271 = vmul.f32 %v5269, %v678
        %5272 = vrot.lane.b32.xlu0 %v5258, 14
        %v5273 = vpop.permute.xlu0 %5272
        %5274 = vrot.lane.b32.xlu0 %v5259, 14
        %v5275 = vpop.permute.xlu0 %5274
        %v5276 = vmul.f32 %v5273, %v681
        %v5277 = vmul.f32 %v5275, %v681
        %5278 = vrot.lane.b32.xlu0 %v5258, 2
        %v5279 = vpop.permute.xlu0 %5278
        %5280 = vrot.lane.b32.xlu0 %v5259, 2
        %v5281 = vpop.permute.xlu0 %5280
        %v5282 = vmul.f32 %v5279, %v683
        %v5283 = vmul.f32 %v5281, %v683
        %5284 = vrot.lane.b32.xlu0 %v5258, 126
        %v5285 = vpop.permute.xlu0 %5284
        %5286 = vrot.lane.b32.xlu0 %v5259, 126
        %v5287 = vpop.permute.xlu0 %5286
        %v5288 = vmul.f32 %v5285, %v685
        %v5289 = vmul.f32 %v5287, %v685
        %5290 = vrot.lane.b32.xlu0 %v5258, 114
        %v5291 = vpop.permute.xlu0 %5290
        %5292 = vrot.lane.b32.xlu0 %v5259, 114
        %v5293 = vpop.permute.xlu0 %5292
        %v5294 = vmul.f32 %v5291, %v688
        %v5295 = vmul.f32 %v5293, %v688
        %5296 = vrot.lane.b32.xlu0 %v5258, 112
        %v5297 = vpop.permute.xlu0 %5296
        %5298 = vrot.lane.b32.xlu0 %v5259, 112
        %v5299 = vpop.permute.xlu0 %5298
        %v5300 = vmul.f32 %v5297, %v690
        %v5301 = vmul.f32 %v5299, %v690
        %5302 = vrot.lane.b32.xlu0 %v5258, 110
        %v5303 = vpop.permute.xlu0 %5302
        %5304 = vrot.lane.b32.xlu0 %v5259, 110
        %v5305 = vpop.permute.xlu0 %5304
        %v5306 = vmul.f32 %v5303, %v693
        %v5307 = vmul.f32 %v5305, %v693
        %5308 = vmatprep.subr.mxu0 0.0
        %5309 = vmatpush1.msra.mxu0 %v5301
        %5310 = vmatprep.subr.mxu0 0.0
        %5311 = vmatpush1.msra.mxu0 %v5300
        %5312 = vmatprep.subr.mxu0 0.0
        %5313 = vmatpush1.msra.mxu0 %v5295
        %5314 = vmatprep.subr.mxu0 0.0
        %5315 = vmatpush1.msra.mxu0 %v5294
        %5316 = vmatprep.subr.mxu0 0.0
        %5317 = vmatpush1.msra.mxu0 %v5289
        %5318 = vmatprep.subr.mxu0 0.0
        %5319 = vmatpush1.msra.mxu0 %v5288
        %5320 = vmatprep.subr.mxu0 0.0
        %5321 = vmatpush1.msra.mxu0 %v5259
        %5322 = vmatprep.subr.mxu0 0.0
        %5323 = vmatpush1.msra.mxu0 %v5258
        %5324 = vmatprep.subr.mxu0 0.0
        %5325 = vmatpush1.msra.mxu0 %v5283
        %5326 = vmatprep.subr.mxu0 0.0
        %5327 = vmatpush1.msra.mxu0 %v5282
        %5328 = vmatprep.subr.mxu0 0.0
        %5329 = vmatpush1.msra.mxu0 %v5277
        %5330 = vmatprep.subr.mxu0 0.0
        %5331 = vmatpush1.msra.mxu0 %v5276
        %5332 = vmatprep.subr.mxu0 0.0
        %5333 = vmatpush1.msra.mxu0 %v5271
        %5334 = vmatprep.subr.mxu0 0.0
        %5335 = vmatpush1.msra.mxu0 %v5270
        %5336 = vmatprep.subr.mxu0 0.0
        %5337 = vmatpush1.msra.mxu0 %v5265
        %5338 = vmatprep.subr.mxu0 0.0
        %5339 = vmatpush1.msra.mxu0 %v5264
        %5340 = vmatprep.subr.mxu0 0.0
        %5341 = vmatpush2.msra.mxu0 0.0
        %5342 = vmatprep.subr.mxu0 0.0
        %5343 = vmatpush2.msra.mxu0 0.0
        %5344 = vmatprep.subr.mxu0 0.0
        %5345 = vmatpush2.msra.mxu0 0.0
        %5346 = vmatprep.subr.mxu0 0.0
        %5347 = vmatpush2.msra.mxu0 0.0
        %5348 = vmatprep.subr.mxu0 0.0
        %5349 = vmatpush2.msra.mxu0 0.0
        %5350 = vmatprep.subr.mxu0 0.0
        %5351 = vmatpush2.msra.mxu0 0.0
        %5352 = vmatprep.subr.mxu0 0.0
        %5353 = vmatpush2.msra.mxu0 0.0
        %5354 = vmatprep.subr.mxu0 0.0
        %5355 = vmatpush2.msra.mxu0 0.0
        %5356 = vmatprep.subr.mxu0 0.0
        %5357 = vmatpush2.msra.mxu0 0.0
        %5358 = vmatprep.subr.mxu0 0.0
        %5359 = vmatpush2.msra.mxu0 0.0
        %5360 = vmatprep.subr.mxu0 0.0
        %5361 = vmatpush2.msra.mxu0 0.0
        %5362 = vmatprep.subr.mxu0 0.0
        %5363 = vmatpush2.msra.mxu0 0.0
        %5364 = vmatprep.subr.mxu0 0.0
        %5365 = vmatpush2.msra.mxu0 0.0
        %5366 = vmatprep.subr.mxu0 0.0
        %5367 = vmatpush2.msra.mxu0 0.0
        %5368 = vmatprep.subr.mxu0 0.0
        %5369 = vmatpush2.msra.mxu0 %v5307
        %5370 = vmatprep.subr.mxu0 0.0
        %5371 = vmatpush2.msra.mxu0 %v5306
        %5372 = vmatprep.mubr.f32.mxu0 %v4777
        %5373 = vmatmul.mubr.f32.gmra.mxu0 %v4712
        %v5374 = vpop.f32.mrf.mxu0
        %v5375 = vadd.f32 %v4769, %v5374
        %v5376 = vpop.f32.mrf.mxu0
        %5377 = vmatprep.mubr.f32.mxu0 %v4780
        %5378 = vmatmul.mubr.f32.gmra.mxu0 %v4714
        %v5379 = vpop.f32.mrf.mxu0
        %v5380 = vadd.f32 %v4774, %v5379
        %v5381 = vpop.f32.mrf.mxu0
        %5382 = vdwg.mxu0
        %v5383 = vmax.f32 %v5375, 0.0
        %v5384 = vmax.f32 %v5380, 0.0
        %5385 = vrot.lane.b32.xlu0 %v5383, 18
        %v5386 = vpop.permute.xlu0 %5385
        %5387 = vrot.lane.b32.xlu0 %v5384, 18
        %v5388 = vpop.permute.xlu0 %5387
        %v5389 = vmul.f32 %v5386, %v676
        %v5390 = vmul.f32 %v5388, %v676
        %5391 = vrot.lane.b32.xlu0 %v5383, 16
        %v5392 = vpop.permute.xlu0 %5391
        %5393 = vrot.lane.b32.xlu0 %v5384, 16
        %v5394 = vpop.permute.xlu0 %5393
        %v5395 = vmul.f32 %v5392, %v678
        %v5396 = vmul.f32 %v5394, %v678
        %5397 = vrot.lane.b32.xlu0 %v5383, 14
        %v5398 = vpop.permute.xlu0 %5397
        %5399 = vrot.lane.b32.xlu0 %v5384, 14
        %v5400 = vpop.permute.xlu0 %5399
        %v5401 = vmul.f32 %v5398, %v681
        %v5402 = vmul.f32 %v5400, %v681
        %5403 = vrot.lane.b32.xlu0 %v5383, 2
        %v5404 = vpop.permute.xlu0 %5403
        %5405 = vrot.lane.b32.xlu0 %v5384, 2
        %v5406 = vpop.permute.xlu0 %5405
        %v5407 = vmul.f32 %v5404, %v683
        %v5408 = vmul.f32 %v5406, %v683
        %5409 = vrot.lane.b32.xlu0 %v5383, 126
        %v5410 = vpop.permute.xlu0 %5409
        %5411 = vrot.lane.b32.xlu0 %v5384, 126
        %v5412 = vpop.permute.xlu0 %5411
        %v5413 = vmul.f32 %v5410, %v685
        %v5414 = vmul.f32 %v5412, %v685
        %5415 = vrot.lane.b32.xlu0 %v5383, 114
        %v5416 = vpop.permute.xlu0 %5415
        %5417 = vrot.lane.b32.xlu0 %v5384, 114
        %v5418 = vpop.permute.xlu0 %5417
        %v5419 = vmul.f32 %v5416, %v688
        %v5420 = vmul.f32 %v5418, %v688
        %5421 = vrot.lane.b32.xlu0 %v5383, 112
        %v5422 = vpop.permute.xlu0 %5421
        %5423 = vrot.lane.b32.xlu0 %v5384, 112
        %v5424 = vpop.permute.xlu0 %5423
        %v5425 = vmul.f32 %v5422, %v690
        %v5426 = vmul.f32 %v5424, %v690
        %5427 = vrot.lane.b32.xlu0 %v5383, 110
        %v5428 = vpop.permute.xlu0 %5427
        %5429 = vrot.lane.b32.xlu0 %v5384, 110
        %v5430 = vpop.permute.xlu0 %5429
        %v5431 = vmul.f32 %v5428, %v693
        %v5432 = vmul.f32 %v5430, %v693
        %5433 = vmatprep.subr.mxu0 0.0
        %5434 = vmatpush1.msra.mxu0 %v5426
        %5435 = vmatprep.subr.mxu0 0.0
        %5436 = vmatpush1.msra.mxu0 %v5425
        %5437 = vmatprep.subr.mxu0 0.0
        %5438 = vmatpush1.msra.mxu0 %v5420
        %5439 = vmatprep.subr.mxu0 0.0
        %5440 = vmatpush1.msra.mxu0 %v5419
        %5441 = vmatprep.subr.mxu0 0.0
        %5442 = vmatpush1.msra.mxu0 %v5414
        %5443 = vmatprep.subr.mxu0 0.0
        %5444 = vmatpush1.msra.mxu0 %v5413
        %5445 = vmatprep.subr.mxu0 0.0
        %5446 = vmatpush1.msra.mxu0 %v5384
        %5447 = vmatprep.subr.mxu0 0.0
        %5448 = vmatpush1.msra.mxu0 %v5383
        %5449 = vmatprep.subr.mxu0 0.0
        %5450 = vmatpush1.msra.mxu0 %v5408
        %5451 = vmatprep.subr.mxu0 0.0
        %5452 = vmatpush1.msra.mxu0 %v5407
        %5453 = vmatprep.subr.mxu0 0.0
        %5454 = vmatpush1.msra.mxu0 %v5402
        %5455 = vmatprep.subr.mxu0 0.0
        %5456 = vmatpush1.msra.mxu0 %v5401
        %5457 = vmatprep.subr.mxu0 0.0
        %5458 = vmatpush1.msra.mxu0 %v5396
        %5459 = vmatprep.subr.mxu0 0.0
        %5460 = vmatpush1.msra.mxu0 %v5395
        %5461 = vmatprep.subr.mxu0 0.0
        %5462 = vmatpush1.msra.mxu0 %v5390
        %5463 = vmatprep.subr.mxu0 0.0
        %5464 = vmatpush1.msra.mxu0 %v5389
        %5465 = vmatprep.subr.mxu0 0.0
        %5466 = vmatpush2.msra.mxu0 0.0
        %5467 = vmatprep.subr.mxu0 0.0
        %5468 = vmatpush2.msra.mxu0 0.0
        %5469 = vmatprep.subr.mxu0 0.0
        %5470 = vmatpush2.msra.mxu0 0.0
        %5471 = vmatprep.subr.mxu0 0.0
        %5472 = vmatpush2.msra.mxu0 0.0
        %5473 = vmatprep.subr.mxu0 0.0
        %5474 = vmatpush2.msra.mxu0 0.0
        %5475 = vmatprep.subr.mxu0 0.0
        %5476 = vmatpush2.msra.mxu0 0.0
        %5477 = vmatprep.subr.mxu0 0.0
        %5478 = vmatpush2.msra.mxu0 0.0
        %5479 = vmatprep.subr.mxu0 0.0
        %5480 = vmatpush2.msra.mxu0 0.0
        %5481 = vmatprep.subr.mxu0 0.0
        %5482 = vmatpush2.msra.mxu0 0.0
        %5483 = vmatprep.subr.mxu0 0.0
        %5484 = vmatpush2.msra.mxu0 0.0
        %5485 = vmatprep.subr.mxu0 0.0
        %5486 = vmatpush2.msra.mxu0 0.0
        %5487 = vmatprep.subr.mxu0 0.0
        %5488 = vmatpush2.msra.mxu0 0.0
        %5489 = vmatprep.subr.mxu0 0.0
        %5490 = vmatpush2.msra.mxu0 0.0
        %5491 = vmatprep.subr.mxu0 0.0
        %5492 = vmatpush2.msra.mxu0 0.0
        %5493 = vmatprep.subr.mxu0 0.0
        %5494 = vmatpush2.msra.mxu0 %v5432
        %5495 = vmatprep.subr.mxu0 0.0
        %5496 = vmatpush2.msra.mxu0 %v5431
        %5497 = vmatprep.mubr.f32.mxu0 %v4924
        %5498 = vmatmul.mubr.f32.gmra.mxu0 %v4859
        %v5499 = vpop.f32.mrf.mxu0
        %v5500 = vadd.f32 %v4916, %v5499
        %v5501 = vpop.f32.mrf.mxu0
        %5502 = vmatprep.mubr.f32.mxu0 %v4927
        %5503 = vmatmul.mubr.f32.gmra.mxu0 %v4861
        %v5504 = vpop.f32.mrf.mxu0
        %v5505 = vadd.f32 %v4921, %v5504
        %v5506 = vpop.f32.mrf.mxu0
        %5507 = vdwg.mxu0
        %v5508 = vmax.f32 %v5500, 0.0
        %v5509 = vmax.f32 %v5505, 0.0
        %v5510 = vadd.f32 %v5508, %v5258
        %v5511 = vadd.f32 %v5509, %v5259
        %5512 = vrot.lane.b32.xlu0 %v5510, 126
        %v5513 = vpop.permute.xlu0 %5512
        %5514 = vrot.lane.b32.xlu0 %v5511, 126
        %v5515 = vpop.permute.xlu0 %5514
        %v5516 = vmax.f32 %v5510, %v5513
        %v5517 = vmax.f32 %v5511, %v5515
        %5518 = vrot.lane.b32.xlu0 %v5510, 112
        %v5519 = vpop.permute.xlu0 %5518
        %5520 = vrot.lane.b32.xlu0 %v5511, 112
        %v5521 = vpop.permute.xlu0 %5520
        %5522 = vrot.lane.b32.xlu0 %v5510, 110
        %v5523 = vpop.permute.xlu0 %5522
        %5524 = vrot.lane.b32.xlu0 %v5511, 110
        %v5525 = vpop.permute.xlu0 %5524
        %v5526 = vmax.f32 %v5519, %v5523
        %v5527 = vmax.f32 %v5521, %v5525
        %v5528 = vmax.f32 %v5516, %v5526
        %v5529 = vmax.f32 %v5517, %v5527
        %5532 = vrot.lane.b32.xlu0 %v5528, 122
        %v5533 = vpop.permute.xlu0 %5532
        %5534 = vrot.lane.b32.xlu0 %v5529, 122
        %v5535 = vpop.permute.xlu0 %5534
        %5538 = vrot.lane.b32.xlu0 %v5528, 68
        %v5539 = vpop.permute.xlu0 %5538
        %5540 = vrot.lane.b32.xlu0 %v5529, 68
        %v5541 = vpop.permute.xlu0 %5540
        %5544 = vrot.lane.b32.xlu0 %v5528, 62
        %v5545 = vpop.permute.xlu0 %5544
        %5546 = vrot.lane.b32.xlu0 %v5529, 62
        %v5547 = vpop.permute.xlu0 %5546
        %v5550 = vsel %vm4357, %v5528, %v5533
        %v5551 = vsel %vm4357, %v5529, %v5535
        %v5552 = vsel %vm4359, %v5550, %v5539
        %v5553 = vsel %vm4359, %v5551, %v5541
        %v5554 = vsel %vm4361, %v5552, %v5545
        %v5555 = vsel %vm4361, %v5553, %v5547
        %v5556 = vld [vmem:[%s1 + $0xd8] sm:$0xff]
        %v5557 = vld [vmem:[%s1 + $0xe0] sm:$0xff]
        %v5558 = vld [vmem:[%s1 + $0xf0] sm:$0xff]
        %v5559 = vld [vmem:[%s1 + $0xf8] sm:$0xff]
        %v5560 = vld [vmem:[%s1 + $0x108] sm:$0xff]
        %v5561 = vld [vmem:[%s1 + $0x110] sm:$0xff]
        %v5562 = vld [vmem:[%s1 + $0x120] sm:$0xff]
        %v5563 = vld [vmem:[%s1 + $0x128] sm:$0xff]
        %v5564 = vld [vmem:[%s2 + $0x48] sm:$0xff]
        %v5565 = vld [vmem:[%s2 + $0x50] sm:$0xff]
        %v5566 = vld [vmem:[%s2 + $0x58] sm:$0xff]
        %v5567 = vld [vmem:[%s2 + $0x60] sm:$0xff]
        %5570 = vrot.lane.b32.xlu0 %v5554, 6
        %v5571 = vpop.permute.xlu0 %5570
        %5572 = vrot.lane.b32.xlu0 %v5555, 6
        %v5573 = vpop.permute.xlu0 %5572
        %v5576 = vsel %vm4361, 0.0, %v5571
        %v5577 = vsel %vm4361, 0.0, %v5573
        %v5578 = vmul.f32 %v5576, %v702
        %v5579 = vmul.f32 %v5577, %v702
        %5580 = vrot.lane.b32.xlu0 %v5554, 4
        %v5581 = vpop.permute.xlu0 %5580
        %5582 = vrot.lane.b32.xlu0 %v5555, 4
        %v5583 = vpop.permute.xlu0 %5582
        %v5586 = vsel %vm4359, 0.0, %v5581
        %v5587 = vsel %vm4359, 0.0, %v5583
        %v5588 = vmul.f32 %v5586, %v704
        %v5589 = vmul.f32 %v5587, %v704
        %5590 = vrot.lane.b32.xlu0 %v5554, 2
        %v5591 = vpop.permute.xlu0 %5590
        %5592 = vrot.lane.b32.xlu0 %v5555, 2
        %v5593 = vpop.permute.xlu0 %5592
        %v5596 = vsel %vm4357, 0.0, %v5591
        %v5597 = vsel %vm4357, 0.0, %v5593
        %v5598 = vmul.f32 %v5596, %v707
        %v5599 = vmul.f32 %v5597, %v707
        %v5600 = vmul.f32 %v5596, %v709
        %v5601 = vmul.f32 %v5597, %v709
        %5602 = vrot.lane.b32.xlu0 %v5554, 126
        %v5603 = vpop.permute.xlu0 %5602
        %5604 = vrot.lane.b32.xlu0 %v5555, 126
        %v5605 = vpop.permute.xlu0 %5604
        %v5608 = vsel %vm4361, %v5603, 0.0
        %v5609 = vsel %vm4361, %v5605, 0.0
        %v5610 = vmul.f32 %v5608, %v711
        %v5611 = vmul.f32 %v5609, %v711
        %v5612 = vmul.f32 %v5608, %v714
        %v5613 = vmul.f32 %v5609, %v714
        %5614 = vrot.lane.b32.xlu0 %v5554, 124
        %v5615 = vpop.permute.xlu0 %5614
        %5616 = vrot.lane.b32.xlu0 %v5555, 124
        %v5617 = vpop.permute.xlu0 %5616
        %v5620 = vsel %vm4359, %v5615, 0.0
        %v5621 = vsel %vm4359, %v5617, 0.0
        %v5622 = vmul.f32 %v5620, %v716
        %v5623 = vmul.f32 %v5621, %v716
        %5624 = vrot.lane.b32.xlu0 %v5554, 122
        %v5625 = vpop.permute.xlu0 %5624
        %5626 = vrot.lane.b32.xlu0 %v5555, 122
        %v5627 = vpop.permute.xlu0 %5626
        %v5630 = vsel %vm4357, %v5625, 0.0
        %v5631 = vsel %vm4357, %v5627, 0.0
        %v5632 = vmul.f32 %v5630, %v719
        %v5633 = vmul.f32 %v5631, %v719
        %5635 = vset.pattern.permute.xlu0 0
        %5636 = vperm.xlu0 %5635, %v5564
        %v5637 = vpop.permute.xlu0 %5636
        %5640 = vset.pattern.permute.xlu0 0
        %5641 = vperm.xlu0 %5640, %v5565
        %v5642 = vpop.permute.xlu0 %5641
        %5645 = vset.pattern.permute.xlu0 0
        %5646 = vperm.xlu0 %5645, %v5566
        %v5647 = vpop.permute.xlu0 %5646
        %5650 = vset.pattern.permute.xlu0 0
        %5651 = vperm.xlu0 %5650, %v5567
        %v5652 = vpop.permute.xlu0 %5651
        %v5655 = vsel %vm4371, %v5557, 0
        %v5658 = vsel %vm4371, %v5559, 0
        %v5661 = vsel %vm4371, %v5561, 0
        %v5664 = vsel %vm4371, %v5563, 0
        %5666 = vmatprep.subr.mxu0 0.0
        %5667 = vmatpush1.msra.mxu0 %v5623
        %5668 = vmatprep.subr.mxu0 0.0
        %5669 = vmatpush1.msra.mxu0 %v5622
        %5670 = vmatprep.subr.mxu0 0.0
        %5671 = vmatpush1.msra.mxu0 %v5613
        %5672 = vmatprep.subr.mxu0 0.0
        %5673 = vmatpush1.msra.mxu0 %v5612
        %5674 = vmatprep.subr.mxu0 0.0
        %5675 = vmatpush1.msra.mxu0 %v5611
        %5676 = vmatprep.subr.mxu0 0.0
        %5677 = vmatpush1.msra.mxu0 %v5610
        %5678 = vmatprep.subr.mxu0 0.0
        %5679 = vmatpush1.msra.mxu0 %v5555
        %5680 = vmatprep.subr.mxu0 0.0
        %5681 = vmatpush1.msra.mxu0 %v5554
        %5682 = vmatprep.subr.mxu0 0.0
        %5683 = vmatpush1.msra.mxu0 %v5601
        %5684 = vmatprep.subr.mxu0 0.0
        %5685 = vmatpush1.msra.mxu0 %v5600
        %5686 = vmatprep.subr.mxu0 0.0
        %5687 = vmatpush1.msra.mxu0 %v5599
        %5688 = vmatprep.subr.mxu0 0.0
        %5689 = vmatpush1.msra.mxu0 %v5598
        %5690 = vmatprep.subr.mxu0 0.0
        %5691 = vmatpush1.msra.mxu0 %v5589
        %5692 = vmatprep.subr.mxu0 0.0
        %5693 = vmatpush1.msra.mxu0 %v5588
        %5694 = vmatprep.subr.mxu0 0.0
        %5695 = vmatpush1.msra.mxu0 %v5579
        %5696 = vmatprep.subr.mxu0 0.0
        %5697 = vmatpush1.msra.mxu0 %v5578
        %5698 = vmatprep.subr.mxu0 0.0
        %5699 = vmatpush2.msra.mxu0 0.0
        %5700 = vmatprep.subr.mxu0 0.0
        %5701 = vmatpush2.msra.mxu0 0.0
        %5702 = vmatprep.subr.mxu0 0.0
        %5703 = vmatpush2.msra.mxu0 0.0
        %5704 = vmatprep.subr.mxu0 0.0
        %5705 = vmatpush2.msra.mxu0 0.0
        %5706 = vmatprep.subr.mxu0 0.0
        %5707 = vmatpush2.msra.mxu0 0.0
        %5708 = vmatprep.subr.mxu0 0.0
        %5709 = vmatpush2.msra.mxu0 0.0
        %5710 = vmatprep.subr.mxu0 0.0
        %5711 = vmatpush2.msra.mxu0 0.0
        %5712 = vmatprep.subr.mxu0 0.0
        %5713 = vmatpush2.msra.mxu0 0.0
        %5714 = vmatprep.subr.mxu0 0.0
        %5715 = vmatpush2.msra.mxu0 0.0
        %5716 = vmatprep.subr.mxu0 0.0
        %5717 = vmatpush2.msra.mxu0 0.0
        %5718 = vmatprep.subr.mxu0 0.0
        %5719 = vmatpush2.msra.mxu0 0.0
        %5720 = vmatprep.subr.mxu0 0.0
        %5721 = vmatpush2.msra.mxu0 0.0
        %5722 = vmatprep.subr.mxu0 0.0
        %5723 = vmatpush2.msra.mxu0 0.0
        %5724 = vmatprep.subr.mxu0 0.0
        %5725 = vmatpush2.msra.mxu0 0.0
        %5726 = vmatprep.subr.mxu0 0.0
        %5727 = vmatpush2.msra.mxu0 %v5633
        %5728 = vmatprep.subr.mxu0 0.0
        %5729 = vmatpush2.msra.mxu0 %v5632
        %5730 = vmatprep.mubr.f32.mxu0 %v5655
        %5731 = vmatmul.mubr.f32.gmra.mxu0 %v5556
        %v5732 = vpop.f32.mrf.mxu0
        %v5733 = vadd.f32 %v5637, %v5732
        %v5734 = vpop.f32.mrf.mxu0
        %5735 = vmatprep.mubr.f32.mxu0 %v5658
        %5736 = vmatmul.mubr.f32.gmra.mxu0 %v5558
        %v5737 = vpop.f32.mrf.mxu0
        %v5738 = vadd.f32 %v5642, %v5737
        %v5739 = vpop.f32.mrf.mxu0
        %5740 = vmatprep.mubr.f32.mxu0 %v5661
        %5741 = vmatmul.mubr.f32.gmra.mxu0 %v5560
        %v5742 = vpop.f32.mrf.mxu0
        %v5743 = vadd.f32 %v5647, %v5742
        %v5744 = vpop.f32.mrf.mxu0
        %5745 = vmatprep.mubr.f32.mxu0 %v5664
        %5746 = vmatmul.mubr.f32.gmra.mxu0 %v5562
        %v5747 = vpop.f32.mrf.mxu0
        %v5748 = vadd.f32 %v5652, %v5747
        %v5749 = vpop.f32.mrf.mxu0
        %5750 = vdwg.mxu0
        %v5751 = vmax.f32 %v5733, 0.0
        %v5752 = vmax.f32 %v5738, 0.0
        %v5753 = vmax.f32 %v5743, 0.0
        %v5754 = vmax.f32 %v5748, 0.0
        %v5755 = vld [vmem:[%s1 + $0x138] sm:$0xff]
        %v5756 = vld [vmem:[%s1 + $0x140] sm:$0xff]
        %v5757 = vld [vmem:[%s1 + $0x148] sm:$0xff]
        %v5758 = vld [vmem:[%s1 + $0x150] sm:$0xff]
        %v5759 = vld [vmem:[%s1 + $0x158] sm:$0xff]
        %v5760 = vld [vmem:[%s1 + $0x160] sm:$0xff]
        %v5761 = vld [vmem:[%s1 + $0x168] sm:$0xff]
        %v5762 = vld [vmem:[%s1 + $0x170] sm:$0xff]
        %v5763 = vld [vmem:[%s1 + $0x178] sm:$0xff]
        %v5764 = vld [vmem:[%s1 + $0x180] sm:$0xff]
        %v5765 = vld [vmem:[%s1 + $0x188] sm:$0xff]
        %v5766 = vld [vmem:[%s1 + $0x190] sm:$0xff]
        %v5767 = vld [vmem:[%s2 + $0x68] sm:$0xff]
        %v5768 = vld [vmem:[%s2 + $0x70] sm:$0xff]
        %v5769 = vld [vmem:[%s2 + $0x78] sm:$0xff]
        %v5770 = vld [vmem:[%s2 + $0x80] sm:$0xff]
        %5775 = vrot.lane.b32.xlu0 %v5751, 6
        %v5776 = vpop.permute.xlu0 %5775
        %5777 = vrot.lane.b32.xlu0 %v5752, 6
        %v5778 = vpop.permute.xlu0 %5777
        %5779 = vrot.lane.b32.xlu0 %v5753, 6
        %v5780 = vpop.permute.xlu0 %5779
        %5781 = vrot.lane.b32.xlu0 %v5754, 6
        %v5782 = vpop.permute.xlu0 %5781
        %v5787 = vsel %vm4361, 0.0, %v5776
        %v5788 = vsel %vm4361, 0.0, %v5778
        %v5789 = vsel %vm4361, 0.0, %v5780
        %v5790 = vsel %vm4361, 0.0, %v5782
        %v5791 = vmul.f32 %v5787, %v702
        %v5792 = vmul.f32 %v5788, %v702
        %v5793 = vmul.f32 %v5789, %v702
        %v5794 = vmul.f32 %v5790, %v702
        %5795 = vrot.lane.b32.xlu0 %v5751, 4
        %v5796 = vpop.permute.xlu0 %5795
        %5797 = vrot.lane.b32.xlu0 %v5752, 4
        %v5798 = vpop.permute.xlu0 %5797
        %5799 = vrot.lane.b32.xlu0 %v5753, 4
        %v5800 = vpop.permute.xlu0 %5799
        %5801 = vrot.lane.b32.xlu0 %v5754, 4
        %v5802 = vpop.permute.xlu0 %5801
        %v5807 = vsel %vm4359, 0.0, %v5796
        %v5808 = vsel %vm4359, 0.0, %v5798
        %v5809 = vsel %vm4359, 0.0, %v5800
        %v5810 = vsel %vm4359, 0.0, %v5802
        %v5811 = vmul.f32 %v5807, %v704
        %v5812 = vmul.f32 %v5808, %v704
        %v5813 = vmul.f32 %v5809, %v704
        %v5814 = vmul.f32 %v5810, %v704
        %5815 = vrot.lane.b32.xlu0 %v5751, 2
        %v5816 = vpop.permute.xlu0 %5815
        %5817 = vrot.lane.b32.xlu0 %v5752, 2
        %v5818 = vpop.permute.xlu0 %5817
        %5819 = vrot.lane.b32.xlu0 %v5753, 2
        %v5820 = vpop.permute.xlu0 %5819
        %5821 = vrot.lane.b32.xlu0 %v5754, 2
        %v5822 = vpop.permute.xlu0 %5821
        %v5827 = vsel %vm4357, 0.0, %v5816
        %v5828 = vsel %vm4357, 0.0, %v5818
        %v5829 = vsel %vm4357, 0.0, %v5820
        %v5830 = vsel %vm4357, 0.0, %v5822
        %v5831 = vmul.f32 %v5827, %v707
        %v5832 = vmul.f32 %v5828, %v707
        %v5833 = vmul.f32 %v5829, %v707
        %v5834 = vmul.f32 %v5830, %v707
        %v5835 = vmul.f32 %v5827, %v709
        %v5836 = vmul.f32 %v5828, %v709
        %v5837 = vmul.f32 %v5829, %v709
        %v5838 = vmul.f32 %v5830, %v709
        %5839 = vrot.lane.b32.xlu0 %v5751, 126
        %v5840 = vpop.permute.xlu0 %5839
        %5841 = vrot.lane.b32.xlu0 %v5752, 126
        %v5842 = vpop.permute.xlu0 %5841
        %5843 = vrot.lane.b32.xlu0 %v5753, 126
        %v5844 = vpop.permute.xlu0 %5843
        %5845 = vrot.lane.b32.xlu0 %v5754, 126
        %v5846 = vpop.permute.xlu0 %5845
        %v5851 = vsel %vm4361, %v5840, 0.0
        %v5852 = vsel %vm4361, %v5842, 0.0
        %v5853 = vsel %vm4361, %v5844, 0.0
        %v5854 = vsel %vm4361, %v5846, 0.0
        %v5855 = vmul.f32 %v5851, %v711
        %v5856 = vmul.f32 %v5852, %v711
        %v5857 = vmul.f32 %v5853, %v711
        %v5858 = vmul.f32 %v5854, %v711
        %v5859 = vmul.f32 %v5851, %v714
        %v5860 = vmul.f32 %v5852, %v714
        %v5861 = vmul.f32 %v5853, %v714
        %v5862 = vmul.f32 %v5854, %v714
        %5863 = vrot.lane.b32.xlu0 %v5751, 124
        %v5864 = vpop.permute.xlu0 %5863
        %5865 = vrot.lane.b32.xlu0 %v5752, 124
        %v5866 = vpop.permute.xlu0 %5865
        %5867 = vrot.lane.b32.xlu0 %v5753, 124
        %v5868 = vpop.permute.xlu0 %5867
        %5869 = vrot.lane.b32.xlu0 %v5754, 124
        %v5870 = vpop.permute.xlu0 %5869
        %v5875 = vsel %vm4359, %v5864, 0.0
        %v5876 = vsel %vm4359, %v5866, 0.0
        %v5877 = vsel %vm4359, %v5868, 0.0
        %v5878 = vsel %vm4359, %v5870, 0.0
        %v5879 = vmul.f32 %v5875, %v716
        %v5880 = vmul.f32 %v5876, %v716
        %v5881 = vmul.f32 %v5877, %v716
        %v5882 = vmul.f32 %v5878, %v716
        %5883 = vrot.lane.b32.xlu0 %v5751, 122
        %v5884 = vpop.permute.xlu0 %5883
        %5885 = vrot.lane.b32.xlu0 %v5752, 122
        %v5886 = vpop.permute.xlu0 %5885
        %5887 = vrot.lane.b32.xlu0 %v5753, 122
        %v5888 = vpop.permute.xlu0 %5887
        %5889 = vrot.lane.b32.xlu0 %v5754, 122
        %v5890 = vpop.permute.xlu0 %5889
        %v5895 = vsel %vm4357, %v5884, 0.0
        %v5896 = vsel %vm4357, %v5886, 0.0
        %v5897 = vsel %vm4357, %v5888, 0.0
        %v5898 = vsel %vm4357, %v5890, 0.0
        %v5899 = vmul.f32 %v5895, %v719
        %v5900 = vmul.f32 %v5896, %v719
        %v5901 = vmul.f32 %v5897, %v719
        %v5902 = vmul.f32 %v5898, %v719
        %5904 = vset.pattern.permute.xlu0 0
        %5905 = vperm.xlu0 %5904, %v5767
        %v5906 = vpop.permute.xlu0 %5905
        %5909 = vset.pattern.permute.xlu0 0
        %5910 = vperm.xlu0 %5909, %v5768
        %v5911 = vpop.permute.xlu0 %5910
        %5914 = vset.pattern.permute.xlu0 0
        %5915 = vperm.xlu0 %5914, %v5769
        %v5916 = vpop.permute.xlu0 %5915
        %5919 = vset.pattern.permute.xlu0 0
        %5920 = vperm.xlu0 %5919, %v5770
        %v5921 = vpop.permute.xlu0 %5920
        %v5924 = vsel %vm4585, %v5757, 0
        %v5927 = vsel %vm4585, %v5760, 0
        %v5930 = vsel %vm4585, %v5763, 0
        %v5933 = vsel %vm4585, %v5766, 0
        %5935 = vmatprep.subr.mxu0 0.0
        %5936 = vmatpush1.msra.mxu0 %v5838
        %5937 = vmatprep.subr.mxu0 0.0
        %5938 = vmatpush1.msra.mxu0 %v5837
        %5939 = vmatprep.subr.mxu0 0.0
        %5940 = vmatpush1.msra.mxu0 %v5836
        %5941 = vmatprep.subr.mxu0 0.0
        %5942 = vmatpush1.msra.mxu0 %v5835
        %5943 = vmatprep.subr.mxu0 0.0
        %5944 = vmatpush1.msra.mxu0 %v5834
        %5945 = vmatprep.subr.mxu0 0.0
        %5946 = vmatpush1.msra.mxu0 %v5833
        %5947 = vmatprep.subr.mxu0 0.0
        %5948 = vmatpush1.msra.mxu0 %v5832
        %5949 = vmatprep.subr.mxu0 0.0
        %5950 = vmatpush1.msra.mxu0 %v5831
        %5951 = vmatprep.subr.mxu0 0.0
        %5952 = vmatpush1.msra.mxu0 %v5814
        %5953 = vmatprep.subr.mxu0 0.0
        %5954 = vmatpush1.msra.mxu0 %v5813
        %5955 = vmatprep.subr.mxu0 0.0
        %5956 = vmatpush1.msra.mxu0 %v5812
        %5957 = vmatprep.subr.mxu0 0.0
        %5958 = vmatpush1.msra.mxu0 %v5811
        %5959 = vmatprep.subr.mxu0 0.0
        %5960 = vmatpush1.msra.mxu0 %v5794
        %5961 = vmatprep.subr.mxu0 0.0
        %5962 = vmatpush1.msra.mxu0 %v5793
        %5963 = vmatprep.subr.mxu0 0.0
        %5964 = vmatpush1.msra.mxu0 %v5792
        %5965 = vmatprep.subr.mxu0 0.0
        %5966 = vmatpush1.msra.mxu0 %v5791
        %5967 = vmatprep.subr.mxu0 0.0
        %5968 = vmatpush2.msra.mxu0 %v5882
        %5969 = vmatprep.subr.mxu0 0.0
        %5970 = vmatpush2.msra.mxu0 %v5881
        %5971 = vmatprep.subr.mxu0 0.0
        %5972 = vmatpush2.msra.mxu0 %v5880
        %5973 = vmatprep.subr.mxu0 0.0
        %5974 = vmatpush2.msra.mxu0 %v5879
        %5975 = vmatprep.subr.mxu0 0.0
        %5976 = vmatpush2.msra.mxu0 %v5862
        %5977 = vmatprep.subr.mxu0 0.0
        %5978 = vmatpush2.msra.mxu0 %v5861
        %5979 = vmatprep.subr.mxu0 0.0
        %5980 = vmatpush2.msra.mxu0 %v5860
        %5981 = vmatprep.subr.mxu0 0.0
        %5982 = vmatpush2.msra.mxu0 %v5859
        %5983 = vmatprep.subr.mxu0 0.0
        %5984 = vmatpush2.msra.mxu0 %v5858
        %5985 = vmatprep.subr.mxu0 0.0
        %5986 = vmatpush2.msra.mxu0 %v5857
        %5987 = vmatprep.subr.mxu0 0.0
        %5988 = vmatpush2.msra.mxu0 %v5856
        %5989 = vmatprep.subr.mxu0 0.0
        %5990 = vmatpush2.msra.mxu0 %v5855
        %5991 = vmatprep.subr.mxu0 0.0
        %5992 = vmatpush2.msra.mxu0 %v5754
        %5993 = vmatprep.subr.mxu0 0.0
        %5994 = vmatpush2.msra.mxu0 %v5753
        %5995 = vmatprep.subr.mxu0 0.0
        %5996 = vmatpush2.msra.mxu0 %v5752
        %5997 = vmatprep.subr.mxu0 0.0
        %5998 = vmatpush2.msra.mxu0 %v5751
        %5999 = vmatprep.mubr.f32.mxu0 %v5756
        %6000 = vmatmul.mubr.f32.gmra.mxu0 %v5755
        %v6001 = vpop.f32.mrf.mxu0
        %v6002 = vadd.f32 %v5906, %v6001
        %v6003 = vpop.f32.mrf.mxu0
        %6004 = vmatprep.mubr.f32.mxu0 %v5759
        %6005 = vmatmul.mubr.f32.gmra.mxu0 %v5758
        %v6006 = vpop.f32.mrf.mxu0
        %v6007 = vadd.f32 %v5911, %v6006
        %v6008 = vpop.f32.mrf.mxu0
        %6009 = vmatprep.mubr.f32.mxu0 %v5762
        %6010 = vmatmul.mubr.f32.gmra.mxu0 %v5761
        %v6011 = vpop.f32.mrf.mxu0
        %v6012 = vadd.f32 %v5916, %v6011
        %v6013 = vpop.f32.mrf.mxu0
        %6014 = vmatprep.mubr.f32.mxu0 %v5765
        %6015 = vmatmul.mubr.f32.gmra.mxu0 %v5764
        %v6016 = vpop.f32.mrf.mxu0
        %v6017 = vadd.f32 %v5921, %v6016
        %v6018 = vpop.f32.mrf.mxu0
        %6019 = vdwg.mxu0
        %6020 = vmatprep.subr.mxu0 0.0
        %6021 = vmatpush1.msra.mxu0 0.0
        %6022 = vmatprep.subr.mxu0 0.0
        %6023 = vmatpush1.msra.mxu0 0.0
        %6024 = vmatprep.subr.mxu0 0.0
        %6025 = vmatpush1.msra.mxu0 0.0
        %6026 = vmatprep.subr.mxu0 0.0
        %6027 = vmatpush1.msra.mxu0 0.0
        %6028 = vmatprep.subr.mxu0 0.0
        %6029 = vmatpush1.msra.mxu0 0.0
        %6030 = vmatprep.subr.mxu0 0.0
        %6031 = vmatpush1.msra.mxu0 0.0
        %6032 = vmatprep.subr.mxu0 0.0
        %6033 = vmatpush1.msra.mxu0 0.0
        %6034 = vmatprep.subr.mxu0 0.0
        %6035 = vmatpush1.msra.mxu0 0.0
        %6036 = vmatprep.subr.mxu0 0.0
        %6037 = vmatpush1.msra.mxu0 0.0
        %6038 = vmatprep.subr.mxu0 0.0
        %6039 = vmatpush1.msra.mxu0 0.0
        %6040 = vmatprep.subr.mxu0 0.0
        %6041 = vmatpush1.msra.mxu0 0.0
        %6042 = vmatprep.subr.mxu0 0.0
        %6043 = vmatpush1.msra.mxu0 0.0
        %6044 = vmatprep.subr.mxu0 0.0
        %6045 = vmatpush1.msra.mxu0 %v5902
        %6046 = vmatprep.subr.mxu0 0.0
        %6047 = vmatpush1.msra.mxu0 %v5901
        %6048 = vmatprep.subr.mxu0 0.0
        %6049 = vmatpush1.msra.mxu0 %v5900
        %6050 = vmatprep.subr.mxu0 0.0
        %6051 = vmatpush1.msra.mxu0 %v5899
        %6052 = vmatprep.subr.mxu0 0.0
        %6053 = vmatpush2.msra.mxu0 0.0
        %6054 = vmatprep.subr.mxu0 0.0
        %6055 = vmatpush2.msra.mxu0 0.0
        %6056 = vmatprep.subr.mxu0 0.0
        %6057 = vmatpush2.msra.mxu0 0.0
        %6058 = vmatprep.subr.mxu0 0.0
        %6059 = vmatpush2.msra.mxu0 0.0
        %6060 = vmatprep.subr.mxu0 0.0
        %6061 = vmatpush2.msra.mxu0 0.0
        %6062 = vmatprep.subr.mxu0 0.0
        %6063 = vmatpush2.msra.mxu0 0.0
        %6064 = vmatprep.subr.mxu0 0.0
        %6065 = vmatpush2.msra.mxu0 0.0
        %6066 = vmatprep.subr.mxu0 0.0
        %6067 = vmatpush2.msra.mxu0 0.0
        %6068 = vmatprep.subr.mxu0 0.0
        %6069 = vmatpush2.msra.mxu0 0.0
        %6070 = vmatprep.subr.mxu0 0.0
        %6071 = vmatpush2.msra.mxu0 0.0
        %6072 = vmatprep.subr.mxu0 0.0
        %6073 = vmatpush2.msra.mxu0 0.0
        %6074 = vmatprep.subr.mxu0 0.0
        %6075 = vmatpush2.msra.mxu0 0.0
        %6076 = vmatprep.subr.mxu0 0.0
        %6077 = vmatpush2.msra.mxu0 0.0
        %6078 = vmatprep.subr.mxu0 0.0
        %6079 = vmatpush2.msra.mxu0 0.0
        %6080 = vmatprep.subr.mxu0 0.0
        %6081 = vmatpush2.msra.mxu0 0.0
        %6082 = vmatprep.subr.mxu0 0.0
        %6083 = vmatpush2.msra.mxu0 0.0
        %6084 = vmatprep.mubr.f32.mxu0 0.0
        %6085 = vmatmul.mubr.f32.gmra.mxu0 %v5924
        %v6086 = vpop.f32.mrf.mxu0
        %v6087 = vadd.f32 %v6002, %v6086
        %v6088 = vpop.f32.mrf.mxu0
        %6089 = vmatprep.mubr.f32.mxu0 0.0
        %6090 = vmatmul.mubr.f32.gmra.mxu0 %v5927
        %v6091 = vpop.f32.mrf.mxu0
        %v6092 = vadd.f32 %v6007, %v6091
        %v6093 = vpop.f32.mrf.mxu0
        %6094 = vmatprep.mubr.f32.mxu0 0.0
        %6095 = vmatmul.mubr.f32.gmra.mxu0 %v5930
        %v6096 = vpop.f32.mrf.mxu0
        %v6097 = vadd.f32 %v6012, %v6096
        %v6098 = vpop.f32.mrf.mxu0
        %6099 = vmatprep.mubr.f32.mxu0 0.0
        %6100 = vmatmul.mubr.f32.gmra.mxu0 %v5933
        %v6101 = vpop.f32.mrf.mxu0
        %v6102 = vadd.f32 %v6017, %v6101
        %v6103 = vpop.f32.mrf.mxu0
        %6104 = vdwg.mxu0
        %v6105 = vmax.f32 %v6087, 0.0
        %v6106 = vmax.f32 %v6092, 0.0
        %v6107 = vmax.f32 %v6097, 0.0
        %v6108 = vmax.f32 %v6102, 0.0
        %v6109 = vld [vmem:[%s1 + $0x198] sm:$0xff]
        %v6110 = vld [vmem:[%s1 + $0x1a0] sm:$0xff]
        %v6111 = vld [vmem:[%s1 + $0x1a8] sm:$0xff]
        %v6112 = vld [vmem:[%s1 + $0x1b0] sm:$0xff]
        %v6113 = vld [vmem:[%s1 + $0x1b8] sm:$0xff]
        %v6114 = vld [vmem:[%s1 + $0x1c0] sm:$0xff]
        %v6115 = vld [vmem:[%s1 + $0x1c8] sm:$0xff]
        %v6116 = vld [vmem:[%s1 + $0x1d0] sm:$0xff]
        %v6117 = vld [vmem:[%s1 + $0x1d8] sm:$0xff]
        %v6118 = vld [vmem:[%s1 + $0x1e0] sm:$0xff]
        %v6119 = vld [vmem:[%s1 + $0x1e8] sm:$0xff]
        %v6120 = vld [vmem:[%s1 + $0x1f0] sm:$0xff]
        %v6121 = vld [vmem:[%s2 + $0x88] sm:$0xff]
        %v6122 = vld [vmem:[%s2 + $0x90] sm:$0xff]
        %v6123 = vld [vmem:[%s2 + $0x98] sm:$0xff]
        %v6124 = vld [vmem:[%s2 + $0xa0] sm:$0xff]
        %6129 = vrot.lane.b32.xlu0 %v6105, 6
        %v6130 = vpop.permute.xlu0 %6129
        %6131 = vrot.lane.b32.xlu0 %v6106, 6
        %v6132 = vpop.permute.xlu0 %6131
        %6133 = vrot.lane.b32.xlu0 %v6107, 6
        %v6134 = vpop.permute.xlu0 %6133
        %6135 = vrot.lane.b32.xlu0 %v6108, 6
        %v6136 = vpop.permute.xlu0 %6135
        %v6141 = vsel %vm4361, 0.0, %v6130
        %v6142 = vsel %vm4361, 0.0, %v6132
        %v6143 = vsel %vm4361, 0.0, %v6134
        %v6144 = vsel %vm4361, 0.0, %v6136
        %v6145 = vmul.f32 %v6141, %v702
        %v6146 = vmul.f32 %v6142, %v702
        %v6147 = vmul.f32 %v6143, %v702
        %v6148 = vmul.f32 %v6144, %v702
        %6149 = vrot.lane.b32.xlu0 %v6105, 4
        %v6150 = vpop.permute.xlu0 %6149
        %6151 = vrot.lane.b32.xlu0 %v6106, 4
        %v6152 = vpop.permute.xlu0 %6151
        %6153 = vrot.lane.b32.xlu0 %v6107, 4
        %v6154 = vpop.permute.xlu0 %6153
        %6155 = vrot.lane.b32.xlu0 %v6108, 4
        %v6156 = vpop.permute.xlu0 %6155
        %v6161 = vsel %vm4359, 0.0, %v6150
        %v6162 = vsel %vm4359, 0.0, %v6152
        %v6163 = vsel %vm4359, 0.0, %v6154
        %v6164 = vsel %vm4359, 0.0, %v6156
        %v6165 = vmul.f32 %v6161, %v704
        %v6166 = vmul.f32 %v6162, %v704
        %v6167 = vmul.f32 %v6163, %v704
        %v6168 = vmul.f32 %v6164, %v704
        %6169 = vrot.lane.b32.xlu0 %v6105, 2
        %v6170 = vpop.permute.xlu0 %6169
        %6171 = vrot.lane.b32.xlu0 %v6106, 2
        %v6172 = vpop.permute.xlu0 %6171
        %6173 = vrot.lane.b32.xlu0 %v6107, 2
        %v6174 = vpop.permute.xlu0 %6173
        %6175 = vrot.lane.b32.xlu0 %v6108, 2
        %v6176 = vpop.permute.xlu0 %6175
        %v6181 = vsel %vm4357, 0.0, %v6170
        %v6182 = vsel %vm4357, 0.0, %v6172
        %v6183 = vsel %vm4357, 0.0, %v6174
        %v6184 = vsel %vm4357, 0.0, %v6176
        %v6185 = vmul.f32 %v6181, %v707
        %v6186 = vmul.f32 %v6182, %v707
        %v6187 = vmul.f32 %v6183, %v707
        %v6188 = vmul.f32 %v6184, %v707
        %v6189 = vmul.f32 %v6181, %v709
        %v6190 = vmul.f32 %v6182, %v709
        %v6191 = vmul.f32 %v6183, %v709
        %v6192 = vmul.f32 %v6184, %v709
        %6193 = vrot.lane.b32.xlu0 %v6105, 126
        %v6194 = vpop.permute.xlu0 %6193
        %6195 = vrot.lane.b32.xlu0 %v6106, 126
        %v6196 = vpop.permute.xlu0 %6195
        %6197 = vrot.lane.b32.xlu0 %v6107, 126
        %v6198 = vpop.permute.xlu0 %6197
        %6199 = vrot.lane.b32.xlu0 %v6108, 126
        %v6200 = vpop.permute.xlu0 %6199
        %v6205 = vsel %vm4361, %v6194, 0.0
        %v6206 = vsel %vm4361, %v6196, 0.0
        %v6207 = vsel %vm4361, %v6198, 0.0
        %v6208 = vsel %vm4361, %v6200, 0.0
        %v6209 = vmul.f32 %v6205, %v711
        %v6210 = vmul.f32 %v6206, %v711
        %v6211 = vmul.f32 %v6207, %v711
        %v6212 = vmul.f32 %v6208, %v711
        %v6213 = vmul.f32 %v6205, %v714
        %v6214 = vmul.f32 %v6206, %v714
        %v6215 = vmul.f32 %v6207, %v714
        %v6216 = vmul.f32 %v6208, %v714
        %6217 = vrot.lane.b32.xlu0 %v6105, 124
        %v6218 = vpop.permute.xlu0 %6217
        %6219 = vrot.lane.b32.xlu0 %v6106, 124
        %v6220 = vpop.permute.xlu0 %6219
        %6221 = vrot.lane.b32.xlu0 %v6107, 124
        %v6222 = vpop.permute.xlu0 %6221
        %6223 = vrot.lane.b32.xlu0 %v6108, 124
        %v6224 = vpop.permute.xlu0 %6223
        %v6229 = vsel %vm4359, %v6218, 0.0
        %v6230 = vsel %vm4359, %v6220, 0.0
        %v6231 = vsel %vm4359, %v6222, 0.0
        %v6232 = vsel %vm4359, %v6224, 0.0
        %v6233 = vmul.f32 %v6229, %v716
        %v6234 = vmul.f32 %v6230, %v716
        %v6235 = vmul.f32 %v6231, %v716
        %v6236 = vmul.f32 %v6232, %v716
        %6237 = vrot.lane.b32.xlu0 %v6105, 122
        %v6238 = vpop.permute.xlu0 %6237
        %6239 = vrot.lane.b32.xlu0 %v6106, 122
        %v6240 = vpop.permute.xlu0 %6239
        %6241 = vrot.lane.b32.xlu0 %v6107, 122
        %v6242 = vpop.permute.xlu0 %6241
        %6243 = vrot.lane.b32.xlu0 %v6108, 122
        %v6244 = vpop.permute.xlu0 %6243
        %v6249 = vsel %vm4357, %v6238, 0.0
        %v6250 = vsel %vm4357, %v6240, 0.0
        %v6251 = vsel %vm4357, %v6242, 0.0
        %v6252 = vsel %vm4357, %v6244, 0.0
        %v6253 = vmul.f32 %v6249, %v719
        %v6254 = vmul.f32 %v6250, %v719
        %v6255 = vmul.f32 %v6251, %v719
        %v6256 = vmul.f32 %v6252, %v719
        %6258 = vset.pattern.permute.xlu0 0
        %6259 = vperm.xlu0 %6258, %v6121
        %v6260 = vpop.permute.xlu0 %6259
        %6263 = vset.pattern.permute.xlu0 0
        %6264 = vperm.xlu0 %6263, %v6122
        %v6265 = vpop.permute.xlu0 %6264
        %6268 = vset.pattern.permute.xlu0 0
        %6269 = vperm.xlu0 %6268, %v6123
        %v6270 = vpop.permute.xlu0 %6269
        %6273 = vset.pattern.permute.xlu0 0
        %6274 = vperm.xlu0 %6273, %v6124
        %v6275 = vpop.permute.xlu0 %6274
        %v6278 = vsel %vm4585, %v6111, 0
        %v6281 = vsel %vm4585, %v6114, 0
        %v6284 = vsel %vm4585, %v6117, 0
        %v6287 = vsel %vm4585, %v6120, 0
        %6289 = vmatprep.subr.mxu0 0.0
        %6290 = vmatpush1.msra.mxu0 %v6192
        %6291 = vmatprep.subr.mxu0 0.0
        %6292 = vmatpush1.msra.mxu0 %v6191
        %6293 = vmatprep.subr.mxu0 0.0
        %6294 = vmatpush1.msra.mxu0 %v6190
        %6295 = vmatprep.subr.mxu0 0.0
        %6296 = vmatpush1.msra.mxu0 %v6189
        %6297 = vmatprep.subr.mxu0 0.0
        %6298 = vmatpush1.msra.mxu0 %v6188
        %6299 = vmatprep.subr.mxu0 0.0
        %6300 = vmatpush1.msra.mxu0 %v6187
        %6301 = vmatprep.subr.mxu0 0.0
        %6302 = vmatpush1.msra.mxu0 %v6186
        %6303 = vmatprep.subr.mxu0 0.0
        %6304 = vmatpush1.msra.mxu0 %v6185
        %6305 = vmatprep.subr.mxu0 0.0
        %6306 = vmatpush1.msra.mxu0 %v6168
        %6307 = vmatprep.subr.mxu0 0.0
        %6308 = vmatpush1.msra.mxu0 %v6167
        %6309 = vmatprep.subr.mxu0 0.0
        %6310 = vmatpush1.msra.mxu0 %v6166
        %6311 = vmatprep.subr.mxu0 0.0
        %6312 = vmatpush1.msra.mxu0 %v6165
        %6313 = vmatprep.subr.mxu0 0.0
        %6314 = vmatpush1.msra.mxu0 %v6148
        %6315 = vmatprep.subr.mxu0 0.0
        %6316 = vmatpush1.msra.mxu0 %v6147
        %6317 = vmatprep.subr.mxu0 0.0
        %6318 = vmatpush1.msra.mxu0 %v6146
        %6319 = vmatprep.subr.mxu0 0.0
        %6320 = vmatpush1.msra.mxu0 %v6145
        %6321 = vmatprep.subr.mxu0 0.0
        %6322 = vmatpush2.msra.mxu0 %v6236
        %6323 = vmatprep.subr.mxu0 0.0
        %6324 = vmatpush2.msra.mxu0 %v6235
        %6325 = vmatprep.subr.mxu0 0.0
        %6326 = vmatpush2.msra.mxu0 %v6234
        %6327 = vmatprep.subr.mxu0 0.0
        %6328 = vmatpush2.msra.mxu0 %v6233
        %6329 = vmatprep.subr.mxu0 0.0
        %6330 = vmatpush2.msra.mxu0 %v6216
        %6331 = vmatprep.subr.mxu0 0.0
        %6332 = vmatpush2.msra.mxu0 %v6215
        %6333 = vmatprep.subr.mxu0 0.0
        %6334 = vmatpush2.msra.mxu0 %v6214
        %6335 = vmatprep.subr.mxu0 0.0
        %6336 = vmatpush2.msra.mxu0 %v6213
        %6337 = vmatprep.subr.mxu0 0.0
        %6338 = vmatpush2.msra.mxu0 %v6212
        %6339 = vmatprep.subr.mxu0 0.0
        %6340 = vmatpush2.msra.mxu0 %v6211
        %6341 = vmatprep.subr.mxu0 0.0
        %6342 = vmatpush2.msra.mxu0 %v6210
        %6343 = vmatprep.subr.mxu0 0.0
        %6344 = vmatpush2.msra.mxu0 %v6209
        %6345 = vmatprep.subr.mxu0 0.0
        %6346 = vmatpush2.msra.mxu0 %v6108
        %6347 = vmatprep.subr.mxu0 0.0
        %6348 = vmatpush2.msra.mxu0 %v6107
        %6349 = vmatprep.subr.mxu0 0.0
        %6350 = vmatpush2.msra.mxu0 %v6106
        %6351 = vmatprep.subr.mxu0 0.0
        %6352 = vmatpush2.msra.mxu0 %v6105
        %6353 = vmatprep.mubr.f32.mxu0 %v6110
        %6354 = vmatmul.mubr.f32.gmra.mxu0 %v6109
        %v6355 = vpop.f32.mrf.mxu0
        %v6356 = vadd.f32 %v6260, %v6355
        %v6357 = vpop.f32.mrf.mxu0
        %6358 = vmatprep.mubr.f32.mxu0 %v6113
        %6359 = vmatmul.mubr.f32.gmra.mxu0 %v6112
        %v6360 = vpop.f32.mrf.mxu0
        %v6361 = vadd.f32 %v6265, %v6360
        %v6362 = vpop.f32.mrf.mxu0
        %6363 = vmatprep.mubr.f32.mxu0 %v6116
        %6364 = vmatmul.mubr.f32.gmra.mxu0 %v6115
        %v6365 = vpop.f32.mrf.mxu0
        %v6366 = vadd.f32 %v6270, %v6365
        %v6367 = vpop.f32.mrf.mxu0
        %6368 = vmatprep.mubr.f32.mxu0 %v6119
        %6369 = vmatmul.mubr.f32.gmra.mxu0 %v6118
        %v6370 = vpop.f32.mrf.mxu0
        %v6371 = vadd.f32 %v6275, %v6370
        %v6372 = vpop.f32.mrf.mxu0
        %6373 = vdwg.mxu0
        %6374 = vmatprep.subr.mxu0 0.0
        %6375 = vmatpush1.msra.mxu0 0.0
        %6376 = vmatprep.subr.mxu0 0.0
        %6377 = vmatpush1.msra.mxu0 0.0
        %6378 = vmatprep.subr.mxu0 0.0
        %6379 = vmatpush1.msra.mxu0 0.0
        %6380 = vmatprep.subr.mxu0 0.0
        %6381 = vmatpush1.msra.mxu0 0.0
        %6382 = vmatprep.subr.mxu0 0.0
        %6383 = vmatpush1.msra.mxu0 0.0
        %6384 = vmatprep.subr.mxu0 0.0
        %6385 = vmatpush1.msra.mxu0 0.0
        %6386 = vmatprep.subr.mxu0 0.0
        %6387 = vmatpush1.msra.mxu0 0.0
        %6388 = vmatprep.subr.mxu0 0.0
        %6389 = vmatpush1.msra.mxu0 0.0
        %6390 = vmatprep.subr.mxu0 0.0
        %6391 = vmatpush1.msra.mxu0 0.0
        %6392 = vmatprep.subr.mxu0 0.0
        %6393 = vmatpush1.msra.mxu0 0.0
        %6394 = vmatprep.subr.mxu0 0.0
        %6395 = vmatpush1.msra.mxu0 0.0
        %6396 = vmatprep.subr.mxu0 0.0
        %6397 = vmatpush1.msra.mxu0 0.0
        %6398 = vmatprep.subr.mxu0 0.0
        %6399 = vmatpush1.msra.mxu0 %v6256
        %6400 = vmatprep.subr.mxu0 0.0
        %6401 = vmatpush1.msra.mxu0 %v6255
        %6402 = vmatprep.subr.mxu0 0.0
        %6403 = vmatpush1.msra.mxu0 %v6254
        %6404 = vmatprep.subr.mxu0 0.0
        %6405 = vmatpush1.msra.mxu0 %v6253
        %6406 = vmatprep.subr.mxu0 0.0
        %6407 = vmatpush2.msra.mxu0 0.0
        %6408 = vmatprep.subr.mxu0 0.0
        %6409 = vmatpush2.msra.mxu0 0.0
        %6410 = vmatprep.subr.mxu0 0.0
        %6411 = vmatpush2.msra.mxu0 0.0
        %6412 = vmatprep.subr.mxu0 0.0
        %6413 = vmatpush2.msra.mxu0 0.0
        %6414 = vmatprep.subr.mxu0 0.0
        %6415 = vmatpush2.msra.mxu0 0.0
        %6416 = vmatprep.subr.mxu0 0.0
        %6417 = vmatpush2.msra.mxu0 0.0
        %6418 = vmatprep.subr.mxu0 0.0
        %6419 = vmatpush2.msra.mxu0 0.0
        %6420 = vmatprep.subr.mxu0 0.0
        %6421 = vmatpush2.msra.mxu0 0.0
        %6422 = vmatprep.subr.mxu0 0.0
        %6423 = vmatpush2.msra.mxu0 0.0
        %6424 = vmatprep.subr.mxu0 0.0
        %6425 = vmatpush2.msra.mxu0 0.0
        %6426 = vmatprep.subr.mxu0 0.0
        %6427 = vmatpush2.msra.mxu0 0.0
        %6428 = vmatprep.subr.mxu0 0.0
        %6429 = vmatpush2.msra.mxu0 0.0
        %6430 = vmatprep.subr.mxu0 0.0
        %6431 = vmatpush2.msra.mxu0 0.0
        %6432 = vmatprep.subr.mxu0 0.0
        %6433 = vmatpush2.msra.mxu0 0.0
        %6434 = vmatprep.subr.mxu0 0.0
        %6435 = vmatpush2.msra.mxu0 0.0
        %6436 = vmatprep.subr.mxu0 0.0
        %6437 = vmatpush2.msra.mxu0 0.0
        %6438 = vmatprep.mubr.f32.mxu0 0.0
        %6439 = vmatmul.mubr.f32.gmra.mxu0 %v6278
        %v6440 = vpop.f32.mrf.mxu0
        %v6441 = vadd.f32 %v6356, %v6440
        %v6442 = vpop.f32.mrf.mxu0
        %6443 = vmatprep.mubr.f32.mxu0 0.0
        %6444 = vmatmul.mubr.f32.gmra.mxu0 %v6281
        %v6445 = vpop.f32.mrf.mxu0
        %v6446 = vadd.f32 %v6361, %v6445
        %v6447 = vpop.f32.mrf.mxu0
        %6448 = vmatprep.mubr.f32.mxu0 0.0
        %6449 = vmatmul.mubr.f32.gmra.mxu0 %v6284
        %v6450 = vpop.f32.mrf.mxu0
        %v6451 = vadd.f32 %v6366, %v6450
        %v6452 = vpop.f32.mrf.mxu0
        %6453 = vmatprep.mubr.f32.mxu0 0.0
        %6454 = vmatmul.mubr.f32.gmra.mxu0 %v6287
        %v6455 = vpop.f32.mrf.mxu0
        %v6456 = vadd.f32 %v6371, %v6455
        %v6457 = vpop.f32.mrf.mxu0
        %6458 = vdwg.mxu0
        %v6459 = vmax.f32 %v6441, 0.0
        %v6460 = vmax.f32 %v6446, 0.0
        %v6461 = vmax.f32 %v6451, 0.0
        %v6462 = vmax.f32 %v6456, 0.0
        %v6463 = vadd.f32 %v6459, %v5751
        %v6464 = vadd.f32 %v6460, %v5752
        %v6465 = vadd.f32 %v6461, %v5753
        %v6466 = vadd.f32 %v6462, %v5754
        %6471 = vrot.lane.b32.xlu0 %v6463, 6
        %v6472 = vpop.permute.xlu0 %6471
        %6473 = vrot.lane.b32.xlu0 %v6464, 6
        %v6474 = vpop.permute.xlu0 %6473
        %6475 = vrot.lane.b32.xlu0 %v6465, 6
        %v6476 = vpop.permute.xlu0 %6475
        %6477 = vrot.lane.b32.xlu0 %v6466, 6
        %v6478 = vpop.permute.xlu0 %6477
        %v6483 = vsel %vm4361, 0.0, %v6472
        %v6484 = vsel %vm4361, 0.0, %v6474
        %v6485 = vsel %vm4361, 0.0, %v6476
        %v6486 = vsel %vm4361, 0.0, %v6478
        %v6487 = vmul.f32 %v6483, %v702
        %v6488 = vmul.f32 %v6484, %v702
        %v6489 = vmul.f32 %v6485, %v702
        %v6490 = vmul.f32 %v6486, %v702
        %6491 = vrot.lane.b32.xlu0 %v6463, 4
        %v6492 = vpop.permute.xlu0 %6491
        %6493 = vrot.lane.b32.xlu0 %v6464, 4
        %v6494 = vpop.permute.xlu0 %6493
        %6495 = vrot.lane.b32.xlu0 %v6465, 4
        %v6496 = vpop.permute.xlu0 %6495
        %6497 = vrot.lane.b32.xlu0 %v6466, 4
        %v6498 = vpop.permute.xlu0 %6497
        %v6503 = vsel %vm4359, 0.0, %v6492
        %v6504 = vsel %vm4359, 0.0, %v6494
        %v6505 = vsel %vm4359, 0.0, %v6496
        %v6506 = vsel %vm4359, 0.0, %v6498
        %v6507 = vmul.f32 %v6503, %v704
        %v6508 = vmul.f32 %v6504, %v704
        %v6509 = vmul.f32 %v6505, %v704
        %v6510 = vmul.f32 %v6506, %v704
        %6511 = vrot.lane.b32.xlu0 %v6463, 2
        %v6512 = vpop.permute.xlu0 %6511
        %6513 = vrot.lane.b32.xlu0 %v6464, 2
        %v6514 = vpop.permute.xlu0 %6513
        %6515 = vrot.lane.b32.xlu0 %v6465, 2
        %v6516 = vpop.permute.xlu0 %6515
        %6517 = vrot.lane.b32.xlu0 %v6466, 2
        %v6518 = vpop.permute.xlu0 %6517
        %v6523 = vsel %vm4357, 0.0, %v6512
        %v6524 = vsel %vm4357, 0.0, %v6514
        %v6525 = vsel %vm4357, 0.0, %v6516
        %v6526 = vsel %vm4357, 0.0, %v6518
        %v6527 = vmul.f32 %v6523, %v707
        %v6528 = vmul.f32 %v6524, %v707
        %v6529 = vmul.f32 %v6525, %v707
        %v6530 = vmul.f32 %v6526, %v707
        %v6531 = vmul.f32 %v6523, %v709
        %v6532 = vmul.f32 %v6524, %v709
        %v6533 = vmul.f32 %v6525, %v709
        %v6534 = vmul.f32 %v6526, %v709
        %6535 = vrot.lane.b32.xlu0 %v6463, 126
        %v6536 = vpop.permute.xlu0 %6535
        %6537 = vrot.lane.b32.xlu0 %v6464, 126
        %v6538 = vpop.permute.xlu0 %6537
        %6539 = vrot.lane.b32.xlu0 %v6465, 126
        %v6540 = vpop.permute.xlu0 %6539
        %6541 = vrot.lane.b32.xlu0 %v6466, 126
        %v6542 = vpop.permute.xlu0 %6541
        %v6547 = vsel %vm4361, %v6536, 0.0
        %v6548 = vsel %vm4361, %v6538, 0.0
        %v6549 = vsel %vm4361, %v6540, 0.0
        %v6550 = vsel %vm4361, %v6542, 0.0
        %v6551 = vmul.f32 %v6547, %v711
        %v6552 = vmul.f32 %v6548, %v711
        %v6553 = vmul.f32 %v6549, %v711
        %v6554 = vmul.f32 %v6550, %v711
        %v6555 = vmul.f32 %v6547, %v714
        %v6556 = vmul.f32 %v6548, %v714
        %v6557 = vmul.f32 %v6549, %v714
        %v6558 = vmul.f32 %v6550, %v714
        %6559 = vrot.lane.b32.xlu0 %v6463, 124
        %v6560 = vpop.permute.xlu0 %6559
        %6561 = vrot.lane.b32.xlu0 %v6464, 124
        %v6562 = vpop.permute.xlu0 %6561
        %6563 = vrot.lane.b32.xlu0 %v6465, 124
        %v6564 = vpop.permute.xlu0 %6563
        %6565 = vrot.lane.b32.xlu0 %v6466, 124
        %v6566 = vpop.permute.xlu0 %6565
        %v6571 = vsel %vm4359, %v6560, 0.0
        %v6572 = vsel %vm4359, %v6562, 0.0
        %v6573 = vsel %vm4359, %v6564, 0.0
        %v6574 = vsel %vm4359, %v6566, 0.0
        %v6575 = vmul.f32 %v6571, %v716
        %v6576 = vmul.f32 %v6572, %v716
        %v6577 = vmul.f32 %v6573, %v716
        %v6578 = vmul.f32 %v6574, %v716
        %6579 = vrot.lane.b32.xlu0 %v6463, 122
        %v6580 = vpop.permute.xlu0 %6579
        %6581 = vrot.lane.b32.xlu0 %v6464, 122
        %v6582 = vpop.permute.xlu0 %6581
        %6583 = vrot.lane.b32.xlu0 %v6465, 122
        %v6584 = vpop.permute.xlu0 %6583
        %6585 = vrot.lane.b32.xlu0 %v6466, 122
        %v6586 = vpop.permute.xlu0 %6585
        %v6591 = vsel %vm4357, %v6580, 0.0
        %v6592 = vsel %vm4357, %v6582, 0.0
        %v6593 = vsel %vm4357, %v6584, 0.0
        %v6594 = vsel %vm4357, %v6586, 0.0
        %v6595 = vmul.f32 %v6591, %v719
        %v6596 = vmul.f32 %v6592, %v719
        %v6597 = vmul.f32 %v6593, %v719
        %v6598 = vmul.f32 %v6594, %v719
        %6599 = vmatprep.subr.mxu0 0.0
        %6600 = vmatpush1.msra.mxu0 %v6534
        %6601 = vmatprep.subr.mxu0 0.0
        %6602 = vmatpush1.msra.mxu0 %v6533
        %6603 = vmatprep.subr.mxu0 0.0
        %6604 = vmatpush1.msra.mxu0 %v6532
        %6605 = vmatprep.subr.mxu0 0.0
        %6606 = vmatpush1.msra.mxu0 %v6531
        %6607 = vmatprep.subr.mxu0 0.0
        %6608 = vmatpush1.msra.mxu0 %v6530
        %6609 = vmatprep.subr.mxu0 0.0
        %6610 = vmatpush1.msra.mxu0 %v6529
        %6611 = vmatprep.subr.mxu0 0.0
        %6612 = vmatpush1.msra.mxu0 %v6528
        %6613 = vmatprep.subr.mxu0 0.0
        %6614 = vmatpush1.msra.mxu0 %v6527
        %6615 = vmatprep.subr.mxu0 0.0
        %6616 = vmatpush1.msra.mxu0 %v6510
        %6617 = vmatprep.subr.mxu0 0.0
        %6618 = vmatpush1.msra.mxu0 %v6509
        %6619 = vmatprep.subr.mxu0 0.0
        %6620 = vmatpush1.msra.mxu0 %v6508
        %6621 = vmatprep.subr.mxu0 0.0
        %6622 = vmatpush1.msra.mxu0 %v6507
        %6623 = vmatprep.subr.mxu0 0.0
        %6624 = vmatpush1.msra.mxu0 %v6490
        %6625 = vmatprep.subr.mxu0 0.0
        %6626 = vmatpush1.msra.mxu0 %v6489
        %6627 = vmatprep.subr.mxu0 0.0
        %6628 = vmatpush1.msra.mxu0 %v6488
        %6629 = vmatprep.subr.mxu0 0.0
        %6630 = vmatpush1.msra.mxu0 %v6487
        %6631 = vmatprep.subr.mxu0 0.0
        %6632 = vmatpush2.msra.mxu0 %v6578
        %6633 = vmatprep.subr.mxu0 0.0
        %6634 = vmatpush2.msra.mxu0 %v6577
        %6635 = vmatprep.subr.mxu0 0.0
        %6636 = vmatpush2.msra.mxu0 %v6576
        %6637 = vmatprep.subr.mxu0 0.0
        %6638 = vmatpush2.msra.mxu0 %v6575
        %6639 = vmatprep.subr.mxu0 0.0
        %6640 = vmatpush2.msra.mxu0 %v6558
        %6641 = vmatprep.subr.mxu0 0.0
        %6642 = vmatpush2.msra.mxu0 %v6557
        %6643 = vmatprep.subr.mxu0 0.0
        %6644 = vmatpush2.msra.mxu0 %v6556
        %6645 = vmatprep.subr.mxu0 0.0
        %6646 = vmatpush2.msra.mxu0 %v6555
        %6647 = vmatprep.subr.mxu0 0.0
        %6648 = vmatpush2.msra.mxu0 %v6554
        %6649 = vmatprep.subr.mxu0 0.0
        %6650 = vmatpush2.msra.mxu0 %v6553
        %6651 = vmatprep.subr.mxu0 0.0
        %6652 = vmatpush2.msra.mxu0 %v6552
        %6653 = vmatprep.subr.mxu0 0.0
        %6654 = vmatpush2.msra.mxu0 %v6551
        %6655 = vmatprep.subr.mxu0 0.0
        %6656 = vmatpush2.msra.mxu0 %v6466
        %6657 = vmatprep.subr.mxu0 0.0
        %6658 = vmatpush2.msra.mxu0 %v6465
        %6659 = vmatprep.subr.mxu0 0.0
        %6660 = vmatpush2.msra.mxu0 %v6464
        %6661 = vmatprep.subr.mxu0 0.0
        %6662 = vmatpush2.msra.mxu0 %v6463
        %6663 = vmatprep.mubr.f32.mxu0 %v5756
        %6664 = vmatmul.mubr.f32.gmra.mxu0 %v5755
        %v6665 = vpop.f32.mrf.mxu0
        %v6666 = vadd.f32 %v5906, %v6665
        %v6667 = vpop.f32.mrf.mxu0
        %6668 = vmatprep.mubr.f32.mxu0 %v5759
        %6669 = vmatmul.mubr.f32.gmra.mxu0 %v5758
        %v6670 = vpop.f32.mrf.mxu0
        %v6671 = vadd.f32 %v5911, %v6670
        %v6672 = vpop.f32.mrf.mxu0
        %6673 = vmatprep.mubr.f32.mxu0 %v5762
        %6674 = vmatmul.mubr.f32.gmra.mxu0 %v5761
        %v6675 = vpop.f32.mrf.mxu0
        %v6676 = vadd.f32 %v5916, %v6675
        %v6677 = vpop.f32.mrf.mxu0
        %6678 = vmatprep.mubr.f32.mxu0 %v5765
        %6679 = vmatmul.mubr.f32.gmra.mxu0 %v5764
        %v6680 = vpop.f32.mrf.mxu0
        %v6681 = vadd.f32 %v5921, %v6680
        %v6682 = vpop.f32.mrf.mxu0
        %6683 = vdwg.mxu0
        %6684 = vmatprep.subr.mxu0 0.0
        %6685 = vmatpush1.msra.mxu0 0.0
        %6686 = vmatprep.subr.mxu0 0.0
        %6687 = vmatpush1.msra.mxu0 0.0
        %6688 = vmatprep.subr.mxu0 0.0
        %6689 = vmatpush1.msra.mxu0 0.0
        %6690 = vmatprep.subr.mxu0 0.0
        %6691 = vmatpush1.msra.mxu0 0.0
        %6692 = vmatprep.subr.mxu0 0.0
        %6693 = vmatpush1.msra.mxu0 0.0
        %6694 = vmatprep.subr.mxu0 0.0
        %6695 = vmatpush1.msra.mxu0 0.0
        %6696 = vmatprep.subr.mxu0 0.0
        %6697 = vmatpush1.msra.mxu0 0.0
        %6698 = vmatprep.subr.mxu0 0.0
        %6699 = vmatpush1.msra.mxu0 0.0
        %6700 = vmatprep.subr.mxu0 0.0
        %6701 = vmatpush1.msra.mxu0 0.0
        %6702 = vmatprep.subr.mxu0 0.0
        %6703 = vmatpush1.msra.mxu0 0.0
        %6704 = vmatprep.subr.mxu0 0.0
        %6705 = vmatpush1.msra.mxu0 0.0
        %6706 = vmatprep.subr.mxu0 0.0
        %6707 = vmatpush1.msra.mxu0 0.0
        %6708 = vmatprep.subr.mxu0 0.0
        %6709 = vmatpush1.msra.mxu0 %v6598
        %6710 = vmatprep.subr.mxu0 0.0
        %6711 = vmatpush1.msra.mxu0 %v6597
        %6712 = vmatprep.subr.mxu0 0.0
        %6713 = vmatpush1.msra.mxu0 %v6596
        %6714 = vmatprep.subr.mxu0 0.0
        %6715 = vmatpush1.msra.mxu0 %v6595
        %6716 = vmatprep.subr.mxu0 0.0
        %6717 = vmatpush2.msra.mxu0 0.0
        %6718 = vmatprep.subr.mxu0 0.0
        %6719 = vmatpush2.msra.mxu0 0.0
        %6720 = vmatprep.subr.mxu0 0.0
        %6721 = vmatpush2.msra.mxu0 0.0
        %6722 = vmatprep.subr.mxu0 0.0
        %6723 = vmatpush2.msra.mxu0 0.0
        %6724 = vmatprep.subr.mxu0 0.0
        %6725 = vmatpush2.msra.mxu0 0.0
        %6726 = vmatprep.subr.mxu0 0.0
        %6727 = vmatpush2.msra.mxu0 0.0
        %6728 = vmatprep.subr.mxu0 0.0
        %6729 = vmatpush2.msra.mxu0 0.0
        %6730 = vmatprep.subr.mxu0 0.0
        %6731 = vmatpush2.msra.mxu0 0.0
        %6732 = vmatprep.subr.mxu0 0.0
        %6733 = vmatpush2.msra.mxu0 0.0
        %6734 = vmatprep.subr.mxu0 0.0
        %6735 = vmatpush2.msra.mxu0 0.0
        %6736 = vmatprep.subr.mxu0 0.0
        %6737 = vmatpush2.msra.mxu0 0.0
        %6738 = vmatprep.subr.mxu0 0.0
        %6739 = vmatpush2.msra.mxu0 0.0
        %6740 = vmatprep.subr.mxu0 0.0
        %6741 = vmatpush2.msra.mxu0 0.0
        %6742 = vmatprep.subr.mxu0 0.0
        %6743 = vmatpush2.msra.mxu0 0.0
        %6744 = vmatprep.subr.mxu0 0.0
        %6745 = vmatpush2.msra.mxu0 0.0
        %6746 = vmatprep.subr.mxu0 0.0
        %6747 = vmatpush2.msra.mxu0 0.0
        %6748 = vmatprep.mubr.f32.mxu0 0.0
        %6749 = vmatmul.mubr.f32.gmra.mxu0 %v5924
        %v6750 = vpop.f32.mrf.mxu0
        %v6751 = vadd.f32 %v6666, %v6750
        %v6752 = vpop.f32.mrf.mxu0
        %6753 = vmatprep.mubr.f32.mxu0 0.0
        %6754 = vmatmul.mubr.f32.gmra.mxu0 %v5927
        %v6755 = vpop.f32.mrf.mxu0
        %v6756 = vadd.f32 %v6671, %v6755
        %v6757 = vpop.f32.mrf.mxu0
        %6758 = vmatprep.mubr.f32.mxu0 0.0
        %6759 = vmatmul.mubr.f32.gmra.mxu0 %v5930
        %v6760 = vpop.f32.mrf.mxu0
        %v6761 = vadd.f32 %v6676, %v6760
        %v6762 = vpop.f32.mrf.mxu0
        %6763 = vmatprep.mubr.f32.mxu0 0.0
        %6764 = vmatmul.mubr.f32.gmra.mxu0 %v5933
        %v6765 = vpop.f32.mrf.mxu0
        %v6766 = vadd.f32 %v6681, %v6765
        %v6767 = vpop.f32.mrf.mxu0
        %6768 = vdwg.mxu0
        %v6769 = vmax.f32 %v6751, 0.0
        %v6770 = vmax.f32 %v6756, 0.0
        %v6771 = vmax.f32 %v6761, 0.0
        %v6772 = vmax.f32 %v6766, 0.0
        %6777 = vrot.lane.b32.xlu0 %v6769, 6
        %v6778 = vpop.permute.xlu0 %6777
        %6779 = vrot.lane.b32.xlu0 %v6770, 6
        %v6780 = vpop.permute.xlu0 %6779
        %6781 = vrot.lane.b32.xlu0 %v6771, 6
        %v6782 = vpop.permute.xlu0 %6781
        %6783 = vrot.lane.b32.xlu0 %v6772, 6
        %v6784 = vpop.permute.xlu0 %6783
        %v6789 = vsel %vm4361, 0.0, %v6778
        %v6790 = vsel %vm4361, 0.0, %v6780
        %v6791 = vsel %vm4361, 0.0, %v6782
        %v6792 = vsel %vm4361, 0.0, %v6784
        %v6793 = vmul.f32 %v6789, %v702
        %v6794 = vmul.f32 %v6790, %v702
        %v6795 = vmul.f32 %v6791, %v702
        %v6796 = vmul.f32 %v6792, %v702
        %6797 = vrot.lane.b32.xlu0 %v6769, 4
        %v6798 = vpop.permute.xlu0 %6797
        %6799 = vrot.lane.b32.xlu0 %v6770, 4
        %v6800 = vpop.permute.xlu0 %6799
        %6801 = vrot.lane.b32.xlu0 %v6771, 4
        %v6802 = vpop.permute.xlu0 %6801
        %6803 = vrot.lane.b32.xlu0 %v6772, 4
        %v6804 = vpop.permute.xlu0 %6803
        %v6809 = vsel %vm4359, 0.0, %v6798
        %v6810 = vsel %vm4359, 0.0, %v6800
        %v6811 = vsel %vm4359, 0.0, %v6802
        %v6812 = vsel %vm4359, 0.0, %v6804
        %v6813 = vmul.f32 %v6809, %v704
        %v6814 = vmul.f32 %v6810, %v704
        %v6815 = vmul.f32 %v6811, %v704
        %v6816 = vmul.f32 %v6812, %v704
        %6817 = vrot.lane.b32.xlu0 %v6769, 2
        %v6818 = vpop.permute.xlu0 %6817
        %6819 = vrot.lane.b32.xlu0 %v6770, 2
        %v6820 = vpop.permute.xlu0 %6819
        %6821 = vrot.lane.b32.xlu0 %v6771, 2
        %v6822 = vpop.permute.xlu0 %6821
        %6823 = vrot.lane.b32.xlu0 %v6772, 2
        %v6824 = vpop.permute.xlu0 %6823
        %v6829 = vsel %vm4357, 0.0, %v6818
        %v6830 = vsel %vm4357, 0.0, %v6820
        %v6831 = vsel %vm4357, 0.0, %v6822
        %v6832 = vsel %vm4357, 0.0, %v6824
        %v6833 = vmul.f32 %v6829, %v707
        %v6834 = vmul.f32 %v6830, %v707
        %v6835 = vmul.f32 %v6831, %v707
        %v6836 = vmul.f32 %v6832, %v707
        %v6837 = vmul.f32 %v6829, %v709
        %v6838 = vmul.f32 %v6830, %v709
        %v6839 = vmul.f32 %v6831, %v709
        %v6840 = vmul.f32 %v6832, %v709
        %6841 = vrot.lane.b32.xlu0 %v6769, 126
        %v6842 = vpop.permute.xlu0 %6841
        %6843 = vrot.lane.b32.xlu0 %v6770, 126
        %v6844 = vpop.permute.xlu0 %6843
        %6845 = vrot.lane.b32.xlu0 %v6771, 126
        %v6846 = vpop.permute.xlu0 %6845
        %6847 = vrot.lane.b32.xlu0 %v6772, 126
        %v6848 = vpop.permute.xlu0 %6847
        %v6853 = vsel %vm4361, %v6842, 0.0
        %v6854 = vsel %vm4361, %v6844, 0.0
        %v6855 = vsel %vm4361, %v6846, 0.0
        %v6856 = vsel %vm4361, %v6848, 0.0
        %v6857 = vmul.f32 %v6853, %v711
        %v6858 = vmul.f32 %v6854, %v711
        %v6859 = vmul.f32 %v6855, %v711
        %v6860 = vmul.f32 %v6856, %v711
        %v6861 = vmul.f32 %v6853, %v714
        %v6862 = vmul.f32 %v6854, %v714
        %v6863 = vmul.f32 %v6855, %v714
        %v6864 = vmul.f32 %v6856, %v714
        %6865 = vrot.lane.b32.xlu0 %v6769, 124
        %v6866 = vpop.permute.xlu0 %6865
        %6867 = vrot.lane.b32.xlu0 %v6770, 124
        %v6868 = vpop.permute.xlu0 %6867
        %6869 = vrot.lane.b32.xlu0 %v6771, 124
        %v6870 = vpop.permute.xlu0 %6869
        %6871 = vrot.lane.b32.xlu0 %v6772, 124
        %v6872 = vpop.permute.xlu0 %6871
        %v6877 = vsel %vm4359, %v6866, 0.0
        %v6878 = vsel %vm4359, %v6868, 0.0
        %v6879 = vsel %vm4359, %v6870, 0.0
        %v6880 = vsel %vm4359, %v6872, 0.0
        %v6881 = vmul.f32 %v6877, %v716
        %v6882 = vmul.f32 %v6878, %v716
        %v6883 = vmul.f32 %v6879, %v716
        %v6884 = vmul.f32 %v6880, %v716
        %6885 = vrot.lane.b32.xlu0 %v6769, 122
        %v6886 = vpop.permute.xlu0 %6885
        %6887 = vrot.lane.b32.xlu0 %v6770, 122
        %v6888 = vpop.permute.xlu0 %6887
        %6889 = vrot.lane.b32.xlu0 %v6771, 122
        %v6890 = vpop.permute.xlu0 %6889
        %6891 = vrot.lane.b32.xlu0 %v6772, 122
        %v6892 = vpop.permute.xlu0 %6891
        %v6897 = vsel %vm4357, %v6886, 0.0
        %v6898 = vsel %vm4357, %v6888, 0.0
        %v6899 = vsel %vm4357, %v6890, 0.0
        %v6900 = vsel %vm4357, %v6892, 0.0
        %v6901 = vmul.f32 %v6897, %v719
        %v6902 = vmul.f32 %v6898, %v719
        %v6903 = vmul.f32 %v6899, %v719
        %v6904 = vmul.f32 %v6900, %v719
        %6905 = vmatprep.subr.mxu0 0.0
        %6906 = vmatpush1.msra.mxu0 %v6840
        %6907 = vmatprep.subr.mxu0 0.0
        %6908 = vmatpush1.msra.mxu0 %v6839
        %6909 = vmatprep.subr.mxu0 0.0
        %6910 = vmatpush1.msra.mxu0 %v6838
        %6911 = vmatprep.subr.mxu0 0.0
        %6912 = vmatpush1.msra.mxu0 %v6837
        %6913 = vmatprep.subr.mxu0 0.0
        %6914 = vmatpush1.msra.mxu0 %v6836
        %6915 = vmatprep.subr.mxu0 0.0
        %6916 = vmatpush1.msra.mxu0 %v6835
        %6917 = vmatprep.subr.mxu0 0.0
        %6918 = vmatpush1.msra.mxu0 %v6834
        %6919 = vmatprep.subr.mxu0 0.0
        %6920 = vmatpush1.msra.mxu0 %v6833
        %6921 = vmatprep.subr.mxu0 0.0
        %6922 = vmatpush1.msra.mxu0 %v6816
        %6923 = vmatprep.subr.mxu0 0.0
        %6924 = vmatpush1.msra.mxu0 %v6815
        %6925 = vmatprep.subr.mxu0 0.0
        %6926 = vmatpush1.msra.mxu0 %v6814
        %6927 = vmatprep.subr.mxu0 0.0
        %6928 = vmatpush1.msra.mxu0 %v6813
        %6929 = vmatprep.subr.mxu0 0.0
        %6930 = vmatpush1.msra.mxu0 %v6796
        %6931 = vmatprep.subr.mxu0 0.0
        %6932 = vmatpush1.msra.mxu0 %v6795
        %6933 = vmatprep.subr.mxu0 0.0
        %6934 = vmatpush1.msra.mxu0 %v6794
        %6935 = vmatprep.subr.mxu0 0.0
        %6936 = vmatpush1.msra.mxu0 %v6793
        %6937 = vmatprep.subr.mxu0 0.0
        %6938 = vmatpush2.msra.mxu0 %v6884
        %6939 = vmatprep.subr.mxu0 0.0
        %6940 = vmatpush2.msra.mxu0 %v6883
        %6941 = vmatprep.subr.mxu0 0.0
        %6942 = vmatpush2.msra.mxu0 %v6882
        %6943 = vmatprep.subr.mxu0 0.0
        %6944 = vmatpush2.msra.mxu0 %v6881
        %6945 = vmatprep.subr.mxu0 0.0
        %6946 = vmatpush2.msra.mxu0 %v6864
        %6947 = vmatprep.subr.mxu0 0.0
        %6948 = vmatpush2.msra.mxu0 %v6863
        %6949 = vmatprep.subr.mxu0 0.0
        %6950 = vmatpush2.msra.mxu0 %v6862
        %6951 = vmatprep.subr.mxu0 0.0
        %6952 = vmatpush2.msra.mxu0 %v6861
        %6953 = vmatprep.subr.mxu0 0.0
        %6954 = vmatpush2.msra.mxu0 %v6860
        %6955 = vmatprep.subr.mxu0 0.0
        %6956 = vmatpush2.msra.mxu0 %v6859
        %6957 = vmatprep.subr.mxu0 0.0
        %6958 = vmatpush2.msra.mxu0 %v6858
        %6959 = vmatprep.subr.mxu0 0.0
        %6960 = vmatpush2.msra.mxu0 %v6857
        %6961 = vmatprep.subr.mxu0 0.0
        %6962 = vmatpush2.msra.mxu0 %v6772
        %6963 = vmatprep.subr.mxu0 0.0
        %6964 = vmatpush2.msra.mxu0 %v6771
        %6965 = vmatprep.subr.mxu0 0.0
        %6966 = vmatpush2.msra.mxu0 %v6770
        %6967 = vmatprep.subr.mxu0 0.0
        %6968 = vmatpush2.msra.mxu0 %v6769
        %6969 = vmatprep.mubr.f32.mxu0 %v6110
        %6970 = vmatmul.mubr.f32.gmra.mxu0 %v6109
        %v6971 = vpop.f32.mrf.mxu0
        %v6972 = vadd.f32 %v6260, %v6971
        %v6973 = vpop.f32.mrf.mxu0
        %6974 = vmatprep.mubr.f32.mxu0 %v6113
        %6975 = vmatmul.mubr.f32.gmra.mxu0 %v6112
        %v6976 = vpop.f32.mrf.mxu0
        %v6977 = vadd.f32 %v6265, %v6976
        %v6978 = vpop.f32.mrf.mxu0
        %6979 = vmatprep.mubr.f32.mxu0 %v6116
        %6980 = vmatmul.mubr.f32.gmra.mxu0 %v6115
        %v6981 = vpop.f32.mrf.mxu0
        %v6982 = vadd.f32 %v6270, %v6981
        %v6983 = vpop.f32.mrf.mxu0
        %6984 = vmatprep.mubr.f32.mxu0 %v6119
        %6985 = vmatmul.mubr.f32.gmra.mxu0 %v6118
        %v6986 = vpop.f32.mrf.mxu0
        %v6987 = vadd.f32 %v6275, %v6986
        %v6988 = vpop.f32.mrf.mxu0
        %6989 = vdwg.mxu0
        %6990 = vmatprep.subr.mxu0 0.0
        %6991 = vmatpush1.msra.mxu0 0.0
        %6992 = vmatprep.subr.mxu0 0.0
        %6993 = vmatpush1.msra.mxu0 0.0
        %6994 = vmatprep.subr.mxu0 0.0
        %6995 = vmatpush1.msra.mxu0 0.0
        %6996 = vmatprep.subr.mxu0 0.0
        %6997 = vmatpush1.msra.mxu0 0.0
        %6998 = vmatprep.subr.mxu0 0.0
        %6999 = vmatpush1.msra.mxu0 0.0
        %7000 = vmatprep.subr.mxu0 0.0
        %7001 = vmatpush1.msra.mxu0 0.0
        %7002 = vmatprep.subr.mxu0 0.0
        %7003 = vmatpush1.msra.mxu0 0.0
        %7004 = vmatprep.subr.mxu0 0.0
        %7005 = vmatpush1.msra.mxu0 0.0
        %7006 = vmatprep.subr.mxu0 0.0
        %7007 = vmatpush1.msra.mxu0 0.0
        %7008 = vmatprep.subr.mxu0 0.0
        %7009 = vmatpush1.msra.mxu0 0.0
        %7010 = vmatprep.subr.mxu0 0.0
        %7011 = vmatpush1.msra.mxu0 0.0
        %7012 = vmatprep.subr.mxu0 0.0
        %7013 = vmatpush1.msra.mxu0 0.0
        %7014 = vmatprep.subr.mxu0 0.0
        %7015 = vmatpush1.msra.mxu0 %v6904
        %7016 = vmatprep.subr.mxu0 0.0
        %7017 = vmatpush1.msra.mxu0 %v6903
        %7018 = vmatprep.subr.mxu0 0.0
        %7019 = vmatpush1.msra.mxu0 %v6902
        %7020 = vmatprep.subr.mxu0 0.0
        %7021 = vmatpush1.msra.mxu0 %v6901
        %7022 = vmatprep.subr.mxu0 0.0
        %7023 = vmatpush2.msra.mxu0 0.0
        %7024 = vmatprep.subr.mxu0 0.0
        %7025 = vmatpush2.msra.mxu0 0.0
        %7026 = vmatprep.subr.mxu0 0.0
        %7027 = vmatpush2.msra.mxu0 0.0
        %7028 = vmatprep.subr.mxu0 0.0
        %7029 = vmatpush2.msra.mxu0 0.0
        %7030 = vmatprep.subr.mxu0 0.0
        %7031 = vmatpush2.msra.mxu0 0.0
        %7032 = vmatprep.subr.mxu0 0.0
        %7033 = vmatpush2.msra.mxu0 0.0
        %7034 = vmatprep.subr.mxu0 0.0
        %7035 = vmatpush2.msra.mxu0 0.0
        %7036 = vmatprep.subr.mxu0 0.0
        %7037 = vmatpush2.msra.mxu0 0.0
        %7038 = vmatprep.subr.mxu0 0.0
        %7039 = vmatpush2.msra.mxu0 0.0
        %7040 = vmatprep.subr.mxu0 0.0
        %7041 = vmatpush2.msra.mxu0 0.0
        %7042 = vmatprep.subr.mxu0 0.0
        %7043 = vmatpush2.msra.mxu0 0.0
        %7044 = vmatprep.subr.mxu0 0.0
        %7045 = vmatpush2.msra.mxu0 0.0
        %7046 = vmatprep.subr.mxu0 0.0
        %7047 = vmatpush2.msra.mxu0 0.0
        %7048 = vmatprep.subr.mxu0 0.0
        %7049 = vmatpush2.msra.mxu0 0.0
        %7050 = vmatprep.subr.mxu0 0.0
        %7051 = vmatpush2.msra.mxu0 0.0
        %7052 = vmatprep.subr.mxu0 0.0
        %7053 = vmatpush2.msra.mxu0 0.0
        %7054 = vmatprep.mubr.f32.mxu0 0.0
        %7055 = vmatmul.mubr.f32.gmra.mxu0 %v6278
        %v7056 = vpop.f32.mrf.mxu0
        %v7057 = vadd.f32 %v6972, %v7056
        %v7058 = vpop.f32.mrf.mxu0
        %7059 = vmatprep.mubr.f32.mxu0 0.0
        %7060 = vmatmul.mubr.f32.gmra.mxu0 %v6281
        %v7061 = vpop.f32.mrf.mxu0
        %v7062 = vadd.f32 %v6977, %v7061
        %v7063 = vpop.f32.mrf.mxu0
        %7064 = vmatprep.mubr.f32.mxu0 0.0
        %7065 = vmatmul.mubr.f32.gmra.mxu0 %v6284
        %v7066 = vpop.f32.mrf.mxu0
        %v7067 = vadd.f32 %v6982, %v7066
        %v7068 = vpop.f32.mrf.mxu0
        %7069 = vmatprep.mubr.f32.mxu0 0.0
        %7070 = vmatmul.mubr.f32.gmra.mxu0 %v6287
        %v7071 = vpop.f32.mrf.mxu0
        %v7072 = vadd.f32 %v6987, %v7071
        %v7073 = vpop.f32.mrf.mxu0
        %7074 = vdwg.mxu0
        %v7075 = vmax.f32 %v7057, 0.0
        %v7076 = vmax.f32 %v7062, 0.0
        %v7077 = vmax.f32 %v7067, 0.0
        %v7078 = vmax.f32 %v7072, 0.0
        %v7079 = vadd.f32 %v7075, %v6463
        %v7080 = vadd.f32 %v7076, %v6464
        %v7081 = vadd.f32 %v7077, %v6465
        %v7082 = vadd.f32 %v7078, %v6466
        %7087 = vrot.lane.b32.xlu0 %v7079, 126
        %v7088 = vpop.permute.xlu0 %7087
        %7089 = vrot.lane.b32.xlu0 %v7080, 126
        %v7090 = vpop.permute.xlu0 %7089
        %7091 = vrot.lane.b32.xlu0 %v7081, 126
        %v7092 = vpop.permute.xlu0 %7091
        %7093 = vrot.lane.b32.xlu0 %v7082, 126
        %v7094 = vpop.permute.xlu0 %7093
        %v7099 = vmax.f32 %v7079, %v7088
        %v7100 = vmax.f32 %v7080, %v7090
        %v7101 = vmax.f32 %v7081, %v7092
        %v7102 = vmax.f32 %v7082, %v7094
        %7107 = vrot.lane.b32.xlu0 %v7099, 124
        %v7108 = vpop.permute.xlu0 %7107
        %7109 = vrot.lane.b32.xlu0 %v7100, 124
        %v7110 = vpop.permute.xlu0 %7109
        %7111 = vrot.lane.b32.xlu0 %v7101, 124
        %v7112 = vpop.permute.xlu0 %7111
        %7113 = vrot.lane.b32.xlu0 %v7102, 124
        %v7114 = vpop.permute.xlu0 %7113
        %v7119 = vmax.f32 %v7099, %v7108
        %v7120 = vmax.f32 %v7100, %v7110
        %v7121 = vmax.f32 %v7101, %v7112
        %v7122 = vmax.f32 %v7102, %v7114
        %v7123 = vld [vmem:[%s1 + $0x1f8] sm:$0xff]
        %v7124 = vld [vmem:[%s1 + $0x210] sm:$0xff]
        %v7125 = vld [vmem:[%s1 + $0x228] sm:$0xff]
        %v7126 = vld [vmem:[%s1 + $0x240] sm:$0xff]
        %v7127 = vld [vmem:[%s2 + $0xa8] sm:$0xff]
        %v7128 = vld [vmem:[%s2 + $0xb0] sm:$0xff]
        %v7129 = vld [vmem:[%s2 + $0xb8] sm:$0xff]
        %v7130 = vld [vmem:[%s2 + $0xc0] sm:$0xff]
        %7132 = vset.pattern.permute.xlu0 0
        %7133 = vperm.xlu0 %7132, %v7127
        %v7134 = vpop.permute.xlu0 %7133
        %7137 = vset.pattern.permute.xlu0 0
        %7138 = vperm.xlu0 %7137, %v7128
        %v7139 = vpop.permute.xlu0 %7138
        %7142 = vset.pattern.permute.xlu0 0
        %7143 = vperm.xlu0 %7142, %v7129
        %v7144 = vpop.permute.xlu0 %7143
        %7147 = vset.pattern.permute.xlu0 0
        %7148 = vperm.xlu0 %7147, %v7130
        %v7149 = vpop.permute.xlu0 %7148
        %v7152 = vsel %vm4585, %v7123, 0
        %v7155 = vsel %vm4585, %v7124, 0
        %v7158 = vsel %vm4585, %v7125, 0
        %v7161 = vsel %vm4585, %v7126, 0
        %7163 = vmatprep.subr.mxu0 0.0
        %7164 = vmatpush1.msra.mxu0 0.0
        %7165 = vmatprep.subr.mxu0 0.0
        %7166 = vmatpush1.msra.mxu0 0.0
        %7167 = vmatprep.subr.mxu0 0.0
        %7168 = vmatpush1.msra.mxu0 0.0
        %7169 = vmatprep.subr.mxu0 0.0
        %7170 = vmatpush1.msra.mxu0 0.0
        %7171 = vmatprep.subr.mxu0 0.0
        %7172 = vmatpush1.msra.mxu0 0.0
        %7173 = vmatprep.subr.mxu0 0.0
        %7174 = vmatpush1.msra.mxu0 0.0
        %7175 = vmatprep.subr.mxu0 0.0
        %7176 = vmatpush1.msra.mxu0 0.0
        %7177 = vmatprep.subr.mxu0 0.0
        %7178 = vmatpush1.msra.mxu0 0.0
        %7179 = vmatprep.subr.mxu0 0.0
        %7180 = vmatpush1.msra.mxu0 0.0
        %7181 = vmatprep.subr.mxu0 0.0
        %7182 = vmatpush1.msra.mxu0 0.0
        %7183 = vmatprep.subr.mxu0 0.0
        %7184 = vmatpush1.msra.mxu0 0.0
        %7185 = vmatprep.subr.mxu0 0.0
        %7186 = vmatpush1.msra.mxu0 0.0
        %7187 = vmatprep.subr.mxu0 0.0
        %7188 = vmatpush1.msra.mxu0 %v7122
        %7189 = vmatprep.subr.mxu0 0.0
        %7190 = vmatpush1.msra.mxu0 %v7121
        %7191 = vmatprep.subr.mxu0 0.0
        %7192 = vmatpush1.msra.mxu0 %v7120
        %7193 = vmatprep.subr.mxu0 0.0
        %7194 = vmatpush1.msra.mxu0 %v7119
        %7195 = vmatprep.subr.mxu0 0.0
        %7196 = vmatpush2.msra.mxu0 0.0
        %7197 = vmatprep.subr.mxu0 0.0
        %7198 = vmatpush2.msra.mxu0 0.0
        %7199 = vmatprep.subr.mxu0 0.0
        %7200 = vmatpush2.msra.mxu0 0.0
        %7201 = vmatprep.subr.mxu0 0.0
        %7202 = vmatpush2.msra.mxu0 0.0
        %7203 = vmatprep.subr.mxu0 0.0
        %7204 = vmatpush2.msra.mxu0 0.0
        %7205 = vmatprep.subr.mxu0 0.0
        %7206 = vmatpush2.msra.mxu0 0.0
        %7207 = vmatprep.subr.mxu0 0.0
        %7208 = vmatpush2.msra.mxu0 0.0
        %7209 = vmatprep.subr.mxu0 0.0
        %7210 = vmatpush2.msra.mxu0 0.0
        %7211 = vmatprep.subr.mxu0 0.0
        %7212 = vmatpush2.msra.mxu0 0.0
        %7213 = vmatprep.subr.mxu0 0.0
        %7214 = vmatpush2.msra.mxu0 0.0
        %7215 = vmatprep.subr.mxu0 0.0
        %7216 = vmatpush2.msra.mxu0 0.0
        %7217 = vmatprep.subr.mxu0 0.0
        %7218 = vmatpush2.msra.mxu0 0.0
        %7219 = vmatprep.subr.mxu0 0.0
        %7220 = vmatpush2.msra.mxu0 0.0
        %7221 = vmatprep.subr.mxu0 0.0
        %7222 = vmatpush2.msra.mxu0 0.0
        %7223 = vmatprep.subr.mxu0 0.0
        %7224 = vmatpush2.msra.mxu0 0.0
        %7225 = vmatprep.subr.mxu0 0.0
        %7226 = vmatpush2.msra.mxu0 0.0
        %7227 = vmatprep.mubr.f32.mxu0 0.0
        %7228 = vmatmul.mubr.f32.gmra.mxu0 %v7152
        %v7229 = vpop.f32.mrf.mxu0
        %v7230 = vadd.f32 %v7134, %v7229
        %v7231 = vpop.f32.mrf.mxu0
        %7232 = vmatprep.mubr.f32.mxu0 0.0
        %7233 = vmatmul.mubr.f32.gmra.mxu0 %v7155
        %v7234 = vpop.f32.mrf.mxu0
        %v7235 = vadd.f32 %v7139, %v7234
        %v7236 = vpop.f32.mrf.mxu0
        %7237 = vmatprep.mubr.f32.mxu0 0.0
        %7238 = vmatmul.mubr.f32.gmra.mxu0 %v7158
        %v7239 = vpop.f32.mrf.mxu0
        %v7240 = vadd.f32 %v7144, %v7239
        %v7241 = vpop.f32.mrf.mxu0
        %7242 = vmatprep.mubr.f32.mxu0 0.0
        %7243 = vmatmul.mubr.f32.gmra.mxu0 %v7161
        %v7244 = vpop.f32.mrf.mxu0
        %v7245 = vadd.f32 %v7149, %v7244
        %v7246 = vpop.f32.mrf.mxu0
        %7247 = vdwg.mxu0
        %v7248 = vmax.f32 %v7230, 0.0
        %v7249 = vmax.f32 %v7235, 0.0
        %v7250 = vmax.f32 %v7240, 0.0
        %v7251 = vmax.f32 %v7245, 0.0
        %v7252 = vld [vmem:[%s3] sm:$0xff]
        %v7253 = vld [vmem:[%s3 + $0x8] sm:$0xff]
        %v7254 = vld [vmem:[%s3 + $0x10] sm:$0xff]
        %v7255 = vld [vmem:[%s3 + $0x18] sm:$0xff]
        %v7256 = vld [vmem:[%s3 + $0x20] sm:$0x1]
        %v7257 = vld [vmem:[%s3 + $0x28] sm:$0xff]
        %v7258 = vld [vmem:[%s3 + $0x30] sm:$0xff]
        %v7259 = vld [vmem:[%s3 + $0x38] sm:$0xff]
        %v7260 = vld [vmem:[%s3 + $0x40] sm:$0xff]
        %v7261 = vld [vmem:[%s3 + $0x48] sm:$0xff]
        %v7262 = vld [vmem:[%s3 + $0x50] sm:$0xff]
        %v7263 = vld [vmem:[%s3 + $0x58] sm:$0xff]
        %v7264 = vld [vmem:[%s3 + $0x60] sm:$0xff]
        %v7265 = vld [vmem:[%s3 + $0x68] sm:$0xff]
        %v7266 = vld [vmem:[%s3 + $0x70] sm:$0xff]
        %v7267 = vld [vmem:[%s3 + $0x78] sm:$0xff]
        %v7268 = vld [vmem:[%s3 + $0x80] sm:$0xff]
        %v7269 = vld [vmem:[%s3 + $0x88] sm:$0xff]
        %v7270 = vld [vmem:[%s3 + $0x90] sm:$0xff]
        %v7271 = vld [vmem:[%s3 + $0x98] sm:$0xff]
        %v7272 = vld [vmem:[%s3 + $0xa0] sm:$0xff]
        %v7273 = vld [vmem:[%s3 + $0xa8] sm:$0x1]
        %v7274 = vlaneseq
        %v7275 = vshrl.u32 %v7274, 7
        %v7276 = vsub.s32 0, %v7275
        %v7277 = vrot.slane %v7256, %v7276
        %7278 = vxpose.xlu0.b32.start [1/16] %v7248, 128
        %7279 = vxpose.xlu0.b32.cont [2/16] %v7249, 128
        %7280 = vxpose.xlu0.b32.cont [3/16] %v7250, 128
        %7281 = vxpose.xlu0.b32.cont [4/16] %v7251, 128
        %7282 = vxpose.xlu0.b32.cont [5/16] 0.0, 128
        %7283 = vxpose.xlu0.b32.cont [6/16] 0.0, 128
        %7284 = vxpose.xlu0.b32.cont [7/16] 0.0, 128
        %7285 = vxpose.xlu0.b32.cont [8/16] 0.0, 128
        %7286 = vxpose.xlu0.b32.cont [9/16] 0.0, 128
        %7287 = vxpose.xlu0.b32.cont [10/16] 0.0, 128
        %7288 = vxpose.xlu0.b32.cont [11/16] 0.0, 128
        %7289 = vxpose.xlu0.b32.cont [12/16] 0.0, 128
        %7290 = vxpose.xlu0.b32.cont [13/16] 0.0, 128
        %7291 = vxpose.xlu0.b32.cont [14/16] 0.0, 128
        %7292 = vxpose.xlu0.b32.cont [15/16] 0.0, 128
        %7293 = vxpose.xlu0.b32.end [16/16] 0.0, 128
        %v7294 = vpop.trf.xlu0
        %v7295 = vpop.trf.xlu0
        %v7296 = vpop.trf.xlu0
        %v7297 = vpop.trf.xlu0
        %v7298 = vpop.trf.xlu0
        %v7299 = vpop.trf.xlu0
        %v7300 = vpop.trf.xlu0
        %v7301 = vpop.trf.xlu0
        %v7302 = vpop.trf.xlu0
        %v7303 = vpop.trf.xlu0
        %v7304 = vpop.trf.xlu0
        %v7305 = vpop.trf.xlu0
        %v7306 = vpop.trf.xlu0
        %v7307 = vpop.trf.xlu0
        %v7308 = vpop.trf.xlu0
        %v7309 = vpop.trf.xlu0
        %v7311 = vsel %vm4585, %v7294, 0
        %7313 = vmatprep.subr.mxu0 0.0
        %7314 = vmatpush1.msra.mxu0 0.0
        %7315 = vmatprep.subr.mxu0 0.0
        %7316 = vmatpush1.msra.mxu0 0.0
        %7317 = vmatprep.subr.mxu0 0.0
        %7318 = vmatpush1.msra.mxu0 0.0
        %7319 = vmatprep.subr.mxu0 0.0
        %7320 = vmatpush1.msra.mxu0 0.0
        %7321 = vmatprep.subr.mxu0 0.0
        %7322 = vmatpush1.msra.mxu0 0.0
        %7323 = vmatprep.subr.mxu0 0.0
        %7324 = vmatpush1.msra.mxu0 0.0
        %7325 = vmatprep.subr.mxu0 0.0
        %7326 = vmatpush1.msra.mxu0 0.0
        %7327 = vmatprep.subr.mxu0 0.0
        %7328 = vmatpush1.msra.mxu0 0.0
        %7329 = vmatprep.subr.mxu0 0.0
        %7330 = vmatpush1.msra.mxu0 0.0
        %7331 = vmatprep.subr.mxu0 0.0
        %7332 = vmatpush1.msra.mxu0 0.0
        %7333 = vmatprep.subr.mxu0 0.0
        %7334 = vmatpush1.msra.mxu0 0.0
        %7335 = vmatprep.subr.mxu0 0.0
        %7336 = vmatpush1.msra.mxu0 0.0
        %7337 = vmatprep.subr.mxu0 0.0
        %7338 = vmatpush1.msra.mxu0 %v7255
        %7339 = vmatprep.subr.mxu0 0.0
        %7340 = vmatpush1.msra.mxu0 %v7254
        %7341 = vmatprep.subr.mxu0 0.0
        %7342 = vmatpush1.msra.mxu0 %v7253
        %7343 = vmatprep.subr.mxu0 0.0
        %7344 = vmatpush1.msra.mxu0 %v7252
        %7345 = vmatprep.subr.mxu0 0.0
        %7346 = vmatpush2.msra.mxu0 0.0
        %7347 = vmatprep.subr.mxu0 0.0
        %7348 = vmatpush2.msra.mxu0 0.0
        %7349 = vmatprep.subr.mxu0 0.0
        %7350 = vmatpush2.msra.mxu0 0.0
        %7351 = vmatprep.subr.mxu0 0.0
        %7352 = vmatpush2.msra.mxu0 0.0
        %7353 = vmatprep.subr.mxu0 0.0
        %7354 = vmatpush2.msra.mxu0 0.0
        %7355 = vmatprep.subr.mxu0 0.0
        %7356 = vmatpush2.msra.mxu0 0.0
        %7357 = vmatprep.subr.mxu0 0.0
        %7358 = vmatpush2.msra.mxu0 0.0
        %7359 = vmatprep.subr.mxu0 0.0
        %7360 = vmatpush2.msra.mxu0 0.0
        %7361 = vmatprep.subr.mxu0 0.0
        %7362 = vmatpush2.msra.mxu0 0.0
        %7363 = vmatprep.subr.mxu0 0.0
        %7364 = vmatpush2.msra.mxu0 0.0
        %7365 = vmatprep.subr.mxu0 0.0
        %7366 = vmatpush2.msra.mxu0 0.0
        %7367 = vmatprep.subr.mxu0 0.0
        %7368 = vmatpush2.msra.mxu0 0.0
        %7369 = vmatprep.subr.mxu0 0.0
        %7370 = vmatpush2.msra.mxu0 0.0
        %7371 = vmatprep.subr.mxu0 0.0
        %7372 = vmatpush2.msra.mxu0 0.0
        %7373 = vmatprep.subr.mxu0 0.0
        %7374 = vmatpush2.msra.mxu0 0.0
        %7375 = vmatprep.subr.mxu0 0.0
        %7376 = vmatpush2.msra.mxu0 0.0
        %7377 = vmatprep.mubr.f32.mxu0 0.0
        %7378 = vmatmul.mubr.f32.gmra.mxu0 %v7311
        %v7379 = vpop.f32.mrf.mxu0
        %v7380 = vadd.f32 %v7277, %v7379
        %v7381 = vpop.f32.mrf.mxu0
        %7382 = vdwg.mxu0
        %v7383 = vmax.f32 %v7380, 0.0
        %v7384 = vlaneseq
        %v7385 = vshrl.u32 %v7384, 7
        %v7386 = vsub.s32 0, %v7385
        %v7387 = vrot.slane %v7273, %v7386
        %7388 = vmatprep.subr.mxu0 0.0
        %7389 = vmatpush1.msra.mxu0 %v7272
        %7390 = vmatprep.subr.mxu0 0.0
        %7391 = vmatpush1.msra.mxu0 %v7271
        %7392 = vmatprep.subr.mxu0 0.0
        %7393 = vmatpush1.msra.mxu0 %v7270
        %7394 = vmatprep.subr.mxu0 0.0
        %7395 = vmatpush1.msra.mxu0 %v7269
        %7396 = vmatprep.subr.mxu0 0.0
        %7397 = vmatpush1.msra.mxu0 %v7268
        %7398 = vmatprep.subr.mxu0 0.0
        %7399 = vmatpush1.msra.mxu0 %v7267
        %7400 = vmatprep.subr.mxu0 0.0
        %7401 = vmatpush1.msra.mxu0 %v7266
        %7402 = vmatprep.subr.mxu0 0.0
        %7403 = vmatpush1.msra.mxu0 %v7265
        %7404 = vmatprep.subr.mxu0 0.0
        %7405 = vmatpush1.msra.mxu0 %v7264
        %7406 = vmatprep.subr.mxu0 0.0
        %7407 = vmatpush1.msra.mxu0 %v7263
        %7408 = vmatprep.subr.mxu0 0.0
        %7409 = vmatpush1.msra.mxu0 %v7262
        %7410 = vmatprep.subr.mxu0 0.0
        %7411 = vmatpush1.msra.mxu0 %v7261
        %7412 = vmatprep.subr.mxu0 0.0
        %7413 = vmatpush1.msra.mxu0 %v7260
        %7414 = vmatprep.subr.mxu0 0.0
        %7415 = vmatpush1.msra.mxu0 %v7259
        %7416 = vmatprep.subr.mxu0 0.0
        %7417 = vmatpush1.msra.mxu0 %v7258
        %7418 = vmatprep.subr.mxu0 0.0
        %7419 = vmatpush1.msra.mxu0 %v7257
        %7420 = vmatprep.subr.mxu0 0.0
        %7421 = vmatpush2.msra.mxu0 0.0
        %7422 = vmatprep.subr.mxu0 0.0
        %7423 = vmatpush2.msra.mxu0 0.0
        %7424 = vmatprep.subr.mxu0 0.0
        %7425 = vmatpush2.msra.mxu0 0.0
        %7426 = vmatprep.subr.mxu0 0.0
        %7427 = vmatpush2.msra.mxu0 0.0
        %7428 = vmatprep.subr.mxu0 0.0
        %7429 = vmatpush2.msra.mxu0 0.0
        %7430 = vmatprep.subr.mxu0 0.0
        %7431 = vmatpush2.msra.mxu0 0.0
        %7432 = vmatprep.subr.mxu0 0.0
        %7433 = vmatpush2.msra.mxu0 0.0
        %7434 = vmatprep.subr.mxu0 0.0
        %7435 = vmatpush2.msra.mxu0 0.0
        %7436 = vmatprep.subr.mxu0 0.0
        %7437 = vmatpush2.msra.mxu0 0.0
        %7438 = vmatprep.subr.mxu0 0.0
        %7439 = vmatpush2.msra.mxu0 0.0
        %7440 = vmatprep.subr.mxu0 0.0
        %7441 = vmatpush2.msra.mxu0 0.0
        %7442 = vmatprep.subr.mxu0 0.0
        %7443 = vmatpush2.msra.mxu0 0.0
        %7444 = vmatprep.subr.mxu0 0.0
        %7445 = vmatpush2.msra.mxu0 0.0
        %7446 = vmatprep.subr.mxu0 0.0
        %7447 = vmatpush2.msra.mxu0 0.0
        %7448 = vmatprep.subr.mxu0 0.0
        %7449 = vmatpush2.msra.mxu0 0.0
        %7450 = vmatprep.subr.mxu0 0.0
        %7451 = vmatpush2.msra.mxu0 0.0
        %7452 = vmatprep.mubr.f32.mxu0 0.0
        %7453 = vmatmul.mubr.f32.gmra.mxu0 %v7383
        %v7454 = vpop.f32.mrf.mxu0
        %v7455 = vadd.f32 %v7387, %v7454
        %v7456 = vpop.f32.mrf.mxu0
        %7457 = vdwg.mxu0
        %7458 = vst [vmem:[%s188] sm:$0x3] %v7455
        %s7459 = sand.u32 %s115, 1
        %s7460 = scalar_lea.sflag [#allocation3], %s7459
        %s7461 = sand.u32 %s115, 1
        %s7462 = smul.addr %s7461, 2
        %s7463 = scalar_lea.vmem [#allocation2], %s7462
        // Predicated region
        $region37: #{forward.1} parent=35 // pred_check
          %p7464 = pneg %p125
        $region38: #{forward.1} parent=35 // pred_check_branch
          %7466 = sbr.rel (%p7464) target = $region40
        $region39: #{forward.1} parent=35 // pred_region
          %s7468 = ssub.s32 32, 32
          %7469 = vsyncadd %s7460, %s7468
          %s7470 = smul.addr %s18, 32
          %s7471 = scalar_lea.hbm %s4, %s7470
          %s7473 = sshll.u32 %s7463, 4
          %s7474 = int_to_ptr.vmem [resolvable:$true] %s7473
          %7476 = dma.vmem_to_hbm [thread:$0]  %s7474, 32, %s7471, %s7460
        $region40: #{forward.1} parent=35 // pred_fallthru
          _
      $region36: #{forward.1} parent=5 // pred_fallthru
        _
      %p7477 = scmp.le.s32.totalorder 2, %s13
      // Predicated region
      $region41: #{forward.1} parent=5 // pred_check
        %p7478 = pneg %p7477
      $region42: #{forward.1} parent=5 // pred_check_branch
        %7480 = sbr.rel (%p7478) target = $region44
      $region43: #{forward.1} parent=5 // pred_region
        %s7481 = ssub.s32 %s13, 2
        // Predicated region
        $region45: #{forward.1} parent=43 // pred_check
          %p7482 = pneg %p131
        $region46: #{forward.1} parent=43 // pred_check_branch
          %7484 = sbr.rel (%p7482) target = $region48
        $region47: #{forward.1} parent=43 // pred_region
          %s7485 = sand.u32 %s116, 1
          %s7486 = scalar_lea.sflag [#allocation3], %s7485
          %s7487 = sand.u32 %s116, 1
          %s7488 = smul.addr %s7487, 2
          %s7489 = scalar_lea.vmem [#allocation2], %s7488
          %7490 = dma.done %s7486, 32
        $region48: #{forward.1} parent=43 // pred_fallthru
          _
      $region44: #{forward.1} parent=5 // pred_fallthru
        _
    $region6: #{forward.1} parent=1 // loop_footer
      %s17 = sadd.s32 1, %s13
    $region7: #{forward.1} parent=1 // loop_footer_branch
      %12 = sbr.rel target = $region3
    $region8: #{forward.1} parent=1 // loop_exit
      _
    %7491 = vsyncpa [#allocation3], 1
    %s7492 = scalar_lea.sflag [#allocation3], 1
    %7493 = vsyncpa %s7492, 1

</llo_original>
